<compile_context>
chip_gen: v7x
topology: tpu7x:2x2x1
jax: 0.10.0
libtpu: 0.0.40
codegen_flags: <defaults>
</compile_context>

<pallas_src>
import functools

import jax
import jax.numpy as jnp
from jax.experimental import pallas as pl
from jax.experimental.pallas import tpu as pltpu


def _round_up(n, m):
    return -(-n // m) * m


# ----------------------------------------------------------------------------
# Pallas kernels
# ----------------------------------------------------------------------------
def _conv1_relu_pool_kernel(p_ref, w_ref, b_ref, o_ref, *, tr):
    """conv1 (im2col) + bias + ReLU + 2x2/2 max-pool for one row tile.

    p_ref: (4*tr, 25)  four pooling-corner patch slabs stacked along rows
    w_ref: (25, 6), b_ref: (1, 6), o_ref: (tr, 6)
    """
    # ONE wide MXU matmul for all four pooling corners (review item 1).
    acc = jnp.dot(p_ref[...], w_ref[...], preferred_element_type=jnp.float32)
    # Corner max via 8-aligned static row slices (tr is a multiple of 8).
    m = jnp.maximum(jnp.maximum(acc[0:tr], acc[tr:2 * tr]),
                    jnp.maximum(acc[2 * tr:3 * tr], acc[3 * tr:4 * tr]))
    # Per-channel bias + monotonic ReLU commute with the corner max.
    o_ref[...] = jnp.maximum(m + b_ref[...], 0.0).astype(o_ref.dtype)


def _conv2_pool_mlp_kernel(p_ref, w2_ref, b2_ref, w1_ref, b1_ref,
                           wf2_ref, bf2_ref, wf3_ref, bf3_ref, o_ref, *, tb):
    """Fused conv2 + bias + ReLU + pool + fc1 + ReLU + fc2 + ReLU + fc3.

    p_ref : (4*tb, 3750)  per-batch-row flattened conv2 patches, four corners
                          stacked along rows
    w2_ref: (3750, 400)   block-diagonal conv2 weight -> output already in
                          (h, w, c) flattened order, so fc1 needs no reshape
    b2_ref: (1, 400) tiled conv2 bias; fc weights padded to 128 lanes.
    o_ref : (tb, 10)
    """
    acc = jnp.dot(p_ref[...], w2_ref[...], preferred_element_type=jnp.float32)
    m = jnp.maximum(jnp.maximum(acc[0:tb], acc[tb:2 * tb]),
                    jnp.maximum(acc[2 * tb:3 * tb], acc[3 * tb:4 * tb]))
    y = jnp.maximum(m + b2_ref[...], 0.0)                      # (tb, 400)
    h = jnp.dot(y, w1_ref[...], preferred_element_type=jnp.float32)
    h = jnp.maximum(h + b1_ref[...], 0.0)                      # (tb, 128)
    h = jnp.dot(h, wf2_ref[...], preferred_element_type=jnp.float32)
    h = jnp.maximum(h + bf2_ref[...], 0.0)                     # (tb, 128)
    h = jnp.dot(h, wf3_ref[...], preferred_element_type=jnp.float32)
    o_ref[...] = (h + bf3_ref[...]).astype(o_ref.dtype)        # (tb, 10)


# ----------------------------------------------------------------------------
# pallas_call wrappers
# ----------------------------------------------------------------------------
def conv1_relu_pool(patches, w, b, *, tr, n_tiles, r_pad):
    """patches: (n_tiles*4*tr, 25) tile-interleaved corner rows -> (r_pad, 6)."""
    k = patches.shape[1]
    oc = w.shape[1]
    kernel = functools.partial(_conv1_relu_pool_kernel, tr=tr)
    return pl.pallas_call(
        kernel,
        out_shape=jax.ShapeDtypeStruct((r_pad, oc), jnp.float32),
        grid=(n_tiles,),
        in_specs=[
            pl.BlockSpec((4 * tr, k), lambda t: (t, 0)),
            pl.BlockSpec(w.shape, lambda t: (0, 0)),
            pl.BlockSpec(b.shape, lambda t: (0, 0)),
        ],
        out_specs=pl.BlockSpec((tr, oc), lambda t: (t, 0)),
        compiler_params=pltpu.CompilerParams(
            dimension_semantics=("parallel",)),
    )(patches, w, b)


def conv2_pool_mlp(patches, prepared, *, tb, n_tiles, b_pad):
    """patches: (n_tiles*4*tb, 3750) tile-interleaved corner rows -> (b_pad, 10)."""
    k = patches.shape[1]
    kernel = functools.partial(_conv2_pool_mlp_kernel, tb=tb)
    weights = (prepared["w2bd"], prepared["b2t"],
               prepared["fw1"], prepared["fb1"],
               prepared["fw2"], prepared["fb2"],
               prepared["fw3"], prepared["fb3"])
    const_specs = [pl.BlockSpec(a.shape, lambda t: (0, 0)) for a in weights]
    return pl.pallas_call(
        kernel,
        out_shape=jax.ShapeDtypeStruct((b_pad, 10), jnp.float32),
        grid=(n_tiles,),
        in_specs=[pl.BlockSpec((4 * tb, k), lambda t: (t, 0))] + const_specs,
        out_specs=pl.BlockSpec((tb, 10), lambda t: (t, 0)),
        compiler_params=pltpu.CompilerParams(
            dimension_semantics=("parallel",),
            # block-diag conv2 weight (~6 MiB) + patch double buffers: set an
            # explicit budget that fits v7x's 64 MiB physical VMEM and clears
            # v5e's 16 MiB scoped default (review VMEM item).
            vmem_limit_bytes=48 * 1024 * 1024),
    )(patches, *weights)


# ----------------------------------------------------------------------------
# Plain-JAX glue: pooled im2col corner extraction (tiny tensors)
# ----------------------------------------------------------------------------
def _pool_corner_patches(x, kh, kw):
    """im2col for a stride-1 conv followed by a 2x2/2 max-pool.

    x: (B, H, W, C), already spatially padded for the conv.
    Returns (4, B, ohp, owp, C, kh*kw): axis 0 is the pooling corner (i*2+j),
    last index is di*kw+dj (matching weight.reshape(OC, -1) column order).
    Built from ONE full patch tensor (25 slices) + one reshape/transpose.
    """
    B, H, W, C = x.shape
    oh, ow = H - kh + 1, W - kw + 1
    assert oh % 2 == 0 and ow % 2 == 0, (
        "fused corner-max pooling assumes even conv output height/width")
    cols = [x[:, di:di + oh, dj:dj + ow, :]
            for di in range(kh) for dj in range(kw)]
    p = jnp.stack(cols, axis=-1)                       # (B, oh, ow, C, kh*kw)
    ohp, owp = oh // 2, ow // 2
    p = p.reshape(B, ohp, 2, owp, 2, C, kh * kw)
    p = p.transpose(2, 4, 0, 1, 3, 5, 6)               # (2, 2, B, ohp, owp, C, kk)
    return p.reshape(4, B, ohp, owp, C, kh * kw)


def _interleave_tiles(corners, tile, n_pad):
    """corners: (4, R, K) -> (n_tiles*4*tile, K).

    Rows are regrouped so grid tile t holds the four corner slabs for rows
    [t*tile, (t+1)*tile) contiguously: row = t*(4*tile) + corner*tile + i.
    Rows R..n_pad-1 are zero padding (discarded after the kernel).
    """
    _, r, k = corners.shape
    c = jnp.pad(corners, ((0, 0), (0, n_pad - r), (0, 0)))
    n_tiles = n_pad // tile
    c = c.reshape(4, n_tiles, tile, k).transpose(1, 0, 2, 3)
    return c.reshape(n_tiles * 4 * tile, k)


# ----------------------------------------------------------------------------
# Parameters
# ----------------------------------------------------------------------------
def init_params(key):
    """PyTorch-layout LeNet parameters (same layout as the nn.Module)."""
    ks = jax.random.split(key, 10)
    scale = 0.1
    return {
        "conv1_w": scale * jax.random.normal(ks[0], (6, 1, 5, 5), jnp.float32),
        "conv1_b": scale * jax.random.normal(ks[1], (6,), jnp.float32),
        "conv2_w": scale * jax.random.normal(ks[2], (16, 6, 5, 5), jnp.float32),
        "conv2_b": scale * jax.random.normal(ks[3], (16,), jnp.float32),
        "fc1_w": scale * jax.random.normal(ks[4], (120, 400), jnp.float32),
        "fc1_b": scale * jax.random.normal(ks[5], (120,), jnp.float32),
        "fc2_w": scale * jax.random.normal(ks[6], (84, 120), jnp.float32),
        "fc2_b": scale * jax.random.normal(ks[7], (84,), jnp.float32),
        "fc3_w": scale * jax.random.normal(ks[8], (10, 84), jnp.float32),
        "fc3_b": scale * jax.random.normal(ks[9], (10,), jnp.float32),
    }


def prepare_params(params):
    """One-time conversion of PyTorch-layout params to kernel layouts."""
    # conv1: (6, 1, 5, 5) -> (25, 6), row = di*5 + dj.
    w1m = params["conv1_w"].reshape(6, 25).T
    b1 = params["conv1_b"].reshape(1, 6)

    # conv2: (16, 6, 5, 5) -> (150, 16), row = cin*25 + di*5 + dj, then expand
    # to a (3750, 400) block-diagonal matrix: row r*150+k, col r*16+oc, so the
    # conv2 matmul output is already the (h, w, c)-flattened fc1 input.
    w2m = params["conv2_w"].reshape(16, 150).T
    eye25 = jnp.eye(25, dtype=w2m.dtype)
    w2bd = (eye25[:, None, :, None] * w2m[None, :, None, :]).reshape(3750, 400)
    b2t = jnp.tile(params["conv2_b"].reshape(1, 16), (1, 25))        # (1, 400)

    # fc1 columns permuted from torch's (c, h, w) flatten to our (h, w, c);
    # hidden dims zero-padded to 128 lanes (ReLU(0)=0 keeps results identical).
    fw1 = params["fc1_w"].reshape(120, 16, 5, 5).transpose(2, 3, 1, 0)
    fw1 = jnp.pad(fw1.reshape(400, 120), ((0, 0), (0, 8)))           # (400, 128)
    fb1 = jnp.pad(params["fc1_b"].reshape(1, 120), ((0, 0), (0, 8)))
    fw2 = jnp.pad(params["fc2_w"].T, ((0, 8), (0, 44)))              # (128, 128)
    fb2 = jnp.pad(params["fc2_b"].reshape(1, 84), ((0, 0), (0, 44)))
    fw3 = jnp.pad(params["fc3_w"].T, ((0, 44), (0, 0)))              # (128, 10)
    fb3 = params["fc3_b"].reshape(1, 10)

    return {"w1m": w1m, "b1": b1, "w2bd": w2bd, "b2t": b2t,
            "fw1": fw1, "fb1": fb1, "fw2": fw2, "fb2": fb2,
            "fw3": fw3, "fb3": fb3}


# ----------------------------------------------------------------------------
# LeNet forward
# ----------------------------------------------------------------------------
def lenet_forward(x, prepared):
    """x: (B, 1, 28, 28) f32 (NCHW, like the PyTorch module) -> (B, 10)."""
    B = x.shape[0]

    # --- K1: conv1 (1->6, 5x5, pad=2) + ReLU + 2x2 max-pool -----------------
    xp = jnp.pad(x, ((0, 0), (0, 0), (2, 2), (2, 2)))       # conv padding
    xp = xp.transpose(0, 2, 3, 1)                           # NHWC (B, 32, 32, 1)
    c1 = _pool_corner_patches(xp, 5, 5)                     # (4, B, 14, 14, 1, 25)
    r1 = B * 14 * 14
    c1 = c1.reshape(4, r1, 25)                              # row = b*196 + hp*14 + wp
    tr1 = 1024 if r1 >= 1024 else _round_up(r1, 8)
    r1_pad = _round_up(r1, tr1)
    p1 = _interleave_tiles(c1, tr1, r1_pad)                 # (nT*4*tr1, 25)
    y1 = conv1_relu_pool(p1, prepared["w1m"], prepared["b1"],
                         tr=tr1, n_tiles=r1_pad // tr1, r_pad=r1_pad)
    y1 = y1[:r1].reshape(B, 14, 14, 6)                      # NHWC

    # --- K2: conv2 (6->16, 5x5) + ReLU + pool + fc1/fc2/fc3 -----------------
    c2 = _pool_corner_patches(y1, 5, 5)                     # (4, B, 5, 5, 6, 25)
    c2 = c2.reshape(4, B, 5 * 5 * 6 * 25)                   # lane = r*150 + (c*25+dd)
    tb = 64 if B >= 64 else _round_up(B, 8)
    b_pad = _round_up(B, tb)
    p2 = _interleave_tiles(c2, tb, b_pad)                   # (nT*4*tb, 3750)
    logits = conv2_pool_mlp(p2, prepared, tb=tb,
                            n_tiles=b_pad // tb, b_pad=b_pad)
    return logits[:B]                                       # (B, 10)


if __name__ == "__main__":
    key = jax.random.PRNGKey(0)
    k_x, k_p = jax.random.split(key)

    # LeNet geometry requires 28x28 single-channel inputs (16*5*5 = 400 -> fc1).
    B = 2
    x = jax.random.normal(k_x, (B, 1, 28, 28), jnp.float32)
    params = init_params(k_p)
    prepared = prepare_params(params)   # one-time weight re-layout, outside jit

    fwd = jax.jit(lenet_forward)
    logits = fwd(x, prepared)
    jax.block_until_ready(logits)
    assert logits.shape == (B, 10)
    print("KERNEL_OK")
</pallas_src>

<mosaic_0001>
module attributes {stable_mosaic.version = 11 : i64} {
  func.func @_conv1_relu_pool_kernel(%arg0: i32, %arg1: memref<1568x25xf32, #tpu.memory_space<vmem>>, %arg2: memref<25x6xf32, #tpu.memory_space<vmem>>, %arg3: memref<1x6xf32, #tpu.memory_space<vmem>>, %arg4: memref<392x6xf32, #tpu.memory_space<vmem>>) attributes {dimension_semantics = [#tpu.dimension_semantics<parallel>], iteration_bounds = array<i64: 1>, scalar_prefetch = 0 : i64, scratch_operands = 0 : i64, tpu.core_type = #tpu.core_type<tc>, window_params = [{transform_indices = @transform_0, window_bounds = array<i64: 1568, 25>}, {pipeline_mode = #tpu.pipeline_mode<synchronous>, transform_indices = @transform_1, window_bounds = array<i64: 25, 6>}, {pipeline_mode = #tpu.pipeline_mode<synchronous>, transform_indices = @transform_2, window_bounds = array<i64: 1, 6>}, {transform_indices = @transform_3, window_bounds = array<i64: 392, 6>}]} {
    %c0 = arith.constant 0 : index
    %c0_0 = arith.constant 0 : index
    %0 = vector.load %arg1[%c0, %c0_0] : memref<1568x25xf32, #tpu.memory_space<vmem>>, vector<1568x25xf32>
    %c0_1 = arith.constant 0 : index
    %c0_2 = arith.constant 0 : index
    %1 = vector.load %arg2[%c0_1, %c0_2] : memref<25x6xf32, #tpu.memory_space<vmem>>, vector<25x6xf32>
    %cst = arith.constant dense<0.000000e+00> : vector<1568x6xf32>
    %2 = tpu.matmul %0, %1, %cst {dimension_numbers = #tpu.dot_dimension_numbers<[1], [0], [0], [1], [0, 0, 1, 1], [], []>} : vector<1568x25xf32>, vector<25x6xf32>, vector<1568x6xf32> -> vector<1568x6xf32>
    %3 = vector.extract_strided_slice %2 {offsets = [0, 0], sizes = [392, 6], strides = [1, 1]} : vector<1568x6xf32> to vector<392x6xf32>
    %4 = vector.extract_strided_slice %2 {offsets = [392, 0], sizes = [392, 6], strides = [1, 1]} : vector<1568x6xf32> to vector<392x6xf32>
    %5 = arith.maximumf %3, %4 : vector<392x6xf32>
    %6 = vector.extract_strided_slice %2 {offsets = [784, 0], sizes = [392, 6], strides = [1, 1]} : vector<1568x6xf32> to vector<392x6xf32>
    %7 = vector.extract_strided_slice %2 {offsets = [1176, 0], sizes = [392, 6], strides = [1, 1]} : vector<1568x6xf32> to vector<392x6xf32>
    %8 = arith.maximumf %6, %7 : vector<392x6xf32>
    %9 = arith.maximumf %5, %8 : vector<392x6xf32>
    %c0_3 = arith.constant 0 : index
    %c0_4 = arith.constant 0 : index
    %10 = vector.load %arg3[%c0_3, %c0_4] : memref<1x6xf32, #tpu.memory_space<vmem>>, vector<1x6xf32>
    %11 = vector.broadcast %10 : vector<1x6xf32> to vector<392x6xf32>
    %12 = arith.addf %9, %11 : vector<392x6xf32>
    %cst_5 = arith.constant 0.000000e+00 : f32
    %13 = vector.broadcast %cst_5 : f32 to vector<392x6xf32>
    %14 = arith.maximumf %12, %13 : vector<392x6xf32>
    %c0_6 = arith.constant 0 : index
    %c0_7 = arith.constant 0 : index
    %15 = vector.load %arg4[%c0_6, %c0_7] : memref<392x6xf32, #tpu.memory_space<vmem>>, vector<392x6xf32>
    tpu.vector_store %arg4[%c0_6, %c0_7], %14 {strides = array<i32>} : memref<392x6xf32, #tpu.memory_space<vmem>>, vector<392x6xf32>,
    return
  }
  func.func @transform_0(%arg0: i32) -> (i32, i32) {
    %c0_i32 = arith.constant 0 : i32
    %c0_i32_0 = arith.constant 0 : i32
    return %arg0, %c0_i32 : i32, i32
  }
  func.func @transform_1(%arg0: i32) -> (i32, i32) {
    %c0_i32 = arith.constant 0 : i32
    %c0_i32_0 = arith.constant 0 : i32
    %c0_i32_1 = arith.constant 0 : i32
    return %c0_i32, %c0_i32_0 : i32, i32
  }
  func.func @transform_2(%arg0: i32) -> (i32, i32) {
    %c0_i32 = arith.constant 0 : i32
    %c0_i32_0 = arith.constant 0 : i32
    %c0_i32_1 = arith.constant 0 : i32
    return %c0_i32, %c0_i32_0 : i32, i32
  }
  func.func @transform_3(%arg0: i32) -> (i32, i32) {
    %c0_i32 = arith.constant 0 : i32
    %c0_i32_0 = arith.constant 0 : i32
    return %arg0, %c0_i32 : i32, i32
  }
}

module attributes {stable_mosaic.version = 11 : i64} {
  func.func @_conv2_pool_mlp_kernel(%arg0: i32, %arg1: memref<32x3750xf32, #tpu.memory_space<vmem>>, %arg2: memref<3750x400xf32, #tpu.memory_space<vmem>>, %arg3: memref<1x400xf32, #tpu.memory_space<vmem>>, %arg4: memref<400x128xf32, #tpu.memory_space<vmem>>, %arg5: memref<1x128xf32, #tpu.memory_space<vmem>>, %arg6: memref<128x128xf32, #tpu.memory_space<vmem>>, %arg7: memref<1x128xf32, #tpu.memory_space<vmem>>, %arg8: memref<128x10xf32, #tpu.memory_space<vmem>>, %arg9: memref<1x10xf32, #tpu.memory_space<vmem>>, %arg10: memref<8x10xf32, #tpu.memory_space<vmem>>) attributes {dimension_semantics = [#tpu.dimension_semantics<parallel>], iteration_bounds = array<i64: 1>, scalar_prefetch = 0 : i64, scratch_operands = 0 : i64, tpu.core_type = #tpu.core_type<tc>, window_params = [{transform_indices = @transform_0, window_bounds = array<i64: 32, 3750>}, {pipeline_mode = #tpu.pipeline_mode<synchronous>, transform_indices = @transform_1, window_bounds = array<i64: 3750, 400>}, {pipeline_mode = #tpu.pipeline_mode<synchronous>, transform_indices = @transform_2, window_bounds = array<i64: 1, 400>}, {pipeline_mode = #tpu.pipeline_mode<synchronous>, transform_indices = @transform_3, window_bounds = array<i64: 400, 128>}, {pipeline_mode = #tpu.pipeline_mode<synchronous>, transform_indices = @transform_4, window_bounds = array<i64: 1, 128>}, {pipeline_mode = #tpu.pipeline_mode<synchronous>, transform_indices = @transform_5, window_bounds = array<i64: 128, 128>}, {pipeline_mode = #tpu.pipeline_mode<synchronous>, transform_indices = @transform_6, window_bounds = array<i64: 1, 128>}, {pipeline_mode = #tpu.pipeline_mode<synchronous>, transform_indices = @transform_7, window_bounds = array<i64: 128, 10>}, {pipeline_mode = #tpu.pipeline_mode<synchronous>, transform_indices = @transform_8, window_bounds = array<i64: 1, 10>}, {transform_indices = @transform_9, window_bounds = array<i64: 8, 10>}]} {
    %c0 = arith.constant 0 : index
    %c0_0 = arith.constant 0 : index
    %0 = vector.load %arg1[%c0, %c0_0] : memref<32x3750xf32, #tpu.memory_space<vmem>>, vector<32x3750xf32>
    %c0_1 = arith.constant 0 : index
    %c0_2 = arith.constant 0 : index
    %1 = vector.load %arg2[%c0_1, %c0_2] : memref<3750x400xf32, #tpu.memory_space<vmem>>, vector<3750x400xf32>
    %cst = arith.constant dense<0.000000e+00> : vector<32x400xf32>
    %2 = tpu.matmul %0, %1, %cst {dimension_numbers = #tpu.dot_dimension_numbers<[1], [0], [0], [1], [0, 0, 1, 1], [], []>} : vector<32x3750xf32>, vector<3750x400xf32>, vector<32x400xf32> -> vector<32x400xf32>
    %3 = vector.extract_strided_slice %2 {offsets = [0, 0], sizes = [8, 400], strides = [1, 1]} : vector<32x400xf32> to vector<8x400xf32>
    %4 = vector.extract_strided_slice %2 {offsets = [8, 0], sizes = [8, 400], strides = [1, 1]} : vector<32x400xf32> to vector<8x400xf32>
    %5 = arith.maximumf %3, %4 : vector<8x400xf32>
    %6 = vector.extract_strided_slice %2 {offsets = [16, 0], sizes = [8, 400], strides = [1, 1]} : vector<32x400xf32> to vector<8x400xf32>
    %7 = vector.extract_strided_slice %2 {offsets = [24, 0], sizes = [8, 400], strides = [1, 1]} : vector<32x400xf32> to vector<8x400xf32>
    %8 = arith.maximumf %6, %7 : vector<8x400xf32>
    %9 = arith.maximumf %5, %8 : vector<8x400xf32>
    %c0_3 = arith.constant 0 : index
    %c0_4 = arith.constant 0 : index
    %10 = vector.load %arg3[%c0_3, %c0_4] : memref<1x400xf32, #tpu.memory_space<vmem>>, vector<1x400xf32>
    %11 = vector.broadcast %10 : vector<1x400xf32> to vector<8x400xf32>
    %12 = arith.addf %9, %11 : vector<8x400xf32>
    %cst_5 = arith.constant 0.000000e+00 : f32
    %13 = vector.broadcast %cst_5 : f32 to vector<8x400xf32>
    %14 = arith.maximumf %12, %13 : vector<8x400xf32>
    %c0_6 = arith.constant 0 : index
    %c0_7 = arith.constant 0 : index
    %15 = vector.load %arg4[%c0_6, %c0_7] : memref<400x128xf32, #tpu.memory_space<vmem>>, vector<400x128xf32>
    %cst_8 = arith.constant dense<0.000000e+00> : vector<8x128xf32>
    %16 = tpu.matmul %14, %15, %cst_8 {dimension_numbers = #tpu.dot_dimension_numbers<[1], [0], [0], [1], [0, 0, 1, 1], [], []>} : vector<8x400xf32>, vector<400x128xf32>, vector<8x128xf32> -> vector<8x128xf32>
    %c0_9 = arith.constant 0 : index
    %c0_10 = arith.constant 0 : index
    %17 = vector.load %arg5[%c0_9, %c0_10] : memref<1x128xf32, #tpu.memory_space<vmem>>, vector<1x128xf32>
    %18 = vector.broadcast %17 : vector<1x128xf32> to vector<8x128xf32>
    %19 = arith.addf %16, %18 : vector<8x128xf32>
    %cst_11 = arith.constant 0.000000e+00 : f32
    %20 = vector.broadcast %cst_11 : f32 to vector<8x128xf32>
    %21 = arith.maximumf %19, %20 : vector<8x128xf32>
    %c0_12 = arith.constant 0 : index
    %c0_13 = arith.constant 0 : index
    %22 = vector.load %arg6[%c0_12, %c0_13] : memref<128x128xf32, #tpu.memory_space<vmem>>, vector<128x128xf32>
    %cst_14 = arith.constant dense<0.000000e+00> : vector<8x128xf32>
    %23 = tpu.matmul %21, %22, %cst_14 {dimension_numbers = #tpu.dot_dimension_numbers<[1], [0], [0], [1], [0, 0, 1, 1], [], []>} : vector<8x128xf32>, vector<128x128xf32>, vector<8x128xf32> -> vector<8x128xf32>
    %c0_15 = arith.constant 0 : index
    %c0_16 = arith.constant 0 : index
    %24 = vector.load %arg7[%c0_15, %c0_16] : memref<1x128xf32, #tpu.memory_space<vmem>>, vector<1x128xf32>
    %25 = vector.broadcast %24 : vector<1x128xf32> to vector<8x128xf32>
    %26 = arith.addf %23, %25 : vector<8x128xf32>
    %cst_17 = arith.constant 0.000000e+00 : f32
    %27 = vector.broadcast %cst_17 : f32 to vector<8x128xf32>
    %28 = arith.maximumf %26, %27 : vector<8x128xf32>
    %c0_18 = arith.constant 0 : index
    %c0_19 = arith.constant 0 : index
    %29 = vector.load %arg8[%c0_18, %c0_19] : memref<128x10xf32, #tpu.memory_space<vmem>>, vector<128x10xf32>
    %cst_20 = arith.constant dense<0.000000e+00> : vector<8x10xf32>
    %30 = tpu.matmul %28, %29, %cst_20 {dimension_numbers = #tpu.dot_dimension_numbers<[1], [0], [0], [1], [0, 0, 1, 1], [], []>} : vector<8x128xf32>, vector<128x10xf32>, vector<8x10xf32> -> vector<8x10xf32>
    %c0_21 = arith.constant 0 : index
    %c0_22 = arith.constant 0 : index
    %31 = vector.load %arg9[%c0_21, %c0_22] : memref<1x10xf32, #tpu.memory_space<vmem>>, vector<1x10xf32>
    %32 = vector.broadcast %31 : vector<1x10xf32> to vector<8x10xf32>
    %33 = arith.addf %30, %32 : vector<8x10xf32>
    %c0_23 = arith.constant 0 : index
    %c0_24 = arith.constant 0 : index
    %34 = vector.load %arg10[%c0_23, %c0_24] : memref<8x10xf32, #tpu.memory_space<vmem>>, vector<8x10xf32>
    tpu.vector_store %arg10[%c0_23, %c0_24], %33 {strides = array<i32>} : memref<8x10xf32, #tpu.memory_space<vmem>>, vector<8x10xf32>,
    return
  }
  func.func @transform_0(%arg0: i32) -> (i32, i32) {
    %c0_i32 = arith.constant 0 : i32
    %c0_i32_0 = arith.constant 0 : i32
    return %arg0, %c0_i32 : i32, i32
  }
  func.func @transform_1(%arg0: i32) -> (i32, i32) {
    %c0_i32 = arith.constant 0 : i32
    %c0_i32_0 = arith.constant 0 : i32
    %c0_i32_1 = arith.constant 0 : i32
    return %c0_i32, %c0_i32_0 : i32, i32
  }
  func.func @transform_2(%arg0: i32) -> (i32, i32) {
    %c0_i32 = arith.constant 0 : i32
    %c0_i32_0 = arith.constant 0 : i32
    %c0_i32_1 = arith.constant 0 : i32
    return %c0_i32, %c0_i32_0 : i32, i32
  }
  func.func @transform_3(%arg0: i32) -> (i32, i32) {
    %c0_i32 = arith.constant 0 : i32
    %c0_i32_0 = arith.constant 0 : i32
    %c0_i32_1 = arith.constant 0 : i32
    return %c0_i32, %c0_i32_0 : i32, i32
  }
  func.func @transform_4(%arg0: i32) -> (i32, i32) {
    %c0_i32 = arith.constant 0 : i32
    %c0_i32_0 = arith.constant 0 : i32
    %c0_i32_1 = arith.constant 0 : i32
    return %c0_i32, %c0_i32_0 : i32, i32
  }
  func.func @transform_5(%arg0: i32) -> (i32, i32) {
    %c0_i32 = arith.constant 0 : i32
    %c0_i32_0 = arith.constant 0 : i32
    %c0_i32_1 = arith.constant 0 : i32
    return %c0_i32, %c0_i32_0 : i32, i32
  }
  func.func @transform_6(%arg0: i32) -> (i32, i32) {
    %c0_i32 = arith.constant 0 : i32
    %c0_i32_0 = arith.constant 0 : i32
    %c0_i32_1 = arith.constant 0 : i32
    return %c0_i32, %c0_i32_0 : i32, i32
  }
  func.func @transform_7(%arg0: i32) -> (i32, i32) {
    %c0_i32 = arith.constant 0 : i32
    %c0_i32_0 = arith.constant 0 : i32
    %c0_i32_1 = arith.constant 0 : i32
    return %c0_i32, %c0_i32_0 : i32, i32
  }
  func.func @transform_8(%arg0: i32) -> (i32, i32) {
    %c0_i32 = arith.constant 0 : i32
    %c0_i32_0 = arith.constant 0 : i32
    %c0_i32_1 = arith.constant 0 : i32
    return %c0_i32, %c0_i32_0 : i32, i32
  }
  func.func @transform_9(%arg0: i32) -> (i32, i32) {
    %c0_i32 = arith.constant 0 : i32
    %c0_i32_0 = arith.constant 0 : i32
    return %arg0, %c0_i32 : i32, i32
  }
}

</mosaic_0001>

<llo_original>
// kernel: lenet_forward.2
$region0: #{lenet_forward.2}
  #allocation0 [shape = 'u32[]', space=smem, size = 0x4, offset = 0x4, fixed_abs, tag = 'smem constant byte address 0x4 - core index']
  #allocation1 [shape = 'u32[144,128]{1,0:T(1,128)}', space=vmem, size = 0x12000, scoped, tag = 'internal scratch']
  %s0 = inlined_call_operand.vmem [shape: f32[1568,25], index: 0, kind: input, shape index: {}]
  %s1 = inlined_call_operand.vmem [shape: f32[25,6], index: 1, kind: input, shape index: {}]
  %s2 = inlined_call_operand.vmem [shape: f32[1,6], index: 2, kind: input, shape index: {}]
  %s3 = inlined_call_operand.vmem [shape: f32[392,6], index: 3, kind: output, shape index: {}]
  %s4 = sld [smem:[#allocation0]]
  $region22: #{lenet_forward.2} parent=0
    _
  %s6 = ssub.s32 1, %s4
  %s7 = scalar_select 0, %s6, %s4
  // Predicated region
  $region2: #{lenet_forward.2} parent=0 // pred_check
    _
  $region3: #{lenet_forward.2} parent=0 // pred_check_branch
    %9 = sbr.rel (0) target = $region5
  $region4: #{lenet_forward.2} parent=0 // pred_region
    _
  $region5: #{lenet_forward.2} parent=0 // pred_fallthru
    _
  // Predicated region
  $region6: #{lenet_forward.2} parent=0 // pred_check
    _
  $region7: #{lenet_forward.2} parent=0 // pred_check_branch
    %11 = sbr.rel (0) target = $region9
  $region8: #{lenet_forward.2} parent=0 // pred_region
    _
  $region9: #{lenet_forward.2} parent=0 // pred_fallthru
    _
  // Predicated region
  $region10: #{lenet_forward.2} parent=0 // pred_check
    _
  $region11: #{lenet_forward.2} parent=0 // pred_check_branch
    %13 = sbr.rel (0) target = $region13
  $region12: #{lenet_forward.2} parent=0 // pred_region
    _
  $region13: #{lenet_forward.2} parent=0 // pred_fallthru
    _
  %v14 = vld [vmem:[%s0] sm:$0xff]
  %v15 = vld [vmem:[%s0 + $0x8] sm:$0xff]
  %v16 = vld [vmem:[%s0 + $0x10] sm:$0xff]
  %v17 = vld [vmem:[%s0 + $0x18] sm:$0xff]
  %v18 = vld [vmem:[%s0 + $0x20] sm:$0xff]
  %v19 = vld [vmem:[%s0 + $0x28] sm:$0xff]
  %v20 = vld [vmem:[%s0 + $0x30] sm:$0xff]
  %v21 = vld [vmem:[%s0 + $0x38] sm:$0xff]
  %v22 = vld [vmem:[%s0 + $0x40] sm:$0xff]
  %v23 = vld [vmem:[%s0 + $0x48] sm:$0xff]
  %v24 = vld [vmem:[%s0 + $0x50] sm:$0xff]
  %v25 = vld [vmem:[%s0 + $0x58] sm:$0xff]
  %v26 = vld [vmem:[%s0 + $0x60] sm:$0xff]
  %v27 = vld [vmem:[%s0 + $0x68] sm:$0xff]
  %v28 = vld [vmem:[%s0 + $0x70] sm:$0xff]
  %v29 = vld [vmem:[%s0 + $0x78] sm:$0xff]
  %v30 = vld [vmem:[%s0 + $0x80] sm:$0xff]
  %v31 = vld [vmem:[%s0 + $0x88] sm:$0xff]
  %v32 = vld [vmem:[%s0 + $0x90] sm:$0xff]
  %v33 = vld [vmem:[%s0 + $0x98] sm:$0xff]
  %v34 = vld [vmem:[%s0 + $0xa0] sm:$0xff]
  %v35 = vld [vmem:[%s0 + $0xa8] sm:$0xff]
  %v36 = vld [vmem:[%s0 + $0xb0] sm:$0xff]
  %v37 = vld [vmem:[%s0 + $0xb8] sm:$0xff]
  %v38 = vld [vmem:[%s0 + $0xc0] sm:$0xff]
  %v39 = vld [vmem:[%s0 + $0xc8] sm:$0xff]
  %v40 = vld [vmem:[%s0 + $0xd0] sm:$0xff]
  %v41 = vld [vmem:[%s0 + $0xd8] sm:$0xff]
  %v42 = vld [vmem:[%s0 + $0xe0] sm:$0xff]
  %v43 = vld [vmem:[%s0 + $0xe8] sm:$0xff]
  %v44 = vld [vmem:[%s0 + $0xf0] sm:$0xff]
  %v45 = vld [vmem:[%s0 + $0xf8] sm:$0xff]
  %v46 = vld [vmem:[%s0 + $0x100] sm:$0xff]
  %v47 = vld [vmem:[%s0 + $0x108] sm:$0xff]
  %v48 = vld [vmem:[%s0 + $0x110] sm:$0xff]
  %v49 = vld [vmem:[%s0 + $0x118] sm:$0xff]
  %v50 = vld [vmem:[%s0 + $0x120] sm:$0xff]
  %v51 = vld [vmem:[%s0 + $0x128] sm:$0xff]
  %v52 = vld [vmem:[%s0 + $0x130] sm:$0xff]
  %v53 = vld [vmem:[%s0 + $0x138] sm:$0xff]
  %v54 = vld [vmem:[%s0 + $0x140] sm:$0xff]
  %v55 = vld [vmem:[%s0 + $0x148] sm:$0xff]
  %v56 = vld [vmem:[%s0 + $0x150] sm:$0xff]
  %v57 = vld [vmem:[%s0 + $0x158] sm:$0xff]
  %v58 = vld [vmem:[%s0 + $0x160] sm:$0xff]
  %v59 = vld [vmem:[%s0 + $0x168] sm:$0xff]
  %v60 = vld [vmem:[%s0 + $0x170] sm:$0xff]
  %v61 = vld [vmem:[%s0 + $0x178] sm:$0xff]
  %v62 = vld [vmem:[%s0 + $0x180] sm:$0xff]
  %v63 = vld [vmem:[%s0 + $0x188] sm:$0xff]
  %v64 = vld [vmem:[%s0 + $0x190] sm:$0xff]
  %v65 = vld [vmem:[%s0 + $0x198] sm:$0xff]
  %v66 = vld [vmem:[%s0 + $0x1a0] sm:$0xff]
  %v67 = vld [vmem:[%s0 + $0x1a8] sm:$0xff]
  %v68 = vld [vmem:[%s0 + $0x1b0] sm:$0xff]
  %v69 = vld [vmem:[%s0 + $0x1b8] sm:$0xff]
  %v70 = vld [vmem:[%s0 + $0x1c0] sm:$0xff]
  %v71 = vld [vmem:[%s0 + $0x1c8] sm:$0xff]
  %v72 = vld [vmem:[%s0 + $0x1d0] sm:$0xff]
  %v73 = vld [vmem:[%s0 + $0x1d8] sm:$0xff]
  %v74 = vld [vmem:[%s0 + $0x1e0] sm:$0xff]
  %v75 = vld [vmem:[%s0 + $0x1e8] sm:$0xff]
  %v76 = vld [vmem:[%s0 + $0x1f0] sm:$0xff]
  %v77 = vld [vmem:[%s0 + $0x1f8] sm:$0xff]
  %v78 = vld [vmem:[%s0 + $0x200] sm:$0xff]
  %v79 = vld [vmem:[%s0 + $0x208] sm:$0xff]
  %v80 = vld [vmem:[%s0 + $0x210] sm:$0xff]
  %v81 = vld [vmem:[%s0 + $0x218] sm:$0xff]
  %v82 = vld [vmem:[%s0 + $0x220] sm:$0xff]
  %v83 = vld [vmem:[%s0 + $0x228] sm:$0xff]
  %v84 = vld [vmem:[%s0 + $0x230] sm:$0xff]
  %v85 = vld [vmem:[%s0 + $0x238] sm:$0xff]
  %v86 = vld [vmem:[%s0 + $0x240] sm:$0xff]
  %v87 = vld [vmem:[%s0 + $0x248] sm:$0xff]
  %v88 = vld [vmem:[%s0 + $0x250] sm:$0xff]
  %v89 = vld [vmem:[%s0 + $0x258] sm:$0xff]
  %v90 = vld [vmem:[%s0 + $0x260] sm:$0xff]
  %v91 = vld [vmem:[%s0 + $0x268] sm:$0xff]
  %v92 = vld [vmem:[%s0 + $0x270] sm:$0xff]
  %v93 = vld [vmem:[%s0 + $0x278] sm:$0xff]
  %v94 = vld [vmem:[%s0 + $0x280] sm:$0xff]
  %v95 = vld [vmem:[%s0 + $0x288] sm:$0xff]
  %v96 = vld [vmem:[%s0 + $0x290] sm:$0xff]
  %v97 = vld [vmem:[%s0 + $0x298] sm:$0xff]
  %v98 = vld [vmem:[%s0 + $0x2a0] sm:$0xff]
  %v99 = vld [vmem:[%s0 + $0x2a8] sm:$0xff]
  %v100 = vld [vmem:[%s0 + $0x2b0] sm:$0xff]
  %v101 = vld [vmem:[%s0 + $0x2b8] sm:$0xff]
  %v102 = vld [vmem:[%s0 + $0x2c0] sm:$0xff]
  %v103 = vld [vmem:[%s0 + $0x2c8] sm:$0xff]
  %v104 = vld [vmem:[%s0 + $0x2d0] sm:$0xff]
  %v105 = vld [vmem:[%s0 + $0x2d8] sm:$0xff]
  %v106 = vld [vmem:[%s0 + $0x2e0] sm:$0xff]
  %v107 = vld [vmem:[%s0 + $0x2e8] sm:$0xff]
  %v108 = vld [vmem:[%s0 + $0x2f0] sm:$0xff]
  %v109 = vld [vmem:[%s0 + $0x2f8] sm:$0xff]
  %v110 = vld [vmem:[%s0 + $0x300] sm:$0xff]
  %v111 = vld [vmem:[%s0 + $0x308] sm:$0xff]
  %v112 = vld [vmem:[%s0 + $0x310] sm:$0xff]
  %v113 = vld [vmem:[%s0 + $0x318] sm:$0xff]
  %v114 = vld [vmem:[%s0 + $0x320] sm:$0xff]
  %v115 = vld [vmem:[%s0 + $0x328] sm:$0xff]
  %v116 = vld [vmem:[%s0 + $0x330] sm:$0xff]
  %v117 = vld [vmem:[%s0 + $0x338] sm:$0xff]
  %v118 = vld [vmem:[%s0 + $0x340] sm:$0xff]
  %v119 = vld [vmem:[%s0 + $0x348] sm:$0xff]
  %v120 = vld [vmem:[%s0 + $0x350] sm:$0xff]
  %v121 = vld [vmem:[%s0 + $0x358] sm:$0xff]
  %v122 = vld [vmem:[%s0 + $0x360] sm:$0xff]
  %v123 = vld [vmem:[%s0 + $0x368] sm:$0xff]
  %v124 = vld [vmem:[%s0 + $0x370] sm:$0xff]
  %v125 = vld [vmem:[%s0 + $0x378] sm:$0xff]
  %v126 = vld [vmem:[%s0 + $0x380] sm:$0xff]
  %v127 = vld [vmem:[%s0 + $0x388] sm:$0xff]
  %v128 = vld [vmem:[%s0 + $0x390] sm:$0xff]
  %v129 = vld [vmem:[%s0 + $0x398] sm:$0xff]
  %v130 = vld [vmem:[%s0 + $0x3a0] sm:$0xff]
  %v131 = vld [vmem:[%s0 + $0x3a8] sm:$0xff]
  %v132 = vld [vmem:[%s0 + $0x3b0] sm:$0xff]
  %v133 = vld [vmem:[%s0 + $0x3b8] sm:$0xff]
  %v134 = vld [vmem:[%s0 + $0x3c0] sm:$0xff]
  %v135 = vld [vmem:[%s0 + $0x3c8] sm:$0xff]
  %v136 = vld [vmem:[%s0 + $0x3d0] sm:$0xff]
  %v137 = vld [vmem:[%s0 + $0x3d8] sm:$0xff]
  %v138 = vld [vmem:[%s0 + $0x3e0] sm:$0xff]
  %v139 = vld [vmem:[%s0 + $0x3e8] sm:$0xff]
  %v140 = vld [vmem:[%s0 + $0x3f0] sm:$0xff]
  %v141 = vld [vmem:[%s0 + $0x3f8] sm:$0xff]
  %v142 = vld [vmem:[%s0 + $0x400] sm:$0xff]
  %v143 = vld [vmem:[%s0 + $0x408] sm:$0xff]
  %v144 = vld [vmem:[%s0 + $0x410] sm:$0xff]
  %v145 = vld [vmem:[%s0 + $0x418] sm:$0xff]
  %v146 = vld [vmem:[%s0 + $0x420] sm:$0xff]
  %v147 = vld [vmem:[%s0 + $0x428] sm:$0xff]
  %v148 = vld [vmem:[%s0 + $0x430] sm:$0xff]
  %v149 = vld [vmem:[%s0 + $0x438] sm:$0xff]
  %v150 = vld [vmem:[%s0 + $0x440] sm:$0xff]
  %v151 = vld [vmem:[%s0 + $0x448] sm:$0xff]
  %v152 = vld [vmem:[%s0 + $0x450] sm:$0xff]
  %v153 = vld [vmem:[%s0 + $0x458] sm:$0xff]
  %v154 = vld [vmem:[%s0 + $0x460] sm:$0xff]
  %v155 = vld [vmem:[%s0 + $0x468] sm:$0xff]
  %v156 = vld [vmem:[%s0 + $0x470] sm:$0xff]
  %v157 = vld [vmem:[%s0 + $0x478] sm:$0xff]
  %v158 = vld [vmem:[%s0 + $0x480] sm:$0xff]
  %v159 = vld [vmem:[%s0 + $0x488] sm:$0xff]
  %v160 = vld [vmem:[%s0 + $0x490] sm:$0xff]
  %v161 = vld [vmem:[%s0 + $0x498] sm:$0xff]
  %v162 = vld [vmem:[%s0 + $0x4a0] sm:$0xff]
  %v163 = vld [vmem:[%s0 + $0x4a8] sm:$0xff]
  %v164 = vld [vmem:[%s0 + $0x4b0] sm:$0xff]
  %v165 = vld [vmem:[%s0 + $0x4b8] sm:$0xff]
  %v166 = vld [vmem:[%s0 + $0x4c0] sm:$0xff]
  %v167 = vld [vmem:[%s0 + $0x4c8] sm:$0xff]
  %v168 = vld [vmem:[%s0 + $0x4d0] sm:$0xff]
  %v169 = vld [vmem:[%s0 + $0x4d8] sm:$0xff]
  %v170 = vld [vmem:[%s0 + $0x4e0] sm:$0xff]
  %v171 = vld [vmem:[%s0 + $0x4e8] sm:$0xff]
  %v172 = vld [vmem:[%s0 + $0x4f0] sm:$0xff]
  %v173 = vld [vmem:[%s0 + $0x4f8] sm:$0xff]
  %v174 = vld [vmem:[%s0 + $0x500] sm:$0xff]
  %v175 = vld [vmem:[%s0 + $0x508] sm:$0xff]
  %v176 = vld [vmem:[%s0 + $0x510] sm:$0xff]
  %v177 = vld [vmem:[%s0 + $0x518] sm:$0xff]
  %v178 = vld [vmem:[%s0 + $0x520] sm:$0xff]
  %v179 = vld [vmem:[%s0 + $0x528] sm:$0xff]
  %v180 = vld [vmem:[%s0 + $0x530] sm:$0xff]
  %v181 = vld [vmem:[%s0 + $0x538] sm:$0xff]
  %v182 = vld [vmem:[%s0 + $0x540] sm:$0xff]
  %v183 = vld [vmem:[%s0 + $0x548] sm:$0xff]
  %v184 = vld [vmem:[%s0 + $0x550] sm:$0xff]
  %v185 = vld [vmem:[%s0 + $0x558] sm:$0xff]
  %v186 = vld [vmem:[%s0 + $0x560] sm:$0xff]
  %v187 = vld [vmem:[%s0 + $0x568] sm:$0xff]
  %v188 = vld [vmem:[%s0 + $0x570] sm:$0xff]
  %v189 = vld [vmem:[%s0 + $0x578] sm:$0xff]
  %v190 = vld [vmem:[%s0 + $0x580] sm:$0xff]
  %v191 = vld [vmem:[%s0 + $0x588] sm:$0xff]
  %v192 = vld [vmem:[%s0 + $0x590] sm:$0xff]
  %v193 = vld [vmem:[%s0 + $0x598] sm:$0xff]
  %v194 = vld [vmem:[%s0 + $0x5a0] sm:$0xff]
  %v195 = vld [vmem:[%s0 + $0x5a8] sm:$0xff]
  %v196 = vld [vmem:[%s0 + $0x5b0] sm:$0xff]
  %v197 = vld [vmem:[%s0 + $0x5b8] sm:$0xff]
  %v198 = vld [vmem:[%s0 + $0x5c0] sm:$0xff]
  %v199 = vld [vmem:[%s0 + $0x5c8] sm:$0xff]
  %v200 = vld [vmem:[%s0 + $0x5d0] sm:$0xff]
  %v201 = vld [vmem:[%s0 + $0x5d8] sm:$0xff]
  %v202 = vld [vmem:[%s0 + $0x5e0] sm:$0xff]
  %v203 = vld [vmem:[%s0 + $0x5e8] sm:$0xff]
  %v204 = vld [vmem:[%s0 + $0x5f0] sm:$0xff]
  %v205 = vld [vmem:[%s0 + $0x5f8] sm:$0xff]
  %v206 = vld [vmem:[%s0 + $0x600] sm:$0xff]
  %v207 = vld [vmem:[%s0 + $0x608] sm:$0xff]
  %v208 = vld [vmem:[%s0 + $0x610] sm:$0xff]
  %v209 = vld [vmem:[%s0 + $0x618] sm:$0xff]
  %v210 = vld [vmem:[%s1] sm:$0xff]
  %v211 = vld [vmem:[%s1 + $0x8] sm:$0xff]
  %v212 = vld [vmem:[%s1 + $0x10] sm:$0xff]
  %v213 = vld [vmem:[%s1 + $0x18] sm:$0x1]
  %vm214 = vcmask 203776
  %v216 = vsel %vm214, %v14, 0
  %v219 = vsel %vm214, %v15, 0
  %v222 = vsel %vm214, %v16, 0
  %v225 = vsel %vm214, %v17, 0
  %v228 = vsel %vm214, %v18, 0
  %v231 = vsel %vm214, %v19, 0
  %v234 = vsel %vm214, %v20, 0
  %v237 = vsel %vm214, %v21, 0
  %v240 = vsel %vm214, %v22, 0
  %v243 = vsel %vm214, %v23, 0
  %v246 = vsel %vm214, %v24, 0
  %v249 = vsel %vm214, %v25, 0
  %v252 = vsel %vm214, %v26, 0
  %v255 = vsel %vm214, %v27, 0
  %v258 = vsel %vm214, %v28, 0
  %v261 = vsel %vm214, %v29, 0
  %v264 = vsel %vm214, %v30, 0
  %v267 = vsel %vm214, %v31, 0
  %v270 = vsel %vm214, %v32, 0
  %v273 = vsel %vm214, %v33, 0
  %v276 = vsel %vm214, %v34, 0
  %v279 = vsel %vm214, %v35, 0
  %v282 = vsel %vm214, %v36, 0
  %v285 = vsel %vm214, %v37, 0
  %v288 = vsel %vm214, %v38, 0
  %v291 = vsel %vm214, %v39, 0
  %v294 = vsel %vm214, %v40, 0
  %v297 = vsel %vm214, %v41, 0
  %v300 = vsel %vm214, %v42, 0
  %v303 = vsel %vm214, %v43, 0
  %v306 = vsel %vm214, %v44, 0
  %v309 = vsel %vm214, %v45, 0
  %v312 = vsel %vm214, %v46, 0
  %v315 = vsel %vm214, %v47, 0
  %v318 = vsel %vm214, %v48, 0
  %v321 = vsel %vm214, %v49, 0
  %v324 = vsel %vm214, %v50, 0
  %v327 = vsel %vm214, %v51, 0
  %v330 = vsel %vm214, %v52, 0
  %v333 = vsel %vm214, %v53, 0
  %v336 = vsel %vm214, %v54, 0
  %v339 = vsel %vm214, %v55, 0
  %v342 = vsel %vm214, %v56, 0
  %v345 = vsel %vm214, %v57, 0
  %v348 = vsel %vm214, %v58, 0
  %v351 = vsel %vm214, %v59, 0
  %v354 = vsel %vm214, %v60, 0
  %v357 = vsel %vm214, %v61, 0
  %v360 = vsel %vm214, %v62, 0
  %v363 = vsel %vm214, %v63, 0
  %v366 = vsel %vm214, %v64, 0
  %v369 = vsel %vm214, %v65, 0
  %v372 = vsel %vm214, %v66, 0
  %v375 = vsel %vm214, %v67, 0
  %v378 = vsel %vm214, %v68, 0
  %v381 = vsel %vm214, %v69, 0
  %v384 = vsel %vm214, %v70, 0
  %v387 = vsel %vm214, %v71, 0
  %v390 = vsel %vm214, %v72, 0
  %v393 = vsel %vm214, %v73, 0
  %v396 = vsel %vm214, %v74, 0
  %v399 = vsel %vm214, %v75, 0
  %v402 = vsel %vm214, %v76, 0
  %v405 = vsel %vm214, %v77, 0
  %v408 = vsel %vm214, %v78, 0
  %v411 = vsel %vm214, %v79, 0
  %v414 = vsel %vm214, %v80, 0
  %v417 = vsel %vm214, %v81, 0
  %v420 = vsel %vm214, %v82, 0
  %v423 = vsel %vm214, %v83, 0
  %v426 = vsel %vm214, %v84, 0
  %v429 = vsel %vm214, %v85, 0
  %v432 = vsel %vm214, %v86, 0
  %v435 = vsel %vm214, %v87, 0
  %v438 = vsel %vm214, %v88, 0
  %v441 = vsel %vm214, %v89, 0
  %v444 = vsel %vm214, %v90, 0
  %v447 = vsel %vm214, %v91, 0
  %v450 = vsel %vm214, %v92, 0
  %v453 = vsel %vm214, %v93, 0
  %v456 = vsel %vm214, %v94, 0
  %v459 = vsel %vm214, %v95, 0
  %v462 = vsel %vm214, %v96, 0
  %v465 = vsel %vm214, %v97, 0
  %v468 = vsel %vm214, %v98, 0
  %v471 = vsel %vm214, %v99, 0
  %v474 = vsel %vm214, %v100, 0
  %v477 = vsel %vm214, %v101, 0
  %v480 = vsel %vm214, %v102, 0
  %v483 = vsel %vm214, %v103, 0
  %v486 = vsel %vm214, %v104, 0
  %v489 = vsel %vm214, %v105, 0
  %v492 = vsel %vm214, %v106, 0
  %v495 = vsel %vm214, %v107, 0
  %v498 = vsel %vm214, %v108, 0
  %v501 = vsel %vm214, %v109, 0
  %v504 = vsel %vm214, %v110, 0
  %v507 = vsel %vm214, %v111, 0
  %v510 = vsel %vm214, %v112, 0
  %v513 = vsel %vm214, %v113, 0
  %v516 = vsel %vm214, %v114, 0
  %v519 = vsel %vm214, %v115, 0
  %v522 = vsel %vm214, %v116, 0
  %v525 = vsel %vm214, %v117, 0
  %v528 = vsel %vm214, %v118, 0
  %v531 = vsel %vm214, %v119, 0
  %v534 = vsel %vm214, %v120, 0
  %v537 = vsel %vm214, %v121, 0
  %v540 = vsel %vm214, %v122, 0
  %v543 = vsel %vm214, %v123, 0
  %v546 = vsel %vm214, %v124, 0
  %v549 = vsel %vm214, %v125, 0
  %v552 = vsel %vm214, %v126, 0
  %v555 = vsel %vm214, %v127, 0
  %v558 = vsel %vm214, %v128, 0
  %v561 = vsel %vm214, %v129, 0
  %v564 = vsel %vm214, %v130, 0
  %v567 = vsel %vm214, %v131, 0
  %v570 = vsel %vm214, %v132, 0
  %v573 = vsel %vm214, %v133, 0
  %v576 = vsel %vm214, %v134, 0
  %v579 = vsel %vm214, %v135, 0
  %v582 = vsel %vm214, %v136, 0
  %v585 = vsel %vm214, %v137, 0
  %v588 = vsel %vm214, %v138, 0
  %v591 = vsel %vm214, %v139, 0
  %v594 = vsel %vm214, %v140, 0
  %v597 = vsel %vm214, %v141, 0
  %v600 = vsel %vm214, %v142, 0
  %v603 = vsel %vm214, %v143, 0
  %v606 = vsel %vm214, %v144, 0
  %v609 = vsel %vm214, %v145, 0
  %v612 = vsel %vm214, %v146, 0
  %v615 = vsel %vm214, %v147, 0
  %v618 = vsel %vm214, %v148, 0
  %v621 = vsel %vm214, %v149, 0
  %v624 = vsel %vm214, %v150, 0
  %v627 = vsel %vm214, %v151, 0
  %v630 = vsel %vm214, %v152, 0
  %v633 = vsel %vm214, %v153, 0
  %v636 = vsel %vm214, %v154, 0
  %v639 = vsel %vm214, %v155, 0
  %v642 = vsel %vm214, %v156, 0
  %v645 = vsel %vm214, %v157, 0
  %v648 = vsel %vm214, %v158, 0
  %v651 = vsel %vm214, %v159, 0
  %v654 = vsel %vm214, %v160, 0
  %v657 = vsel %vm214, %v161, 0
  %v660 = vsel %vm214, %v162, 0
  %v663 = vsel %vm214, %v163, 0
  %v666 = vsel %vm214, %v164, 0
  %v669 = vsel %vm214, %v165, 0
  %v672 = vsel %vm214, %v166, 0
  %v675 = vsel %vm214, %v167, 0
  %v678 = vsel %vm214, %v168, 0
  %v681 = vsel %vm214, %v169, 0
  %v684 = vsel %vm214, %v170, 0
  %v687 = vsel %vm214, %v171, 0
  %v690 = vsel %vm214, %v172, 0
  %v693 = vsel %vm214, %v173, 0
  %v696 = vsel %vm214, %v174, 0
  %v699 = vsel %vm214, %v175, 0
  %v702 = vsel %vm214, %v176, 0
  %v705 = vsel %vm214, %v177, 0
  %v708 = vsel %vm214, %v178, 0
  %v711 = vsel %vm214, %v179, 0
  %v714 = vsel %vm214, %v180, 0
  %v717 = vsel %vm214, %v181, 0
  %v720 = vsel %vm214, %v182, 0
  %v723 = vsel %vm214, %v183, 0
  %v726 = vsel %vm214, %v184, 0
  %v729 = vsel %vm214, %v185, 0
  %v732 = vsel %vm214, %v186, 0
  %v735 = vsel %vm214, %v187, 0
  %v738 = vsel %vm214, %v188, 0
  %v741 = vsel %vm214, %v189, 0
  %v744 = vsel %vm214, %v190, 0
  %v747 = vsel %vm214, %v191, 0
  %v750 = vsel %vm214, %v192, 0
  %v753 = vsel %vm214, %v193, 0
  %v756 = vsel %vm214, %v194, 0
  %v759 = vsel %vm214, %v195, 0
  %v762 = vsel %vm214, %v196, 0
  %v765 = vsel %vm214, %v197, 0
  %v768 = vsel %vm214, %v198, 0
  %v771 = vsel %vm214, %v199, 0
  %v774 = vsel %vm214, %v200, 0
  %v777 = vsel %vm214, %v201, 0
  %v780 = vsel %vm214, %v202, 0
  %v783 = vsel %vm214, %v203, 0
  %v786 = vsel %vm214, %v204, 0
  %v789 = vsel %vm214, %v205, 0
  %v792 = vsel %vm214, %v206, 0
  %v795 = vsel %vm214, %v207, 0
  %v798 = vsel %vm214, %v208, 0
  %v801 = vsel %vm214, %v209, 0
  %vm803 = vcmask 1040384
  %v805 = vsel %vm803, %v213, 0
  %807 = vmatprep.subr.mxu0 0.0
  %808 = vmatpush1.msra.mxu0 %v210
  %809 = vmatprep.subr.mxu0 0.0
  %810 = vmatpush1.msra.mxu0 %v211
  %811 = vmatprep.subr.mxu0 0.0
  %812 = vmatpush1.msra.mxu0 %v212
  %813 = vmatprep.subr.mxu0 0.0
  %814 = vmatpush1.msra.mxu0 %v805
  %815 = vmatprep.subr.mxu0 0.0
  %816 = vmatpush1.msra.mxu0 0.0
  %817 = vmatprep.subr.mxu0 0.0
  %818 = vmatpush1.msra.mxu0 0.0
  %819 = vmatprep.subr.mxu0 0.0
  %820 = vmatpush1.msra.mxu0 0.0
  %821 = vmatprep.subr.mxu0 0.0
  %822 = vmatpush1.msra.mxu0 0.0
  %823 = vmatprep.subr.mxu0 0.0
  %824 = vmatpush1.msra.mxu0 0.0
  %825 = vmatprep.subr.mxu0 0.0
  %826 = vmatpush1.msra.mxu0 0.0
  %827 = vmatprep.subr.mxu0 0.0
  %828 = vmatpush1.msra.mxu0 0.0
  %829 = vmatprep.subr.mxu0 0.0
  %830 = vmatpush1.msra.mxu0 0.0
  %831 = vmatprep.subr.mxu0 0.0
  %832 = vmatpush1.msra.mxu0 0.0
  %833 = vmatprep.subr.mxu0 0.0
  %834 = vmatpush1.msra.mxu0 0.0
  %835 = vmatprep.subr.mxu0 0.0
  %836 = vmatpush1.msra.mxu0 0.0
  %837 = vmatprep.subr.mxu0 0.0
  %838 = vmatpush1.msra.mxu0 0.0
  %839 = vmatprep.subr.mxu0 0.0
  %840 = vmatpush1.msra.mxu0 0.0
  %841 = vmatprep.subr.mxu0 0.0
  %842 = vmatpush1.msra.mxu0 0.0
  %843 = vmatprep.subr.mxu0 0.0
  %844 = vmatpush1.msra.mxu0 0.0
  %845 = vmatprep.subr.mxu0 0.0
  %846 = vmatpush1.msra.mxu0 0.0
  %847 = vmatprep.subr.mxu0 0.0
  %848 = vmatpush1.msra.mxu0 0.0
  %849 = vmatprep.subr.mxu0 0.0
  %850 = vmatpush1.msra.mxu0 0.0
  %851 = vmatprep.subr.mxu0 0.0
  %852 = vmatpush1.msra.mxu0 0.0
  %853 = vmatprep.subr.mxu0 0.0
  %854 = vmatpush1.msra.mxu0 0.0
  %855 = vmatprep.subr.mxu0 0.0
  %856 = vmatpush1.msra.mxu0 0.0
  %857 = vmatprep.subr.mxu0 0.0
  %858 = vmatpush1.msra.mxu0 0.0
  %859 = vmatprep.subr.mxu0 0.0
  %860 = vmatpush1.msra.mxu0 0.0
  %861 = vmatprep.subr.mxu0 0.0
  %862 = vmatpush1.msra.mxu0 0.0
  %863 = vmatprep.subr.mxu0 0.0
  %864 = vmatpush1.msra.mxu0 0.0
  %865 = vmatprep.subr.mxu0 0.0
  %866 = vmatpush1.msra.mxu0 0.0
  %867 = vmatprep.subr.mxu0 0.0
  %868 = vmatpush1.msra.mxu0 0.0
  %869 = vmatprep.subr.mxu0 0.0
  %870 = vmatpush1.msra.mxu0 0.0
  %871 = vmatprep.mubr.f32.mxu0 0.0
  %872 = vmatmul.mubr.f32.gmra.mrb[0].mxu0 %v216
  %v873 = vpop.f32.mrb[0].mxu0
  %v874 = vadd.f32 0.0, %v873
  %v875 = vpop.f32.mrb[0].mxu0
  %876 = vmatprep.mubr.f32.mxu0 0.0
  %877 = vmatmul.mubr.f32.gmra.mrb[0].mxu0 %v219
  %v878 = vpop.f32.mrb[0].mxu0
  %v879 = vadd.f32 0.0, %v878
  %v880 = vpop.f32.mrb[0].mxu0
  %881 = vmatprep.mubr.f32.mxu0 0.0
  %882 = vmatmul.mubr.f32.gmra.mrb[0].mxu0 %v222
  %v883 = vpop.f32.mrb[0].mxu0
  %v884 = vadd.f32 0.0, %v883
  %v885 = vpop.f32.mrb[0].mxu0
  %886 = vmatprep.mubr.f32.mxu0 0.0
  %887 = vmatmul.mubr.f32.gmra.mrb[0].mxu0 %v225
  %v888 = vpop.f32.mrb[0].mxu0
  %v889 = vadd.f32 0.0, %v888
  %v890 = vpop.f32.mrb[0].mxu0
  %891 = vmatprep.mubr.f32.mxu0 0.0
  %892 = vmatmul.mubr.f32.gmra.mrb[0].mxu0 %v228
  %v893 = vpop.f32.mrb[0].mxu0
  %v894 = vadd.f32 0.0, %v893
  %v895 = vpop.f32.mrb[0].mxu0
  %896 = vmatprep.mubr.f32.mxu0 0.0
  %897 = vmatmul.mubr.f32.gmra.mrb[0].mxu0 %v231
  %v898 = vpop.f32.mrb[0].mxu0
  %v899 = vadd.f32 0.0, %v898
  %v900 = vpop.f32.mrb[0].mxu0
  %901 = vmatprep.mubr.f32.mxu0 0.0
  %902 = vmatmul.mubr.f32.gmra.mrb[0].mxu0 %v234
  %v903 = vpop.f32.mrb[0].mxu0
  %v904 = vadd.f32 0.0, %v903
  %v905 = vpop.f32.mrb[0].mxu0
  %906 = vmatprep.mubr.f32.mxu0 0.0
  %907 = vmatmul.mubr.f32.gmra.mrb[0].mxu0 %v237
  %v908 = vpop.f32.mrb[0].mxu0
  %v909 = vadd.f32 0.0, %v908
  %v910 = vpop.f32.mrb[0].mxu0
  %911 = vmatprep.mubr.f32.mxu0 0.0
  %912 = vmatmul.mubr.f32.gmra.mrb[0].mxu0 %v240
  %v913 = vpop.f32.mrb[0].mxu0
  %v914 = vadd.f32 0.0, %v913
  %v915 = vpop.f32.mrb[0].mxu0
  %916 = vmatprep.mubr.f32.mxu0 0.0
  %917 = vmatmul.mubr.f32.gmra.mrb[0].mxu0 %v243
  %v918 = vpop.f32.mrb[0].mxu0
  %v919 = vadd.f32 0.0, %v918
  %v920 = vpop.f32.mrb[0].mxu0
  %921 = vmatprep.mubr.f32.mxu0 0.0
  %922 = vmatmul.mubr.f32.gmra.mrb[0].mxu0 %v246
  %v923 = vpop.f32.mrb[0].mxu0
  %v924 = vadd.f32 0.0, %v923
  %v925 = vpop.f32.mrb[0].mxu0
  %926 = vmatprep.mubr.f32.mxu0 0.0
  %927 = vmatmul.mubr.f32.gmra.mrb[0].mxu0 %v249
  %v928 = vpop.f32.mrb[0].mxu0
  %v929 = vadd.f32 0.0, %v928
  %v930 = vpop.f32.mrb[0].mxu0
  %931 = vmatprep.mubr.f32.mxu0 0.0
  %932 = vmatmul.mubr.f32.gmra.mrb[0].mxu0 %v252
  %v933 = vpop.f32.mrb[0].mxu0
  %v934 = vadd.f32 0.0, %v933
  %v935 = vpop.f32.mrb[0].mxu0
  %936 = vmatprep.mubr.f32.mxu0 0.0
  %937 = vmatmul.mubr.f32.gmra.mrb[0].mxu0 %v255
  %v938 = vpop.f32.mrb[0].mxu0
  %v939 = vadd.f32 0.0, %v938
  %v940 = vpop.f32.mrb[0].mxu0
  %941 = vmatprep.mubr.f32.mxu0 0.0
  %942 = vmatmul.mubr.f32.gmra.mrb[0].mxu0 %v258
  %v943 = vpop.f32.mrb[0].mxu0
  %v944 = vadd.f32 0.0, %v943
  %v945 = vpop.f32.mrb[0].mxu0
  %946 = vmatprep.mubr.f32.mxu0 0.0
  %947 = vmatmul.mubr.f32.gmra.mrb[0].mxu0 %v261
  %v948 = vpop.f32.mrb[0].mxu0
  %v949 = vadd.f32 0.0, %v948
  %v950 = vpop.f32.mrb[0].mxu0
  %951 = vmatprep.mubr.f32.mxu0 0.0
  %952 = vmatmul.mubr.f32.gmra.mrb[0].mxu0 %v264
  %v953 = vpop.f32.mrb[0].mxu0
  %v954 = vadd.f32 0.0, %v953
  %v955 = vpop.f32.mrb[0].mxu0
  %956 = vmatprep.mubr.f32.mxu0 0.0
  %957 = vmatmul.mubr.f32.gmra.mrb[0].mxu0 %v267
  %v958 = vpop.f32.mrb[0].mxu0
  %v959 = vadd.f32 0.0, %v958
  %v960 = vpop.f32.mrb[0].mxu0
  %961 = vmatprep.mubr.f32.mxu0 0.0
  %962 = vmatmul.mubr.f32.gmra.mrb[0].mxu0 %v270
  %v963 = vpop.f32.mrb[0].mxu0
  %v964 = vadd.f32 0.0, %v963
  %v965 = vpop.f32.mrb[0].mxu0
  %966 = vmatprep.mubr.f32.mxu0 0.0
  %967 = vmatmul.mubr.f32.gmra.mrb[0].mxu0 %v273
  %v968 = vpop.f32.mrb[0].mxu0
  %v969 = vadd.f32 0.0, %v968
  %v970 = vpop.f32.mrb[0].mxu0
  %971 = vmatprep.mubr.f32.mxu0 0.0
  %972 = vmatmul.mubr.f32.gmra.mrb[0].mxu0 %v276
  %v973 = vpop.f32.mrb[0].mxu0
  %v974 = vadd.f32 0.0, %v973
  %v975 = vpop.f32.mrb[0].mxu0
  %976 = vmatprep.mubr.f32.mxu0 0.0
  %977 = vmatmul.mubr.f32.gmra.mrb[0].mxu0 %v279
  %v978 = vpop.f32.mrb[0].mxu0
  %v979 = vadd.f32 0.0, %v978
  %v980 = vpop.f32.mrb[0].mxu0
  %981 = vmatprep.mubr.f32.mxu0 0.0
  %982 = vmatmul.mubr.f32.gmra.mrb[0].mxu0 %v282
  %v983 = vpop.f32.mrb[0].mxu0
  %v984 = vadd.f32 0.0, %v983
  %v985 = vpop.f32.mrb[0].mxu0
  %986 = vmatprep.mubr.f32.mxu0 0.0
  %987 = vmatmul.mubr.f32.gmra.mrb[0].mxu0 %v285
  %v988 = vpop.f32.mrb[0].mxu0
  %v989 = vadd.f32 0.0, %v988
  %v990 = vpop.f32.mrb[0].mxu0
  %991 = vmatprep.mubr.f32.mxu0 0.0
  %992 = vmatmul.mubr.f32.gmra.mrb[0].mxu0 %v288
  %v993 = vpop.f32.mrb[0].mxu0
  %v994 = vadd.f32 0.0, %v993
  %v995 = vpop.f32.mrb[0].mxu0
  %996 = vmatprep.mubr.f32.mxu0 0.0
  %997 = vmatmul.mubr.f32.gmra.mrb[0].mxu0 %v291
  %v998 = vpop.f32.mrb[0].mxu0
  %v999 = vadd.f32 0.0, %v998
  %v1000 = vpop.f32.mrb[0].mxu0
  %1001 = vmatprep.mubr.f32.mxu0 0.0
  %1002 = vmatmul.mubr.f32.gmra.mrb[0].mxu0 %v294
  %v1003 = vpop.f32.mrb[0].mxu0
  %v1004 = vadd.f32 0.0, %v1003
  %v1005 = vpop.f32.mrb[0].mxu0
  %1006 = vmatprep.mubr.f32.mxu0 0.0
  %1007 = vmatmul.mubr.f32.gmra.mrb[0].mxu0 %v297
  %v1008 = vpop.f32.mrb[0].mxu0
  %v1009 = vadd.f32 0.0, %v1008
  %v1010 = vpop.f32.mrb[0].mxu0
  %1011 = vmatprep.mubr.f32.mxu0 0.0
  %1012 = vmatmul.mubr.f32.gmra.mrb[0].mxu0 %v300
  %v1013 = vpop.f32.mrb[0].mxu0
  %v1014 = vadd.f32 0.0, %v1013
  %v1015 = vpop.f32.mrb[0].mxu0
  %1016 = vmatprep.mubr.f32.mxu0 0.0
  %1017 = vmatmul.mubr.f32.gmra.mrb[0].mxu0 %v303
  %v1018 = vpop.f32.mrb[0].mxu0
  %v1019 = vadd.f32 0.0, %v1018
  %v1020 = vpop.f32.mrb[0].mxu0
  %1021 = vmatprep.mubr.f32.mxu0 0.0
  %1022 = vmatmul.mubr.f32.gmra.mrb[0].mxu0 %v306
  %v1023 = vpop.f32.mrb[0].mxu0
  %v1024 = vadd.f32 0.0, %v1023
  %v1025 = vpop.f32.mrb[0].mxu0
  %1026 = vmatprep.mubr.f32.mxu0 0.0
  %1027 = vmatmul.mubr.f32.gmra.mrb[0].mxu0 %v309
  %v1028 = vpop.f32.mrb[0].mxu0
  %v1029 = vadd.f32 0.0, %v1028
  %v1030 = vpop.f32.mrb[0].mxu0
  %1031 = vmatprep.mubr.f32.mxu0 0.0
  %1032 = vmatmul.mubr.f32.gmra.mrb[0].mxu0 %v312
  %v1033 = vpop.f32.mrb[0].mxu0
  %v1034 = vadd.f32 0.0, %v1033
  %v1035 = vpop.f32.mrb[0].mxu0
  %1036 = vmatprep.mubr.f32.mxu0 0.0
  %1037 = vmatmul.mubr.f32.gmra.mrb[0].mxu0 %v315
  %v1038 = vpop.f32.mrb[0].mxu0
  %v1039 = vadd.f32 0.0, %v1038
  %v1040 = vpop.f32.mrb[0].mxu0
  %1041 = vmatprep.mubr.f32.mxu0 0.0
  %1042 = vmatmul.mubr.f32.gmra.mrb[0].mxu0 %v318
  %v1043 = vpop.f32.mrb[0].mxu0
  %v1044 = vadd.f32 0.0, %v1043
  %v1045 = vpop.f32.mrb[0].mxu0
  %1046 = vmatprep.mubr.f32.mxu0 0.0
  %1047 = vmatmul.mubr.f32.gmra.mrb[0].mxu0 %v321
  %v1048 = vpop.f32.mrb[0].mxu0
  %v1049 = vadd.f32 0.0, %v1048
  %v1050 = vpop.f32.mrb[0].mxu0
  %1051 = vmatprep.mubr.f32.mxu0 0.0
  %1052 = vmatmul.mubr.f32.gmra.mrb[0].mxu0 %v324
  %v1053 = vpop.f32.mrb[0].mxu0
  %v1054 = vadd.f32 0.0, %v1053
  %v1055 = vpop.f32.mrb[0].mxu0
  %1056 = vmatprep.mubr.f32.mxu0 0.0
  %1057 = vmatmul.mubr.f32.gmra.mrb[0].mxu0 %v327
  %v1058 = vpop.f32.mrb[0].mxu0
  %v1059 = vadd.f32 0.0, %v1058
  %v1060 = vpop.f32.mrb[0].mxu0
  %1061 = vmatprep.mubr.f32.mxu0 0.0
  %1062 = vmatmul.mubr.f32.gmra.mrb[0].mxu0 %v330
  %v1063 = vpop.f32.mrb[0].mxu0
  %v1064 = vadd.f32 0.0, %v1063
  %v1065 = vpop.f32.mrb[0].mxu0
  %1066 = vmatprep.mubr.f32.mxu0 0.0
  %1067 = vmatmul.mubr.f32.gmra.mrb[0].mxu0 %v333
  %v1068 = vpop.f32.mrb[0].mxu0
  %v1069 = vadd.f32 0.0, %v1068
  %v1070 = vpop.f32.mrb[0].mxu0
  %1071 = vmatprep.mubr.f32.mxu0 0.0
  %1072 = vmatmul.mubr.f32.gmra.mrb[0].mxu0 %v336
  %v1073 = vpop.f32.mrb[0].mxu0
  %v1074 = vadd.f32 0.0, %v1073
  %v1075 = vpop.f32.mrb[0].mxu0
  %1076 = vmatprep.mubr.f32.mxu0 0.0
  %1077 = vmatmul.mubr.f32.gmra.mrb[0].mxu0 %v339
  %v1078 = vpop.f32.mrb[0].mxu0
  %v1079 = vadd.f32 0.0, %v1078
  %v1080 = vpop.f32.mrb[0].mxu0
  %1081 = vmatprep.mubr.f32.mxu0 0.0
  %1082 = vmatmul.mubr.f32.gmra.mrb[0].mxu0 %v342
  %v1083 = vpop.f32.mrb[0].mxu0
  %v1084 = vadd.f32 0.0, %v1083
  %v1085 = vpop.f32.mrb[0].mxu0
  %1086 = vmatprep.mubr.f32.mxu0 0.0
  %1087 = vmatmul.mubr.f32.gmra.mrb[0].mxu0 %v345
  %v1088 = vpop.f32.mrb[0].mxu0
  %v1089 = vadd.f32 0.0, %v1088
  %v1090 = vpop.f32.mrb[0].mxu0
  %1091 = vmatprep.mubr.f32.mxu0 0.0
  %1092 = vmatmul.mubr.f32.gmra.mrb[0].mxu0 %v348
  %v1093 = vpop.f32.mrb[0].mxu0
  %v1094 = vadd.f32 0.0, %v1093
  %v1095 = vpop.f32.mrb[0].mxu0
  %1096 = vmatprep.mubr.f32.mxu0 0.0
  %1097 = vmatmul.mubr.f32.gmra.mrb[0].mxu0 %v351
  %v1098 = vpop.f32.mrb[0].mxu0
  %v1099 = vadd.f32 0.0, %v1098
  %v1100 = vpop.f32.mrb[0].mxu0
  %1101 = vmatprep.mubr.f32.mxu0 0.0
  %1102 = vmatmul.mubr.f32.gmra.mrb[0].mxu0 %v354
  %v1103 = vpop.f32.mrb[0].mxu0
  %v1104 = vadd.f32 0.0, %v1103
  %v1105 = vpop.f32.mrb[0].mxu0
  %1106 = vmatprep.mubr.f32.mxu0 0.0
  %1107 = vmatmul.mubr.f32.gmra.mrb[0].mxu0 %v357
  %v1108 = vpop.f32.mrb[0].mxu0
  %v1109 = vadd.f32 0.0, %v1108
  %v1110 = vpop.f32.mrb[0].mxu0
  %1111 = vmatprep.mubr.f32.mxu0 0.0
  %1112 = vmatmul.mubr.f32.gmra.mrb[0].mxu0 %v360
  %v1113 = vpop.f32.mrb[0].mxu0
  %v1114 = vadd.f32 0.0, %v1113
  %v1115 = vpop.f32.mrb[0].mxu0
  %1116 = vmatprep.mubr.f32.mxu0 0.0
  %1117 = vmatmul.mubr.f32.gmra.mrb[0].mxu0 %v363
  %v1118 = vpop.f32.mrb[0].mxu0
  %v1119 = vadd.f32 0.0, %v1118
  %v1120 = vpop.f32.mrb[0].mxu0
  %1121 = vmatprep.mubr.f32.mxu0 0.0
  %1122 = vmatmul.mubr.f32.gmra.mrb[0].mxu0 %v366
  %v1123 = vpop.f32.mrb[0].mxu0
  %v1124 = vadd.f32 0.0, %v1123
  %v1125 = vpop.f32.mrb[0].mxu0
  %1126 = vmatprep.mubr.f32.mxu0 0.0
  %1127 = vmatmul.mubr.f32.gmra.mrb[0].mxu0 %v369
  %v1128 = vpop.f32.mrb[0].mxu0
  %v1129 = vadd.f32 0.0, %v1128
  %v1130 = vpop.f32.mrb[0].mxu0
  %1131 = vmatprep.mubr.f32.mxu0 0.0
  %1132 = vmatmul.mubr.f32.gmra.mrb[0].mxu0 %v372
  %v1133 = vpop.f32.mrb[0].mxu0
  %v1134 = vadd.f32 0.0, %v1133
  %v1135 = vpop.f32.mrb[0].mxu0
  %1136 = vmatprep.mubr.f32.mxu0 0.0
  %1137 = vmatmul.mubr.f32.gmra.mrb[0].mxu0 %v375
  %v1138 = vpop.f32.mrb[0].mxu0
  %v1139 = vadd.f32 0.0, %v1138
  %v1140 = vpop.f32.mrb[0].mxu0
  %1141 = vmatprep.mubr.f32.mxu0 0.0
  %1142 = vmatmul.mubr.f32.gmra.mrb[0].mxu0 %v378
  %v1143 = vpop.f32.mrb[0].mxu0
  %v1144 = vadd.f32 0.0, %v1143
  %v1145 = vpop.f32.mrb[0].mxu0
  %1146 = vmatprep.mubr.f32.mxu0 0.0
  %1147 = vmatmul.mubr.f32.gmra.mrb[0].mxu0 %v381
  %v1148 = vpop.f32.mrb[0].mxu0
  %v1149 = vadd.f32 0.0, %v1148
  %v1150 = vpop.f32.mrb[0].mxu0
  %1151 = vmatprep.mubr.f32.mxu0 0.0
  %1152 = vmatmul.mubr.f32.gmra.mrb[0].mxu0 %v384
  %v1153 = vpop.f32.mrb[0].mxu0
  %v1154 = vadd.f32 0.0, %v1153
  %v1155 = vpop.f32.mrb[0].mxu0
  %1156 = vmatprep.mubr.f32.mxu0 0.0
  %1157 = vmatmul.mubr.f32.gmra.mrb[0].mxu0 %v387
  %v1158 = vpop.f32.mrb[0].mxu0
  %v1159 = vadd.f32 0.0, %v1158
  %v1160 = vpop.f32.mrb[0].mxu0
  %1161 = vmatprep.mubr.f32.mxu0 0.0
  %1162 = vmatmul.mubr.f32.gmra.mrb[0].mxu0 %v390
  %v1163 = vpop.f32.mrb[0].mxu0
  %v1164 = vadd.f32 0.0, %v1163
  %v1165 = vpop.f32.mrb[0].mxu0
  %1166 = vmatprep.mubr.f32.mxu0 0.0
  %1167 = vmatmul.mubr.f32.gmra.mrb[0].mxu0 %v393
  %v1168 = vpop.f32.mrb[0].mxu0
  %v1169 = vadd.f32 0.0, %v1168
  %v1170 = vpop.f32.mrb[0].mxu0
  %1171 = vmatprep.mubr.f32.mxu0 0.0
  %1172 = vmatmul.mubr.f32.gmra.mrb[0].mxu0 %v396
  %v1173 = vpop.f32.mrb[0].mxu0
  %v1174 = vadd.f32 0.0, %v1173
  %v1175 = vpop.f32.mrb[0].mxu0
  %1176 = vmatprep.mubr.f32.mxu0 0.0
  %1177 = vmatmul.mubr.f32.gmra.mrb[0].mxu0 %v399
  %v1178 = vpop.f32.mrb[0].mxu0
  %v1179 = vadd.f32 0.0, %v1178
  %v1180 = vpop.f32.mrb[0].mxu0
  %1181 = vmatprep.mubr.f32.mxu0 0.0
  %1182 = vmatmul.mubr.f32.gmra.mrb[0].mxu0 %v402
  %v1183 = vpop.f32.mrb[0].mxu0
  %v1184 = vadd.f32 0.0, %v1183
  %v1185 = vpop.f32.mrb[0].mxu0
  %1186 = vmatprep.mubr.f32.mxu0 0.0
  %1187 = vmatmul.mubr.f32.gmra.mrb[0].mxu0 %v405
  %v1188 = vpop.f32.mrb[0].mxu0
  %v1189 = vadd.f32 0.0, %v1188
  %v1190 = vpop.f32.mrb[0].mxu0
  %1191 = vmatprep.mubr.f32.mxu0 0.0
  %1192 = vmatmul.mubr.f32.gmra.mrb[0].mxu0 %v408
  %v1193 = vpop.f32.mrb[0].mxu0
  %v1194 = vadd.f32 0.0, %v1193
  %v1195 = vpop.f32.mrb[0].mxu0
  %1196 = vmatprep.mubr.f32.mxu0 0.0
  %1197 = vmatmul.mubr.f32.gmra.mrb[0].mxu0 %v411
  %v1198 = vpop.f32.mrb[0].mxu0
  %v1199 = vadd.f32 0.0, %v1198
  %v1200 = vpop.f32.mrb[0].mxu0
  %1201 = vmatprep.mubr.f32.mxu0 0.0
  %1202 = vmatmul.mubr.f32.gmra.mrb[0].mxu0 %v414
  %v1203 = vpop.f32.mrb[0].mxu0
  %v1204 = vadd.f32 0.0, %v1203
  %v1205 = vpop.f32.mrb[0].mxu0
  %1206 = vmatprep.mubr.f32.mxu0 0.0
  %1207 = vmatmul.mubr.f32.gmra.mrb[0].mxu0 %v417
  %v1208 = vpop.f32.mrb[0].mxu0
  %v1209 = vadd.f32 0.0, %v1208
  %v1210 = vpop.f32.mrb[0].mxu0
  %1211 = vmatprep.mubr.f32.mxu0 0.0
  %1212 = vmatmul.mubr.f32.gmra.mrb[0].mxu0 %v420
  %v1213 = vpop.f32.mrb[0].mxu0
  %v1214 = vadd.f32 0.0, %v1213
  %v1215 = vpop.f32.mrb[0].mxu0
  %1216 = vmatprep.mubr.f32.mxu0 0.0
  %1217 = vmatmul.mubr.f32.gmra.mrb[0].mxu0 %v423
  %v1218 = vpop.f32.mrb[0].mxu0
  %v1219 = vadd.f32 0.0, %v1218
  %v1220 = vpop.f32.mrb[0].mxu0
  %1221 = vmatprep.mubr.f32.mxu0 0.0
  %1222 = vmatmul.mubr.f32.gmra.mrb[0].mxu0 %v426
  %v1223 = vpop.f32.mrb[0].mxu0
  %v1224 = vadd.f32 0.0, %v1223
  %v1225 = vpop.f32.mrb[0].mxu0
  %1226 = vmatprep.mubr.f32.mxu0 0.0
  %1227 = vmatmul.mubr.f32.gmra.mrb[0].mxu0 %v429
  %v1228 = vpop.f32.mrb[0].mxu0
  %v1229 = vadd.f32 0.0, %v1228
  %v1230 = vpop.f32.mrb[0].mxu0
  %1231 = vmatprep.mubr.f32.mxu0 0.0
  %1232 = vmatmul.mubr.f32.gmra.mrb[0].mxu0 %v432
  %v1233 = vpop.f32.mrb[0].mxu0
  %v1234 = vadd.f32 0.0, %v1233
  %v1235 = vpop.f32.mrb[0].mxu0
  %1236 = vmatprep.mubr.f32.mxu0 0.0
  %1237 = vmatmul.mubr.f32.gmra.mrb[0].mxu0 %v435
  %v1238 = vpop.f32.mrb[0].mxu0
  %v1239 = vadd.f32 0.0, %v1238
  %v1240 = vpop.f32.mrb[0].mxu0
  %1241 = vmatprep.mubr.f32.mxu0 0.0
  %1242 = vmatmul.mubr.f32.gmra.mrb[0].mxu0 %v438
  %v1243 = vpop.f32.mrb[0].mxu0
  %v1244 = vadd.f32 0.0, %v1243
  %v1245 = vpop.f32.mrb[0].mxu0
  %1246 = vmatprep.mubr.f32.mxu0 0.0
  %1247 = vmatmul.mubr.f32.gmra.mrb[0].mxu0 %v441
  %v1248 = vpop.f32.mrb[0].mxu0
  %v1249 = vadd.f32 0.0, %v1248
  %v1250 = vpop.f32.mrb[0].mxu0
  %1251 = vmatprep.mubr.f32.mxu0 0.0
  %1252 = vmatmul.mubr.f32.gmra.mrb[0].mxu0 %v444
  %v1253 = vpop.f32.mrb[0].mxu0
  %v1254 = vadd.f32 0.0, %v1253
  %v1255 = vpop.f32.mrb[0].mxu0
  %1256 = vmatprep.mubr.f32.mxu0 0.0
  %1257 = vmatmul.mubr.f32.gmra.mrb[0].mxu0 %v447
  %v1258 = vpop.f32.mrb[0].mxu0
  %v1259 = vadd.f32 0.0, %v1258
  %v1260 = vpop.f32.mrb[0].mxu0
  %1261 = vmatprep.mubr.f32.mxu0 0.0
  %1262 = vmatmul.mubr.f32.gmra.mrb[0].mxu0 %v450
  %v1263 = vpop.f32.mrb[0].mxu0
  %v1264 = vadd.f32 0.0, %v1263
  %v1265 = vpop.f32.mrb[0].mxu0
  %1266 = vmatprep.mubr.f32.mxu0 0.0
  %1267 = vmatmul.mubr.f32.gmra.mrb[0].mxu0 %v453
  %v1268 = vpop.f32.mrb[0].mxu0
  %v1269 = vadd.f32 0.0, %v1268
  %v1270 = vpop.f32.mrb[0].mxu0
  %1271 = vmatprep.mubr.f32.mxu0 0.0
  %1272 = vmatmul.mubr.f32.gmra.mrb[0].mxu0 %v456
  %v1273 = vpop.f32.mrb[0].mxu0
  %v1274 = vadd.f32 0.0, %v1273
  %v1275 = vpop.f32.mrb[0].mxu0
  %1276 = vmatprep.mubr.f32.mxu0 0.0
  %1277 = vmatmul.mubr.f32.gmra.mrb[0].mxu0 %v459
  %v1278 = vpop.f32.mrb[0].mxu0
  %v1279 = vadd.f32 0.0, %v1278
  %v1280 = vpop.f32.mrb[0].mxu0
  %1281 = vmatprep.mubr.f32.mxu0 0.0
  %1282 = vmatmul.mubr.f32.gmra.mrb[0].mxu0 %v462
  %v1283 = vpop.f32.mrb[0].mxu0
  %v1284 = vadd.f32 0.0, %v1283
  %v1285 = vpop.f32.mrb[0].mxu0
  %1286 = vmatprep.mubr.f32.mxu0 0.0
  %1287 = vmatmul.mubr.f32.gmra.mrb[0].mxu0 %v465
  %v1288 = vpop.f32.mrb[0].mxu0
  %v1289 = vadd.f32 0.0, %v1288
  %v1290 = vpop.f32.mrb[0].mxu0
  %1291 = vmatprep.mubr.f32.mxu0 0.0
  %1292 = vmatmul.mubr.f32.gmra.mrb[0].mxu0 %v468
  %v1293 = vpop.f32.mrb[0].mxu0
  %v1294 = vadd.f32 0.0, %v1293
  %v1295 = vpop.f32.mrb[0].mxu0
  %1296 = vmatprep.mubr.f32.mxu0 0.0
  %1297 = vmatmul.mubr.f32.gmra.mrb[0].mxu0 %v471
  %v1298 = vpop.f32.mrb[0].mxu0
  %v1299 = vadd.f32 0.0, %v1298
  %v1300 = vpop.f32.mrb[0].mxu0
  %1301 = vmatprep.mubr.f32.mxu0 0.0
  %1302 = vmatmul.mubr.f32.gmra.mrb[0].mxu0 %v474
  %v1303 = vpop.f32.mrb[0].mxu0
  %v1304 = vadd.f32 0.0, %v1303
  %v1305 = vpop.f32.mrb[0].mxu0
  %1306 = vmatprep.mubr.f32.mxu0 0.0
  %1307 = vmatmul.mubr.f32.gmra.mrb[0].mxu0 %v477
  %v1308 = vpop.f32.mrb[0].mxu0
  %v1309 = vadd.f32 0.0, %v1308
  %v1310 = vpop.f32.mrb[0].mxu0
  %1311 = vmatprep.mubr.f32.mxu0 0.0
  %1312 = vmatmul.mubr.f32.gmra.mrb[0].mxu0 %v480
  %v1313 = vpop.f32.mrb[0].mxu0
  %v1314 = vadd.f32 0.0, %v1313
  %v1315 = vpop.f32.mrb[0].mxu0
  %1316 = vmatprep.mubr.f32.mxu0 0.0
  %1317 = vmatmul.mubr.f32.gmra.mrb[0].mxu0 %v483
  %v1318 = vpop.f32.mrb[0].mxu0
  %v1319 = vadd.f32 0.0, %v1318
  %v1320 = vpop.f32.mrb[0].mxu0
  %1321 = vmatprep.mubr.f32.mxu0 0.0
  %1322 = vmatmul.mubr.f32.gmra.mrb[0].mxu0 %v486
  %v1323 = vpop.f32.mrb[0].mxu0
  %v1324 = vadd.f32 0.0, %v1323
  %v1325 = vpop.f32.mrb[0].mxu0
  %1326 = vmatprep.mubr.f32.mxu0 0.0
  %1327 = vmatmul.mubr.f32.gmra.mrb[0].mxu0 %v489
  %v1328 = vpop.f32.mrb[0].mxu0
  %v1329 = vadd.f32 0.0, %v1328
  %v1330 = vpop.f32.mrb[0].mxu0
  %1331 = vmatprep.mubr.f32.mxu0 0.0
  %1332 = vmatmul.mubr.f32.gmra.mrb[0].mxu0 %v492
  %v1333 = vpop.f32.mrb[0].mxu0
  %v1334 = vadd.f32 0.0, %v1333
  %v1335 = vpop.f32.mrb[0].mxu0
  %1336 = vmatprep.mubr.f32.mxu0 0.0
  %1337 = vmatmul.mubr.f32.gmra.mrb[0].mxu0 %v495
  %v1338 = vpop.f32.mrb[0].mxu0
  %v1339 = vadd.f32 0.0, %v1338
  %v1340 = vpop.f32.mrb[0].mxu0
  %1341 = vmatprep.mubr.f32.mxu0 0.0
  %1342 = vmatmul.mubr.f32.gmra.mrb[0].mxu0 %v498
  %v1343 = vpop.f32.mrb[0].mxu0
  %v1344 = vadd.f32 0.0, %v1343
  %v1345 = vpop.f32.mrb[0].mxu0
  %1346 = vmatprep.mubr.f32.mxu0 0.0
  %1347 = vmatmul.mubr.f32.gmra.mrb[0].mxu0 %v501
  %v1348 = vpop.f32.mrb[0].mxu0
  %v1349 = vadd.f32 0.0, %v1348
  %v1350 = vpop.f32.mrb[0].mxu0
  %1351 = vmatprep.mubr.f32.mxu0 0.0
  %1352 = vmatmul.mubr.f32.gmra.mrb[0].mxu0 %v504
  %v1353 = vpop.f32.mrb[0].mxu0
  %v1354 = vadd.f32 0.0, %v1353
  %v1355 = vpop.f32.mrb[0].mxu0
  %1356 = vmatprep.mubr.f32.mxu0 0.0
  %1357 = vmatmul.mubr.f32.gmra.mrb[0].mxu0 %v507
  %v1358 = vpop.f32.mrb[0].mxu0
  %v1359 = vadd.f32 0.0, %v1358
  %v1360 = vpop.f32.mrb[0].mxu0
  %1361 = vmatprep.mubr.f32.mxu0 0.0
  %1362 = vmatmul.mubr.f32.gmra.mrb[0].mxu0 %v510
  %v1363 = vpop.f32.mrb[0].mxu0
  %v1364 = vadd.f32 0.0, %v1363
  %v1365 = vpop.f32.mrb[0].mxu0
  %1366 = vmatprep.mubr.f32.mxu0 0.0
  %1367 = vmatmul.mubr.f32.gmra.mrb[0].mxu0 %v513
  %v1368 = vpop.f32.mrb[0].mxu0
  %v1369 = vadd.f32 0.0, %v1368
  %v1370 = vpop.f32.mrb[0].mxu0
  %1371 = vmatprep.mubr.f32.mxu0 0.0
  %1372 = vmatmul.mubr.f32.gmra.mrb[0].mxu0 %v516
  %v1373 = vpop.f32.mrb[0].mxu0
  %v1374 = vadd.f32 0.0, %v1373
  %v1375 = vpop.f32.mrb[0].mxu0
  %1376 = vmatprep.mubr.f32.mxu0 0.0
  %1377 = vmatmul.mubr.f32.gmra.mrb[0].mxu0 %v519
  %v1378 = vpop.f32.mrb[0].mxu0
  %v1379 = vadd.f32 0.0, %v1378
  %v1380 = vpop.f32.mrb[0].mxu0
  %1381 = vmatprep.mubr.f32.mxu0 0.0
  %1382 = vmatmul.mubr.f32.gmra.mrb[0].mxu0 %v522
  %v1383 = vpop.f32.mrb[0].mxu0
  %v1384 = vadd.f32 0.0, %v1383
  %v1385 = vpop.f32.mrb[0].mxu0
  %1386 = vmatprep.mubr.f32.mxu0 0.0
  %1387 = vmatmul.mubr.f32.gmra.mrb[0].mxu0 %v525
  %v1388 = vpop.f32.mrb[0].mxu0
  %v1389 = vadd.f32 0.0, %v1388
  %v1390 = vpop.f32.mrb[0].mxu0
  %1391 = vmatprep.mubr.f32.mxu0 0.0
  %1392 = vmatmul.mubr.f32.gmra.mrb[0].mxu0 %v528
  %v1393 = vpop.f32.mrb[0].mxu0
  %v1394 = vadd.f32 0.0, %v1393
  %v1395 = vpop.f32.mrb[0].mxu0
  %1396 = vmatprep.mubr.f32.mxu0 0.0
  %1397 = vmatmul.mubr.f32.gmra.mrb[0].mxu0 %v531
  %v1398 = vpop.f32.mrb[0].mxu0
  %v1399 = vadd.f32 0.0, %v1398
  %v1400 = vpop.f32.mrb[0].mxu0
  %1401 = vmatprep.mubr.f32.mxu0 0.0
  %1402 = vmatmul.mubr.f32.gmra.mrb[0].mxu0 %v534
  %v1403 = vpop.f32.mrb[0].mxu0
  %v1404 = vadd.f32 0.0, %v1403
  %v1405 = vpop.f32.mrb[0].mxu0
  %1406 = vmatprep.mubr.f32.mxu0 0.0
  %1407 = vmatmul.mubr.f32.gmra.mrb[0].mxu0 %v537
  %v1408 = vpop.f32.mrb[0].mxu0
  %v1409 = vadd.f32 0.0, %v1408
  %v1410 = vpop.f32.mrb[0].mxu0
  %1411 = vmatprep.mubr.f32.mxu0 0.0
  %1412 = vmatmul.mubr.f32.gmra.mrb[0].mxu0 %v540
  %v1413 = vpop.f32.mrb[0].mxu0
  %v1414 = vadd.f32 0.0, %v1413
  %v1415 = vpop.f32.mrb[0].mxu0
  %1416 = vmatprep.mubr.f32.mxu0 0.0
  %1417 = vmatmul.mubr.f32.gmra.mrb[0].mxu0 %v543
  %v1418 = vpop.f32.mrb[0].mxu0
  %v1419 = vadd.f32 0.0, %v1418
  %v1420 = vpop.f32.mrb[0].mxu0
  %1421 = vmatprep.mubr.f32.mxu0 0.0
  %1422 = vmatmul.mubr.f32.gmra.mrb[0].mxu0 %v546
  %v1423 = vpop.f32.mrb[0].mxu0
  %v1424 = vadd.f32 0.0, %v1423
  %v1425 = vpop.f32.mrb[0].mxu0
  %1426 = vmatprep.mubr.f32.mxu0 0.0
  %1427 = vmatmul.mubr.f32.gmra.mrb[0].mxu0 %v549
  %v1428 = vpop.f32.mrb[0].mxu0
  %v1429 = vadd.f32 0.0, %v1428
  %v1430 = vpop.f32.mrb[0].mxu0
  %1431 = vmatprep.mubr.f32.mxu0 0.0
  %1432 = vmatmul.mubr.f32.gmra.mrb[0].mxu0 %v552
  %v1433 = vpop.f32.mrb[0].mxu0
  %v1434 = vadd.f32 0.0, %v1433
  %v1435 = vpop.f32.mrb[0].mxu0
  %1436 = vmatprep.mubr.f32.mxu0 0.0
  %1437 = vmatmul.mubr.f32.gmra.mrb[0].mxu0 %v555
  %v1438 = vpop.f32.mrb[0].mxu0
  %v1439 = vadd.f32 0.0, %v1438
  %v1440 = vpop.f32.mrb[0].mxu0
  %1441 = vmatprep.mubr.f32.mxu0 0.0
  %1442 = vmatmul.mubr.f32.gmra.mrb[0].mxu0 %v558
  %v1443 = vpop.f32.mrb[0].mxu0
  %v1444 = vadd.f32 0.0, %v1443
  %v1445 = vpop.f32.mrb[0].mxu0
  %1446 = vmatprep.mubr.f32.mxu0 0.0
  %1447 = vmatmul.mubr.f32.gmra.mrb[0].mxu0 %v561
  %v1448 = vpop.f32.mrb[0].mxu0
  %v1449 = vadd.f32 0.0, %v1448
  %v1450 = vpop.f32.mrb[0].mxu0
  %1451 = vmatprep.mubr.f32.mxu0 0.0
  %1452 = vmatmul.mubr.f32.gmra.mrb[0].mxu0 %v564
  %v1453 = vpop.f32.mrb[0].mxu0
  %v1454 = vadd.f32 0.0, %v1453
  %v1455 = vpop.f32.mrb[0].mxu0
  %1456 = vmatprep.mubr.f32.mxu0 0.0
  %1457 = vmatmul.mubr.f32.gmra.mrb[0].mxu0 %v567
  %v1458 = vpop.f32.mrb[0].mxu0
  %v1459 = vadd.f32 0.0, %v1458
  %v1460 = vpop.f32.mrb[0].mxu0
  %1461 = vmatprep.mubr.f32.mxu0 0.0
  %1462 = vmatmul.mubr.f32.gmra.mrb[0].mxu0 %v570
  %v1463 = vpop.f32.mrb[0].mxu0
  %v1464 = vadd.f32 0.0, %v1463
  %v1465 = vpop.f32.mrb[0].mxu0
  %1466 = vmatprep.mubr.f32.mxu0 0.0
  %1467 = vmatmul.mubr.f32.gmra.mrb[0].mxu0 %v573
  %v1468 = vpop.f32.mrb[0].mxu0
  %v1469 = vadd.f32 0.0, %v1468
  %v1470 = vpop.f32.mrb[0].mxu0
  %1471 = vmatprep.mubr.f32.mxu0 0.0
  %1472 = vmatmul.mubr.f32.gmra.mrb[0].mxu0 %v576
  %v1473 = vpop.f32.mrb[0].mxu0
  %v1474 = vadd.f32 0.0, %v1473
  %v1475 = vpop.f32.mrb[0].mxu0
  %1476 = vmatprep.mubr.f32.mxu0 0.0
  %1477 = vmatmul.mubr.f32.gmra.mrb[0].mxu0 %v579
  %v1478 = vpop.f32.mrb[0].mxu0
  %v1479 = vadd.f32 0.0, %v1478
  %v1480 = vpop.f32.mrb[0].mxu0
  %1481 = vmatprep.mubr.f32.mxu0 0.0
  %1482 = vmatmul.mubr.f32.gmra.mrb[0].mxu0 %v582
  %v1483 = vpop.f32.mrb[0].mxu0
  %v1484 = vadd.f32 0.0, %v1483
  %v1485 = vpop.f32.mrb[0].mxu0
  %1486 = vmatprep.mubr.f32.mxu0 0.0
  %1487 = vmatmul.mubr.f32.gmra.mrb[0].mxu0 %v585
  %v1488 = vpop.f32.mrb[0].mxu0
  %v1489 = vadd.f32 0.0, %v1488
  %v1490 = vpop.f32.mrb[0].mxu0
  %1491 = vmatprep.mubr.f32.mxu0 0.0
  %1492 = vmatmul.mubr.f32.gmra.mrb[0].mxu0 %v588
  %v1493 = vpop.f32.mrb[0].mxu0
  %v1494 = vadd.f32 0.0, %v1493
  %v1495 = vpop.f32.mrb[0].mxu0
  %1496 = vmatprep.mubr.f32.mxu0 0.0
  %1497 = vmatmul.mubr.f32.gmra.mrb[0].mxu0 %v591
  %v1498 = vpop.f32.mrb[0].mxu0
  %v1499 = vadd.f32 0.0, %v1498
  %v1500 = vpop.f32.mrb[0].mxu0
  %1501 = vmatprep.mubr.f32.mxu0 0.0
  %1502 = vmatmul.mubr.f32.gmra.mrb[0].mxu0 %v594
  %v1503 = vpop.f32.mrb[0].mxu0
  %v1504 = vadd.f32 0.0, %v1503
  %v1505 = vpop.f32.mrb[0].mxu0
  %1506 = vmatprep.mubr.f32.mxu0 0.0
  %1507 = vmatmul.mubr.f32.gmra.mrb[0].mxu0 %v597
  %v1508 = vpop.f32.mrb[0].mxu0
  %v1509 = vadd.f32 0.0, %v1508
  %v1510 = vpop.f32.mrb[0].mxu0
  %1511 = vmatprep.mubr.f32.mxu0 0.0
  %1512 = vmatmul.mubr.f32.gmra.mrb[0].mxu0 %v600
  %v1513 = vpop.f32.mrb[0].mxu0
  %v1514 = vadd.f32 0.0, %v1513
  %v1515 = vpop.f32.mrb[0].mxu0
  %1516 = vmatprep.mubr.f32.mxu0 0.0
  %1517 = vmatmul.mubr.f32.gmra.mrb[0].mxu0 %v603
  %v1518 = vpop.f32.mrb[0].mxu0
  %v1519 = vadd.f32 0.0, %v1518
  %v1520 = vpop.f32.mrb[0].mxu0
  %1521 = vmatprep.mubr.f32.mxu0 0.0
  %1522 = vmatmul.mubr.f32.gmra.mrb[0].mxu0 %v606
  %v1523 = vpop.f32.mrb[0].mxu0
  %v1524 = vadd.f32 0.0, %v1523
  %v1525 = vpop.f32.mrb[0].mxu0
  %1526 = vmatprep.mubr.f32.mxu0 0.0
  %1527 = vmatmul.mubr.f32.gmra.mrb[0].mxu0 %v609
  %v1528 = vpop.f32.mrb[0].mxu0
  %v1529 = vadd.f32 0.0, %v1528
  %v1530 = vpop.f32.mrb[0].mxu0
  %1531 = vmatprep.mubr.f32.mxu0 0.0
  %1532 = vmatmul.mubr.f32.gmra.mrb[0].mxu0 %v612
  %v1533 = vpop.f32.mrb[0].mxu0
  %v1534 = vadd.f32 0.0, %v1533
  %v1535 = vpop.f32.mrb[0].mxu0
  %1536 = vmatprep.mubr.f32.mxu0 0.0
  %1537 = vmatmul.mubr.f32.gmra.mrb[0].mxu0 %v615
  %v1538 = vpop.f32.mrb[0].mxu0
  %v1539 = vadd.f32 0.0, %v1538
  %v1540 = vpop.f32.mrb[0].mxu0
  %1541 = vmatprep.mubr.f32.mxu0 0.0
  %1542 = vmatmul.mubr.f32.gmra.mrb[0].mxu0 %v618
  %v1543 = vpop.f32.mrb[0].mxu0
  %v1544 = vadd.f32 0.0, %v1543
  %v1545 = vpop.f32.mrb[0].mxu0
  %1546 = vmatprep.mubr.f32.mxu0 0.0
  %1547 = vmatmul.mubr.f32.gmra.mrb[0].mxu0 %v621
  %v1548 = vpop.f32.mrb[0].mxu0
  %v1549 = vadd.f32 0.0, %v1548
  %v1550 = vpop.f32.mrb[0].mxu0
  %1551 = vmatprep.mubr.f32.mxu0 0.0
  %1552 = vmatmul.mubr.f32.gmra.mrb[0].mxu0 %v624
  %v1553 = vpop.f32.mrb[0].mxu0
  %v1554 = vadd.f32 0.0, %v1553
  %v1555 = vpop.f32.mrb[0].mxu0
  %1556 = vmatprep.mubr.f32.mxu0 0.0
  %1557 = vmatmul.mubr.f32.gmra.mrb[0].mxu0 %v627
  %v1558 = vpop.f32.mrb[0].mxu0
  %v1559 = vadd.f32 0.0, %v1558
  %v1560 = vpop.f32.mrb[0].mxu0
  %1561 = vmatprep.mubr.f32.mxu0 0.0
  %1562 = vmatmul.mubr.f32.gmra.mrb[0].mxu0 %v630
  %v1563 = vpop.f32.mrb[0].mxu0
  %v1564 = vadd.f32 0.0, %v1563
  %v1565 = vpop.f32.mrb[0].mxu0
  %1566 = vmatprep.mubr.f32.mxu0 0.0
  %1567 = vmatmul.mubr.f32.gmra.mrb[0].mxu0 %v633
  %v1568 = vpop.f32.mrb[0].mxu0
  %v1569 = vadd.f32 0.0, %v1568
  %v1570 = vpop.f32.mrb[0].mxu0
  %1571 = vmatprep.mubr.f32.mxu0 0.0
  %1572 = vmatmul.mubr.f32.gmra.mrb[0].mxu0 %v636
  %v1573 = vpop.f32.mrb[0].mxu0
  %v1574 = vadd.f32 0.0, %v1573
  %v1575 = vpop.f32.mrb[0].mxu0
  %1576 = vmatprep.mubr.f32.mxu0 0.0
  %1577 = vmatmul.mubr.f32.gmra.mrb[0].mxu0 %v639
  %v1578 = vpop.f32.mrb[0].mxu0
  %v1579 = vadd.f32 0.0, %v1578
  %v1580 = vpop.f32.mrb[0].mxu0
  %1581 = vmatprep.mubr.f32.mxu0 0.0
  %1582 = vmatmul.mubr.f32.gmra.mrb[0].mxu0 %v642
  %v1583 = vpop.f32.mrb[0].mxu0
  %v1584 = vadd.f32 0.0, %v1583
  %v1585 = vpop.f32.mrb[0].mxu0
  %1586 = vmatprep.mubr.f32.mxu0 0.0
  %1587 = vmatmul.mubr.f32.gmra.mrb[0].mxu0 %v645
  %v1588 = vpop.f32.mrb[0].mxu0
  %v1589 = vadd.f32 0.0, %v1588
  %v1590 = vpop.f32.mrb[0].mxu0
  %1591 = vmatprep.mubr.f32.mxu0 0.0
  %1592 = vmatmul.mubr.f32.gmra.mrb[0].mxu0 %v648
  %v1593 = vpop.f32.mrb[0].mxu0
  %v1594 = vadd.f32 0.0, %v1593
  %v1595 = vpop.f32.mrb[0].mxu0
  %1596 = vmatprep.mubr.f32.mxu0 0.0
  %1597 = vmatmul.mubr.f32.gmra.mrb[0].mxu0 %v651
  %v1598 = vpop.f32.mrb[0].mxu0
  %v1599 = vadd.f32 0.0, %v1598
  %v1600 = vpop.f32.mrb[0].mxu0
  %1601 = vmatprep.mubr.f32.mxu0 0.0
  %1602 = vmatmul.mubr.f32.gmra.mrb[0].mxu0 %v654
  %v1603 = vpop.f32.mrb[0].mxu0
  %v1604 = vadd.f32 0.0, %v1603
  %v1605 = vpop.f32.mrb[0].mxu0
  %1606 = vmatprep.mubr.f32.mxu0 0.0
  %1607 = vmatmul.mubr.f32.gmra.mrb[0].mxu0 %v657
  %v1608 = vpop.f32.mrb[0].mxu0
  %v1609 = vadd.f32 0.0, %v1608
  %v1610 = vpop.f32.mrb[0].mxu0
  %1611 = vmatprep.mubr.f32.mxu0 0.0
  %1612 = vmatmul.mubr.f32.gmra.mrb[0].mxu0 %v660
  %v1613 = vpop.f32.mrb[0].mxu0
  %v1614 = vadd.f32 0.0, %v1613
  %v1615 = vpop.f32.mrb[0].mxu0
  %1616 = vmatprep.mubr.f32.mxu0 0.0
  %1617 = vmatmul.mubr.f32.gmra.mrb[0].mxu0 %v663
  %v1618 = vpop.f32.mrb[0].mxu0
  %v1619 = vadd.f32 0.0, %v1618
  %v1620 = vpop.f32.mrb[0].mxu0
  %1621 = vmatprep.mubr.f32.mxu0 0.0
  %1622 = vmatmul.mubr.f32.gmra.mrb[0].mxu0 %v666
  %v1623 = vpop.f32.mrb[0].mxu0
  %v1624 = vadd.f32 0.0, %v1623
  %v1625 = vpop.f32.mrb[0].mxu0
  %1626 = vmatprep.mubr.f32.mxu0 0.0
  %1627 = vmatmul.mubr.f32.gmra.mrb[0].mxu0 %v669
  %v1628 = vpop.f32.mrb[0].mxu0
  %v1629 = vadd.f32 0.0, %v1628
  %v1630 = vpop.f32.mrb[0].mxu0
  %1631 = vmatprep.mubr.f32.mxu0 0.0
  %1632 = vmatmul.mubr.f32.gmra.mrb[0].mxu0 %v672
  %v1633 = vpop.f32.mrb[0].mxu0
  %v1634 = vadd.f32 0.0, %v1633
  %v1635 = vpop.f32.mrb[0].mxu0
  %1636 = vmatprep.mubr.f32.mxu0 0.0
  %1637 = vmatmul.mubr.f32.gmra.mrb[0].mxu0 %v675
  %v1638 = vpop.f32.mrb[0].mxu0
  %v1639 = vadd.f32 0.0, %v1638
  %v1640 = vpop.f32.mrb[0].mxu0
  %1641 = vmatprep.mubr.f32.mxu0 0.0
  %1642 = vmatmul.mubr.f32.gmra.mrb[0].mxu0 %v678
  %v1643 = vpop.f32.mrb[0].mxu0
  %v1644 = vadd.f32 0.0, %v1643
  %v1645 = vpop.f32.mrb[0].mxu0
  %1646 = vmatprep.mubr.f32.mxu0 0.0
  %1647 = vmatmul.mubr.f32.gmra.mrb[0].mxu0 %v681
  %v1648 = vpop.f32.mrb[0].mxu0
  %v1649 = vadd.f32 0.0, %v1648
  %v1650 = vpop.f32.mrb[0].mxu0
  %1651 = vmatprep.mubr.f32.mxu0 0.0
  %1652 = vmatmul.mubr.f32.gmra.mrb[0].mxu0 %v684
  %v1653 = vpop.f32.mrb[0].mxu0
  %v1654 = vadd.f32 0.0, %v1653
  %v1655 = vpop.f32.mrb[0].mxu0
  %1656 = vmatprep.mubr.f32.mxu0 0.0
  %1657 = vmatmul.mubr.f32.gmra.mrb[0].mxu0 %v687
  %v1658 = vpop.f32.mrb[0].mxu0
  %v1659 = vadd.f32 0.0, %v1658
  %v1660 = vpop.f32.mrb[0].mxu0
  %1661 = vmatprep.mubr.f32.mxu0 0.0
  %1662 = vmatmul.mubr.f32.gmra.mrb[0].mxu0 %v690
  %v1663 = vpop.f32.mrb[0].mxu0
  %v1664 = vadd.f32 0.0, %v1663
  %v1665 = vpop.f32.mrb[0].mxu0
  %1666 = vmatprep.mubr.f32.mxu0 0.0
  %1667 = vmatmul.mubr.f32.gmra.mrb[0].mxu0 %v693
  %v1668 = vpop.f32.mrb[0].mxu0
  %v1669 = vadd.f32 0.0, %v1668
  %v1670 = vpop.f32.mrb[0].mxu0
  %1671 = vmatprep.mubr.f32.mxu0 0.0
  %1672 = vmatmul.mubr.f32.gmra.mrb[0].mxu0 %v696
  %v1673 = vpop.f32.mrb[0].mxu0
  %v1674 = vadd.f32 0.0, %v1673
  %v1675 = vpop.f32.mrb[0].mxu0
  %1676 = vmatprep.mubr.f32.mxu0 0.0
  %1677 = vmatmul.mubr.f32.gmra.mrb[0].mxu0 %v699
  %v1678 = vpop.f32.mrb[0].mxu0
  %v1679 = vadd.f32 0.0, %v1678
  %v1680 = vpop.f32.mrb[0].mxu0
  %1681 = vmatprep.mubr.f32.mxu0 0.0
  %1682 = vmatmul.mubr.f32.gmra.mrb[0].mxu0 %v702
  %v1683 = vpop.f32.mrb[0].mxu0
  %v1684 = vadd.f32 0.0, %v1683
  %v1685 = vpop.f32.mrb[0].mxu0
  %1686 = vmatprep.mubr.f32.mxu0 0.0
  %1687 = vmatmul.mubr.f32.gmra.mrb[0].mxu0 %v705
  %v1688 = vpop.f32.mrb[0].mxu0
  %v1689 = vadd.f32 0.0, %v1688
  %v1690 = vpop.f32.mrb[0].mxu0
  %1691 = vmatprep.mubr.f32.mxu0 0.0
  %1692 = vmatmul.mubr.f32.gmra.mrb[0].mxu0 %v708
  %v1693 = vpop.f32.mrb[0].mxu0
  %v1694 = vadd.f32 0.0, %v1693
  %v1695 = vpop.f32.mrb[0].mxu0
  %1696 = vmatprep.mubr.f32.mxu0 0.0
  %1697 = vmatmul.mubr.f32.gmra.mrb[0].mxu0 %v711
  %v1698 = vpop.f32.mrb[0].mxu0
  %v1699 = vadd.f32 0.0, %v1698
  %v1700 = vpop.f32.mrb[0].mxu0
  %1701 = vmatprep.mubr.f32.mxu0 0.0
  %1702 = vmatmul.mubr.f32.gmra.mrb[0].mxu0 %v714
  %v1703 = vpop.f32.mrb[0].mxu0
  %v1704 = vadd.f32 0.0, %v1703
  %v1705 = vpop.f32.mrb[0].mxu0
  %1706 = vmatprep.mubr.f32.mxu0 0.0
  %1707 = vmatmul.mubr.f32.gmra.mrb[0].mxu0 %v717
  %v1708 = vpop.f32.mrb[0].mxu0
  %v1709 = vadd.f32 0.0, %v1708
  %v1710 = vpop.f32.mrb[0].mxu0
  %1711 = vmatprep.mubr.f32.mxu0 0.0
  %1712 = vmatmul.mubr.f32.gmra.mrb[0].mxu0 %v720
  %v1713 = vpop.f32.mrb[0].mxu0
  %v1714 = vadd.f32 0.0, %v1713
  %v1715 = vpop.f32.mrb[0].mxu0
  %1716 = vmatprep.mubr.f32.mxu0 0.0
  %1717 = vmatmul.mubr.f32.gmra.mrb[0].mxu0 %v723
  %v1718 = vpop.f32.mrb[0].mxu0
  %v1719 = vadd.f32 0.0, %v1718
  %v1720 = vpop.f32.mrb[0].mxu0
  %1721 = vmatprep.mubr.f32.mxu0 0.0
  %1722 = vmatmul.mubr.f32.gmra.mrb[0].mxu0 %v726
  %v1723 = vpop.f32.mrb[0].mxu0
  %v1724 = vadd.f32 0.0, %v1723
  %v1725 = vpop.f32.mrb[0].mxu0
  %1726 = vmatprep.mubr.f32.mxu0 0.0
  %1727 = vmatmul.mubr.f32.gmra.mrb[0].mxu0 %v729
  %v1728 = vpop.f32.mrb[0].mxu0
  %v1729 = vadd.f32 0.0, %v1728
  %v1730 = vpop.f32.mrb[0].mxu0
  %1731 = vmatprep.mubr.f32.mxu0 0.0
  %1732 = vmatmul.mubr.f32.gmra.mrb[0].mxu0 %v732
  %v1733 = vpop.f32.mrb[0].mxu0
  %v1734 = vadd.f32 0.0, %v1733
  %v1735 = vpop.f32.mrb[0].mxu0
  %1736 = vmatprep.mubr.f32.mxu0 0.0
  %1737 = vmatmul.mubr.f32.gmra.mrb[0].mxu0 %v735
  %v1738 = vpop.f32.mrb[0].mxu0
  %v1739 = vadd.f32 0.0, %v1738
  %v1740 = vpop.f32.mrb[0].mxu0
  %1741 = vmatprep.mubr.f32.mxu0 0.0
  %1742 = vmatmul.mubr.f32.gmra.mrb[0].mxu0 %v738
  %v1743 = vpop.f32.mrb[0].mxu0
  %v1744 = vadd.f32 0.0, %v1743
  %v1745 = vpop.f32.mrb[0].mxu0
  %1746 = vmatprep.mubr.f32.mxu0 0.0
  %1747 = vmatmul.mubr.f32.gmra.mrb[0].mxu0 %v741
  %v1748 = vpop.f32.mrb[0].mxu0
  %v1749 = vadd.f32 0.0, %v1748
  %v1750 = vpop.f32.mrb[0].mxu0
  %1751 = vmatprep.mubr.f32.mxu0 0.0
  %1752 = vmatmul.mubr.f32.gmra.mrb[0].mxu0 %v744
  %v1753 = vpop.f32.mrb[0].mxu0
  %v1754 = vadd.f32 0.0, %v1753
  %v1755 = vpop.f32.mrb[0].mxu0
  %1756 = vmatprep.mubr.f32.mxu0 0.0
  %1757 = vmatmul.mubr.f32.gmra.mrb[0].mxu0 %v747
  %v1758 = vpop.f32.mrb[0].mxu0
  %v1759 = vadd.f32 0.0, %v1758
  %v1760 = vpop.f32.mrb[0].mxu0
  %1761 = vmatprep.mubr.f32.mxu0 0.0
  %1762 = vmatmul.mubr.f32.gmra.mrb[0].mxu0 %v750
  %v1763 = vpop.f32.mrb[0].mxu0
  %v1764 = vadd.f32 0.0, %v1763
  %v1765 = vpop.f32.mrb[0].mxu0
  %1766 = vmatprep.mubr.f32.mxu0 0.0
  %1767 = vmatmul.mubr.f32.gmra.mrb[0].mxu0 %v753
  %v1768 = vpop.f32.mrb[0].mxu0
  %v1769 = vadd.f32 0.0, %v1768
  %v1770 = vpop.f32.mrb[0].mxu0
  %1771 = vmatprep.mubr.f32.mxu0 0.0
  %1772 = vmatmul.mubr.f32.gmra.mrb[0].mxu0 %v756
  %v1773 = vpop.f32.mrb[0].mxu0
  %v1774 = vadd.f32 0.0, %v1773
  %v1775 = vpop.f32.mrb[0].mxu0
  %1776 = vmatprep.mubr.f32.mxu0 0.0
  %1777 = vmatmul.mubr.f32.gmra.mrb[0].mxu0 %v759
  %v1778 = vpop.f32.mrb[0].mxu0
  %v1779 = vadd.f32 0.0, %v1778
  %v1780 = vpop.f32.mrb[0].mxu0
  %1781 = vmatprep.mubr.f32.mxu0 0.0
  %1782 = vmatmul.mubr.f32.gmra.mrb[0].mxu0 %v762
  %v1783 = vpop.f32.mrb[0].mxu0
  %v1784 = vadd.f32 0.0, %v1783
  %v1785 = vpop.f32.mrb[0].mxu0
  %1786 = vmatprep.mubr.f32.mxu0 0.0
  %1787 = vmatmul.mubr.f32.gmra.mrb[0].mxu0 %v765
  %v1788 = vpop.f32.mrb[0].mxu0
  %v1789 = vadd.f32 0.0, %v1788
  %v1790 = vpop.f32.mrb[0].mxu0
  %1791 = vmatprep.mubr.f32.mxu0 0.0
  %1792 = vmatmul.mubr.f32.gmra.mrb[0].mxu0 %v768
  %v1793 = vpop.f32.mrb[0].mxu0
  %v1794 = vadd.f32 0.0, %v1793
  %v1795 = vpop.f32.mrb[0].mxu0
  %1796 = vmatprep.mubr.f32.mxu0 0.0
  %1797 = vmatmul.mubr.f32.gmra.mrb[0].mxu0 %v771
  %v1798 = vpop.f32.mrb[0].mxu0
  %v1799 = vadd.f32 0.0, %v1798
  %v1800 = vpop.f32.mrb[0].mxu0
  %1801 = vmatprep.mubr.f32.mxu0 0.0
  %1802 = vmatmul.mubr.f32.gmra.mrb[0].mxu0 %v774
  %v1803 = vpop.f32.mrb[0].mxu0
  %v1804 = vadd.f32 0.0, %v1803
  %v1805 = vpop.f32.mrb[0].mxu0
  %1806 = vmatprep.mubr.f32.mxu0 0.0
  %1807 = vmatmul.mubr.f32.gmra.mrb[0].mxu0 %v777
  %v1808 = vpop.f32.mrb[0].mxu0
  %v1809 = vadd.f32 0.0, %v1808
  %v1810 = vpop.f32.mrb[0].mxu0
  %1811 = vmatprep.mubr.f32.mxu0 0.0
  %1812 = vmatmul.mubr.f32.gmra.mrb[0].mxu0 %v780
  %v1813 = vpop.f32.mrb[0].mxu0
  %v1814 = vadd.f32 0.0, %v1813
  %v1815 = vpop.f32.mrb[0].mxu0
  %1816 = vmatprep.mubr.f32.mxu0 0.0
  %1817 = vmatmul.mubr.f32.gmra.mrb[0].mxu0 %v783
  %v1818 = vpop.f32.mrb[0].mxu0
  %v1819 = vadd.f32 0.0, %v1818
  %v1820 = vpop.f32.mrb[0].mxu0
  %1821 = vmatprep.mubr.f32.mxu0 0.0
  %1822 = vmatmul.mubr.f32.gmra.mrb[0].mxu0 %v786
  %v1823 = vpop.f32.mrb[0].mxu0
  %v1824 = vadd.f32 0.0, %v1823
  %v1825 = vpop.f32.mrb[0].mxu0
  %1826 = vmatprep.mubr.f32.mxu0 0.0
  %1827 = vmatmul.mubr.f32.gmra.mrb[0].mxu0 %v789
  %v1828 = vpop.f32.mrb[0].mxu0
  %v1829 = vadd.f32 0.0, %v1828
  %v1830 = vpop.f32.mrb[0].mxu0
  %1831 = vmatprep.mubr.f32.mxu0 0.0
  %1832 = vmatmul.mubr.f32.gmra.mrb[0].mxu0 %v792
  %v1833 = vpop.f32.mrb[0].mxu0
  %v1834 = vadd.f32 0.0, %v1833
  %v1835 = vpop.f32.mrb[0].mxu0
  %1836 = vmatprep.mubr.f32.mxu0 0.0
  %1837 = vmatmul.mubr.f32.gmra.mrb[0].mxu0 %v795
  %v1838 = vpop.f32.mrb[0].mxu0
  %v1839 = vadd.f32 0.0, %v1838
  %v1840 = vpop.f32.mrb[0].mxu0
  %1841 = vmatprep.mubr.f32.mxu0 0.0
  %1842 = vmatmul.mubr.f32.gmra.mrb[0].mxu0 %v798
  %v1843 = vpop.f32.mrb[0].mxu0
  %v1844 = vadd.f32 0.0, %v1843
  %v1845 = vpop.f32.mrb[0].mxu0
  %1846 = vmatprep.mubr.f32.mxu0 0.0
  %1847 = vmatmul.mubr.f32.gmra.mrb[0].mxu0 %v801
  %v1848 = vpop.f32.mrb[0].mxu0
  %v1849 = vadd.f32 0.0, %v1848
  %v1850 = vpop.f32.mrb[0].mxu0
  %1851 = vdwg.mxu0
  %v1852 = vmax.f32 %v874, %v1119
  %v1853 = vmax.f32 %v879, %v1124
  %v1854 = vmax.f32 %v884, %v1129
  %v1855 = vmax.f32 %v889, %v1134
  %v1856 = vmax.f32 %v894, %v1139
  %v1857 = vmax.f32 %v899, %v1144
  %v1858 = vmax.f32 %v904, %v1149
  %v1859 = vmax.f32 %v909, %v1154
  %v1860 = vmax.f32 %v914, %v1159
  %v1861 = vmax.f32 %v919, %v1164
  %v1862 = vmax.f32 %v924, %v1169
  %v1863 = vmax.f32 %v929, %v1174
  %v1864 = vmax.f32 %v934, %v1179
  %v1865 = vmax.f32 %v939, %v1184
  %v1866 = vmax.f32 %v944, %v1189
  %v1867 = vmax.f32 %v949, %v1194
  %v1868 = vmax.f32 %v954, %v1199
  %v1869 = vmax.f32 %v959, %v1204
  %v1870 = vmax.f32 %v964, %v1209
  %v1871 = vmax.f32 %v969, %v1214
  %v1872 = vmax.f32 %v974, %v1219
  %v1873 = vmax.f32 %v979, %v1224
  %v1874 = vmax.f32 %v984, %v1229
  %v1875 = vmax.f32 %v989, %v1234
  %v1876 = vmax.f32 %v994, %v1239
  %v1877 = vmax.f32 %v999, %v1244
  %v1878 = vmax.f32 %v1004, %v1249
  %v1879 = vmax.f32 %v1009, %v1254
  %v1880 = vmax.f32 %v1014, %v1259
  %v1881 = vmax.f32 %v1019, %v1264
  %v1882 = vmax.f32 %v1024, %v1269
  %v1883 = vmax.f32 %v1029, %v1274
  %v1884 = vmax.f32 %v1034, %v1279
  %v1885 = vmax.f32 %v1039, %v1284
  %v1886 = vmax.f32 %v1044, %v1289
  %v1887 = vmax.f32 %v1049, %v1294
  %v1888 = vmax.f32 %v1054, %v1299
  %v1889 = vmax.f32 %v1059, %v1304
  %v1890 = vmax.f32 %v1064, %v1309
  %v1891 = vmax.f32 %v1069, %v1314
  %v1892 = vmax.f32 %v1074, %v1319
  %v1893 = vmax.f32 %v1079, %v1324
  %v1894 = vmax.f32 %v1084, %v1329
  %v1895 = vmax.f32 %v1089, %v1334
  %v1896 = vmax.f32 %v1094, %v1339
  %v1897 = vmax.f32 %v1099, %v1344
  %v1898 = vmax.f32 %v1104, %v1349
  %v1899 = vmax.f32 %v1109, %v1354
  %v1900 = vmax.f32 %v1114, %v1359
  %v1901 = vmax.f32 %v1364, %v1609
  %v1902 = vmax.f32 %v1369, %v1614
  %v1903 = vmax.f32 %v1374, %v1619
  %v1904 = vmax.f32 %v1379, %v1624
  %v1905 = vmax.f32 %v1384, %v1629
  %v1906 = vmax.f32 %v1389, %v1634
  %v1907 = vmax.f32 %v1394, %v1639
  %v1908 = vmax.f32 %v1399, %v1644
  %v1909 = vmax.f32 %v1404, %v1649
  %v1910 = vmax.f32 %v1409, %v1654
  %v1911 = vmax.f32 %v1414, %v1659
  %v1912 = vmax.f32 %v1419, %v1664
  %v1913 = vmax.f32 %v1424, %v1669
  %v1914 = vmax.f32 %v1429, %v1674
  %v1915 = vmax.f32 %v1434, %v1679
  %v1916 = vmax.f32 %v1439, %v1684
  %v1917 = vmax.f32 %v1444, %v1689
  %v1918 = vmax.f32 %v1449, %v1694
  %v1919 = vmax.f32 %v1454, %v1699
  %v1920 = vmax.f32 %v1459, %v1704
  %v1921 = vmax.f32 %v1464, %v1709
  %v1922 = vmax.f32 %v1469, %v1714
  %v1923 = vmax.f32 %v1474, %v1719
  %v1924 = vmax.f32 %v1479, %v1724
  %v1925 = vmax.f32 %v1484, %v1729
  %v1926 = vmax.f32 %v1489, %v1734
  %v1927 = vmax.f32 %v1494, %v1739
  %v1928 = vmax.f32 %v1499, %v1744
  %v1929 = vmax.f32 %v1504, %v1749
  %v1930 = vmax.f32 %v1509, %v1754
  %v1931 = vmax.f32 %v1514, %v1759
  %v1932 = vmax.f32 %v1519, %v1764
  %v1933 = vmax.f32 %v1524, %v1769
  %v1934 = vmax.f32 %v1529, %v1774
  %v1935 = vmax.f32 %v1534, %v1779
  %v1936 = vmax.f32 %v1539, %v1784
  %v1937 = vmax.f32 %v1544, %v1789
  %v1938 = vmax.f32 %v1549, %v1794
  %v1939 = vmax.f32 %v1554, %v1799
  %v1940 = vmax.f32 %v1559, %v1804
  %v1941 = vmax.f32 %v1564, %v1809
  %v1942 = vmax.f32 %v1569, %v1814
  %v1943 = vmax.f32 %v1574, %v1819
  %v1944 = vmax.f32 %v1579, %v1824
  %v1945 = vmax.f32 %v1584, %v1829
  %v1946 = vmax.f32 %v1589, %v1834
  %v1947 = vmax.f32 %v1594, %v1839
  %v1948 = vmax.f32 %v1599, %v1844
  %v1949 = vmax.f32 %v1604, %v1849
  %v1950 = vmax.f32 %v1852, %v1901
  %v1951 = vmax.f32 %v1853, %v1902
  %v1952 = vmax.f32 %v1854, %v1903
  %v1953 = vmax.f32 %v1855, %v1904
  %v1954 = vmax.f32 %v1856, %v1905
  %v1955 = vmax.f32 %v1857, %v1906
  %v1956 = vmax.f32 %v1858, %v1907
  %v1957 = vmax.f32 %v1859, %v1908
  %v1958 = vmax.f32 %v1860, %v1909
  %v1959 = vmax.f32 %v1861, %v1910
  %v1960 = vmax.f32 %v1862, %v1911
  %v1961 = vmax.f32 %v1863, %v1912
  %v1962 = vmax.f32 %v1864, %v1913
  %v1963 = vmax.f32 %v1865, %v1914
  %v1964 = vmax.f32 %v1866, %v1915
  %v1965 = vmax.f32 %v1867, %v1916
  %v1966 = vmax.f32 %v1868, %v1917
  %v1967 = vmax.f32 %v1869, %v1918
  %v1968 = vmax.f32 %v1870, %v1919
  %v1969 = vmax.f32 %v1871, %v1920
  %v1970 = vmax.f32 %v1872, %v1921
  %v1971 = vmax.f32 %v1873, %v1922
  %v1972 = vmax.f32 %v1874, %v1923
  %v1973 = vmax.f32 %v1875, %v1924
  %v1974 = vmax.f32 %v1876, %v1925
  %v1975 = vmax.f32 %v1877, %v1926
  %v1976 = vmax.f32 %v1878, %v1927
  %v1977 = vmax.f32 %v1879, %v1928
  %v1978 = vmax.f32 %v1880, %v1929
  %v1979 = vmax.f32 %v1881, %v1930
  %v1980 = vmax.f32 %v1882, %v1931
  %v1981 = vmax.f32 %v1883, %v1932
  %v1982 = vmax.f32 %v1884, %v1933
  %v1983 = vmax.f32 %v1885, %v1934
  %v1984 = vmax.f32 %v1886, %v1935
  %v1985 = vmax.f32 %v1887, %v1936
  %v1986 = vmax.f32 %v1888, %v1937
  %v1987 = vmax.f32 %v1889, %v1938
  %v1988 = vmax.f32 %v1890, %v1939
  %v1989 = vmax.f32 %v1891, %v1940
  %v1990 = vmax.f32 %v1892, %v1941
  %v1991 = vmax.f32 %v1893, %v1942
  %v1992 = vmax.f32 %v1894, %v1943
  %v1993 = vmax.f32 %v1895, %v1944
  %v1994 = vmax.f32 %v1896, %v1945
  %v1995 = vmax.f32 %v1897, %v1946
  %v1996 = vmax.f32 %v1898, %v1947
  %v1997 = vmax.f32 %v1899, %v1948
  %v1998 = vmax.f32 %v1900, %v1949
  %v1999 = vld [vmem:[%s2] sm:$0x1]
  %v2001 = vlaneseq
  %v2002 = vshrl.u32 %v2001, 7
  %v2003 = vsub.s32 0, %v2002
  %v2004 = vrot.slane %v1999, %v2003
  %v2006 = vadd.f32 %v1950, %v2004
  %v2007 = vadd.f32 %v1951, %v2004
  %v2008 = vadd.f32 %v1952, %v2004
  %v2009 = vadd.f32 %v1953, %v2004
  %v2010 = vadd.f32 %v1954, %v2004
  %v2011 = vadd.f32 %v1955, %v2004
  %v2012 = vadd.f32 %v1956, %v2004
  %v2013 = vadd.f32 %v1957, %v2004
  %v2014 = vadd.f32 %v1958, %v2004
  %v2015 = vadd.f32 %v1959, %v2004
  %v2016 = vadd.f32 %v1960, %v2004
  %v2017 = vadd.f32 %v1961, %v2004
  %v2018 = vadd.f32 %v1962, %v2004
  %v2019 = vadd.f32 %v1963, %v2004
  %v2020 = vadd.f32 %v1964, %v2004
  %v2021 = vadd.f32 %v1965, %v2004
  %v2022 = vadd.f32 %v1966, %v2004
  %v2023 = vadd.f32 %v1967, %v2004
  %v2024 = vadd.f32 %v1968, %v2004
  %v2025 = vadd.f32 %v1969, %v2004
  %v2026 = vadd.f32 %v1970, %v2004
  %v2027 = vadd.f32 %v1971, %v2004
  %v2028 = vadd.f32 %v1972, %v2004
  %v2029 = vadd.f32 %v1973, %v2004
  %v2030 = vadd.f32 %v1974, %v2004
  %v2031 = vadd.f32 %v1975, %v2004
  %v2032 = vadd.f32 %v1976, %v2004
  %v2033 = vadd.f32 %v1977, %v2004
  %v2034 = vadd.f32 %v1978, %v2004
  %v2035 = vadd.f32 %v1979, %v2004
  %v2036 = vadd.f32 %v1980, %v2004
  %v2037 = vadd.f32 %v1981, %v2004
  %v2038 = vadd.f32 %v1982, %v2004
  %v2039 = vadd.f32 %v1983, %v2004
  %v2040 = vadd.f32 %v1984, %v2004
  %v2041 = vadd.f32 %v1985, %v2004
  %v2042 = vadd.f32 %v1986, %v2004
  %v2043 = vadd.f32 %v1987, %v2004
  %v2044 = vadd.f32 %v1988, %v2004
  %v2045 = vadd.f32 %v1989, %v2004
  %v2046 = vadd.f32 %v1990, %v2004
  %v2047 = vadd.f32 %v1991, %v2004
  %v2048 = vadd.f32 %v1992, %v2004
  %v2049 = vadd.f32 %v1993, %v2004
  %v2050 = vadd.f32 %v1994, %v2004
  %v2051 = vadd.f32 %v1995, %v2004
  %v2052 = vadd.f32 %v1996, %v2004
  %v2053 = vadd.f32 %v1997, %v2004
  %v2054 = vadd.f32 %v1998, %v2004
  %v2055 = vmax.f32 %v2006, 0.0
  %v2056 = vmax.f32 %v2007, 0.0
  %v2057 = vmax.f32 %v2008, 0.0
  %v2058 = vmax.f32 %v2009, 0.0
  %v2059 = vmax.f32 %v2010, 0.0
  %v2060 = vmax.f32 %v2011, 0.0
  %v2061 = vmax.f32 %v2012, 0.0
  %v2062 = vmax.f32 %v2013, 0.0
  %v2063 = vmax.f32 %v2014, 0.0
  %v2064 = vmax.f32 %v2015, 0.0
  %v2065 = vmax.f32 %v2016, 0.0
  %v2066 = vmax.f32 %v2017, 0.0
  %v2067 = vmax.f32 %v2018, 0.0
  %v2068 = vmax.f32 %v2019, 0.0
  %v2069 = vmax.f32 %v2020, 0.0
  %v2070 = vmax.f32 %v2021, 0.0
  %v2071 = vmax.f32 %v2022, 0.0
  %v2072 = vmax.f32 %v2023, 0.0
  %v2073 = vmax.f32 %v2024, 0.0
  %v2074 = vmax.f32 %v2025, 0.0
  %v2075 = vmax.f32 %v2026, 0.0
  %v2076 = vmax.f32 %v2027, 0.0
  %v2077 = vmax.f32 %v2028, 0.0
  %v2078 = vmax.f32 %v2029, 0.0
  %v2079 = vmax.f32 %v2030, 0.0
  %v2080 = vmax.f32 %v2031, 0.0
  %v2081 = vmax.f32 %v2032, 0.0
  %v2082 = vmax.f32 %v2033, 0.0
  %v2083 = vmax.f32 %v2034, 0.0
  %v2084 = vmax.f32 %v2035, 0.0
  %v2085 = vmax.f32 %v2036, 0.0
  %v2086 = vmax.f32 %v2037, 0.0
  %v2087 = vmax.f32 %v2038, 0.0
  %v2088 = vmax.f32 %v2039, 0.0
  %v2089 = vmax.f32 %v2040, 0.0
  %v2090 = vmax.f32 %v2041, 0.0
  %v2091 = vmax.f32 %v2042, 0.0
  %v2092 = vmax.f32 %v2043, 0.0
  %v2093 = vmax.f32 %v2044, 0.0
  %v2094 = vmax.f32 %v2045, 0.0
  %v2095 = vmax.f32 %v2046, 0.0
  %v2096 = vmax.f32 %v2047, 0.0
  %v2097 = vmax.f32 %v2048, 0.0
  %v2098 = vmax.f32 %v2049, 0.0
  %v2099 = vmax.f32 %v2050, 0.0
  %v2100 = vmax.f32 %v2051, 0.0
  %v2101 = vmax.f32 %v2052, 0.0
  %v2102 = vmax.f32 %v2053, 0.0
  %v2103 = vmax.f32 %v2054, 0.0
  %vm2104 = vcmask 48128
  %2105 = vst.msk [vmem:[%s3] sm:$0xff] %vm2104, %v2055
  %2106 = vst.msk [vmem:[%s3 + $0x8] sm:$0xff] %vm2104, %v2056
  %2107 = vst.msk [vmem:[%s3 + $0x10] sm:$0xff] %vm2104, %v2057
  %2108 = vst.msk [vmem:[%s3 + $0x18] sm:$0xff] %vm2104, %v2058
  %2109 = vst.msk [vmem:[%s3 + $0x20] sm:$0xff] %vm2104, %v2059
  %2110 = vst.msk [vmem:[%s3 + $0x28] sm:$0xff] %vm2104, %v2060
  %2111 = vst.msk [vmem:[%s3 + $0x30] sm:$0xff] %vm2104, %v2061
  %2112 = vst.msk [vmem:[%s3 + $0x38] sm:$0xff] %vm2104, %v2062
  %2113 = vst.msk [vmem:[%s3 + $0x40] sm:$0xff] %vm2104, %v2063
  %2114 = vst.msk [vmem:[%s3 + $0x48] sm:$0xff] %vm2104, %v2064
  %2115 = vst.msk [vmem:[%s3 + $0x50] sm:$0xff] %vm2104, %v2065
  %2116 = vst.msk [vmem:[%s3 + $0x58] sm:$0xff] %vm2104, %v2066
  %2117 = vst.msk [vmem:[%s3 + $0x60] sm:$0xff] %vm2104, %v2067
  %2118 = vst.msk [vmem:[%s3 + $0x68] sm:$0xff] %vm2104, %v2068
  %2119 = vst.msk [vmem:[%s3 + $0x70] sm:$0xff] %vm2104, %v2069
  %2120 = vst.msk [vmem:[%s3 + $0x78] sm:$0xff] %vm2104, %v2070
  %2121 = vst.msk [vmem:[%s3 + $0x80] sm:$0xff] %vm2104, %v2071
  %2122 = vst.msk [vmem:[%s3 + $0x88] sm:$0xff] %vm2104, %v2072
  %2123 = vst.msk [vmem:[%s3 + $0x90] sm:$0xff] %vm2104, %v2073
  %2124 = vst.msk [vmem:[%s3 + $0x98] sm:$0xff] %vm2104, %v2074
  %2125 = vst.msk [vmem:[%s3 + $0xa0] sm:$0xff] %vm2104, %v2075
  %2126 = vst.msk [vmem:[%s3 + $0xa8] sm:$0xff] %vm2104, %v2076
  %2127 = vst.msk [vmem:[%s3 + $0xb0] sm:$0xff] %vm2104, %v2077
  %2128 = vst.msk [vmem:[%s3 + $0xb8] sm:$0xff] %vm2104, %v2078
  %2129 = vst.msk [vmem:[%s3 + $0xc0] sm:$0xff] %vm2104, %v2079
  %2130 = vst.msk [vmem:[%s3 + $0xc8] sm:$0xff] %vm2104, %v2080
  %2131 = vst.msk [vmem:[%s3 + $0xd0] sm:$0xff] %vm2104, %v2081
  %2132 = vst.msk [vmem:[%s3 + $0xd8] sm:$0xff] %vm2104, %v2082
  %2133 = vst.msk [vmem:[%s3 + $0xe0] sm:$0xff] %vm2104, %v2083
  %2134 = vst.msk [vmem:[%s3 + $0xe8] sm:$0xff] %vm2104, %v2084
  %2135 = vst.msk [vmem:[%s3 + $0xf0] sm:$0xff] %vm2104, %v2085
  %2136 = vst.msk [vmem:[%s3 + $0xf8] sm:$0xff] %vm2104, %v2086
  %2137 = vst.msk [vmem:[%s3 + $0x100] sm:$0xff] %vm2104, %v2087
  %2138 = vst.msk [vmem:[%s3 + $0x108] sm:$0xff] %vm2104, %v2088
  %2139 = vst.msk [vmem:[%s3 + $0x110] sm:$0xff] %vm2104, %v2089
  %2140 = vst.msk [vmem:[%s3 + $0x118] sm:$0xff] %vm2104, %v2090
  %2141 = vst.msk [vmem:[%s3 + $0x120] sm:$0xff] %vm2104, %v2091
  %2142 = vst.msk [vmem:[%s3 + $0x128] sm:$0xff] %vm2104, %v2092
  %2143 = vst.msk [vmem:[%s3 + $0x130] sm:$0xff] %vm2104, %v2093
  %2144 = vst.msk [vmem:[%s3 + $0x138] sm:$0xff] %vm2104, %v2094
  %2145 = vst.msk [vmem:[%s3 + $0x140] sm:$0xff] %vm2104, %v2095
  %2146 = vst.msk [vmem:[%s3 + $0x148] sm:$0xff] %vm2104, %v2096
  %2147 = vst.msk [vmem:[%s3 + $0x150] sm:$0xff] %vm2104, %v2097
  %2148 = vst.msk [vmem:[%s3 + $0x158] sm:$0xff] %vm2104, %v2098
  %2149 = vst.msk [vmem:[%s3 + $0x160] sm:$0xff] %vm2104, %v2099
  %2150 = vst.msk [vmem:[%s3 + $0x168] sm:$0xff] %vm2104, %v2100
  %2151 = vst.msk [vmem:[%s3 + $0x170] sm:$0xff] %vm2104, %v2101
  %2152 = vst.msk [vmem:[%s3 + $0x178] sm:$0xff] %vm2104, %v2102
  %2153 = vst.msk [vmem:[%s3 + $0x180] sm:$0xff] %vm2104, %v2103
  // Predicated region
  $region14: #{lenet_forward.2} parent=0 // pred_check
    _
  $region15: #{lenet_forward.2} parent=0 // pred_check_branch
    %2155 = sbr.rel (0) target = $region17
  $region16: #{lenet_forward.2} parent=0 // pred_region
    _
  $region17: #{lenet_forward.2} parent=0 // pred_fallthru
    _
  // Predicated region
  $region18: #{lenet_forward.2} parent=0 // pred_check
    _
  $region19: #{lenet_forward.2} parent=0 // pred_check_branch
    %2157 = sbr.rel (0) target = $region21
  $region20: #{lenet_forward.2} parent=0 // pred_region
    _
  $region21: #{lenet_forward.2} parent=0 // pred_fallthru
    _

// kernel: lenet_forward.3
$region0: #{lenet_forward.3}
  #allocation0 [shape = 'u32[]', space=smem, size = 0x4, offset = 0x4, fixed_abs, tag = 'smem constant byte address 0x4 - core index']
  #allocation1 [shape = 'u32[144,128]{1,0:T(1,128)}', space=vmem, size = 0x12000, scoped, tag = 'internal scratch']
  %s0 = inlined_call_operand.vmem [shape: f32[32,3750], index: 0, kind: input, shape index: {}]
  %s1 = inlined_call_operand.vmem [shape: f32[3750,400], index: 1, kind: input, shape index: {}]
  %s2 = inlined_call_operand.vmem [shape: f32[1,400], index: 2, kind: input, shape index: {}]
  %s3 = inlined_call_operand.vmem [shape: f32[400,128], index: 3, kind: input, shape index: {}]
  %s4 = inlined_call_operand.vmem [shape: f32[1,128], index: 4, kind: input, shape index: {}]
  %s5 = inlined_call_operand.vmem [shape: f32[128,128], index: 5, kind: input, shape index: {}]
  %s6 = inlined_call_operand.vmem [shape: f32[1,128], index: 6, kind: input, shape index: {}]
  %s7 = inlined_call_operand.vmem [shape: f32[128,10], index: 7, kind: input, shape index: {}]
  %s8 = inlined_call_operand.vmem [shape: f32[1,10], index: 8, kind: input, shape index: {}]
  %s9 = inlined_call_operand.vmem [shape: f32[8,10], index: 9, kind: output, shape index: {}]
  %s10 = sld [smem:[#allocation0]]
  $region46: #{lenet_forward.3} parent=0
    _
  %s12 = ssub.s32 1, %s10
  %s13 = scalar_select 0, %s12, %s10
  // Predicated region
  $region2: #{lenet_forward.3} parent=0 // pred_check
    _
  $region3: #{lenet_forward.3} parent=0 // pred_check_branch
    %15 = sbr.rel (0) target = $region5
  $region4: #{lenet_forward.3} parent=0 // pred_region
    _
  $region5: #{lenet_forward.3} parent=0 // pred_fallthru
    _
  // Predicated region
  $region6: #{lenet_forward.3} parent=0 // pred_check
    _
  $region7: #{lenet_forward.3} parent=0 // pred_check_branch
    %17 = sbr.rel (0) target = $region9
  $region8: #{lenet_forward.3} parent=0 // pred_region
    _
  $region9: #{lenet_forward.3} parent=0 // pred_fallthru
    _
  // Predicated region
  $region10: #{lenet_forward.3} parent=0 // pred_check
    _
  $region11: #{lenet_forward.3} parent=0 // pred_check_branch
    %19 = sbr.rel (0) target = $region13
  $region12: #{lenet_forward.3} parent=0 // pred_region
    _
  $region13: #{lenet_forward.3} parent=0 // pred_fallthru
    _
  // Predicated region
  $region14: #{lenet_forward.3} parent=0 // pred_check
    _
  $region15: #{lenet_forward.3} parent=0 // pred_check_branch
    %21 = sbr.rel (0) target = $region17
  $region16: #{lenet_forward.3} parent=0 // pred_region
    _
  $region17: #{lenet_forward.3} parent=0 // pred_fallthru
    _
  // Predicated region
  $region18: #{lenet_forward.3} parent=0 // pred_check
    _
  $region19: #{lenet_forward.3} parent=0 // pred_check_branch
    %23 = sbr.rel (0) target = $region21
  $region20: #{lenet_forward.3} parent=0 // pred_region
    _
  $region21: #{lenet_forward.3} parent=0 // pred_fallthru
    _
  // Predicated region
  $region22: #{lenet_forward.3} parent=0 // pred_check
    _
  $region23: #{lenet_forward.3} parent=0 // pred_check_branch
    %25 = sbr.rel (0) target = $region25
  $region24: #{lenet_forward.3} parent=0 // pred_region
    _
  $region25: #{lenet_forward.3} parent=0 // pred_fallthru
    _
  // Predicated region
  $region26: #{lenet_forward.3} parent=0 // pred_check
    _
  $region27: #{lenet_forward.3} parent=0 // pred_check_branch
    %27 = sbr.rel (0) target = $region29
  $region28: #{lenet_forward.3} parent=0 // pred_region
    _
  $region29: #{lenet_forward.3} parent=0 // pred_fallthru
    _
  // Predicated region
  $region30: #{lenet_forward.3} parent=0 // pred_check
    _
  $region31: #{lenet_forward.3} parent=0 // pred_check_branch
    %29 = sbr.rel (0) target = $region33
  $region32: #{lenet_forward.3} parent=0 // pred_region
    _
  $region33: #{lenet_forward.3} parent=0 // pred_fallthru
    _
  // Predicated region
  $region34: #{lenet_forward.3} parent=0 // pred_check
    _
  $region35: #{lenet_forward.3} parent=0 // pred_check_branch
    %31 = sbr.rel (0) target = $region37
  $region36: #{lenet_forward.3} parent=0 // pred_region
    _
  $region37: #{lenet_forward.3} parent=0 // pred_fallthru
    _
  %v32 = vld [vmem:[%s0] sm:$0xff]
  %v33 = vld [vmem:[%s0 + $0x8] sm:$0xff]
  %v34 = vld [vmem:[%s0 + $0x10] sm:$0xff]
  %v35 = vld [vmem:[%s0 + $0x18] sm:$0xff]
  %v36 = vld [vmem:[%s0 + $0x20] sm:$0xff]
  %v37 = vld [vmem:[%s0 + $0x28] sm:$0xff]
  %v38 = vld [vmem:[%s0 + $0x30] sm:$0xff]
  %v39 = vld [vmem:[%s0 + $0x38] sm:$0xff]
  %v40 = vld [vmem:[%s0 + $0x40] sm:$0xff]
  %v41 = vld [vmem:[%s0 + $0x48] sm:$0xff]
  %v42 = vld [vmem:[%s0 + $0x50] sm:$0xff]
  %v43 = vld [vmem:[%s0 + $0x58] sm:$0xff]
  %v44 = vld [vmem:[%s0 + $0x60] sm:$0xff]
  %v45 = vld [vmem:[%s0 + $0x68] sm:$0xff]
  %v46 = vld [vmem:[%s0 + $0x70] sm:$0xff]
  %v47 = vld [vmem:[%s0 + $0x78] sm:$0xff]
  %v48 = vld [vmem:[%s0 + $0x80] sm:$0xff]
  %v49 = vld [vmem:[%s0 + $0x88] sm:$0xff]
  %v50 = vld [vmem:[%s0 + $0x90] sm:$0xff]
  %v51 = vld [vmem:[%s0 + $0x98] sm:$0xff]
  %v52 = vld [vmem:[%s0 + $0xa0] sm:$0xff]
  %v53 = vld [vmem:[%s0 + $0xa8] sm:$0xff]
  %v54 = vld [vmem:[%s0 + $0xb0] sm:$0xff]
  %v55 = vld [vmem:[%s0 + $0xb8] sm:$0xff]
  %v56 = vld [vmem:[%s0 + $0xc0] sm:$0xff]
  %v57 = vld [vmem:[%s0 + $0xc8] sm:$0xff]
  %v58 = vld [vmem:[%s0 + $0xd0] sm:$0xff]
  %v59 = vld [vmem:[%s0 + $0xd8] sm:$0xff]
  %v60 = vld [vmem:[%s0 + $0xe0] sm:$0xff]
  %v61 = vld [vmem:[%s0 + $0xe8] sm:$0xff]
  %v62 = vld [vmem:[%s0 + $0xf0] sm:$0xff]
  %v63 = vld [vmem:[%s0 + $0xf8] sm:$0xff]
  %v64 = vld [vmem:[%s0 + $0x100] sm:$0xff]
  %v65 = vld [vmem:[%s0 + $0x108] sm:$0xff]
  %v66 = vld [vmem:[%s0 + $0x110] sm:$0xff]
  %v67 = vld [vmem:[%s0 + $0x118] sm:$0xff]
  %v68 = vld [vmem:[%s0 + $0x120] sm:$0xff]
  %v69 = vld [vmem:[%s0 + $0x128] sm:$0xff]
  %v70 = vld [vmem:[%s0 + $0x130] sm:$0xff]
  %v71 = vld [vmem:[%s0 + $0x138] sm:$0xff]
  %v72 = vld [vmem:[%s0 + $0x140] sm:$0xff]
  %v73 = vld [vmem:[%s0 + $0x148] sm:$0xff]
  %v74 = vld [vmem:[%s0 + $0x150] sm:$0xff]
  %v75 = vld [vmem:[%s0 + $0x158] sm:$0xff]
  %v76 = vld [vmem:[%s0 + $0x160] sm:$0xff]
  %v77 = vld [vmem:[%s0 + $0x168] sm:$0xff]
  %v78 = vld [vmem:[%s0 + $0x170] sm:$0xff]
  %v79 = vld [vmem:[%s0 + $0x178] sm:$0xff]
  %v80 = vld [vmem:[%s0 + $0x180] sm:$0xff]
  %v81 = vld [vmem:[%s0 + $0x188] sm:$0xff]
  %v82 = vld [vmem:[%s0 + $0x190] sm:$0xff]
  %v83 = vld [vmem:[%s0 + $0x198] sm:$0xff]
  %v84 = vld [vmem:[%s0 + $0x1a0] sm:$0xff]
  %v85 = vld [vmem:[%s0 + $0x1a8] sm:$0xff]
  %v86 = vld [vmem:[%s0 + $0x1b0] sm:$0xff]
  %v87 = vld [vmem:[%s0 + $0x1b8] sm:$0xff]
  %v88 = vld [vmem:[%s0 + $0x1c0] sm:$0xff]
  %v89 = vld [vmem:[%s0 + $0x1c8] sm:$0xff]
  %v90 = vld [vmem:[%s0 + $0x1d0] sm:$0xff]
  %v91 = vld [vmem:[%s0 + $0x1d8] sm:$0xff]
  %v92 = vld [vmem:[%s0 + $0x1e0] sm:$0xff]
  %v93 = vld [vmem:[%s0 + $0x1e8] sm:$0xff]
  %v94 = vld [vmem:[%s0 + $0x1f0] sm:$0xff]
  %v95 = vld [vmem:[%s0 + $0x1f8] sm:$0xff]
  %v96 = vld [vmem:[%s0 + $0x200] sm:$0xff]
  %v97 = vld [vmem:[%s0 + $0x208] sm:$0xff]
  %v98 = vld [vmem:[%s0 + $0x210] sm:$0xff]
  %v99 = vld [vmem:[%s0 + $0x218] sm:$0xff]
  %v100 = vld [vmem:[%s0 + $0x220] sm:$0xff]
  %v101 = vld [vmem:[%s0 + $0x228] sm:$0xff]
  %v102 = vld [vmem:[%s0 + $0x230] sm:$0xff]
  %v103 = vld [vmem:[%s0 + $0x238] sm:$0xff]
  %v104 = vld [vmem:[%s0 + $0x240] sm:$0xff]
  %v105 = vld [vmem:[%s0 + $0x248] sm:$0xff]
  %v106 = vld [vmem:[%s0 + $0x250] sm:$0xff]
  %v107 = vld [vmem:[%s0 + $0x258] sm:$0xff]
  %v108 = vld [vmem:[%s0 + $0x260] sm:$0xff]
  %v109 = vld [vmem:[%s0 + $0x268] sm:$0xff]
  %v110 = vld [vmem:[%s0 + $0x270] sm:$0xff]
  %v111 = vld [vmem:[%s0 + $0x278] sm:$0xff]
  %v112 = vld [vmem:[%s0 + $0x280] sm:$0xff]
  %v113 = vld [vmem:[%s0 + $0x288] sm:$0xff]
  %v114 = vld [vmem:[%s0 + $0x290] sm:$0xff]
  %v115 = vld [vmem:[%s0 + $0x298] sm:$0xff]
  %v116 = vld [vmem:[%s0 + $0x2a0] sm:$0xff]
  %v117 = vld [vmem:[%s0 + $0x2a8] sm:$0xff]
  %v118 = vld [vmem:[%s0 + $0x2b0] sm:$0xff]
  %v119 = vld [vmem:[%s0 + $0x2b8] sm:$0xff]
  %v120 = vld [vmem:[%s0 + $0x2c0] sm:$0xff]
  %v121 = vld [vmem:[%s0 + $0x2c8] sm:$0xff]
  %v122 = vld [vmem:[%s0 + $0x2d0] sm:$0xff]
  %v123 = vld [vmem:[%s0 + $0x2d8] sm:$0xff]
  %v124 = vld [vmem:[%s0 + $0x2e0] sm:$0xff]
  %v125 = vld [vmem:[%s0 + $0x2e8] sm:$0xff]
  %v126 = vld [vmem:[%s0 + $0x2f0] sm:$0xff]
  %v127 = vld [vmem:[%s0 + $0x2f8] sm:$0xff]
  %v128 = vld [vmem:[%s0 + $0x300] sm:$0xff]
  %v129 = vld [vmem:[%s0 + $0x308] sm:$0xff]
  %v130 = vld [vmem:[%s0 + $0x310] sm:$0xff]
  %v131 = vld [vmem:[%s0 + $0x318] sm:$0xff]
  %v132 = vld [vmem:[%s0 + $0x320] sm:$0xff]
  %v133 = vld [vmem:[%s0 + $0x328] sm:$0xff]
  %v134 = vld [vmem:[%s0 + $0x330] sm:$0xff]
  %v135 = vld [vmem:[%s0 + $0x338] sm:$0xff]
  %v136 = vld [vmem:[%s0 + $0x340] sm:$0xff]
  %v137 = vld [vmem:[%s0 + $0x348] sm:$0xff]
  %v138 = vld [vmem:[%s0 + $0x350] sm:$0xff]
  %v139 = vld [vmem:[%s0 + $0x358] sm:$0xff]
  %v140 = vld [vmem:[%s0 + $0x360] sm:$0xff]
  %v141 = vld [vmem:[%s0 + $0x368] sm:$0xff]
  %v142 = vld [vmem:[%s0 + $0x370] sm:$0xff]
  %v143 = vld [vmem:[%s0 + $0x378] sm:$0xff]
  %v144 = vld [vmem:[%s0 + $0x380] sm:$0xff]
  %v145 = vld [vmem:[%s0 + $0x388] sm:$0xff]
  %v146 = vld [vmem:[%s0 + $0x390] sm:$0xff]
  %v147 = vld [vmem:[%s0 + $0x398] sm:$0xff]
  %v148 = vld [vmem:[%s0 + $0x3a0] sm:$0xff]
  %v149 = vld [vmem:[%s0 + $0x3a8] sm:$0xff]
  %v150 = vld [vmem:[%s0 + $0x3b0] sm:$0xff]
  %v151 = vld [vmem:[%s0 + $0x3b8] sm:$0xff]
  %v152 = vld [vmem:[%s1] sm:$0xff]
  %v153 = vld [vmem:[%s1 + $0x8] sm:$0xff]
  %v154 = vld [vmem:[%s1 + $0x10] sm:$0xff]
  %v155 = vld [vmem:[%s1 + $0x18] sm:$0xff]
  %v156 = vld [vmem:[%s1 + $0x20] sm:$0xff]
  %v157 = vld [vmem:[%s1 + $0x28] sm:$0xff]
  %v158 = vld [vmem:[%s1 + $0x30] sm:$0xff]
  %v159 = vld [vmem:[%s1 + $0x38] sm:$0xff]
  %v160 = vld [vmem:[%s1 + $0x40] sm:$0xff]
  %v161 = vld [vmem:[%s1 + $0x48] sm:$0xff]
  %v162 = vld [vmem:[%s1 + $0x50] sm:$0xff]
  %v163 = vld [vmem:[%s1 + $0x58] sm:$0xff]
  %v164 = vld [vmem:[%s1 + $0x60] sm:$0xff]
  %v165 = vld [vmem:[%s1 + $0x68] sm:$0xff]
  %v166 = vld [vmem:[%s1 + $0x70] sm:$0xff]
  %v167 = vld [vmem:[%s1 + $0x78] sm:$0xff]
  %v168 = vld [vmem:[%s1 + $0x80] sm:$0xff]
  %v169 = vld [vmem:[%s1 + $0x88] sm:$0xff]
  %v170 = vld [vmem:[%s1 + $0x90] sm:$0xff]
  %v171 = vld [vmem:[%s1 + $0x98] sm:$0xff]
  %v172 = vld [vmem:[%s1 + $0xa0] sm:$0xff]
  %v173 = vld [vmem:[%s1 + $0xa8] sm:$0xff]
  %v174 = vld [vmem:[%s1 + $0xb0] sm:$0xff]
  %v175 = vld [vmem:[%s1 + $0xb8] sm:$0xff]
  %v176 = vld [vmem:[%s1 + $0xc0] sm:$0xff]
  %v177 = vld [vmem:[%s1 + $0xc8] sm:$0xff]
  %v178 = vld [vmem:[%s1 + $0xd0] sm:$0xff]
  %v179 = vld [vmem:[%s1 + $0xd8] sm:$0xff]
  %v180 = vld [vmem:[%s1 + $0xe0] sm:$0xff]
  %v181 = vld [vmem:[%s1 + $0xe8] sm:$0xff]
  %v182 = vld [vmem:[%s1 + $0xf0] sm:$0xff]
  %v183 = vld [vmem:[%s1 + $0xf8] sm:$0xff]
  %v184 = vld [vmem:[%s1 + $0x100] sm:$0xff]
  %v185 = vld [vmem:[%s1 + $0x108] sm:$0xff]
  %v186 = vld [vmem:[%s1 + $0x110] sm:$0xff]
  %v187 = vld [vmem:[%s1 + $0x118] sm:$0xff]
  %v188 = vld [vmem:[%s1 + $0x120] sm:$0xff]
  %v189 = vld [vmem:[%s1 + $0x128] sm:$0xff]
  %v190 = vld [vmem:[%s1 + $0x130] sm:$0xff]
  %v191 = vld [vmem:[%s1 + $0x138] sm:$0xff]
  %v192 = vld [vmem:[%s1 + $0x140] sm:$0xff]
  %v193 = vld [vmem:[%s1 + $0x148] sm:$0xff]
  %v194 = vld [vmem:[%s1 + $0x150] sm:$0xff]
  %v195 = vld [vmem:[%s1 + $0x158] sm:$0xff]
  %v196 = vld [vmem:[%s1 + $0x160] sm:$0xff]
  %v197 = vld [vmem:[%s1 + $0x168] sm:$0xff]
  %v198 = vld [vmem:[%s1 + $0x170] sm:$0xff]
  %v199 = vld [vmem:[%s1 + $0x178] sm:$0xff]
  %v200 = vld [vmem:[%s1 + $0x180] sm:$0xff]
  %v201 = vld [vmem:[%s1 + $0x188] sm:$0xff]
  %v202 = vld [vmem:[%s1 + $0x190] sm:$0xff]
  %v203 = vld [vmem:[%s1 + $0x198] sm:$0xff]
  %v204 = vld [vmem:[%s1 + $0x1a0] sm:$0xff]
  %v205 = vld [vmem:[%s1 + $0x1a8] sm:$0xff]
  %v206 = vld [vmem:[%s1 + $0x1b0] sm:$0xff]
  %v207 = vld [vmem:[%s1 + $0x1b8] sm:$0xff]
  %v208 = vld [vmem:[%s1 + $0x1c0] sm:$0xff]
  %v209 = vld [vmem:[%s1 + $0x1c8] sm:$0xff]
  %v210 = vld [vmem:[%s1 + $0x1d0] sm:$0xff]
  %v211 = vld [vmem:[%s1 + $0x1d8] sm:$0xff]
  %v212 = vld [vmem:[%s1 + $0x1e0] sm:$0xff]
  %v213 = vld [vmem:[%s1 + $0x1e8] sm:$0xff]
  %v214 = vld [vmem:[%s1 + $0x1f0] sm:$0xff]
  %v215 = vld [vmem:[%s1 + $0x1f8] sm:$0xff]
  %v216 = vld [vmem:[%s1 + $0x200] sm:$0xff]
  %v217 = vld [vmem:[%s1 + $0x208] sm:$0xff]
  %v218 = vld [vmem:[%s1 + $0x210] sm:$0xff]
  %v219 = vld [vmem:[%s1 + $0x218] sm:$0xff]
  %v220 = vld [vmem:[%s1 + $0x220] sm:$0xff]
  %v221 = vld [vmem:[%s1 + $0x228] sm:$0xff]
  %v222 = vld [vmem:[%s1 + $0x230] sm:$0xff]
  %v223 = vld [vmem:[%s1 + $0x238] sm:$0xff]
  %v224 = vld [vmem:[%s1 + $0x240] sm:$0xff]
  %v225 = vld [vmem:[%s1 + $0x248] sm:$0xff]
  %v226 = vld [vmem:[%s1 + $0x250] sm:$0xff]
  %v227 = vld [vmem:[%s1 + $0x258] sm:$0xff]
  %v228 = vld [vmem:[%s1 + $0x260] sm:$0xff]
  %v229 = vld [vmem:[%s1 + $0x268] sm:$0xff]
  %v230 = vld [vmem:[%s1 + $0x270] sm:$0xff]
  %v231 = vld [vmem:[%s1 + $0x278] sm:$0xff]
  %v232 = vld [vmem:[%s1 + $0x280] sm:$0xff]
  %v233 = vld [vmem:[%s1 + $0x288] sm:$0xff]
  %v234 = vld [vmem:[%s1 + $0x290] sm:$0xff]
  %v235 = vld [vmem:[%s1 + $0x298] sm:$0xff]
  %v236 = vld [vmem:[%s1 + $0x2a0] sm:$0xff]
  %v237 = vld [vmem:[%s1 + $0x2a8] sm:$0xff]
  %v238 = vld [vmem:[%s1 + $0x2b0] sm:$0xff]
  %v239 = vld [vmem:[%s1 + $0x2b8] sm:$0xff]
  %v240 = vld [vmem:[%s1 + $0x2c0] sm:$0xff]
  %v241 = vld [vmem:[%s1 + $0x2c8] sm:$0xff]
  %v242 = vld [vmem:[%s1 + $0x2d0] sm:$0xff]
  %v243 = vld [vmem:[%s1 + $0x2d8] sm:$0xff]
  %v244 = vld [vmem:[%s1 + $0x2e0] sm:$0xff]
  %v245 = vld [vmem:[%s1 + $0x2e8] sm:$0xff]
  %v246 = vld [vmem:[%s1 + $0x2f0] sm:$0xff]
  %v247 = vld [vmem:[%s1 + $0x2f8] sm:$0xff]
  %v248 = vld [vmem:[%s1 + $0x300] sm:$0xff]
  %v249 = vld [vmem:[%s1 + $0x308] sm:$0xff]
  %v250 = vld [vmem:[%s1 + $0x310] sm:$0xff]
  %v251 = vld [vmem:[%s1 + $0x318] sm:$0xff]
  %v252 = vld [vmem:[%s1 + $0x320] sm:$0xff]
  %v253 = vld [vmem:[%s1 + $0x328] sm:$0xff]
  %v254 = vld [vmem:[%s1 + $0x330] sm:$0xff]
  %v255 = vld [vmem:[%s1 + $0x338] sm:$0xff]
  %v256 = vld [vmem:[%s1 + $0x340] sm:$0xff]
  %v257 = vld [vmem:[%s1 + $0x348] sm:$0xff]
  %v258 = vld [vmem:[%s1 + $0x350] sm:$0xff]
  %v259 = vld [vmem:[%s1 + $0x358] sm:$0xff]
  %v260 = vld [vmem:[%s1 + $0x360] sm:$0xff]
  %v261 = vld [vmem:[%s1 + $0x368] sm:$0xff]
  %v262 = vld [vmem:[%s1 + $0x370] sm:$0xff]
  %v263 = vld [vmem:[%s1 + $0x378] sm:$0xff]
  %v264 = vld [vmem:[%s1 + $0x380] sm:$0xff]
  %v265 = vld [vmem:[%s1 + $0x388] sm:$0xff]
  %v266 = vld [vmem:[%s1 + $0x390] sm:$0xff]
  %v267 = vld [vmem:[%s1 + $0x398] sm:$0xff]
  %v268 = vld [vmem:[%s1 + $0x3a0] sm:$0xff]
  %v269 = vld [vmem:[%s1 + $0x3a8] sm:$0xff]
  %v270 = vld [vmem:[%s1 + $0x3b0] sm:$0xff]
  %v271 = vld [vmem:[%s1 + $0x3b8] sm:$0xff]
  %v272 = vld [vmem:[%s1 + $0x3c0] sm:$0xff]
  %v273 = vld [vmem:[%s1 + $0x3c8] sm:$0xff]
  %v274 = vld [vmem:[%s1 + $0x3d0] sm:$0xff]
  %v275 = vld [vmem:[%s1 + $0x3d8] sm:$0xff]
  %v276 = vld [vmem:[%s1 + $0x3e0] sm:$0xff]
  %v277 = vld [vmem:[%s1 + $0x3e8] sm:$0xff]
  %v278 = vld [vmem:[%s1 + $0x3f0] sm:$0xff]
  %v279 = vld [vmem:[%s1 + $0x3f8] sm:$0xff]
  %v280 = vld [vmem:[%s1 + $0x400] sm:$0xff]
  %v281 = vld [vmem:[%s1 + $0x408] sm:$0xff]
  %v282 = vld [vmem:[%s1 + $0x410] sm:$0xff]
  %v283 = vld [vmem:[%s1 + $0x418] sm:$0xff]
  %v284 = vld [vmem:[%s1 + $0x420] sm:$0xff]
  %v285 = vld [vmem:[%s1 + $0x428] sm:$0xff]
  %v286 = vld [vmem:[%s1 + $0x430] sm:$0xff]
  %v287 = vld [vmem:[%s1 + $0x438] sm:$0xff]
  %v288 = vld [vmem:[%s1 + $0x440] sm:$0xff]
  %v289 = vld [vmem:[%s1 + $0x448] sm:$0xff]
  %v290 = vld [vmem:[%s1 + $0x450] sm:$0xff]
  %v291 = vld [vmem:[%s1 + $0x458] sm:$0xff]
  %v292 = vld [vmem:[%s1 + $0x460] sm:$0xff]
  %v293 = vld [vmem:[%s1 + $0x468] sm:$0xff]
  %v294 = vld [vmem:[%s1 + $0x470] sm:$0xff]
  %v295 = vld [vmem:[%s1 + $0x478] sm:$0xff]
  %v296 = vld [vmem:[%s1 + $0x480] sm:$0xff]
  %v297 = vld [vmem:[%s1 + $0x488] sm:$0xff]
  %v298 = vld [vmem:[%s1 + $0x490] sm:$0xff]
  %v299 = vld [vmem:[%s1 + $0x498] sm:$0xff]
  %v300 = vld [vmem:[%s1 + $0x4a0] sm:$0xff]
  %v301 = vld [vmem:[%s1 + $0x4a8] sm:$0xff]
  %v302 = vld [vmem:[%s1 + $0x4b0] sm:$0xff]
  %v303 = vld [vmem:[%s1 + $0x4b8] sm:$0xff]
  %v304 = vld [vmem:[%s1 + $0x4c0] sm:$0xff]
  %v305 = vld [vmem:[%s1 + $0x4c8] sm:$0xff]
  %v306 = vld [vmem:[%s1 + $0x4d0] sm:$0xff]
  %v307 = vld [vmem:[%s1 + $0x4d8] sm:$0xff]
  %v308 = vld [vmem:[%s1 + $0x4e0] sm:$0xff]
  %v309 = vld [vmem:[%s1 + $0x4e8] sm:$0xff]
  %v310 = vld [vmem:[%s1 + $0x4f0] sm:$0xff]
  %v311 = vld [vmem:[%s1 + $0x4f8] sm:$0xff]
  %v312 = vld [vmem:[%s1 + $0x500] sm:$0xff]
  %v313 = vld [vmem:[%s1 + $0x508] sm:$0xff]
  %v314 = vld [vmem:[%s1 + $0x510] sm:$0xff]
  %v315 = vld [vmem:[%s1 + $0x518] sm:$0xff]
  %v316 = vld [vmem:[%s1 + $0x520] sm:$0xff]
  %v317 = vld [vmem:[%s1 + $0x528] sm:$0xff]
  %v318 = vld [vmem:[%s1 + $0x530] sm:$0xff]
  %v319 = vld [vmem:[%s1 + $0x538] sm:$0xff]
  %v320 = vld [vmem:[%s1 + $0x540] sm:$0xff]
  %v321 = vld [vmem:[%s1 + $0x548] sm:$0xff]
  %v322 = vld [vmem:[%s1 + $0x550] sm:$0xff]
  %v323 = vld [vmem:[%s1 + $0x558] sm:$0xff]
  %v324 = vld [vmem:[%s1 + $0x560] sm:$0xff]
  %v325 = vld [vmem:[%s1 + $0x568] sm:$0xff]
  %v326 = vld [vmem:[%s1 + $0x570] sm:$0xff]
  %v327 = vld [vmem:[%s1 + $0x578] sm:$0xff]
  %v328 = vld [vmem:[%s1 + $0x580] sm:$0xff]
  %v329 = vld [vmem:[%s1 + $0x588] sm:$0xff]
  %v330 = vld [vmem:[%s1 + $0x590] sm:$0xff]
  %v331 = vld [vmem:[%s1 + $0x598] sm:$0xff]
  %v332 = vld [vmem:[%s1 + $0x5a0] sm:$0xff]
  %v333 = vld [vmem:[%s1 + $0x5a8] sm:$0xff]
  %v334 = vld [vmem:[%s1 + $0x5b0] sm:$0xff]
  %v335 = vld [vmem:[%s1 + $0x5b8] sm:$0xff]
  %v336 = vld [vmem:[%s1 + $0x5c0] sm:$0xff]
  %v337 = vld [vmem:[%s1 + $0x5c8] sm:$0xff]
  %v338 = vld [vmem:[%s1 + $0x5d0] sm:$0xff]
  %v339 = vld [vmem:[%s1 + $0x5d8] sm:$0xff]
  %v340 = vld [vmem:[%s1 + $0x5e0] sm:$0xff]
  %v341 = vld [vmem:[%s1 + $0x5e8] sm:$0xff]
  %v342 = vld [vmem:[%s1 + $0x5f0] sm:$0xff]
  %v343 = vld [vmem:[%s1 + $0x5f8] sm:$0xff]
  %v344 = vld [vmem:[%s1 + $0x600] sm:$0xff]
  %v345 = vld [vmem:[%s1 + $0x608] sm:$0xff]
  %v346 = vld [vmem:[%s1 + $0x610] sm:$0xff]
  %v347 = vld [vmem:[%s1 + $0x618] sm:$0xff]
  %v348 = vld [vmem:[%s1 + $0x620] sm:$0xff]
  %v349 = vld [vmem:[%s1 + $0x628] sm:$0xff]
  %v350 = vld [vmem:[%s1 + $0x630] sm:$0xff]
  %v351 = vld [vmem:[%s1 + $0x638] sm:$0xff]
  %v352 = vld [vmem:[%s1 + $0x640] sm:$0xff]
  %v353 = vld [vmem:[%s1 + $0x648] sm:$0xff]
  %v354 = vld [vmem:[%s1 + $0x650] sm:$0xff]
  %v355 = vld [vmem:[%s1 + $0x658] sm:$0xff]
  %v356 = vld [vmem:[%s1 + $0x660] sm:$0xff]
  %v357 = vld [vmem:[%s1 + $0x668] sm:$0xff]
  %v358 = vld [vmem:[%s1 + $0x670] sm:$0xff]
  %v359 = vld [vmem:[%s1 + $0x678] sm:$0xff]
  %v360 = vld [vmem:[%s1 + $0x680] sm:$0xff]
  %v361 = vld [vmem:[%s1 + $0x688] sm:$0xff]
  %v362 = vld [vmem:[%s1 + $0x690] sm:$0xff]
  %v363 = vld [vmem:[%s1 + $0x698] sm:$0xff]
  %v364 = vld [vmem:[%s1 + $0x6a0] sm:$0xff]
  %v365 = vld [vmem:[%s1 + $0x6a8] sm:$0xff]
  %v366 = vld [vmem:[%s1 + $0x6b0] sm:$0xff]
  %v367 = vld [vmem:[%s1 + $0x6b8] sm:$0xff]
  %v368 = vld [vmem:[%s1 + $0x6c0] sm:$0xff]
  %v369 = vld [vmem:[%s1 + $0x6c8] sm:$0xff]
  %v370 = vld [vmem:[%s1 + $0x6d0] sm:$0xff]
  %v371 = vld [vmem:[%s1 + $0x6d8] sm:$0xff]
  %v372 = vld [vmem:[%s1 + $0x6e0] sm:$0xff]
  %v373 = vld [vmem:[%s1 + $0x6e8] sm:$0xff]
  %v374 = vld [vmem:[%s1 + $0x6f0] sm:$0xff]
  %v375 = vld [vmem:[%s1 + $0x6f8] sm:$0xff]
  %v376 = vld [vmem:[%s1 + $0x700] sm:$0xff]
  %v377 = vld [vmem:[%s1 + $0x708] sm:$0xff]
  %v378 = vld [vmem:[%s1 + $0x710] sm:$0xff]
  %v379 = vld [vmem:[%s1 + $0x718] sm:$0xff]
  %v380 = vld [vmem:[%s1 + $0x720] sm:$0xff]
  %v381 = vld [vmem:[%s1 + $0x728] sm:$0xff]
  %v382 = vld [vmem:[%s1 + $0x730] sm:$0xff]
  %v383 = vld [vmem:[%s1 + $0x738] sm:$0xff]
  %v384 = vld [vmem:[%s1 + $0x740] sm:$0xff]
  %v385 = vld [vmem:[%s1 + $0x748] sm:$0xff]
  %v386 = vld [vmem:[%s1 + $0x750] sm:$0xff]
  %v387 = vld [vmem:[%s1 + $0x758] sm:$0xff]
  %v388 = vld [vmem:[%s1 + $0x760] sm:$0xff]
  %v389 = vld [vmem:[%s1 + $0x768] sm:$0xff]
  %v390 = vld [vmem:[%s1 + $0x770] sm:$0xff]
  %v391 = vld [vmem:[%s1 + $0x778] sm:$0xff]
  %v392 = vld [vmem:[%s1 + $0x780] sm:$0xff]
  %v393 = vld [vmem:[%s1 + $0x788] sm:$0xff]
  %v394 = vld [vmem:[%s1 + $0x790] sm:$0xff]
  %v395 = vld [vmem:[%s1 + $0x798] sm:$0xff]
  %v396 = vld [vmem:[%s1 + $0x7a0] sm:$0xff]
  %v397 = vld [vmem:[%s1 + $0x7a8] sm:$0xff]
  %v398 = vld [vmem:[%s1 + $0x7b0] sm:$0xff]
  %v399 = vld [vmem:[%s1 + $0x7b8] sm:$0xff]
  %v400 = vld [vmem:[%s1 + $0x7c0] sm:$0xff]
  %v401 = vld [vmem:[%s1 + $0x7c8] sm:$0xff]
  %v402 = vld [vmem:[%s1 + $0x7d0] sm:$0xff]
  %v403 = vld [vmem:[%s1 + $0x7d8] sm:$0xff]
  %v404 = vld [vmem:[%s1 + $0x7e0] sm:$0xff]
  %v405 = vld [vmem:[%s1 + $0x7e8] sm:$0xff]
  %v406 = vld [vmem:[%s1 + $0x7f0] sm:$0xff]
  %v407 = vld [vmem:[%s1 + $0x7f8] sm:$0xff]
  %v408 = vld [vmem:[%s1 + $0x800] sm:$0xff]
  %v409 = vld [vmem:[%s1 + $0x808] sm:$0xff]
  %v410 = vld [vmem:[%s1 + $0x810] sm:$0xff]
  %v411 = vld [vmem:[%s1 + $0x818] sm:$0xff]
  %v412 = vld [vmem:[%s1 + $0x820] sm:$0xff]
  %v413 = vld [vmem:[%s1 + $0x828] sm:$0xff]
  %v414 = vld [vmem:[%s1 + $0x830] sm:$0xff]
  %v415 = vld [vmem:[%s1 + $0x838] sm:$0xff]
  %v416 = vld [vmem:[%s1 + $0x840] sm:$0xff]
  %v417 = vld [vmem:[%s1 + $0x848] sm:$0xff]
  %v418 = vld [vmem:[%s1 + $0x850] sm:$0xff]
  %v419 = vld [vmem:[%s1 + $0x858] sm:$0xff]
  %v420 = vld [vmem:[%s1 + $0x860] sm:$0xff]
  %v421 = vld [vmem:[%s1 + $0x868] sm:$0xff]
  %v422 = vld [vmem:[%s1 + $0x870] sm:$0xff]
  %v423 = vld [vmem:[%s1 + $0x878] sm:$0xff]
  %v424 = vld [vmem:[%s1 + $0x880] sm:$0xff]
  %v425 = vld [vmem:[%s1 + $0x888] sm:$0xff]
  %v426 = vld [vmem:[%s1 + $0x890] sm:$0xff]
  %v427 = vld [vmem:[%s1 + $0x898] sm:$0xff]
  %v428 = vld [vmem:[%s1 + $0x8a0] sm:$0xff]
  %v429 = vld [vmem:[%s1 + $0x8a8] sm:$0xff]
  %v430 = vld [vmem:[%s1 + $0x8b0] sm:$0xff]
  %v431 = vld [vmem:[%s1 + $0x8b8] sm:$0xff]
  %v432 = vld [vmem:[%s1 + $0x8c0] sm:$0xff]
  %v433 = vld [vmem:[%s1 + $0x8c8] sm:$0xff]
  %v434 = vld [vmem:[%s1 + $0x8d0] sm:$0xff]
  %v435 = vld [vmem:[%s1 + $0x8d8] sm:$0xff]
  %v436 = vld [vmem:[%s1 + $0x8e0] sm:$0xff]
  %v437 = vld [vmem:[%s1 + $0x8e8] sm:$0xff]
  %v438 = vld [vmem:[%s1 + $0x8f0] sm:$0xff]
  %v439 = vld [vmem:[%s1 + $0x8f8] sm:$0xff]
  %v440 = vld [vmem:[%s1 + $0x900] sm:$0xff]
  %v441 = vld [vmem:[%s1 + $0x908] sm:$0xff]
  %v442 = vld [vmem:[%s1 + $0x910] sm:$0xff]
  %v443 = vld [vmem:[%s1 + $0x918] sm:$0xff]
  %v444 = vld [vmem:[%s1 + $0x920] sm:$0xff]
  %v445 = vld [vmem:[%s1 + $0x928] sm:$0xff]
  %v446 = vld [vmem:[%s1 + $0x930] sm:$0xff]
  %v447 = vld [vmem:[%s1 + $0x938] sm:$0xff]
  %v448 = vld [vmem:[%s1 + $0x940] sm:$0xff]
  %v449 = vld [vmem:[%s1 + $0x948] sm:$0xff]
  %v450 = vld [vmem:[%s1 + $0x950] sm:$0xff]
  %v451 = vld [vmem:[%s1 + $0x958] sm:$0xff]
  %v452 = vld [vmem:[%s1 + $0x960] sm:$0xff]
  %v453 = vld [vmem:[%s1 + $0x968] sm:$0xff]
  %v454 = vld [vmem:[%s1 + $0x970] sm:$0xff]
  %v455 = vld [vmem:[%s1 + $0x978] sm:$0xff]
  %v456 = vld [vmem:[%s1 + $0x980] sm:$0xff]
  %v457 = vld [vmem:[%s1 + $0x988] sm:$0xff]
  %v458 = vld [vmem:[%s1 + $0x990] sm:$0xff]
  %v459 = vld [vmem:[%s1 + $0x998] sm:$0xff]
  %v460 = vld [vmem:[%s1 + $0x9a0] sm:$0xff]
  %v461 = vld [vmem:[%s1 + $0x9a8] sm:$0xff]
  %v462 = vld [vmem:[%s1 + $0x9b0] sm:$0xff]
  %v463 = vld [vmem:[%s1 + $0x9b8] sm:$0xff]
  %v464 = vld [vmem:[%s1 + $0x9c0] sm:$0xff]
  %v465 = vld [vmem:[%s1 + $0x9c8] sm:$0xff]
  %v466 = vld [vmem:[%s1 + $0x9d0] sm:$0xff]
  %v467 = vld [vmem:[%s1 + $0x9d8] sm:$0xff]
  %v468 = vld [vmem:[%s1 + $0x9e0] sm:$0xff]
  %v469 = vld [vmem:[%s1 + $0x9e8] sm:$0xff]
  %v470 = vld [vmem:[%s1 + $0x9f0] sm:$0xff]
  %v471 = vld [vmem:[%s1 + $0x9f8] sm:$0xff]
  %v472 = vld [vmem:[%s1 + $0xa00] sm:$0xff]
  %v473 = vld [vmem:[%s1 + $0xa08] sm:$0xff]
  %v474 = vld [vmem:[%s1 + $0xa10] sm:$0xff]
  %v475 = vld [vmem:[%s1 + $0xa18] sm:$0xff]
  %v476 = vld [vmem:[%s1 + $0xa20] sm:$0xff]
  %v477 = vld [vmem:[%s1 + $0xa28] sm:$0xff]
  %v478 = vld [vmem:[%s1 + $0xa30] sm:$0xff]
  %v479 = vld [vmem:[%s1 + $0xa38] sm:$0xff]
  %v480 = vld [vmem:[%s1 + $0xa40] sm:$0xff]
  %v481 = vld [vmem:[%s1 + $0xa48] sm:$0xff]
  %v482 = vld [vmem:[%s1 + $0xa50] sm:$0xff]
  %v483 = vld [vmem:[%s1 + $0xa58] sm:$0xff]
  %v484 = vld [vmem:[%s1 + $0xa60] sm:$0xff]
  %v485 = vld [vmem:[%s1 + $0xa68] sm:$0xff]
  %v486 = vld [vmem:[%s1 + $0xa70] sm:$0xff]
  %v487 = vld [vmem:[%s1 + $0xa78] sm:$0xff]
  %v488 = vld [vmem:[%s1 + $0xa80] sm:$0xff]
  %v489 = vld [vmem:[%s1 + $0xa88] sm:$0xff]
  %v490 = vld [vmem:[%s1 + $0xa90] sm:$0xff]
  %v491 = vld [vmem:[%s1 + $0xa98] sm:$0xff]
  %v492 = vld [vmem:[%s1 + $0xaa0] sm:$0xff]
  %v493 = vld [vmem:[%s1 + $0xaa8] sm:$0xff]
  %v494 = vld [vmem:[%s1 + $0xab0] sm:$0xff]
  %v495 = vld [vmem:[%s1 + $0xab8] sm:$0xff]
  %v496 = vld [vmem:[%s1 + $0xac0] sm:$0xff]
  %v497 = vld [vmem:[%s1 + $0xac8] sm:$0xff]
  %v498 = vld [vmem:[%s1 + $0xad0] sm:$0xff]
  %v499 = vld [vmem:[%s1 + $0xad8] sm:$0xff]
  %v500 = vld [vmem:[%s1 + $0xae0] sm:$0xff]
  %v501 = vld [vmem:[%s1 + $0xae8] sm:$0xff]
  %v502 = vld [vmem:[%s1 + $0xaf0] sm:$0xff]
  %v503 = vld [vmem:[%s1 + $0xaf8] sm:$0xff]
  %v504 = vld [vmem:[%s1 + $0xb00] sm:$0xff]
  %v505 = vld [vmem:[%s1 + $0xb08] sm:$0xff]
  %v506 = vld [vmem:[%s1 + $0xb10] sm:$0xff]
  %v507 = vld [vmem:[%s1 + $0xb18] sm:$0xff]
  %v508 = vld [vmem:[%s1 + $0xb20] sm:$0xff]
  %v509 = vld [vmem:[%s1 + $0xb28] sm:$0xff]
  %v510 = vld [vmem:[%s1 + $0xb30] sm:$0xff]
  %v511 = vld [vmem:[%s1 + $0xb38] sm:$0xff]
  %v512 = vld [vmem:[%s1 + $0xb40] sm:$0xff]
  %v513 = vld [vmem:[%s1 + $0xb48] sm:$0xff]
  %v514 = vld [vmem:[%s1 + $0xb50] sm:$0xff]
  %v515 = vld [vmem:[%s1 + $0xb58] sm:$0xff]
  %v516 = vld [vmem:[%s1 + $0xb60] sm:$0xff]
  %v517 = vld [vmem:[%s1 + $0xb68] sm:$0xff]
  %v518 = vld [vmem:[%s1 + $0xb70] sm:$0xff]
  %v519 = vld [vmem:[%s1 + $0xb78] sm:$0xff]
  %v520 = vld [vmem:[%s1 + $0xb80] sm:$0xff]
  %v521 = vld [vmem:[%s1 + $0xb88] sm:$0xff]
  %v522 = vld [vmem:[%s1 + $0xb90] sm:$0xff]
  %v523 = vld [vmem:[%s1 + $0xb98] sm:$0xff]
  %v524 = vld [vmem:[%s1 + $0xba0] sm:$0xff]
  %v525 = vld [vmem:[%s1 + $0xba8] sm:$0xff]
  %v526 = vld [vmem:[%s1 + $0xbb0] sm:$0xff]
  %v527 = vld [vmem:[%s1 + $0xbb8] sm:$0xff]
  %v528 = vld [vmem:[%s1 + $0xbc0] sm:$0xff]
  %v529 = vld [vmem:[%s1 + $0xbc8] sm:$0xff]
  %v530 = vld [vmem:[%s1 + $0xbd0] sm:$0xff]
  %v531 = vld [vmem:[%s1 + $0xbd8] sm:$0xff]
  %v532 = vld [vmem:[%s1 + $0xbe0] sm:$0xff]
  %v533 = vld [vmem:[%s1 + $0xbe8] sm:$0xff]
  %v534 = vld [vmem:[%s1 + $0xbf0] sm:$0xff]
  %v535 = vld [vmem:[%s1 + $0xbf8] sm:$0xff]
  %v536 = vld [vmem:[%s1 + $0xc00] sm:$0xff]
  %v537 = vld [vmem:[%s1 + $0xc08] sm:$0xff]
  %v538 = vld [vmem:[%s1 + $0xc10] sm:$0xff]
  %v539 = vld [vmem:[%s1 + $0xc18] sm:$0xff]
  %v540 = vld [vmem:[%s1 + $0xc20] sm:$0xff]
  %v541 = vld [vmem:[%s1 + $0xc28] sm:$0xff]
  %v542 = vld [vmem:[%s1 + $0xc30] sm:$0xff]
  %v543 = vld [vmem:[%s1 + $0xc38] sm:$0xff]
  %v544 = vld [vmem:[%s1 + $0xc40] sm:$0xff]
  %v545 = vld [vmem:[%s1 + $0xc48] sm:$0xff]
  %v546 = vld [vmem:[%s1 + $0xc50] sm:$0xff]
  %v547 = vld [vmem:[%s1 + $0xc58] sm:$0xff]
  %v548 = vld [vmem:[%s1 + $0xc60] sm:$0xff]
  %v549 = vld [vmem:[%s1 + $0xc68] sm:$0xff]
  %v550 = vld [vmem:[%s1 + $0xc70] sm:$0xff]
  %v551 = vld [vmem:[%s1 + $0xc78] sm:$0xff]
  %v552 = vld [vmem:[%s1 + $0xc80] sm:$0xff]
  %v553 = vld [vmem:[%s1 + $0xc88] sm:$0xff]
  %v554 = vld [vmem:[%s1 + $0xc90] sm:$0xff]
  %v555 = vld [vmem:[%s1 + $0xc98] sm:$0xff]
  %v556 = vld [vmem:[%s1 + $0xca0] sm:$0xff]
  %v557 = vld [vmem:[%s1 + $0xca8] sm:$0xff]
  %v558 = vld [vmem:[%s1 + $0xcb0] sm:$0xff]
  %v559 = vld [vmem:[%s1 + $0xcb8] sm:$0xff]
  %v560 = vld [vmem:[%s1 + $0xcc0] sm:$0xff]
  %v561 = vld [vmem:[%s1 + $0xcc8] sm:$0xff]
  %v562 = vld [vmem:[%s1 + $0xcd0] sm:$0xff]
  %v563 = vld [vmem:[%s1 + $0xcd8] sm:$0xff]
  %v564 = vld [vmem:[%s1 + $0xce0] sm:$0xff]
  %v565 = vld [vmem:[%s1 + $0xce8] sm:$0xff]
  %v566 = vld [vmem:[%s1 + $0xcf0] sm:$0xff]
  %v567 = vld [vmem:[%s1 + $0xcf8] sm:$0xff]
  %v568 = vld [vmem:[%s1 + $0xd00] sm:$0xff]
  %v569 = vld [vmem:[%s1 + $0xd08] sm:$0xff]
  %v570 = vld [vmem:[%s1 + $0xd10] sm:$0xff]
  %v571 = vld [vmem:[%s1 + $0xd18] sm:$0xff]
  %v572 = vld [vmem:[%s1 + $0xd20] sm:$0xff]
  %v573 = vld [vmem:[%s1 + $0xd28] sm:$0xff]
  %v574 = vld [vmem:[%s1 + $0xd30] sm:$0xff]
  %v575 = vld [vmem:[%s1 + $0xd38] sm:$0xff]
  %v576 = vld [vmem:[%s1 + $0xd40] sm:$0xff]
  %v577 = vld [vmem:[%s1 + $0xd48] sm:$0xff]
  %v578 = vld [vmem:[%s1 + $0xd50] sm:$0xff]
  %v579 = vld [vmem:[%s1 + $0xd58] sm:$0xff]
  %v580 = vld [vmem:[%s1 + $0xd60] sm:$0xff]
  %v581 = vld [vmem:[%s1 + $0xd68] sm:$0xff]
  %v582 = vld [vmem:[%s1 + $0xd70] sm:$0xff]
  %v583 = vld [vmem:[%s1 + $0xd78] sm:$0xff]
  %v584 = vld [vmem:[%s1 + $0xd80] sm:$0xff]
  %v585 = vld [vmem:[%s1 + $0xd88] sm:$0xff]
  %v586 = vld [vmem:[%s1 + $0xd90] sm:$0xff]
  %v587 = vld [vmem:[%s1 + $0xd98] sm:$0xff]
  %v588 = vld [vmem:[%s1 + $0xda0] sm:$0xff]
  %v589 = vld [vmem:[%s1 + $0xda8] sm:$0xff]
  %v590 = vld [vmem:[%s1 + $0xdb0] sm:$0xff]
  %v591 = vld [vmem:[%s1 + $0xdb8] sm:$0xff]
  %v592 = vld [vmem:[%s1 + $0xdc0] sm:$0xff]
  %v593 = vld [vmem:[%s1 + $0xdc8] sm:$0xff]
  %v594 = vld [vmem:[%s1 + $0xdd0] sm:$0xff]
  %v595 = vld [vmem:[%s1 + $0xdd8] sm:$0xff]
  %v596 = vld [vmem:[%s1 + $0xde0] sm:$0xff]
  %v597 = vld [vmem:[%s1 + $0xde8] sm:$0xff]
  %v598 = vld [vmem:[%s1 + $0xdf0] sm:$0xff]
  %v599 = vld [vmem:[%s1 + $0xdf8] sm:$0xff]
  %v600 = vld [vmem:[%s1 + $0xe00] sm:$0xff]
  %v601 = vld [vmem:[%s1 + $0xe08] sm:$0xff]
  %v602 = vld [vmem:[%s1 + $0xe10] sm:$0xff]
  %v603 = vld [vmem:[%s1 + $0xe18] sm:$0xff]
  %v604 = vld [vmem:[%s1 + $0xe20] sm:$0xff]
  %v605 = vld [vmem:[%s1 + $0xe28] sm:$0xff]
  %v606 = vld [vmem:[%s1 + $0xe30] sm:$0xff]
  %v607 = vld [vmem:[%s1 + $0xe38] sm:$0xff]
  %v608 = vld [vmem:[%s1 + $0xe40] sm:$0xff]
  %v609 = vld [vmem:[%s1 + $0xe48] sm:$0xff]
  %v610 = vld [vmem:[%s1 + $0xe50] sm:$0xff]
  %v611 = vld [vmem:[%s1 + $0xe58] sm:$0xff]
  %v612 = vld [vmem:[%s1 + $0xe60] sm:$0xff]
  %v613 = vld [vmem:[%s1 + $0xe68] sm:$0xff]
  %v614 = vld [vmem:[%s1 + $0xe70] sm:$0xff]
  %v615 = vld [vmem:[%s1 + $0xe78] sm:$0xff]
  %v616 = vld [vmem:[%s1 + $0xe80] sm:$0xff]
  %v617 = vld [vmem:[%s1 + $0xe88] sm:$0xff]
  %v618 = vld [vmem:[%s1 + $0xe90] sm:$0xff]
  %v619 = vld [vmem:[%s1 + $0xe98] sm:$0xff]
  %v620 = vld [vmem:[%s1 + $0xea0] sm:$0xff]
  %v621 = vld [vmem:[%s1 + $0xea8] sm:$0xff]
  %v622 = vld [vmem:[%s1 + $0xeb0] sm:$0xff]
  %v623 = vld [vmem:[%s1 + $0xeb8] sm:$0xff]
  %v624 = vld [vmem:[%s1 + $0xec0] sm:$0xff]
  %v625 = vld [vmem:[%s1 + $0xec8] sm:$0xff]
  %v626 = vld [vmem:[%s1 + $0xed0] sm:$0xff]
  %v627 = vld [vmem:[%s1 + $0xed8] sm:$0xff]
  %v628 = vld [vmem:[%s1 + $0xee0] sm:$0xff]
  %v629 = vld [vmem:[%s1 + $0xee8] sm:$0xff]
  %v630 = vld [vmem:[%s1 + $0xef0] sm:$0xff]
  %v631 = vld [vmem:[%s1 + $0xef8] sm:$0xff]
  %v632 = vld [vmem:[%s1 + $0xf00] sm:$0xff]
  %v633 = vld [vmem:[%s1 + $0xf08] sm:$0xff]
  %v634 = vld [vmem:[%s1 + $0xf10] sm:$0xff]
  %v635 = vld [vmem:[%s1 + $0xf18] sm:$0xff]
  %v636 = vld [vmem:[%s1 + $0xf20] sm:$0xff]
  %v637 = vld [vmem:[%s1 + $0xf28] sm:$0xff]
  %v638 = vld [vmem:[%s1 + $0xf30] sm:$0xff]
  %v639 = vld [vmem:[%s1 + $0xf38] sm:$0xff]
  %v640 = vld [vmem:[%s1 + $0xf40] sm:$0xff]
  %v641 = vld [vmem:[%s1 + $0xf48] sm:$0xff]
  %v642 = vld [vmem:[%s1 + $0xf50] sm:$0xff]
  %v643 = vld [vmem:[%s1 + $0xf58] sm:$0xff]
  %v644 = vld [vmem:[%s1 + $0xf60] sm:$0xff]
  %v645 = vld [vmem:[%s1 + $0xf68] sm:$0xff]
  %v646 = vld [vmem:[%s1 + $0xf70] sm:$0xff]
  %v647 = vld [vmem:[%s1 + $0xf78] sm:$0xff]
  %v648 = vld [vmem:[%s1 + $0xf80] sm:$0xff]
  %v649 = vld [vmem:[%s1 + $0xf88] sm:$0xff]
  %v650 = vld [vmem:[%s1 + $0xf90] sm:$0xff]
  %v651 = vld [vmem:[%s1 + $0xf98] sm:$0xff]
  %v652 = vld [vmem:[%s1 + $0xfa0] sm:$0xff]
  %v653 = vld [vmem:[%s1 + $0xfa8] sm:$0xff]
  %v654 = vld [vmem:[%s1 + $0xfb0] sm:$0xff]
  %v655 = vld [vmem:[%s1 + $0xfb8] sm:$0xff]
  %v656 = vld [vmem:[%s1 + $0xfc0] sm:$0xff]
  %v657 = vld [vmem:[%s1 + $0xfc8] sm:$0xff]
  %v658 = vld [vmem:[%s1 + $0xfd0] sm:$0xff]
  %v659 = vld [vmem:[%s1 + $0xfd8] sm:$0xff]
  %v660 = vld [vmem:[%s1 + $0xfe0] sm:$0xff]
  %v661 = vld [vmem:[%s1 + $0xfe8] sm:$0xff]
  %v662 = vld [vmem:[%s1 + $0xff0] sm:$0xff]
  %v663 = vld [vmem:[%s1 + $0xff8] sm:$0xff]
  %v664 = vld [vmem:[%s1 + $0x1000] sm:$0xff]
  %v665 = vld [vmem:[%s1 + $0x1008] sm:$0xff]
  %v666 = vld [vmem:[%s1 + $0x1010] sm:$0xff]
  %v667 = vld [vmem:[%s1 + $0x1018] sm:$0xff]
  %v668 = vld [vmem:[%s1 + $0x1020] sm:$0xff]
  %v669 = vld [vmem:[%s1 + $0x1028] sm:$0xff]
  %v670 = vld [vmem:[%s1 + $0x1030] sm:$0xff]
  %v671 = vld [vmem:[%s1 + $0x1038] sm:$0xff]
  %v672 = vld [vmem:[%s1 + $0x1040] sm:$0xff]
  %v673 = vld [vmem:[%s1 + $0x1048] sm:$0xff]
  %v674 = vld [vmem:[%s1 + $0x1050] sm:$0xff]
  %v675 = vld [vmem:[%s1 + $0x1058] sm:$0xff]
  %v676 = vld [vmem:[%s1 + $0x1060] sm:$0xff]
  %v677 = vld [vmem:[%s1 + $0x1068] sm:$0xff]
  %v678 = vld [vmem:[%s1 + $0x1070] sm:$0xff]
  %v679 = vld [vmem:[%s1 + $0x1078] sm:$0xff]
  %v680 = vld [vmem:[%s1 + $0x1080] sm:$0xff]
  %v681 = vld [vmem:[%s1 + $0x1088] sm:$0xff]
  %v682 = vld [vmem:[%s1 + $0x1090] sm:$0xff]
  %v683 = vld [vmem:[%s1 + $0x1098] sm:$0xff]
  %v684 = vld [vmem:[%s1 + $0x10a0] sm:$0xff]
  %v685 = vld [vmem:[%s1 + $0x10a8] sm:$0xff]
  %v686 = vld [vmem:[%s1 + $0x10b0] sm:$0xff]
  %v687 = vld [vmem:[%s1 + $0x10b8] sm:$0xff]
  %v688 = vld [vmem:[%s1 + $0x10c0] sm:$0xff]
  %v689 = vld [vmem:[%s1 + $0x10c8] sm:$0xff]
  %v690 = vld [vmem:[%s1 + $0x10d0] sm:$0xff]
  %v691 = vld [vmem:[%s1 + $0x10d8] sm:$0xff]
  %v692 = vld [vmem:[%s1 + $0x10e0] sm:$0xff]
  %v693 = vld [vmem:[%s1 + $0x10e8] sm:$0xff]
  %v694 = vld [vmem:[%s1 + $0x10f0] sm:$0xff]
  %v695 = vld [vmem:[%s1 + $0x10f8] sm:$0xff]
  %v696 = vld [vmem:[%s1 + $0x1100] sm:$0xff]
  %v697 = vld [vmem:[%s1 + $0x1108] sm:$0xff]
  %v698 = vld [vmem:[%s1 + $0x1110] sm:$0xff]
  %v699 = vld [vmem:[%s1 + $0x1118] sm:$0xff]
  %v700 = vld [vmem:[%s1 + $0x1120] sm:$0xff]
  %v701 = vld [vmem:[%s1 + $0x1128] sm:$0xff]
  %v702 = vld [vmem:[%s1 + $0x1130] sm:$0xff]
  %v703 = vld [vmem:[%s1 + $0x1138] sm:$0xff]
  %v704 = vld [vmem:[%s1 + $0x1140] sm:$0xff]
  %v705 = vld [vmem:[%s1 + $0x1148] sm:$0xff]
  %v706 = vld [vmem:[%s1 + $0x1150] sm:$0xff]
  %v707 = vld [vmem:[%s1 + $0x1158] sm:$0xff]
  %v708 = vld [vmem:[%s1 + $0x1160] sm:$0xff]
  %v709 = vld [vmem:[%s1 + $0x1168] sm:$0xff]
  %v710 = vld [vmem:[%s1 + $0x1170] sm:$0xff]
  %v711 = vld [vmem:[%s1 + $0x1178] sm:$0xff]
  %v712 = vld [vmem:[%s1 + $0x1180] sm:$0xff]
  %v713 = vld [vmem:[%s1 + $0x1188] sm:$0xff]
  %v714 = vld [vmem:[%s1 + $0x1190] sm:$0xff]
  %v715 = vld [vmem:[%s1 + $0x1198] sm:$0xff]
  %v716 = vld [vmem:[%s1 + $0x11a0] sm:$0xff]
  %v717 = vld [vmem:[%s1 + $0x11a8] sm:$0xff]
  %v718 = vld [vmem:[%s1 + $0x11b0] sm:$0xff]
  %v719 = vld [vmem:[%s1 + $0x11b8] sm:$0xff]
  %v720 = vld [vmem:[%s1 + $0x11c0] sm:$0xff]
  %v721 = vld [vmem:[%s1 + $0x11c8] sm:$0xff]
  %v722 = vld [vmem:[%s1 + $0x11d0] sm:$0xff]
  %v723 = vld [vmem:[%s1 + $0x11d8] sm:$0xff]
  %v724 = vld [vmem:[%s1 + $0x11e0] sm:$0xff]
  %v725 = vld [vmem:[%s1 + $0x11e8] sm:$0xff]
  %v726 = vld [vmem:[%s1 + $0x11f0] sm:$0xff]
  %v727 = vld [vmem:[%s1 + $0x11f8] sm:$0xff]
  %v728 = vld [vmem:[%s1 + $0x1200] sm:$0xff]
  %v729 = vld [vmem:[%s1 + $0x1208] sm:$0xff]
  %v730 = vld [vmem:[%s1 + $0x1210] sm:$0xff]
  %v731 = vld [vmem:[%s1 + $0x1218] sm:$0xff]
  %v732 = vld [vmem:[%s1 + $0x1220] sm:$0xff]
  %v733 = vld [vmem:[%s1 + $0x1228] sm:$0xff]
  %v734 = vld [vmem:[%s1 + $0x1230] sm:$0xff]
  %v735 = vld [vmem:[%s1 + $0x1238] sm:$0xff]
  %v736 = vld [vmem:[%s1 + $0x1240] sm:$0xff]
  %v737 = vld [vmem:[%s1 + $0x1248] sm:$0xff]
  %v738 = vld [vmem:[%s1 + $0x1250] sm:$0xff]
  %v739 = vld [vmem:[%s1 + $0x1258] sm:$0xff]
  %v740 = vld [vmem:[%s1 + $0x1260] sm:$0xff]
  %v741 = vld [vmem:[%s1 + $0x1268] sm:$0xff]
  %v742 = vld [vmem:[%s1 + $0x1270] sm:$0xff]
  %v743 = vld [vmem:[%s1 + $0x1278] sm:$0xff]
  %v744 = vld [vmem:[%s1 + $0x1280] sm:$0xff]
  %v745 = vld [vmem:[%s1 + $0x1288] sm:$0xff]
  %v746 = vld [vmem:[%s1 + $0x1290] sm:$0xff]
  %v747 = vld [vmem:[%s1 + $0x1298] sm:$0xff]
  %v748 = vld [vmem:[%s1 + $0x12a0] sm:$0xff]
  %v749 = vld [vmem:[%s1 + $0x12a8] sm:$0xff]
  %v750 = vld [vmem:[%s1 + $0x12b0] sm:$0xff]
  %v751 = vld [vmem:[%s1 + $0x12b8] sm:$0xff]
  %v752 = vld [vmem:[%s1 + $0x12c0] sm:$0xff]
  %v753 = vld [vmem:[%s1 + $0x12c8] sm:$0xff]
  %v754 = vld [vmem:[%s1 + $0x12d0] sm:$0xff]
  %v755 = vld [vmem:[%s1 + $0x12d8] sm:$0xff]
  %v756 = vld [vmem:[%s1 + $0x12e0] sm:$0xff]
  %v757 = vld [vmem:[%s1 + $0x12e8] sm:$0xff]
  %v758 = vld [vmem:[%s1 + $0x12f0] sm:$0xff]
  %v759 = vld [vmem:[%s1 + $0x12f8] sm:$0xff]
  %v760 = vld [vmem:[%s1 + $0x1300] sm:$0xff]
  %v761 = vld [vmem:[%s1 + $0x1308] sm:$0xff]
  %v762 = vld [vmem:[%s1 + $0x1310] sm:$0xff]
  %v763 = vld [vmem:[%s1 + $0x1318] sm:$0xff]
  %v764 = vld [vmem:[%s1 + $0x1320] sm:$0xff]
  %v765 = vld [vmem:[%s1 + $0x1328] sm:$0xff]
  %v766 = vld [vmem:[%s1 + $0x1330] sm:$0xff]
  %v767 = vld [vmem:[%s1 + $0x1338] sm:$0xff]
  %v768 = vld [vmem:[%s1 + $0x1340] sm:$0xff]
  %v769 = vld [vmem:[%s1 + $0x1348] sm:$0xff]
  %v770 = vld [vmem:[%s1 + $0x1350] sm:$0xff]
  %v771 = vld [vmem:[%s1 + $0x1358] sm:$0xff]
  %v772 = vld [vmem:[%s1 + $0x1360] sm:$0xff]
  %v773 = vld [vmem:[%s1 + $0x1368] sm:$0xff]
  %v774 = vld [vmem:[%s1 + $0x1370] sm:$0xff]
  %v775 = vld [vmem:[%s1 + $0x1378] sm:$0xff]
  %v776 = vld [vmem:[%s1 + $0x1380] sm:$0xff]
  %v777 = vld [vmem:[%s1 + $0x1388] sm:$0xff]
  %v778 = vld [vmem:[%s1 + $0x1390] sm:$0xff]
  %v779 = vld [vmem:[%s1 + $0x1398] sm:$0xff]
  %v780 = vld [vmem:[%s1 + $0x13a0] sm:$0xff]
  %v781 = vld [vmem:[%s1 + $0x13a8] sm:$0xff]
  %v782 = vld [vmem:[%s1 + $0x13b0] sm:$0xff]
  %v783 = vld [vmem:[%s1 + $0x13b8] sm:$0xff]
  %v784 = vld [vmem:[%s1 + $0x13c0] sm:$0xff]
  %v785 = vld [vmem:[%s1 + $0x13c8] sm:$0xff]
  %v786 = vld [vmem:[%s1 + $0x13d0] sm:$0xff]
  %v787 = vld [vmem:[%s1 + $0x13d8] sm:$0xff]
  %v788 = vld [vmem:[%s1 + $0x13e0] sm:$0xff]
  %v789 = vld [vmem:[%s1 + $0x13e8] sm:$0xff]
  %v790 = vld [vmem:[%s1 + $0x13f0] sm:$0xff]
  %v791 = vld [vmem:[%s1 + $0x13f8] sm:$0xff]
  %v792 = vld [vmem:[%s1 + $0x1400] sm:$0xff]
  %v793 = vld [vmem:[%s1 + $0x1408] sm:$0xff]
  %v794 = vld [vmem:[%s1 + $0x1410] sm:$0xff]
  %v795 = vld [vmem:[%s1 + $0x1418] sm:$0xff]
  %v796 = vld [vmem:[%s1 + $0x1420] sm:$0xff]
  %v797 = vld [vmem:[%s1 + $0x1428] sm:$0xff]
  %v798 = vld [vmem:[%s1 + $0x1430] sm:$0xff]
  %v799 = vld [vmem:[%s1 + $0x1438] sm:$0xff]
  %v800 = vld [vmem:[%s1 + $0x1440] sm:$0xff]
  %v801 = vld [vmem:[%s1 + $0x1448] sm:$0xff]
  %v802 = vld [vmem:[%s1 + $0x1450] sm:$0xff]
  %v803 = vld [vmem:[%s1 + $0x1458] sm:$0xff]
  %v804 = vld [vmem:[%s1 + $0x1460] sm:$0xff]
  %v805 = vld [vmem:[%s1 + $0x1468] sm:$0xff]
  %v806 = vld [vmem:[%s1 + $0x1470] sm:$0xff]
  %v807 = vld [vmem:[%s1 + $0x1478] sm:$0xff]
  %v808 = vld [vmem:[%s1 + $0x1480] sm:$0xff]
  %v809 = vld [vmem:[%s1 + $0x1488] sm:$0xff]
  %v810 = vld [vmem:[%s1 + $0x1490] sm:$0xff]
  %v811 = vld [vmem:[%s1 + $0x1498] sm:$0xff]
  %v812 = vld [vmem:[%s1 + $0x14a0] sm:$0xff]
  %v813 = vld [vmem:[%s1 + $0x14a8] sm:$0xff]
  %v814 = vld [vmem:[%s1 + $0x14b0] sm:$0xff]
  %v815 = vld [vmem:[%s1 + $0x14b8] sm:$0xff]
  %v816 = vld [vmem:[%s1 + $0x14c0] sm:$0xff]
  %v817 = vld [vmem:[%s1 + $0x14c8] sm:$0xff]
  %v818 = vld [vmem:[%s1 + $0x14d0] sm:$0xff]
  %v819 = vld [vmem:[%s1 + $0x14d8] sm:$0xff]
  %v820 = vld [vmem:[%s1 + $0x14e0] sm:$0xff]
  %v821 = vld [vmem:[%s1 + $0x14e8] sm:$0xff]
  %v822 = vld [vmem:[%s1 + $0x14f0] sm:$0xff]
  %v823 = vld [vmem:[%s1 + $0x14f8] sm:$0xff]
  %v824 = vld [vmem:[%s1 + $0x1500] sm:$0xff]
  %v825 = vld [vmem:[%s1 + $0x1508] sm:$0xff]
  %v826 = vld [vmem:[%s1 + $0x1510] sm:$0xff]
  %v827 = vld [vmem:[%s1 + $0x1518] sm:$0xff]
  %v828 = vld [vmem:[%s1 + $0x1520] sm:$0xff]
  %v829 = vld [vmem:[%s1 + $0x1528] sm:$0xff]
  %v830 = vld [vmem:[%s1 + $0x1530] sm:$0xff]
  %v831 = vld [vmem:[%s1 + $0x1538] sm:$0xff]
  %v832 = vld [vmem:[%s1 + $0x1540] sm:$0xff]
  %v833 = vld [vmem:[%s1 + $0x1548] sm:$0xff]
  %v834 = vld [vmem:[%s1 + $0x1550] sm:$0xff]
  %v835 = vld [vmem:[%s1 + $0x1558] sm:$0xff]
  %v836 = vld [vmem:[%s1 + $0x1560] sm:$0xff]
  %v837 = vld [vmem:[%s1 + $0x1568] sm:$0xff]
  %v838 = vld [vmem:[%s1 + $0x1570] sm:$0xff]
  %v839 = vld [vmem:[%s1 + $0x1578] sm:$0xff]
  %v840 = vld [vmem:[%s1 + $0x1580] sm:$0xff]
  %v841 = vld [vmem:[%s1 + $0x1588] sm:$0xff]
  %v842 = vld [vmem:[%s1 + $0x1590] sm:$0xff]
  %v843 = vld [vmem:[%s1 + $0x1598] sm:$0xff]
  %v844 = vld [vmem:[%s1 + $0x15a0] sm:$0xff]
  %v845 = vld [vmem:[%s1 + $0x15a8] sm:$0xff]
  %v846 = vld [vmem:[%s1 + $0x15b0] sm:$0xff]
  %v847 = vld [vmem:[%s1 + $0x15b8] sm:$0xff]
  %v848 = vld [vmem:[%s1 + $0x15c0] sm:$0xff]
  %v849 = vld [vmem:[%s1 + $0x15c8] sm:$0xff]
  %v850 = vld [vmem:[%s1 + $0x15d0] sm:$0xff]
  %v851 = vld [vmem:[%s1 + $0x15d8] sm:$0xff]
  %v852 = vld [vmem:[%s1 + $0x15e0] sm:$0xff]
  %v853 = vld [vmem:[%s1 + $0x15e8] sm:$0xff]
  %v854 = vld [vmem:[%s1 + $0x15f0] sm:$0xff]
  %v855 = vld [vmem:[%s1 + $0x15f8] sm:$0xff]
  %v856 = vld [vmem:[%s1 + $0x1600] sm:$0xff]
  %v857 = vld [vmem:[%s1 + $0x1608] sm:$0xff]
  %v858 = vld [vmem:[%s1 + $0x1610] sm:$0xff]
  %v859 = vld [vmem:[%s1 + $0x1618] sm:$0xff]
  %v860 = vld [vmem:[%s1 + $0x1620] sm:$0xff]
  %v861 = vld [vmem:[%s1 + $0x1628] sm:$0xff]
  %v862 = vld [vmem:[%s1 + $0x1630] sm:$0xff]
  %v863 = vld [vmem:[%s1 + $0x1638] sm:$0xff]
  %v864 = vld [vmem:[%s1 + $0x1640] sm:$0xff]
  %v865 = vld [vmem:[%s1 + $0x1648] sm:$0xff]
  %v866 = vld [vmem:[%s1 + $0x1650] sm:$0xff]
  %v867 = vld [vmem:[%s1 + $0x1658] sm:$0xff]
  %v868 = vld [vmem:[%s1 + $0x1660] sm:$0xff]
  %v869 = vld [vmem:[%s1 + $0x1668] sm:$0xff]
  %v870 = vld [vmem:[%s1 + $0x1670] sm:$0xff]
  %v871 = vld [vmem:[%s1 + $0x1678] sm:$0xff]
  %v872 = vld [vmem:[%s1 + $0x1680] sm:$0xff]
  %v873 = vld [vmem:[%s1 + $0x1688] sm:$0xff]
  %v874 = vld [vmem:[%s1 + $0x1690] sm:$0xff]
  %v875 = vld [vmem:[%s1 + $0x1698] sm:$0xff]
  %v876 = vld [vmem:[%s1 + $0x16a0] sm:$0xff]
  %v877 = vld [vmem:[%s1 + $0x16a8] sm:$0xff]
  %v878 = vld [vmem:[%s1 + $0x16b0] sm:$0xff]
  %v879 = vld [vmem:[%s1 + $0x16b8] sm:$0xff]
  %v880 = vld [vmem:[%s1 + $0x16c0] sm:$0xff]
  %v881 = vld [vmem:[%s1 + $0x16c8] sm:$0xff]
  %v882 = vld [vmem:[%s1 + $0x16d0] sm:$0xff]
  %v883 = vld [vmem:[%s1 + $0x16d8] sm:$0xff]
  %v884 = vld [vmem:[%s1 + $0x16e0] sm:$0xff]
  %v885 = vld [vmem:[%s1 + $0x16e8] sm:$0xff]
  %v886 = vld [vmem:[%s1 + $0x16f0] sm:$0xff]
  %v887 = vld [vmem:[%s1 + $0x16f8] sm:$0xff]
  %v888 = vld [vmem:[%s1 + $0x1700] sm:$0xff]
  %v889 = vld [vmem:[%s1 + $0x1708] sm:$0xff]
  %v890 = vld [vmem:[%s1 + $0x1710] sm:$0xff]
  %v891 = vld [vmem:[%s1 + $0x1718] sm:$0xff]
  %v892 = vld [vmem:[%s1 + $0x1720] sm:$0xff]
  %v893 = vld [vmem:[%s1 + $0x1728] sm:$0xff]
  %v894 = vld [vmem:[%s1 + $0x1730] sm:$0xff]
  %v895 = vld [vmem:[%s1 + $0x1738] sm:$0xff]
  %v896 = vld [vmem:[%s1 + $0x1740] sm:$0xff]
  %v897 = vld [vmem:[%s1 + $0x1748] sm:$0xff]
  %v898 = vld [vmem:[%s1 + $0x1750] sm:$0xff]
  %v899 = vld [vmem:[%s1 + $0x1758] sm:$0xff]
  %v900 = vld [vmem:[%s1 + $0x1760] sm:$0xff]
  %v901 = vld [vmem:[%s1 + $0x1768] sm:$0xff]
  %v902 = vld [vmem:[%s1 + $0x1770] sm:$0xff]
  %v903 = vld [vmem:[%s1 + $0x1778] sm:$0xff]
  %v904 = vld [vmem:[%s1 + $0x1780] sm:$0xff]
  %v905 = vld [vmem:[%s1 + $0x1788] sm:$0xff]
  %v906 = vld [vmem:[%s1 + $0x1790] sm:$0xff]
  %v907 = vld [vmem:[%s1 + $0x1798] sm:$0xff]
  %v908 = vld [vmem:[%s1 + $0x17a0] sm:$0xff]
  %v909 = vld [vmem:[%s1 + $0x17a8] sm:$0xff]
  %v910 = vld [vmem:[%s1 + $0x17b0] sm:$0xff]
  %v911 = vld [vmem:[%s1 + $0x17b8] sm:$0xff]
  %v912 = vld [vmem:[%s1 + $0x17c0] sm:$0xff]
  %v913 = vld [vmem:[%s1 + $0x17c8] sm:$0xff]
  %v914 = vld [vmem:[%s1 + $0x17d0] sm:$0xff]
  %v915 = vld [vmem:[%s1 + $0x17d8] sm:$0xff]
  %v916 = vld [vmem:[%s1 + $0x17e0] sm:$0xff]
  %v917 = vld [vmem:[%s1 + $0x17e8] sm:$0xff]
  %v918 = vld [vmem:[%s1 + $0x17f0] sm:$0xff]
  %v919 = vld [vmem:[%s1 + $0x17f8] sm:$0xff]
  %v920 = vld [vmem:[%s1 + $0x1800] sm:$0xff]
  %v921 = vld [vmem:[%s1 + $0x1808] sm:$0xff]
  %v922 = vld [vmem:[%s1 + $0x1810] sm:$0xff]
  %v923 = vld [vmem:[%s1 + $0x1818] sm:$0xff]
  %v924 = vld [vmem:[%s1 + $0x1820] sm:$0xff]
  %v925 = vld [vmem:[%s1 + $0x1828] sm:$0xff]
  %v926 = vld [vmem:[%s1 + $0x1830] sm:$0xff]
  %v927 = vld [vmem:[%s1 + $0x1838] sm:$0xff]
  %v928 = vld [vmem:[%s1 + $0x1840] sm:$0xff]
  %v929 = vld [vmem:[%s1 + $0x1848] sm:$0xff]
  %v930 = vld [vmem:[%s1 + $0x1850] sm:$0xff]
  %v931 = vld [vmem:[%s1 + $0x1858] sm:$0xff]
  %v932 = vld [vmem:[%s1 + $0x1860] sm:$0xff]
  %v933 = vld [vmem:[%s1 + $0x1868] sm:$0xff]
  %v934 = vld [vmem:[%s1 + $0x1870] sm:$0xff]
  %v935 = vld [vmem:[%s1 + $0x1878] sm:$0xff]
  %v936 = vld [vmem:[%s1 + $0x1880] sm:$0xff]
  %v937 = vld [vmem:[%s1 + $0x1888] sm:$0xff]
  %v938 = vld [vmem:[%s1 + $0x1890] sm:$0xff]
  %v939 = vld [vmem:[%s1 + $0x1898] sm:$0xff]
  %v940 = vld [vmem:[%s1 + $0x18a0] sm:$0xff]
  %v941 = vld [vmem:[%s1 + $0x18a8] sm:$0xff]
  %v942 = vld [vmem:[%s1 + $0x18b0] sm:$0xff]
  %v943 = vld [vmem:[%s1 + $0x18b8] sm:$0xff]
  %v944 = vld [vmem:[%s1 + $0x18c0] sm:$0xff]
  %v945 = vld [vmem:[%s1 + $0x18c8] sm:$0xff]
  %v946 = vld [vmem:[%s1 + $0x18d0] sm:$0xff]
  %v947 = vld [vmem:[%s1 + $0x18d8] sm:$0xff]
  %v948 = vld [vmem:[%s1 + $0x18e0] sm:$0xff]
  %v949 = vld [vmem:[%s1 + $0x18e8] sm:$0xff]
  %v950 = vld [vmem:[%s1 + $0x18f0] sm:$0xff]
  %v951 = vld [vmem:[%s1 + $0x18f8] sm:$0xff]
  %v952 = vld [vmem:[%s1 + $0x1900] sm:$0xff]
  %v953 = vld [vmem:[%s1 + $0x1908] sm:$0xff]
  %v954 = vld [vmem:[%s1 + $0x1910] sm:$0xff]
  %v955 = vld [vmem:[%s1 + $0x1918] sm:$0xff]
  %v956 = vld [vmem:[%s1 + $0x1920] sm:$0xff]
  %v957 = vld [vmem:[%s1 + $0x1928] sm:$0xff]
  %v958 = vld [vmem:[%s1 + $0x1930] sm:$0xff]
  %v959 = vld [vmem:[%s1 + $0x1938] sm:$0xff]
  %v960 = vld [vmem:[%s1 + $0x1940] sm:$0xff]
  %v961 = vld [vmem:[%s1 + $0x1948] sm:$0xff]
  %v962 = vld [vmem:[%s1 + $0x1950] sm:$0xff]
  %v963 = vld [vmem:[%s1 + $0x1958] sm:$0xff]
  %v964 = vld [vmem:[%s1 + $0x1960] sm:$0xff]
  %v965 = vld [vmem:[%s1 + $0x1968] sm:$0xff]
  %v966 = vld [vmem:[%s1 + $0x1970] sm:$0xff]
  %v967 = vld [vmem:[%s1 + $0x1978] sm:$0xff]
  %v968 = vld [vmem:[%s1 + $0x1980] sm:$0xff]
  %v969 = vld [vmem:[%s1 + $0x1988] sm:$0xff]
  %v970 = vld [vmem:[%s1 + $0x1990] sm:$0xff]
  %v971 = vld [vmem:[%s1 + $0x1998] sm:$0xff]
  %v972 = vld [vmem:[%s1 + $0x19a0] sm:$0xff]
  %v973 = vld [vmem:[%s1 + $0x19a8] sm:$0xff]
  %v974 = vld [vmem:[%s1 + $0x19b0] sm:$0xff]
  %v975 = vld [vmem:[%s1 + $0x19b8] sm:$0xff]
  %v976 = vld [vmem:[%s1 + $0x19c0] sm:$0xff]
  %v977 = vld [vmem:[%s1 + $0x19c8] sm:$0xff]
  %v978 = vld [vmem:[%s1 + $0x19d0] sm:$0xff]
  %v979 = vld [vmem:[%s1 + $0x19d8] sm:$0xff]
  %v980 = vld [vmem:[%s1 + $0x19e0] sm:$0xff]
  %v981 = vld [vmem:[%s1 + $0x19e8] sm:$0xff]
  %v982 = vld [vmem:[%s1 + $0x19f0] sm:$0xff]
  %v983 = vld [vmem:[%s1 + $0x19f8] sm:$0xff]
  %v984 = vld [vmem:[%s1 + $0x1a00] sm:$0xff]
  %v985 = vld [vmem:[%s1 + $0x1a08] sm:$0xff]
  %v986 = vld [vmem:[%s1 + $0x1a10] sm:$0xff]
  %v987 = vld [vmem:[%s1 + $0x1a18] sm:$0xff]
  %v988 = vld [vmem:[%s1 + $0x1a20] sm:$0xff]
  %v989 = vld [vmem:[%s1 + $0x1a28] sm:$0xff]
  %v990 = vld [vmem:[%s1 + $0x1a30] sm:$0xff]
  %v991 = vld [vmem:[%s1 + $0x1a38] sm:$0xff]
  %v992 = vld [vmem:[%s1 + $0x1a40] sm:$0xff]
  %v993 = vld [vmem:[%s1 + $0x1a48] sm:$0xff]
  %v994 = vld [vmem:[%s1 + $0x1a50] sm:$0xff]
  %v995 = vld [vmem:[%s1 + $0x1a58] sm:$0xff]
  %v996 = vld [vmem:[%s1 + $0x1a60] sm:$0xff]
  %v997 = vld [vmem:[%s1 + $0x1a68] sm:$0xff]
  %v998 = vld [vmem:[%s1 + $0x1a70] sm:$0xff]
  %v999 = vld [vmem:[%s1 + $0x1a78] sm:$0xff]
  %v1000 = vld [vmem:[%s1 + $0x1a80] sm:$0xff]
  %v1001 = vld [vmem:[%s1 + $0x1a88] sm:$0xff]
  %v1002 = vld [vmem:[%s1 + $0x1a90] sm:$0xff]
  %v1003 = vld [vmem:[%s1 + $0x1a98] sm:$0xff]
  %v1004 = vld [vmem:[%s1 + $0x1aa0] sm:$0xff]
  %v1005 = vld [vmem:[%s1 + $0x1aa8] sm:$0xff]
  %v1006 = vld [vmem:[%s1 + $0x1ab0] sm:$0xff]
  %v1007 = vld [vmem:[%s1 + $0x1ab8] sm:$0xff]
  %v1008 = vld [vmem:[%s1 + $0x1ac0] sm:$0xff]
  %v1009 = vld [vmem:[%s1 + $0x1ac8] sm:$0xff]
  %v1010 = vld [vmem:[%s1 + $0x1ad0] sm:$0xff]
  %v1011 = vld [vmem:[%s1 + $0x1ad8] sm:$0xff]
  %v1012 = vld [vmem:[%s1 + $0x1ae0] sm:$0xff]
  %v1013 = vld [vmem:[%s1 + $0x1ae8] sm:$0xff]
  %v1014 = vld [vmem:[%s1 + $0x1af0] sm:$0xff]
  %v1015 = vld [vmem:[%s1 + $0x1af8] sm:$0xff]
  %v1016 = vld [vmem:[%s1 + $0x1b00] sm:$0xff]
  %v1017 = vld [vmem:[%s1 + $0x1b08] sm:$0xff]
  %v1018 = vld [vmem:[%s1 + $0x1b10] sm:$0xff]
  %v1019 = vld [vmem:[%s1 + $0x1b18] sm:$0xff]
  %v1020 = vld [vmem:[%s1 + $0x1b20] sm:$0xff]
  %v1021 = vld [vmem:[%s1 + $0x1b28] sm:$0xff]
  %v1022 = vld [vmem:[%s1 + $0x1b30] sm:$0xff]
  %v1023 = vld [vmem:[%s1 + $0x1b38] sm:$0xff]
  %v1024 = vld [vmem:[%s1 + $0x1b40] sm:$0xff]
  %v1025 = vld [vmem:[%s1 + $0x1b48] sm:$0xff]
  %v1026 = vld [vmem:[%s1 + $0x1b50] sm:$0xff]
  %v1027 = vld [vmem:[%s1 + $0x1b58] sm:$0xff]
  %v1028 = vld [vmem:[%s1 + $0x1b60] sm:$0xff]
  %v1029 = vld [vmem:[%s1 + $0x1b68] sm:$0xff]
  %v1030 = vld [vmem:[%s1 + $0x1b70] sm:$0xff]
  %v1031 = vld [vmem:[%s1 + $0x1b78] sm:$0xff]
  %v1032 = vld [vmem:[%s1 + $0x1b80] sm:$0xff]
  %v1033 = vld [vmem:[%s1 + $0x1b88] sm:$0xff]
  %v1034 = vld [vmem:[%s1 + $0x1b90] sm:$0xff]
  %v1035 = vld [vmem:[%s1 + $0x1b98] sm:$0xff]
  %v1036 = vld [vmem:[%s1 + $0x1ba0] sm:$0xff]
  %v1037 = vld [vmem:[%s1 + $0x1ba8] sm:$0xff]
  %v1038 = vld [vmem:[%s1 + $0x1bb0] sm:$0xff]
  %v1039 = vld [vmem:[%s1 + $0x1bb8] sm:$0xff]
  %v1040 = vld [vmem:[%s1 + $0x1bc0] sm:$0xff]
  %v1041 = vld [vmem:[%s1 + $0x1bc8] sm:$0xff]
  %v1042 = vld [vmem:[%s1 + $0x1bd0] sm:$0xff]
  %v1043 = vld [vmem:[%s1 + $0x1bd8] sm:$0xff]
  %v1044 = vld [vmem:[%s1 + $0x1be0] sm:$0xff]
  %v1045 = vld [vmem:[%s1 + $0x1be8] sm:$0xff]
  %v1046 = vld [vmem:[%s1 + $0x1bf0] sm:$0xff]
  %v1047 = vld [vmem:[%s1 + $0x1bf8] sm:$0xff]
  %v1048 = vld [vmem:[%s1 + $0x1c00] sm:$0xff]
  %v1049 = vld [vmem:[%s1 + $0x1c08] sm:$0xff]
  %v1050 = vld [vmem:[%s1 + $0x1c10] sm:$0xff]
  %v1051 = vld [vmem:[%s1 + $0x1c18] sm:$0xff]
  %v1052 = vld [vmem:[%s1 + $0x1c20] sm:$0xff]
  %v1053 = vld [vmem:[%s1 + $0x1c28] sm:$0xff]
  %v1054 = vld [vmem:[%s1 + $0x1c30] sm:$0xff]
  %v1055 = vld [vmem:[%s1 + $0x1c38] sm:$0xff]
  %v1056 = vld [vmem:[%s1 + $0x1c40] sm:$0xff]
  %v1057 = vld [vmem:[%s1 + $0x1c48] sm:$0xff]
  %v1058 = vld [vmem:[%s1 + $0x1c50] sm:$0xff]
  %v1059 = vld [vmem:[%s1 + $0x1c58] sm:$0xff]
  %v1060 = vld [vmem:[%s1 + $0x1c60] sm:$0xff]
  %v1061 = vld [vmem:[%s1 + $0x1c68] sm:$0xff]
  %v1062 = vld [vmem:[%s1 + $0x1c70] sm:$0xff]
  %v1063 = vld [vmem:[%s1 + $0x1c78] sm:$0xff]
  %v1064 = vld [vmem:[%s1 + $0x1c80] sm:$0xff]
  %v1065 = vld [vmem:[%s1 + $0x1c88] sm:$0xff]
  %v1066 = vld [vmem:[%s1 + $0x1c90] sm:$0xff]
  %v1067 = vld [vmem:[%s1 + $0x1c98] sm:$0xff]
  %v1068 = vld [vmem:[%s1 + $0x1ca0] sm:$0xff]
  %v1069 = vld [vmem:[%s1 + $0x1ca8] sm:$0xff]
  %v1070 = vld [vmem:[%s1 + $0x1cb0] sm:$0xff]
  %v1071 = vld [vmem:[%s1 + $0x1cb8] sm:$0xff]
  %v1072 = vld [vmem:[%s1 + $0x1cc0] sm:$0xff]
  %v1073 = vld [vmem:[%s1 + $0x1cc8] sm:$0xff]
  %v1074 = vld [vmem:[%s1 + $0x1cd0] sm:$0xff]
  %v1075 = vld [vmem:[%s1 + $0x1cd8] sm:$0xff]
  %v1076 = vld [vmem:[%s1 + $0x1ce0] sm:$0xff]
  %v1077 = vld [vmem:[%s1 + $0x1ce8] sm:$0xff]
  %v1078 = vld [vmem:[%s1 + $0x1cf0] sm:$0xff]
  %v1079 = vld [vmem:[%s1 + $0x1cf8] sm:$0xff]
  %v1080 = vld [vmem:[%s1 + $0x1d00] sm:$0xff]
  %v1081 = vld [vmem:[%s1 + $0x1d08] sm:$0xff]
  %v1082 = vld [vmem:[%s1 + $0x1d10] sm:$0xff]
  %v1083 = vld [vmem:[%s1 + $0x1d18] sm:$0xff]
  %v1084 = vld [vmem:[%s1 + $0x1d20] sm:$0xff]
  %v1085 = vld [vmem:[%s1 + $0x1d28] sm:$0xff]
  %v1086 = vld [vmem:[%s1 + $0x1d30] sm:$0xff]
  %v1087 = vld [vmem:[%s1 + $0x1d38] sm:$0xff]
  %v1088 = vld [vmem:[%s1 + $0x1d40] sm:$0xff]
  %v1089 = vld [vmem:[%s1 + $0x1d48] sm:$0xff]
  %v1090 = vld [vmem:[%s1 + $0x1d50] sm:$0xff]
  %v1091 = vld [vmem:[%s1 + $0x1d58] sm:$0xff]
  %v1092 = vld [vmem:[%s1 + $0x1d60] sm:$0xff]
  %v1093 = vld [vmem:[%s1 + $0x1d68] sm:$0xff]
  %v1094 = vld [vmem:[%s1 + $0x1d70] sm:$0xff]
  %v1095 = vld [vmem:[%s1 + $0x1d78] sm:$0xff]
  %v1096 = vld [vmem:[%s1 + $0x1d80] sm:$0xff]
  %v1097 = vld [vmem:[%s1 + $0x1d88] sm:$0xff]
  %v1098 = vld [vmem:[%s1 + $0x1d90] sm:$0xff]
  %v1099 = vld [vmem:[%s1 + $0x1d98] sm:$0xff]
  %v1100 = vld [vmem:[%s1 + $0x1da0] sm:$0xff]
  %v1101 = vld [vmem:[%s1 + $0x1da8] sm:$0xff]
  %v1102 = vld [vmem:[%s1 + $0x1db0] sm:$0xff]
  %v1103 = vld [vmem:[%s1 + $0x1db8] sm:$0xff]
  %v1104 = vld [vmem:[%s1 + $0x1dc0] sm:$0xff]
  %v1105 = vld [vmem:[%s1 + $0x1dc8] sm:$0xff]
  %v1106 = vld [vmem:[%s1 + $0x1dd0] sm:$0xff]
  %v1107 = vld [vmem:[%s1 + $0x1dd8] sm:$0xff]
  %v1108 = vld [vmem:[%s1 + $0x1de0] sm:$0xff]
  %v1109 = vld [vmem:[%s1 + $0x1de8] sm:$0xff]
  %v1110 = vld [vmem:[%s1 + $0x1df0] sm:$0xff]
  %v1111 = vld [vmem:[%s1 + $0x1df8] sm:$0xff]
  %v1112 = vld [vmem:[%s1 + $0x1e00] sm:$0xff]
  %v1113 = vld [vmem:[%s1 + $0x1e08] sm:$0xff]
  %v1114 = vld [vmem:[%s1 + $0x1e10] sm:$0xff]
  %v1115 = vld [vmem:[%s1 + $0x1e18] sm:$0xff]
  %v1116 = vld [vmem:[%s1 + $0x1e20] sm:$0xff]
  %v1117 = vld [vmem:[%s1 + $0x1e28] sm:$0xff]
  %v1118 = vld [vmem:[%s1 + $0x1e30] sm:$0xff]
  %v1119 = vld [vmem:[%s1 + $0x1e38] sm:$0xff]
  %v1120 = vld [vmem:[%s1 + $0x1e40] sm:$0xff]
  %v1121 = vld [vmem:[%s1 + $0x1e48] sm:$0xff]
  %v1122 = vld [vmem:[%s1 + $0x1e50] sm:$0xff]
  %v1123 = vld [vmem:[%s1 + $0x1e58] sm:$0xff]
  %v1124 = vld [vmem:[%s1 + $0x1e60] sm:$0xff]
  %v1125 = vld [vmem:[%s1 + $0x1e68] sm:$0xff]
  %v1126 = vld [vmem:[%s1 + $0x1e70] sm:$0xff]
  %v1127 = vld [vmem:[%s1 + $0x1e78] sm:$0xff]
  %v1128 = vld [vmem:[%s1 + $0x1e80] sm:$0xff]
  %v1129 = vld [vmem:[%s1 + $0x1e88] sm:$0xff]
  %v1130 = vld [vmem:[%s1 + $0x1e90] sm:$0xff]
  %v1131 = vld [vmem:[%s1 + $0x1e98] sm:$0xff]
  %v1132 = vld [vmem:[%s1 + $0x1ea0] sm:$0xff]
  %v1133 = vld [vmem:[%s1 + $0x1ea8] sm:$0xff]
  %v1134 = vld [vmem:[%s1 + $0x1eb0] sm:$0xff]
  %v1135 = vld [vmem:[%s1 + $0x1eb8] sm:$0xff]
  %v1136 = vld [vmem:[%s1 + $0x1ec0] sm:$0xff]
  %v1137 = vld [vmem:[%s1 + $0x1ec8] sm:$0xff]
  %v1138 = vld [vmem:[%s1 + $0x1ed0] sm:$0xff]
  %v1139 = vld [vmem:[%s1 + $0x1ed8] sm:$0xff]
  %v1140 = vld [vmem:[%s1 + $0x1ee0] sm:$0xff]
  %v1141 = vld [vmem:[%s1 + $0x1ee8] sm:$0xff]
  %v1142 = vld [vmem:[%s1 + $0x1ef0] sm:$0xff]
  %v1143 = vld [vmem:[%s1 + $0x1ef8] sm:$0xff]
  %v1144 = vld [vmem:[%s1 + $0x1f00] sm:$0xff]
  %v1145 = vld [vmem:[%s1 + $0x1f08] sm:$0xff]
  %v1146 = vld [vmem:[%s1 + $0x1f10] sm:$0xff]
  %v1147 = vld [vmem:[%s1 + $0x1f18] sm:$0xff]
  %v1148 = vld [vmem:[%s1 + $0x1f20] sm:$0xff]
  %v1149 = vld [vmem:[%s1 + $0x1f28] sm:$0xff]
  %v1150 = vld [vmem:[%s1 + $0x1f30] sm:$0xff]
  %v1151 = vld [vmem:[%s1 + $0x1f38] sm:$0xff]
  %v1152 = vld [vmem:[%s1 + $0x1f40] sm:$0xff]
  %v1153 = vld [vmem:[%s1 + $0x1f48] sm:$0xff]
  %v1154 = vld [vmem:[%s1 + $0x1f50] sm:$0xff]
  %v1155 = vld [vmem:[%s1 + $0x1f58] sm:$0xff]
  %v1156 = vld [vmem:[%s1 + $0x1f60] sm:$0xff]
  %v1157 = vld [vmem:[%s1 + $0x1f68] sm:$0xff]
  %v1158 = vld [vmem:[%s1 + $0x1f70] sm:$0xff]
  %v1159 = vld [vmem:[%s1 + $0x1f78] sm:$0xff]
  %v1160 = vld [vmem:[%s1 + $0x1f80] sm:$0xff]
  %v1161 = vld [vmem:[%s1 + $0x1f88] sm:$0xff]
  %v1162 = vld [vmem:[%s1 + $0x1f90] sm:$0xff]
  %v1163 = vld [vmem:[%s1 + $0x1f98] sm:$0xff]
  %v1164 = vld [vmem:[%s1 + $0x1fa0] sm:$0xff]
  %v1165 = vld [vmem:[%s1 + $0x1fa8] sm:$0xff]
  %v1166 = vld [vmem:[%s1 + $0x1fb0] sm:$0xff]
  %v1167 = vld [vmem:[%s1 + $0x1fb8] sm:$0xff]
  %v1168 = vld [vmem:[%s1 + $0x1fc0] sm:$0xff]
  %v1169 = vld [vmem:[%s1 + $0x1fc8] sm:$0xff]
  %v1170 = vld [vmem:[%s1 + $0x1fd0] sm:$0xff]
  %v1171 = vld [vmem:[%s1 + $0x1fd8] sm:$0xff]
  %v1172 = vld [vmem:[%s1 + $0x1fe0] sm:$0xff]
  %v1173 = vld [vmem:[%s1 + $0x1fe8] sm:$0xff]
  %v1174 = vld [vmem:[%s1 + $0x1ff0] sm:$0xff]
  %v1175 = vld [vmem:[%s1 + $0x1ff8] sm:$0xff]
  %v1176 = vld [vmem:[%s1 + $0x2000] sm:$0xff]
  %v1177 = vld [vmem:[%s1 + $0x2008] sm:$0xff]
  %v1178 = vld [vmem:[%s1 + $0x2010] sm:$0xff]
  %v1179 = vld [vmem:[%s1 + $0x2018] sm:$0xff]
  %v1180 = vld [vmem:[%s1 + $0x2020] sm:$0xff]
  %v1181 = vld [vmem:[%s1 + $0x2028] sm:$0xff]
  %v1182 = vld [vmem:[%s1 + $0x2030] sm:$0xff]
  %v1183 = vld [vmem:[%s1 + $0x2038] sm:$0xff]
  %v1184 = vld [vmem:[%s1 + $0x2040] sm:$0xff]
  %v1185 = vld [vmem:[%s1 + $0x2048] sm:$0xff]
  %v1186 = vld [vmem:[%s1 + $0x2050] sm:$0xff]
  %v1187 = vld [vmem:[%s1 + $0x2058] sm:$0xff]
  %v1188 = vld [vmem:[%s1 + $0x2060] sm:$0xff]
  %v1189 = vld [vmem:[%s1 + $0x2068] sm:$0xff]
  %v1190 = vld [vmem:[%s1 + $0x2070] sm:$0xff]
  %v1191 = vld [vmem:[%s1 + $0x2078] sm:$0xff]
  %v1192 = vld [vmem:[%s1 + $0x2080] sm:$0xff]
  %v1193 = vld [vmem:[%s1 + $0x2088] sm:$0xff]
  %v1194 = vld [vmem:[%s1 + $0x2090] sm:$0xff]
  %v1195 = vld [vmem:[%s1 + $0x2098] sm:$0xff]
  %v1196 = vld [vmem:[%s1 + $0x20a0] sm:$0xff]
  %v1197 = vld [vmem:[%s1 + $0x20a8] sm:$0xff]
  %v1198 = vld [vmem:[%s1 + $0x20b0] sm:$0xff]
  %v1199 = vld [vmem:[%s1 + $0x20b8] sm:$0xff]
  %v1200 = vld [vmem:[%s1 + $0x20c0] sm:$0xff]
  %v1201 = vld [vmem:[%s1 + $0x20c8] sm:$0xff]
  %v1202 = vld [vmem:[%s1 + $0x20d0] sm:$0xff]
  %v1203 = vld [vmem:[%s1 + $0x20d8] sm:$0xff]
  %v1204 = vld [vmem:[%s1 + $0x20e0] sm:$0xff]
  %v1205 = vld [vmem:[%s1 + $0x20e8] sm:$0xff]
  %v1206 = vld [vmem:[%s1 + $0x20f0] sm:$0xff]
  %v1207 = vld [vmem:[%s1 + $0x20f8] sm:$0xff]
  %v1208 = vld [vmem:[%s1 + $0x2100] sm:$0xff]
  %v1209 = vld [vmem:[%s1 + $0x2108] sm:$0xff]
  %v1210 = vld [vmem:[%s1 + $0x2110] sm:$0xff]
  %v1211 = vld [vmem:[%s1 + $0x2118] sm:$0xff]
  %v1212 = vld [vmem:[%s1 + $0x2120] sm:$0xff]
  %v1213 = vld [vmem:[%s1 + $0x2128] sm:$0xff]
  %v1214 = vld [vmem:[%s1 + $0x2130] sm:$0xff]
  %v1215 = vld [vmem:[%s1 + $0x2138] sm:$0xff]
  %v1216 = vld [vmem:[%s1 + $0x2140] sm:$0xff]
  %v1217 = vld [vmem:[%s1 + $0x2148] sm:$0xff]
  %v1218 = vld [vmem:[%s1 + $0x2150] sm:$0xff]
  %v1219 = vld [vmem:[%s1 + $0x2158] sm:$0xff]
  %v1220 = vld [vmem:[%s1 + $0x2160] sm:$0xff]
  %v1221 = vld [vmem:[%s1 + $0x2168] sm:$0xff]
  %v1222 = vld [vmem:[%s1 + $0x2170] sm:$0xff]
  %v1223 = vld [vmem:[%s1 + $0x2178] sm:$0xff]
  %v1224 = vld [vmem:[%s1 + $0x2180] sm:$0xff]
  %v1225 = vld [vmem:[%s1 + $0x2188] sm:$0xff]
  %v1226 = vld [vmem:[%s1 + $0x2190] sm:$0xff]
  %v1227 = vld [vmem:[%s1 + $0x2198] sm:$0xff]
  %v1228 = vld [vmem:[%s1 + $0x21a0] sm:$0xff]
  %v1229 = vld [vmem:[%s1 + $0x21a8] sm:$0xff]
  %v1230 = vld [vmem:[%s1 + $0x21b0] sm:$0xff]
  %v1231 = vld [vmem:[%s1 + $0x21b8] sm:$0xff]
  %v1232 = vld [vmem:[%s1 + $0x21c0] sm:$0xff]
  %v1233 = vld [vmem:[%s1 + $0x21c8] sm:$0xff]
  %v1234 = vld [vmem:[%s1 + $0x21d0] sm:$0xff]
  %v1235 = vld [vmem:[%s1 + $0x21d8] sm:$0xff]
  %v1236 = vld [vmem:[%s1 + $0x21e0] sm:$0xff]
  %v1237 = vld [vmem:[%s1 + $0x21e8] sm:$0xff]
  %v1238 = vld [vmem:[%s1 + $0x21f0] sm:$0xff]
  %v1239 = vld [vmem:[%s1 + $0x21f8] sm:$0xff]
  %v1240 = vld [vmem:[%s1 + $0x2200] sm:$0xff]
  %v1241 = vld [vmem:[%s1 + $0x2208] sm:$0xff]
  %v1242 = vld [vmem:[%s1 + $0x2210] sm:$0xff]
  %v1243 = vld [vmem:[%s1 + $0x2218] sm:$0xff]
  %v1244 = vld [vmem:[%s1 + $0x2220] sm:$0xff]
  %v1245 = vld [vmem:[%s1 + $0x2228] sm:$0xff]
  %v1246 = vld [vmem:[%s1 + $0x2230] sm:$0xff]
  %v1247 = vld [vmem:[%s1 + $0x2238] sm:$0xff]
  %v1248 = vld [vmem:[%s1 + $0x2240] sm:$0xff]
  %v1249 = vld [vmem:[%s1 + $0x2248] sm:$0xff]
  %v1250 = vld [vmem:[%s1 + $0x2250] sm:$0xff]
  %v1251 = vld [vmem:[%s1 + $0x2258] sm:$0xff]
  %v1252 = vld [vmem:[%s1 + $0x2260] sm:$0xff]
  %v1253 = vld [vmem:[%s1 + $0x2268] sm:$0xff]
  %v1254 = vld [vmem:[%s1 + $0x2270] sm:$0xff]
  %v1255 = vld [vmem:[%s1 + $0x2278] sm:$0xff]
  %v1256 = vld [vmem:[%s1 + $0x2280] sm:$0xff]
  %v1257 = vld [vmem:[%s1 + $0x2288] sm:$0xff]
  %v1258 = vld [vmem:[%s1 + $0x2290] sm:$0xff]
  %v1259 = vld [vmem:[%s1 + $0x2298] sm:$0xff]
  %v1260 = vld [vmem:[%s1 + $0x22a0] sm:$0xff]
  %v1261 = vld [vmem:[%s1 + $0x22a8] sm:$0xff]
  %v1262 = vld [vmem:[%s1 + $0x22b0] sm:$0xff]
  %v1263 = vld [vmem:[%s1 + $0x22b8] sm:$0xff]
  %v1264 = vld [vmem:[%s1 + $0x22c0] sm:$0xff]
  %v1265 = vld [vmem:[%s1 + $0x22c8] sm:$0xff]
  %v1266 = vld [vmem:[%s1 + $0x22d0] sm:$0xff]
  %v1267 = vld [vmem:[%s1 + $0x22d8] sm:$0xff]
  %v1268 = vld [vmem:[%s1 + $0x22e0] sm:$0xff]
  %v1269 = vld [vmem:[%s1 + $0x22e8] sm:$0xff]
  %v1270 = vld [vmem:[%s1 + $0x22f0] sm:$0xff]
  %v1271 = vld [vmem:[%s1 + $0x22f8] sm:$0xff]
  %v1272 = vld [vmem:[%s1 + $0x2300] sm:$0xff]
  %v1273 = vld [vmem:[%s1 + $0x2308] sm:$0xff]
  %v1274 = vld [vmem:[%s1 + $0x2310] sm:$0xff]
  %v1275 = vld [vmem:[%s1 + $0x2318] sm:$0xff]
  %v1276 = vld [vmem:[%s1 + $0x2320] sm:$0xff]
  %v1277 = vld [vmem:[%s1 + $0x2328] sm:$0xff]
  %v1278 = vld [vmem:[%s1 + $0x2330] sm:$0xff]
  %v1279 = vld [vmem:[%s1 + $0x2338] sm:$0xff]
  %v1280 = vld [vmem:[%s1 + $0x2340] sm:$0xff]
  %v1281 = vld [vmem:[%s1 + $0x2348] sm:$0xff]
  %v1282 = vld [vmem:[%s1 + $0x2350] sm:$0xff]
  %v1283 = vld [vmem:[%s1 + $0x2358] sm:$0xff]
  %v1284 = vld [vmem:[%s1 + $0x2360] sm:$0xff]
  %v1285 = vld [vmem:[%s1 + $0x2368] sm:$0xff]
  %v1286 = vld [vmem:[%s1 + $0x2370] sm:$0xff]
  %v1287 = vld [vmem:[%s1 + $0x2378] sm:$0xff]
  %v1288 = vld [vmem:[%s1 + $0x2380] sm:$0xff]
  %v1289 = vld [vmem:[%s1 + $0x2388] sm:$0xff]
  %v1290 = vld [vmem:[%s1 + $0x2390] sm:$0xff]
  %v1291 = vld [vmem:[%s1 + $0x2398] sm:$0xff]
  %v1292 = vld [vmem:[%s1 + $0x23a0] sm:$0xff]
  %v1293 = vld [vmem:[%s1 + $0x23a8] sm:$0xff]
  %v1294 = vld [vmem:[%s1 + $0x23b0] sm:$0xff]
  %v1295 = vld [vmem:[%s1 + $0x23b8] sm:$0xff]
  %v1296 = vld [vmem:[%s1 + $0x23c0] sm:$0xff]
  %v1297 = vld [vmem:[%s1 + $0x23c8] sm:$0xff]
  %v1298 = vld [vmem:[%s1 + $0x23d0] sm:$0xff]
  %v1299 = vld [vmem:[%s1 + $0x23d8] sm:$0xff]
  %v1300 = vld [vmem:[%s1 + $0x23e0] sm:$0xff]
  %v1301 = vld [vmem:[%s1 + $0x23e8] sm:$0xff]
  %v1302 = vld [vmem:[%s1 + $0x23f0] sm:$0xff]
  %v1303 = vld [vmem:[%s1 + $0x23f8] sm:$0xff]
  %v1304 = vld [vmem:[%s1 + $0x2400] sm:$0xff]
  %v1305 = vld [vmem:[%s1 + $0x2408] sm:$0xff]
  %v1306 = vld [vmem:[%s1 + $0x2410] sm:$0xff]
  %v1307 = vld [vmem:[%s1 + $0x2418] sm:$0xff]
  %v1308 = vld [vmem:[%s1 + $0x2420] sm:$0xff]
  %v1309 = vld [vmem:[%s1 + $0x2428] sm:$0xff]
  %v1310 = vld [vmem:[%s1 + $0x2430] sm:$0xff]
  %v1311 = vld [vmem:[%s1 + $0x2438] sm:$0xff]
  %v1312 = vld [vmem:[%s1 + $0x2440] sm:$0xff]
  %v1313 = vld [vmem:[%s1 + $0x2448] sm:$0xff]
  %v1314 = vld [vmem:[%s1 + $0x2450] sm:$0xff]
  %v1315 = vld [vmem:[%s1 + $0x2458] sm:$0xff]
  %v1316 = vld [vmem:[%s1 + $0x2460] sm:$0xff]
  %v1317 = vld [vmem:[%s1 + $0x2468] sm:$0xff]
  %v1318 = vld [vmem:[%s1 + $0x2470] sm:$0xff]
  %v1319 = vld [vmem:[%s1 + $0x2478] sm:$0xff]
  %v1320 = vld [vmem:[%s1 + $0x2480] sm:$0xff]
  %v1321 = vld [vmem:[%s1 + $0x2488] sm:$0xff]
  %v1322 = vld [vmem:[%s1 + $0x2490] sm:$0xff]
  %v1323 = vld [vmem:[%s1 + $0x2498] sm:$0xff]
  %v1324 = vld [vmem:[%s1 + $0x24a0] sm:$0xff]
  %v1325 = vld [vmem:[%s1 + $0x24a8] sm:$0xff]
  %v1326 = vld [vmem:[%s1 + $0x24b0] sm:$0xff]
  %v1327 = vld [vmem:[%s1 + $0x24b8] sm:$0xff]
  %v1328 = vld [vmem:[%s1 + $0x24c0] sm:$0xff]
  %v1329 = vld [vmem:[%s1 + $0x24c8] sm:$0xff]
  %v1330 = vld [vmem:[%s1 + $0x24d0] sm:$0xff]
  %v1331 = vld [vmem:[%s1 + $0x24d8] sm:$0xff]
  %v1332 = vld [vmem:[%s1 + $0x24e0] sm:$0xff]
  %v1333 = vld [vmem:[%s1 + $0x24e8] sm:$0xff]
  %v1334 = vld [vmem:[%s1 + $0x24f0] sm:$0xff]
  %v1335 = vld [vmem:[%s1 + $0x24f8] sm:$0xff]
  %v1336 = vld [vmem:[%s1 + $0x2500] sm:$0xff]
  %v1337 = vld [vmem:[%s1 + $0x2508] sm:$0xff]
  %v1338 = vld [vmem:[%s1 + $0x2510] sm:$0xff]
  %v1339 = vld [vmem:[%s1 + $0x2518] sm:$0xff]
  %v1340 = vld [vmem:[%s1 + $0x2520] sm:$0xff]
  %v1341 = vld [vmem:[%s1 + $0x2528] sm:$0xff]
  %v1342 = vld [vmem:[%s1 + $0x2530] sm:$0xff]
  %v1343 = vld [vmem:[%s1 + $0x2538] sm:$0xff]
  %v1344 = vld [vmem:[%s1 + $0x2540] sm:$0xff]
  %v1345 = vld [vmem:[%s1 + $0x2548] sm:$0xff]
  %v1346 = vld [vmem:[%s1 + $0x2550] sm:$0xff]
  %v1347 = vld [vmem:[%s1 + $0x2558] sm:$0xff]
  %v1348 = vld [vmem:[%s1 + $0x2560] sm:$0xff]
  %v1349 = vld [vmem:[%s1 + $0x2568] sm:$0xff]
  %v1350 = vld [vmem:[%s1 + $0x2570] sm:$0xff]
  %v1351 = vld [vmem:[%s1 + $0x2578] sm:$0xff]
  %v1352 = vld [vmem:[%s1 + $0x2580] sm:$0xff]
  %v1353 = vld [vmem:[%s1 + $0x2588] sm:$0xff]
  %v1354 = vld [vmem:[%s1 + $0x2590] sm:$0xff]
  %v1355 = vld [vmem:[%s1 + $0x2598] sm:$0xff]
  %v1356 = vld [vmem:[%s1 + $0x25a0] sm:$0xff]
  %v1357 = vld [vmem:[%s1 + $0x25a8] sm:$0xff]
  %v1358 = vld [vmem:[%s1 + $0x25b0] sm:$0xff]
  %v1359 = vld [vmem:[%s1 + $0x25b8] sm:$0xff]
  %v1360 = vld [vmem:[%s1 + $0x25c0] sm:$0xff]
  %v1361 = vld [vmem:[%s1 + $0x25c8] sm:$0xff]
  %v1362 = vld [vmem:[%s1 + $0x25d0] sm:$0xff]
  %v1363 = vld [vmem:[%s1 + $0x25d8] sm:$0xff]
  %v1364 = vld [vmem:[%s1 + $0x25e0] sm:$0xff]
  %v1365 = vld [vmem:[%s1 + $0x25e8] sm:$0xff]
  %v1366 = vld [vmem:[%s1 + $0x25f0] sm:$0xff]
  %v1367 = vld [vmem:[%s1 + $0x25f8] sm:$0xff]
  %v1368 = vld [vmem:[%s1 + $0x2600] sm:$0xff]
  %v1369 = vld [vmem:[%s1 + $0x2608] sm:$0xff]
  %v1370 = vld [vmem:[%s1 + $0x2610] sm:$0xff]
  %v1371 = vld [vmem:[%s1 + $0x2618] sm:$0xff]
  %v1372 = vld [vmem:[%s1 + $0x2620] sm:$0xff]
  %v1373 = vld [vmem:[%s1 + $0x2628] sm:$0xff]
  %v1374 = vld [vmem:[%s1 + $0x2630] sm:$0xff]
  %v1375 = vld [vmem:[%s1 + $0x2638] sm:$0xff]
  %v1376 = vld [vmem:[%s1 + $0x2640] sm:$0xff]
  %v1377 = vld [vmem:[%s1 + $0x2648] sm:$0xff]
  %v1378 = vld [vmem:[%s1 + $0x2650] sm:$0xff]
  %v1379 = vld [vmem:[%s1 + $0x2658] sm:$0xff]
  %v1380 = vld [vmem:[%s1 + $0x2660] sm:$0xff]
  %v1381 = vld [vmem:[%s1 + $0x2668] sm:$0xff]
  %v1382 = vld [vmem:[%s1 + $0x2670] sm:$0xff]
  %v1383 = vld [vmem:[%s1 + $0x2678] sm:$0xff]
  %v1384 = vld [vmem:[%s1 + $0x2680] sm:$0xff]
  %v1385 = vld [vmem:[%s1 + $0x2688] sm:$0xff]
  %v1386 = vld [vmem:[%s1 + $0x2690] sm:$0xff]
  %v1387 = vld [vmem:[%s1 + $0x2698] sm:$0xff]
  %v1388 = vld [vmem:[%s1 + $0x26a0] sm:$0xff]
  %v1389 = vld [vmem:[%s1 + $0x26a8] sm:$0xff]
  %v1390 = vld [vmem:[%s1 + $0x26b0] sm:$0xff]
  %v1391 = vld [vmem:[%s1 + $0x26b8] sm:$0xff]
  %v1392 = vld [vmem:[%s1 + $0x26c0] sm:$0xff]
  %v1393 = vld [vmem:[%s1 + $0x26c8] sm:$0xff]
  %v1394 = vld [vmem:[%s1 + $0x26d0] sm:$0xff]
  %v1395 = vld [vmem:[%s1 + $0x26d8] sm:$0xff]
  %v1396 = vld [vmem:[%s1 + $0x26e0] sm:$0xff]
  %v1397 = vld [vmem:[%s1 + $0x26e8] sm:$0xff]
  %v1398 = vld [vmem:[%s1 + $0x26f0] sm:$0xff]
  %v1399 = vld [vmem:[%s1 + $0x26f8] sm:$0xff]
  %v1400 = vld [vmem:[%s1 + $0x2700] sm:$0xff]
  %v1401 = vld [vmem:[%s1 + $0x2708] sm:$0xff]
  %v1402 = vld [vmem:[%s1 + $0x2710] sm:$0xff]
  %v1403 = vld [vmem:[%s1 + $0x2718] sm:$0xff]
  %v1404 = vld [vmem:[%s1 + $0x2720] sm:$0xff]
  %v1405 = vld [vmem:[%s1 + $0x2728] sm:$0xff]
  %v1406 = vld [vmem:[%s1 + $0x2730] sm:$0xff]
  %v1407 = vld [vmem:[%s1 + $0x2738] sm:$0xff]
  %v1408 = vld [vmem:[%s1 + $0x2740] sm:$0xff]
  %v1409 = vld [vmem:[%s1 + $0x2748] sm:$0xff]
  %v1410 = vld [vmem:[%s1 + $0x2750] sm:$0xff]
  %v1411 = vld [vmem:[%s1 + $0x2758] sm:$0xff]
  %v1412 = vld [vmem:[%s1 + $0x2760] sm:$0xff]
  %v1413 = vld [vmem:[%s1 + $0x2768] sm:$0xff]
  %v1414 = vld [vmem:[%s1 + $0x2770] sm:$0xff]
  %v1415 = vld [vmem:[%s1 + $0x2778] sm:$0xff]
  %v1416 = vld [vmem:[%s1 + $0x2780] sm:$0xff]
  %v1417 = vld [vmem:[%s1 + $0x2788] sm:$0xff]
  %v1418 = vld [vmem:[%s1 + $0x2790] sm:$0xff]
  %v1419 = vld [vmem:[%s1 + $0x2798] sm:$0xff]
  %v1420 = vld [vmem:[%s1 + $0x27a0] sm:$0xff]
  %v1421 = vld [vmem:[%s1 + $0x27a8] sm:$0xff]
  %v1422 = vld [vmem:[%s1 + $0x27b0] sm:$0xff]
  %v1423 = vld [vmem:[%s1 + $0x27b8] sm:$0xff]
  %v1424 = vld [vmem:[%s1 + $0x27c0] sm:$0xff]
  %v1425 = vld [vmem:[%s1 + $0x27c8] sm:$0xff]
  %v1426 = vld [vmem:[%s1 + $0x27d0] sm:$0xff]
  %v1427 = vld [vmem:[%s1 + $0x27d8] sm:$0xff]
  %v1428 = vld [vmem:[%s1 + $0x27e0] sm:$0xff]
  %v1429 = vld [vmem:[%s1 + $0x27e8] sm:$0xff]
  %v1430 = vld [vmem:[%s1 + $0x27f0] sm:$0xff]
  %v1431 = vld [vmem:[%s1 + $0x27f8] sm:$0xff]
  %v1432 = vld [vmem:[%s1 + $0x2800] sm:$0xff]
  %v1433 = vld [vmem:[%s1 + $0x2808] sm:$0xff]
  %v1434 = vld [vmem:[%s1 + $0x2810] sm:$0xff]
  %v1435 = vld [vmem:[%s1 + $0x2818] sm:$0xff]
  %v1436 = vld [vmem:[%s1 + $0x2820] sm:$0xff]
  %v1437 = vld [vmem:[%s1 + $0x2828] sm:$0xff]
  %v1438 = vld [vmem:[%s1 + $0x2830] sm:$0xff]
  %v1439 = vld [vmem:[%s1 + $0x2838] sm:$0xff]
  %v1440 = vld [vmem:[%s1 + $0x2840] sm:$0xff]
  %v1441 = vld [vmem:[%s1 + $0x2848] sm:$0xff]
  %v1442 = vld [vmem:[%s1 + $0x2850] sm:$0xff]
  %v1443 = vld [vmem:[%s1 + $0x2858] sm:$0xff]
  %v1444 = vld [vmem:[%s1 + $0x2860] sm:$0xff]
  %v1445 = vld [vmem:[%s1 + $0x2868] sm:$0xff]
  %v1446 = vld [vmem:[%s1 + $0x2870] sm:$0xff]
  %v1447 = vld [vmem:[%s1 + $0x2878] sm:$0xff]
  %v1448 = vld [vmem:[%s1 + $0x2880] sm:$0xff]
  %v1449 = vld [vmem:[%s1 + $0x2888] sm:$0xff]
  %v1450 = vld [vmem:[%s1 + $0x2890] sm:$0xff]
  %v1451 = vld [vmem:[%s1 + $0x2898] sm:$0xff]
  %v1452 = vld [vmem:[%s1 + $0x28a0] sm:$0xff]
  %v1453 = vld [vmem:[%s1 + $0x28a8] sm:$0xff]
  %v1454 = vld [vmem:[%s1 + $0x28b0] sm:$0xff]
  %v1455 = vld [vmem:[%s1 + $0x28b8] sm:$0xff]
  %v1456 = vld [vmem:[%s1 + $0x28c0] sm:$0xff]
  %v1457 = vld [vmem:[%s1 + $0x28c8] sm:$0xff]
  %v1458 = vld [vmem:[%s1 + $0x28d0] sm:$0xff]
  %v1459 = vld [vmem:[%s1 + $0x28d8] sm:$0xff]
  %v1460 = vld [vmem:[%s1 + $0x28e0] sm:$0xff]
  %v1461 = vld [vmem:[%s1 + $0x28e8] sm:$0xff]
  %v1462 = vld [vmem:[%s1 + $0x28f0] sm:$0xff]
  %v1463 = vld [vmem:[%s1 + $0x28f8] sm:$0xff]
  %v1464 = vld [vmem:[%s1 + $0x2900] sm:$0xff]
  %v1465 = vld [vmem:[%s1 + $0x2908] sm:$0xff]
  %v1466 = vld [vmem:[%s1 + $0x2910] sm:$0xff]
  %v1467 = vld [vmem:[%s1 + $0x2918] sm:$0xff]
  %v1468 = vld [vmem:[%s1 + $0x2920] sm:$0xff]
  %v1469 = vld [vmem:[%s1 + $0x2928] sm:$0xff]
  %v1470 = vld [vmem:[%s1 + $0x2930] sm:$0xff]
  %v1471 = vld [vmem:[%s1 + $0x2938] sm:$0xff]
  %v1472 = vld [vmem:[%s1 + $0x2940] sm:$0xff]
  %v1473 = vld [vmem:[%s1 + $0x2948] sm:$0xff]
  %v1474 = vld [vmem:[%s1 + $0x2950] sm:$0xff]
  %v1475 = vld [vmem:[%s1 + $0x2958] sm:$0xff]
  %v1476 = vld [vmem:[%s1 + $0x2960] sm:$0xff]
  %v1477 = vld [vmem:[%s1 + $0x2968] sm:$0xff]
  %v1478 = vld [vmem:[%s1 + $0x2970] sm:$0xff]
  %v1479 = vld [vmem:[%s1 + $0x2978] sm:$0xff]
  %v1480 = vld [vmem:[%s1 + $0x2980] sm:$0xff]
  %v1481 = vld [vmem:[%s1 + $0x2988] sm:$0xff]
  %v1482 = vld [vmem:[%s1 + $0x2990] sm:$0xff]
  %v1483 = vld [vmem:[%s1 + $0x2998] sm:$0xff]
  %v1484 = vld [vmem:[%s1 + $0x29a0] sm:$0xff]
  %v1485 = vld [vmem:[%s1 + $0x29a8] sm:$0xff]
  %v1486 = vld [vmem:[%s1 + $0x29b0] sm:$0xff]
  %v1487 = vld [vmem:[%s1 + $0x29b8] sm:$0xff]
  %v1488 = vld [vmem:[%s1 + $0x29c0] sm:$0xff]
  %v1489 = vld [vmem:[%s1 + $0x29c8] sm:$0xff]
  %v1490 = vld [vmem:[%s1 + $0x29d0] sm:$0xff]
  %v1491 = vld [vmem:[%s1 + $0x29d8] sm:$0xff]
  %v1492 = vld [vmem:[%s1 + $0x29e0] sm:$0xff]
  %v1493 = vld [vmem:[%s1 + $0x29e8] sm:$0xff]
  %v1494 = vld [vmem:[%s1 + $0x29f0] sm:$0xff]
  %v1495 = vld [vmem:[%s1 + $0x29f8] sm:$0xff]
  %v1496 = vld [vmem:[%s1 + $0x2a00] sm:$0xff]
  %v1497 = vld [vmem:[%s1 + $0x2a08] sm:$0xff]
  %v1498 = vld [vmem:[%s1 + $0x2a10] sm:$0xff]
  %v1499 = vld [vmem:[%s1 + $0x2a18] sm:$0xff]
  %v1500 = vld [vmem:[%s1 + $0x2a20] sm:$0xff]
  %v1501 = vld [vmem:[%s1 + $0x2a28] sm:$0xff]
  %v1502 = vld [vmem:[%s1 + $0x2a30] sm:$0xff]
  %v1503 = vld [vmem:[%s1 + $0x2a38] sm:$0xff]
  %v1504 = vld [vmem:[%s1 + $0x2a40] sm:$0xff]
  %v1505 = vld [vmem:[%s1 + $0x2a48] sm:$0xff]
  %v1506 = vld [vmem:[%s1 + $0x2a50] sm:$0xff]
  %v1507 = vld [vmem:[%s1 + $0x2a58] sm:$0xff]
  %v1508 = vld [vmem:[%s1 + $0x2a60] sm:$0xff]
  %v1509 = vld [vmem:[%s1 + $0x2a68] sm:$0xff]
  %v1510 = vld [vmem:[%s1 + $0x2a70] sm:$0xff]
  %v1511 = vld [vmem:[%s1 + $0x2a78] sm:$0xff]
  %v1512 = vld [vmem:[%s1 + $0x2a80] sm:$0xff]
  %v1513 = vld [vmem:[%s1 + $0x2a88] sm:$0xff]
  %v1514 = vld [vmem:[%s1 + $0x2a90] sm:$0xff]
  %v1515 = vld [vmem:[%s1 + $0x2a98] sm:$0xff]
  %v1516 = vld [vmem:[%s1 + $0x2aa0] sm:$0xff]
  %v1517 = vld [vmem:[%s1 + $0x2aa8] sm:$0xff]
  %v1518 = vld [vmem:[%s1 + $0x2ab0] sm:$0xff]
  %v1519 = vld [vmem:[%s1 + $0x2ab8] sm:$0xff]
  %v1520 = vld [vmem:[%s1 + $0x2ac0] sm:$0xff]
  %v1521 = vld [vmem:[%s1 + $0x2ac8] sm:$0xff]
  %v1522 = vld [vmem:[%s1 + $0x2ad0] sm:$0xff]
  %v1523 = vld [vmem:[%s1 + $0x2ad8] sm:$0xff]
  %v1524 = vld [vmem:[%s1 + $0x2ae0] sm:$0xff]
  %v1525 = vld [vmem:[%s1 + $0x2ae8] sm:$0xff]
  %v1526 = vld [vmem:[%s1 + $0x2af0] sm:$0xff]
  %v1527 = vld [vmem:[%s1 + $0x2af8] sm:$0xff]
  %v1528 = vld [vmem:[%s1 + $0x2b00] sm:$0xff]
  %v1529 = vld [vmem:[%s1 + $0x2b08] sm:$0xff]
  %v1530 = vld [vmem:[%s1 + $0x2b10] sm:$0xff]
  %v1531 = vld [vmem:[%s1 + $0x2b18] sm:$0xff]
  %v1532 = vld [vmem:[%s1 + $0x2b20] sm:$0xff]
  %v1533 = vld [vmem:[%s1 + $0x2b28] sm:$0xff]
  %v1534 = vld [vmem:[%s1 + $0x2b30] sm:$0xff]
  %v1535 = vld [vmem:[%s1 + $0x2b38] sm:$0xff]
  %v1536 = vld [vmem:[%s1 + $0x2b40] sm:$0xff]
  %v1537 = vld [vmem:[%s1 + $0x2b48] sm:$0xff]
  %v1538 = vld [vmem:[%s1 + $0x2b50] sm:$0xff]
  %v1539 = vld [vmem:[%s1 + $0x2b58] sm:$0xff]
  %v1540 = vld [vmem:[%s1 + $0x2b60] sm:$0xff]
  %v1541 = vld [vmem:[%s1 + $0x2b68] sm:$0xff]
  %v1542 = vld [vmem:[%s1 + $0x2b70] sm:$0xff]
  %v1543 = vld [vmem:[%s1 + $0x2b78] sm:$0xff]
  %v1544 = vld [vmem:[%s1 + $0x2b80] sm:$0xff]
  %v1545 = vld [vmem:[%s1 + $0x2b88] sm:$0xff]
  %v1546 = vld [vmem:[%s1 + $0x2b90] sm:$0xff]
  %v1547 = vld [vmem:[%s1 + $0x2b98] sm:$0xff]
  %v1548 = vld [vmem:[%s1 + $0x2ba0] sm:$0xff]
  %v1549 = vld [vmem:[%s1 + $0x2ba8] sm:$0xff]
  %v1550 = vld [vmem:[%s1 + $0x2bb0] sm:$0xff]
  %v1551 = vld [vmem:[%s1 + $0x2bb8] sm:$0xff]
  %v1552 = vld [vmem:[%s1 + $0x2bc0] sm:$0xff]
  %v1553 = vld [vmem:[%s1 + $0x2bc8] sm:$0xff]
  %v1554 = vld [vmem:[%s1 + $0x2bd0] sm:$0xff]
  %v1555 = vld [vmem:[%s1 + $0x2bd8] sm:$0xff]
  %v1556 = vld [vmem:[%s1 + $0x2be0] sm:$0xff]
  %v1557 = vld [vmem:[%s1 + $0x2be8] sm:$0xff]
  %v1558 = vld [vmem:[%s1 + $0x2bf0] sm:$0xff]
  %v1559 = vld [vmem:[%s1 + $0x2bf8] sm:$0xff]
  %v1560 = vld [vmem:[%s1 + $0x2c00] sm:$0xff]
  %v1561 = vld [vmem:[%s1 + $0x2c08] sm:$0xff]
  %v1562 = vld [vmem:[%s1 + $0x2c10] sm:$0xff]
  %v1563 = vld [vmem:[%s1 + $0x2c18] sm:$0xff]
  %v1564 = vld [vmem:[%s1 + $0x2c20] sm:$0xff]
  %v1565 = vld [vmem:[%s1 + $0x2c28] sm:$0xff]
  %v1566 = vld [vmem:[%s1 + $0x2c30] sm:$0xff]
  %v1567 = vld [vmem:[%s1 + $0x2c38] sm:$0xff]
  %v1568 = vld [vmem:[%s1 + $0x2c40] sm:$0xff]
  %v1569 = vld [vmem:[%s1 + $0x2c48] sm:$0xff]
  %v1570 = vld [vmem:[%s1 + $0x2c50] sm:$0xff]
  %v1571 = vld [vmem:[%s1 + $0x2c58] sm:$0xff]
  %v1572 = vld [vmem:[%s1 + $0x2c60] sm:$0xff]
  %v1573 = vld [vmem:[%s1 + $0x2c68] sm:$0xff]
  %v1574 = vld [vmem:[%s1 + $0x2c70] sm:$0xff]
  %v1575 = vld [vmem:[%s1 + $0x2c78] sm:$0xff]
  %v1576 = vld [vmem:[%s1 + $0x2c80] sm:$0xff]
  %v1577 = vld [vmem:[%s1 + $0x2c88] sm:$0xff]
  %v1578 = vld [vmem:[%s1 + $0x2c90] sm:$0xff]
  %v1579 = vld [vmem:[%s1 + $0x2c98] sm:$0xff]
  %v1580 = vld [vmem:[%s1 + $0x2ca0] sm:$0xff]
  %v1581 = vld [vmem:[%s1 + $0x2ca8] sm:$0xff]
  %v1582 = vld [vmem:[%s1 + $0x2cb0] sm:$0xff]
  %v1583 = vld [vmem:[%s1 + $0x2cb8] sm:$0xff]
  %v1584 = vld [vmem:[%s1 + $0x2cc0] sm:$0xff]
  %v1585 = vld [vmem:[%s1 + $0x2cc8] sm:$0xff]
  %v1586 = vld [vmem:[%s1 + $0x2cd0] sm:$0xff]
  %v1587 = vld [vmem:[%s1 + $0x2cd8] sm:$0xff]
  %v1588 = vld [vmem:[%s1 + $0x2ce0] sm:$0xff]
  %v1589 = vld [vmem:[%s1 + $0x2ce8] sm:$0xff]
  %v1590 = vld [vmem:[%s1 + $0x2cf0] sm:$0xff]
  %v1591 = vld [vmem:[%s1 + $0x2cf8] sm:$0xff]
  %v1592 = vld [vmem:[%s1 + $0x2d00] sm:$0xff]
  %v1593 = vld [vmem:[%s1 + $0x2d08] sm:$0xff]
  %v1594 = vld [vmem:[%s1 + $0x2d10] sm:$0xff]
  %v1595 = vld [vmem:[%s1 + $0x2d18] sm:$0xff]
  %v1596 = vld [vmem:[%s1 + $0x2d20] sm:$0xff]
  %v1597 = vld [vmem:[%s1 + $0x2d28] sm:$0xff]
  %v1598 = vld [vmem:[%s1 + $0x2d30] sm:$0xff]
  %v1599 = vld [vmem:[%s1 + $0x2d38] sm:$0xff]
  %v1600 = vld [vmem:[%s1 + $0x2d40] sm:$0xff]
  %v1601 = vld [vmem:[%s1 + $0x2d48] sm:$0xff]
  %v1602 = vld [vmem:[%s1 + $0x2d50] sm:$0xff]
  %v1603 = vld [vmem:[%s1 + $0x2d58] sm:$0xff]
  %v1604 = vld [vmem:[%s1 + $0x2d60] sm:$0xff]
  %v1605 = vld [vmem:[%s1 + $0x2d68] sm:$0xff]
  %v1606 = vld [vmem:[%s1 + $0x2d70] sm:$0xff]
  %v1607 = vld [vmem:[%s1 + $0x2d78] sm:$0xff]
  %v1608 = vld [vmem:[%s1 + $0x2d80] sm:$0xff]
  %v1609 = vld [vmem:[%s1 + $0x2d88] sm:$0xff]
  %v1610 = vld [vmem:[%s1 + $0x2d90] sm:$0xff]
  %v1611 = vld [vmem:[%s1 + $0x2d98] sm:$0xff]
  %v1612 = vld [vmem:[%s1 + $0x2da0] sm:$0xff]
  %v1613 = vld [vmem:[%s1 + $0x2da8] sm:$0xff]
  %v1614 = vld [vmem:[%s1 + $0x2db0] sm:$0xff]
  %v1615 = vld [vmem:[%s1 + $0x2db8] sm:$0xff]
  %v1616 = vld [vmem:[%s1 + $0x2dc0] sm:$0xff]
  %v1617 = vld [vmem:[%s1 + $0x2dc8] sm:$0xff]
  %v1618 = vld [vmem:[%s1 + $0x2dd0] sm:$0xff]
  %v1619 = vld [vmem:[%s1 + $0x2dd8] sm:$0xff]
  %v1620 = vld [vmem:[%s1 + $0x2de0] sm:$0xff]
  %v1621 = vld [vmem:[%s1 + $0x2de8] sm:$0xff]
  %v1622 = vld [vmem:[%s1 + $0x2df0] sm:$0xff]
  %v1623 = vld [vmem:[%s1 + $0x2df8] sm:$0xff]
  %v1624 = vld [vmem:[%s1 + $0x2e00] sm:$0xff]
  %v1625 = vld [vmem:[%s1 + $0x2e08] sm:$0xff]
  %v1626 = vld [vmem:[%s1 + $0x2e10] sm:$0xff]
  %v1627 = vld [vmem:[%s1 + $0x2e18] sm:$0xff]
  %v1628 = vld [vmem:[%s1 + $0x2e20] sm:$0xff]
  %v1629 = vld [vmem:[%s1 + $0x2e28] sm:$0xff]
  %v1630 = vld [vmem:[%s1 + $0x2e30] sm:$0xff]
  %v1631 = vld [vmem:[%s1 + $0x2e38] sm:$0xff]
  %v1632 = vld [vmem:[%s1 + $0x2e40] sm:$0xff]
  %v1633 = vld [vmem:[%s1 + $0x2e48] sm:$0xff]
  %v1634 = vld [vmem:[%s1 + $0x2e50] sm:$0xff]
  %v1635 = vld [vmem:[%s1 + $0x2e58] sm:$0xff]
  %v1636 = vld [vmem:[%s1 + $0x2e60] sm:$0xff]
  %v1637 = vld [vmem:[%s1 + $0x2e68] sm:$0xff]
  %v1638 = vld [vmem:[%s1 + $0x2e70] sm:$0xff]
  %v1639 = vld [vmem:[%s1 + $0x2e78] sm:$0xff]
  %v1640 = vld [vmem:[%s1 + $0x2e80] sm:$0xff]
  %v1641 = vld [vmem:[%s1 + $0x2e88] sm:$0xff]
  %v1642 = vld [vmem:[%s1 + $0x2e90] sm:$0xff]
  %v1643 = vld [vmem:[%s1 + $0x2e98] sm:$0xff]
  %v1644 = vld [vmem:[%s1 + $0x2ea0] sm:$0xff]
  %v1645 = vld [vmem:[%s1 + $0x2ea8] sm:$0xff]
  %v1646 = vld [vmem:[%s1 + $0x2eb0] sm:$0xff]
  %v1647 = vld [vmem:[%s1 + $0x2eb8] sm:$0xff]
  %v1648 = vld [vmem:[%s1 + $0x2ec0] sm:$0xff]
  %v1649 = vld [vmem:[%s1 + $0x2ec8] sm:$0xff]
  %v1650 = vld [vmem:[%s1 + $0x2ed0] sm:$0xff]
  %v1651 = vld [vmem:[%s1 + $0x2ed8] sm:$0xff]
  %v1652 = vld [vmem:[%s1 + $0x2ee0] sm:$0xff]
  %v1653 = vld [vmem:[%s1 + $0x2ee8] sm:$0xff]
  %v1654 = vld [vmem:[%s1 + $0x2ef0] sm:$0xff]
  %v1655 = vld [vmem:[%s1 + $0x2ef8] sm:$0xff]
  %v1656 = vld [vmem:[%s1 + $0x2f00] sm:$0xff]
  %v1657 = vld [vmem:[%s1 + $0x2f08] sm:$0xff]
  %v1658 = vld [vmem:[%s1 + $0x2f10] sm:$0xff]
  %v1659 = vld [vmem:[%s1 + $0x2f18] sm:$0xff]
  %v1660 = vld [vmem:[%s1 + $0x2f20] sm:$0xff]
  %v1661 = vld [vmem:[%s1 + $0x2f28] sm:$0xff]
  %v1662 = vld [vmem:[%s1 + $0x2f30] sm:$0xff]
  %v1663 = vld [vmem:[%s1 + $0x2f38] sm:$0xff]
  %v1664 = vld [vmem:[%s1 + $0x2f40] sm:$0xff]
  %v1665 = vld [vmem:[%s1 + $0x2f48] sm:$0xff]
  %v1666 = vld [vmem:[%s1 + $0x2f50] sm:$0xff]
  %v1667 = vld [vmem:[%s1 + $0x2f58] sm:$0xff]
  %v1668 = vld [vmem:[%s1 + $0x2f60] sm:$0xff]
  %v1669 = vld [vmem:[%s1 + $0x2f68] sm:$0xff]
  %v1670 = vld [vmem:[%s1 + $0x2f70] sm:$0xff]
  %v1671 = vld [vmem:[%s1 + $0x2f78] sm:$0xff]
  %v1672 = vld [vmem:[%s1 + $0x2f80] sm:$0xff]
  %v1673 = vld [vmem:[%s1 + $0x2f88] sm:$0xff]
  %v1674 = vld [vmem:[%s1 + $0x2f90] sm:$0xff]
  %v1675 = vld [vmem:[%s1 + $0x2f98] sm:$0xff]
  %v1676 = vld [vmem:[%s1 + $0x2fa0] sm:$0xff]
  %v1677 = vld [vmem:[%s1 + $0x2fa8] sm:$0xff]
  %v1678 = vld [vmem:[%s1 + $0x2fb0] sm:$0xff]
  %v1679 = vld [vmem:[%s1 + $0x2fb8] sm:$0xff]
  %v1680 = vld [vmem:[%s1 + $0x2fc0] sm:$0xff]
  %v1681 = vld [vmem:[%s1 + $0x2fc8] sm:$0xff]
  %v1682 = vld [vmem:[%s1 + $0x2fd0] sm:$0xff]
  %v1683 = vld [vmem:[%s1 + $0x2fd8] sm:$0xff]
  %v1684 = vld [vmem:[%s1 + $0x2fe0] sm:$0xff]
  %v1685 = vld [vmem:[%s1 + $0x2fe8] sm:$0xff]
  %v1686 = vld [vmem:[%s1 + $0x2ff0] sm:$0xff]
  %v1687 = vld [vmem:[%s1 + $0x2ff8] sm:$0xff]
  %v1688 = vld [vmem:[%s1 + $0x3000] sm:$0xff]
  %v1689 = vld [vmem:[%s1 + $0x3008] sm:$0xff]
  %v1690 = vld [vmem:[%s1 + $0x3010] sm:$0xff]
  %v1691 = vld [vmem:[%s1 + $0x3018] sm:$0xff]
  %v1692 = vld [vmem:[%s1 + $0x3020] sm:$0xff]
  %v1693 = vld [vmem:[%s1 + $0x3028] sm:$0xff]
  %v1694 = vld [vmem:[%s1 + $0x3030] sm:$0xff]
  %v1695 = vld [vmem:[%s1 + $0x3038] sm:$0xff]
  %v1696 = vld [vmem:[%s1 + $0x3040] sm:$0xff]
  %v1697 = vld [vmem:[%s1 + $0x3048] sm:$0xff]
  %v1698 = vld [vmem:[%s1 + $0x3050] sm:$0xff]
  %v1699 = vld [vmem:[%s1 + $0x3058] sm:$0xff]
  %v1700 = vld [vmem:[%s1 + $0x3060] sm:$0xff]
  %v1701 = vld [vmem:[%s1 + $0x3068] sm:$0xff]
  %v1702 = vld [vmem:[%s1 + $0x3070] sm:$0xff]
  %v1703 = vld [vmem:[%s1 + $0x3078] sm:$0xff]
  %v1704 = vld [vmem:[%s1 + $0x3080] sm:$0xff]
  %v1705 = vld [vmem:[%s1 + $0x3088] sm:$0xff]
  %v1706 = vld [vmem:[%s1 + $0x3090] sm:$0xff]
  %v1707 = vld [vmem:[%s1 + $0x3098] sm:$0xff]
  %v1708 = vld [vmem:[%s1 + $0x30a0] sm:$0xff]
  %v1709 = vld [vmem:[%s1 + $0x30a8] sm:$0xff]
  %v1710 = vld [vmem:[%s1 + $0x30b0] sm:$0xff]
  %v1711 = vld [vmem:[%s1 + $0x30b8] sm:$0xff]
  %v1712 = vld [vmem:[%s1 + $0x30c0] sm:$0xff]
  %v1713 = vld [vmem:[%s1 + $0x30c8] sm:$0xff]
  %v1714 = vld [vmem:[%s1 + $0x30d0] sm:$0xff]
  %v1715 = vld [vmem:[%s1 + $0x30d8] sm:$0xff]
  %v1716 = vld [vmem:[%s1 + $0x30e0] sm:$0xff]
  %v1717 = vld [vmem:[%s1 + $0x30e8] sm:$0xff]
  %v1718 = vld [vmem:[%s1 + $0x30f0] sm:$0xff]
  %v1719 = vld [vmem:[%s1 + $0x30f8] sm:$0xff]
  %v1720 = vld [vmem:[%s1 + $0x3100] sm:$0xff]
  %v1721 = vld [vmem:[%s1 + $0x3108] sm:$0xff]
  %v1722 = vld [vmem:[%s1 + $0x3110] sm:$0xff]
  %v1723 = vld [vmem:[%s1 + $0x3118] sm:$0xff]
  %v1724 = vld [vmem:[%s1 + $0x3120] sm:$0xff]
  %v1725 = vld [vmem:[%s1 + $0x3128] sm:$0xff]
  %v1726 = vld [vmem:[%s1 + $0x3130] sm:$0xff]
  %v1727 = vld [vmem:[%s1 + $0x3138] sm:$0xff]
  %v1728 = vld [vmem:[%s1 + $0x3140] sm:$0xff]
  %v1729 = vld [vmem:[%s1 + $0x3148] sm:$0xff]
  %v1730 = vld [vmem:[%s1 + $0x3150] sm:$0xff]
  %v1731 = vld [vmem:[%s1 + $0x3158] sm:$0xff]
  %v1732 = vld [vmem:[%s1 + $0x3160] sm:$0xff]
  %v1733 = vld [vmem:[%s1 + $0x3168] sm:$0xff]
  %v1734 = vld [vmem:[%s1 + $0x3170] sm:$0xff]
  %v1735 = vld [vmem:[%s1 + $0x3178] sm:$0xff]
  %v1736 = vld [vmem:[%s1 + $0x3180] sm:$0xff]
  %v1737 = vld [vmem:[%s1 + $0x3188] sm:$0xff]
  %v1738 = vld [vmem:[%s1 + $0x3190] sm:$0xff]
  %v1739 = vld [vmem:[%s1 + $0x3198] sm:$0xff]
  %v1740 = vld [vmem:[%s1 + $0x31a0] sm:$0xff]
  %v1741 = vld [vmem:[%s1 + $0x31a8] sm:$0xff]
  %v1742 = vld [vmem:[%s1 + $0x31b0] sm:$0xff]
  %v1743 = vld [vmem:[%s1 + $0x31b8] sm:$0xff]
  %v1744 = vld [vmem:[%s1 + $0x31c0] sm:$0xff]
  %v1745 = vld [vmem:[%s1 + $0x31c8] sm:$0xff]
  %v1746 = vld [vmem:[%s1 + $0x31d0] sm:$0xff]
  %v1747 = vld [vmem:[%s1 + $0x31d8] sm:$0xff]
  %v1748 = vld [vmem:[%s1 + $0x31e0] sm:$0xff]
  %v1749 = vld [vmem:[%s1 + $0x31e8] sm:$0xff]
  %v1750 = vld [vmem:[%s1 + $0x31f0] sm:$0xff]
  %v1751 = vld [vmem:[%s1 + $0x31f8] sm:$0xff]
  %v1752 = vld [vmem:[%s1 + $0x3200] sm:$0xff]
  %v1753 = vld [vmem:[%s1 + $0x3208] sm:$0xff]
  %v1754 = vld [vmem:[%s1 + $0x3210] sm:$0xff]
  %v1755 = vld [vmem:[%s1 + $0x3218] sm:$0xff]
  %v1756 = vld [vmem:[%s1 + $0x3220] sm:$0xff]
  %v1757 = vld [vmem:[%s1 + $0x3228] sm:$0xff]
  %v1758 = vld [vmem:[%s1 + $0x3230] sm:$0xff]
  %v1759 = vld [vmem:[%s1 + $0x3238] sm:$0xff]
  %v1760 = vld [vmem:[%s1 + $0x3240] sm:$0xff]
  %v1761 = vld [vmem:[%s1 + $0x3248] sm:$0xff]
  %v1762 = vld [vmem:[%s1 + $0x3250] sm:$0xff]
  %v1763 = vld [vmem:[%s1 + $0x3258] sm:$0xff]
  %v1764 = vld [vmem:[%s1 + $0x3260] sm:$0xff]
  %v1765 = vld [vmem:[%s1 + $0x3268] sm:$0xff]
  %v1766 = vld [vmem:[%s1 + $0x3270] sm:$0xff]
  %v1767 = vld [vmem:[%s1 + $0x3278] sm:$0xff]
  %v1768 = vld [vmem:[%s1 + $0x3280] sm:$0xff]
  %v1769 = vld [vmem:[%s1 + $0x3288] sm:$0xff]
  %v1770 = vld [vmem:[%s1 + $0x3290] sm:$0xff]
  %v1771 = vld [vmem:[%s1 + $0x3298] sm:$0xff]
  %v1772 = vld [vmem:[%s1 + $0x32a0] sm:$0xff]
  %v1773 = vld [vmem:[%s1 + $0x32a8] sm:$0xff]
  %v1774 = vld [vmem:[%s1 + $0x32b0] sm:$0xff]
  %v1775 = vld [vmem:[%s1 + $0x32b8] sm:$0xff]
  %v1776 = vld [vmem:[%s1 + $0x32c0] sm:$0xff]
  %v1777 = vld [vmem:[%s1 + $0x32c8] sm:$0xff]
  %v1778 = vld [vmem:[%s1 + $0x32d0] sm:$0xff]
  %v1779 = vld [vmem:[%s1 + $0x32d8] sm:$0xff]
  %v1780 = vld [vmem:[%s1 + $0x32e0] sm:$0xff]
  %v1781 = vld [vmem:[%s1 + $0x32e8] sm:$0xff]
  %v1782 = vld [vmem:[%s1 + $0x32f0] sm:$0xff]
  %v1783 = vld [vmem:[%s1 + $0x32f8] sm:$0xff]
  %v1784 = vld [vmem:[%s1 + $0x3300] sm:$0xff]
  %v1785 = vld [vmem:[%s1 + $0x3308] sm:$0xff]
  %v1786 = vld [vmem:[%s1 + $0x3310] sm:$0xff]
  %v1787 = vld [vmem:[%s1 + $0x3318] sm:$0xff]
  %v1788 = vld [vmem:[%s1 + $0x3320] sm:$0xff]
  %v1789 = vld [vmem:[%s1 + $0x3328] sm:$0xff]
  %v1790 = vld [vmem:[%s1 + $0x3330] sm:$0xff]
  %v1791 = vld [vmem:[%s1 + $0x3338] sm:$0xff]
  %v1792 = vld [vmem:[%s1 + $0x3340] sm:$0xff]
  %v1793 = vld [vmem:[%s1 + $0x3348] sm:$0xff]
  %v1794 = vld [vmem:[%s1 + $0x3350] sm:$0xff]
  %v1795 = vld [vmem:[%s1 + $0x3358] sm:$0xff]
  %v1796 = vld [vmem:[%s1 + $0x3360] sm:$0xff]
  %v1797 = vld [vmem:[%s1 + $0x3368] sm:$0xff]
  %v1798 = vld [vmem:[%s1 + $0x3370] sm:$0xff]
  %v1799 = vld [vmem:[%s1 + $0x3378] sm:$0xff]
  %v1800 = vld [vmem:[%s1 + $0x3380] sm:$0xff]
  %v1801 = vld [vmem:[%s1 + $0x3388] sm:$0xff]
  %v1802 = vld [vmem:[%s1 + $0x3390] sm:$0xff]
  %v1803 = vld [vmem:[%s1 + $0x3398] sm:$0xff]
  %v1804 = vld [vmem:[%s1 + $0x33a0] sm:$0xff]
  %v1805 = vld [vmem:[%s1 + $0x33a8] sm:$0xff]
  %v1806 = vld [vmem:[%s1 + $0x33b0] sm:$0xff]
  %v1807 = vld [vmem:[%s1 + $0x33b8] sm:$0xff]
  %v1808 = vld [vmem:[%s1 + $0x33c0] sm:$0xff]
  %v1809 = vld [vmem:[%s1 + $0x33c8] sm:$0xff]
  %v1810 = vld [vmem:[%s1 + $0x33d0] sm:$0xff]
  %v1811 = vld [vmem:[%s1 + $0x33d8] sm:$0xff]
  %v1812 = vld [vmem:[%s1 + $0x33e0] sm:$0xff]
  %v1813 = vld [vmem:[%s1 + $0x33e8] sm:$0xff]
  %v1814 = vld [vmem:[%s1 + $0x33f0] sm:$0xff]
  %v1815 = vld [vmem:[%s1 + $0x33f8] sm:$0xff]
  %v1816 = vld [vmem:[%s1 + $0x3400] sm:$0xff]
  %v1817 = vld [vmem:[%s1 + $0x3408] sm:$0xff]
  %v1818 = vld [vmem:[%s1 + $0x3410] sm:$0xff]
  %v1819 = vld [vmem:[%s1 + $0x3418] sm:$0xff]
  %v1820 = vld [vmem:[%s1 + $0x3420] sm:$0xff]
  %v1821 = vld [vmem:[%s1 + $0x3428] sm:$0xff]
  %v1822 = vld [vmem:[%s1 + $0x3430] sm:$0xff]
  %v1823 = vld [vmem:[%s1 + $0x3438] sm:$0xff]
  %v1824 = vld [vmem:[%s1 + $0x3440] sm:$0xff]
  %v1825 = vld [vmem:[%s1 + $0x3448] sm:$0xff]
  %v1826 = vld [vmem:[%s1 + $0x3450] sm:$0xff]
  %v1827 = vld [vmem:[%s1 + $0x3458] sm:$0xff]
  %v1828 = vld [vmem:[%s1 + $0x3460] sm:$0xff]
  %v1829 = vld [vmem:[%s1 + $0x3468] sm:$0xff]
  %v1830 = vld [vmem:[%s1 + $0x3470] sm:$0xff]
  %v1831 = vld [vmem:[%s1 + $0x3478] sm:$0xff]
  %v1832 = vld [vmem:[%s1 + $0x3480] sm:$0xff]
  %v1833 = vld [vmem:[%s1 + $0x3488] sm:$0xff]
  %v1834 = vld [vmem:[%s1 + $0x3490] sm:$0xff]
  %v1835 = vld [vmem:[%s1 + $0x3498] sm:$0xff]
  %v1836 = vld [vmem:[%s1 + $0x34a0] sm:$0xff]
  %v1837 = vld [vmem:[%s1 + $0x34a8] sm:$0xff]
  %v1838 = vld [vmem:[%s1 + $0x34b0] sm:$0xff]
  %v1839 = vld [vmem:[%s1 + $0x34b8] sm:$0xff]
  %v1840 = vld [vmem:[%s1 + $0x34c0] sm:$0xff]
  %v1841 = vld [vmem:[%s1 + $0x34c8] sm:$0xff]
  %v1842 = vld [vmem:[%s1 + $0x34d0] sm:$0xff]
  %v1843 = vld [vmem:[%s1 + $0x34d8] sm:$0xff]
  %v1844 = vld [vmem:[%s1 + $0x34e0] sm:$0xff]
  %v1845 = vld [vmem:[%s1 + $0x34e8] sm:$0xff]
  %v1846 = vld [vmem:[%s1 + $0x34f0] sm:$0xff]
  %v1847 = vld [vmem:[%s1 + $0x34f8] sm:$0xff]
  %v1848 = vld [vmem:[%s1 + $0x3500] sm:$0xff]
  %v1849 = vld [vmem:[%s1 + $0x3508] sm:$0xff]
  %v1850 = vld [vmem:[%s1 + $0x3510] sm:$0xff]
  %v1851 = vld [vmem:[%s1 + $0x3518] sm:$0xff]
  %v1852 = vld [vmem:[%s1 + $0x3520] sm:$0xff]
  %v1853 = vld [vmem:[%s1 + $0x3528] sm:$0xff]
  %v1854 = vld [vmem:[%s1 + $0x3530] sm:$0xff]
  %v1855 = vld [vmem:[%s1 + $0x3538] sm:$0xff]
  %v1856 = vld [vmem:[%s1 + $0x3540] sm:$0xff]
  %v1857 = vld [vmem:[%s1 + $0x3548] sm:$0xff]
  %v1858 = vld [vmem:[%s1 + $0x3550] sm:$0xff]
  %v1859 = vld [vmem:[%s1 + $0x3558] sm:$0xff]
  %v1860 = vld [vmem:[%s1 + $0x3560] sm:$0xff]
  %v1861 = vld [vmem:[%s1 + $0x3568] sm:$0xff]
  %v1862 = vld [vmem:[%s1 + $0x3570] sm:$0xff]
  %v1863 = vld [vmem:[%s1 + $0x3578] sm:$0xff]
  %v1864 = vld [vmem:[%s1 + $0x3580] sm:$0xff]
  %v1865 = vld [vmem:[%s1 + $0x3588] sm:$0xff]
  %v1866 = vld [vmem:[%s1 + $0x3590] sm:$0xff]
  %v1867 = vld [vmem:[%s1 + $0x3598] sm:$0xff]
  %v1868 = vld [vmem:[%s1 + $0x35a0] sm:$0xff]
  %v1869 = vld [vmem:[%s1 + $0x35a8] sm:$0xff]
  %v1870 = vld [vmem:[%s1 + $0x35b0] sm:$0xff]
  %v1871 = vld [vmem:[%s1 + $0x35b8] sm:$0xff]
  %v1872 = vld [vmem:[%s1 + $0x35c0] sm:$0xff]
  %v1873 = vld [vmem:[%s1 + $0x35c8] sm:$0xff]
  %v1874 = vld [vmem:[%s1 + $0x35d0] sm:$0xff]
  %v1875 = vld [vmem:[%s1 + $0x35d8] sm:$0xff]
  %v1876 = vld [vmem:[%s1 + $0x35e0] sm:$0xff]
  %v1877 = vld [vmem:[%s1 + $0x35e8] sm:$0xff]
  %v1878 = vld [vmem:[%s1 + $0x35f0] sm:$0xff]
  %v1879 = vld [vmem:[%s1 + $0x35f8] sm:$0xff]
  %v1880 = vld [vmem:[%s1 + $0x3600] sm:$0xff]
  %v1881 = vld [vmem:[%s1 + $0x3608] sm:$0xff]
  %v1882 = vld [vmem:[%s1 + $0x3610] sm:$0xff]
  %v1883 = vld [vmem:[%s1 + $0x3618] sm:$0xff]
  %v1884 = vld [vmem:[%s1 + $0x3620] sm:$0xff]
  %v1885 = vld [vmem:[%s1 + $0x3628] sm:$0xff]
  %v1886 = vld [vmem:[%s1 + $0x3630] sm:$0xff]
  %v1887 = vld [vmem:[%s1 + $0x3638] sm:$0xff]
  %v1888 = vld [vmem:[%s1 + $0x3640] sm:$0xff]
  %v1889 = vld [vmem:[%s1 + $0x3648] sm:$0xff]
  %v1890 = vld [vmem:[%s1 + $0x3650] sm:$0xff]
  %v1891 = vld [vmem:[%s1 + $0x3658] sm:$0xff]
  %v1892 = vld [vmem:[%s1 + $0x3660] sm:$0xff]
  %v1893 = vld [vmem:[%s1 + $0x3668] sm:$0xff]
  %v1894 = vld [vmem:[%s1 + $0x3670] sm:$0xff]
  %v1895 = vld [vmem:[%s1 + $0x3678] sm:$0xff]
  %v1896 = vld [vmem:[%s1 + $0x3680] sm:$0xff]
  %v1897 = vld [vmem:[%s1 + $0x3688] sm:$0xff]
  %v1898 = vld [vmem:[%s1 + $0x3690] sm:$0xff]
  %v1899 = vld [vmem:[%s1 + $0x3698] sm:$0xff]
  %v1900 = vld [vmem:[%s1 + $0x36a0] sm:$0xff]
  %v1901 = vld [vmem:[%s1 + $0x36a8] sm:$0xff]
  %v1902 = vld [vmem:[%s1 + $0x36b0] sm:$0xff]
  %v1903 = vld [vmem:[%s1 + $0x36b8] sm:$0xff]
  %v1904 = vld [vmem:[%s1 + $0x36c0] sm:$0xff]
  %v1905 = vld [vmem:[%s1 + $0x36c8] sm:$0xff]
  %v1906 = vld [vmem:[%s1 + $0x36d0] sm:$0xff]
  %v1907 = vld [vmem:[%s1 + $0x36d8] sm:$0xff]
  %v1908 = vld [vmem:[%s1 + $0x36e0] sm:$0xff]
  %v1909 = vld [vmem:[%s1 + $0x36e8] sm:$0xff]
  %v1910 = vld [vmem:[%s1 + $0x36f0] sm:$0xff]
  %v1911 = vld [vmem:[%s1 + $0x36f8] sm:$0xff]
  %v1912 = vld [vmem:[%s1 + $0x3700] sm:$0xff]
  %v1913 = vld [vmem:[%s1 + $0x3708] sm:$0xff]
  %v1914 = vld [vmem:[%s1 + $0x3710] sm:$0xff]
  %v1915 = vld [vmem:[%s1 + $0x3718] sm:$0xff]
  %v1916 = vld [vmem:[%s1 + $0x3720] sm:$0xff]
  %v1917 = vld [vmem:[%s1 + $0x3728] sm:$0xff]
  %v1918 = vld [vmem:[%s1 + $0x3730] sm:$0xff]
  %v1919 = vld [vmem:[%s1 + $0x3738] sm:$0xff]
  %v1920 = vld [vmem:[%s1 + $0x3740] sm:$0xff]
  %v1921 = vld [vmem:[%s1 + $0x3748] sm:$0xff]
  %v1922 = vld [vmem:[%s1 + $0x3750] sm:$0xff]
  %v1923 = vld [vmem:[%s1 + $0x3758] sm:$0xff]
  %v1924 = vld [vmem:[%s1 + $0x3760] sm:$0xff]
  %v1925 = vld [vmem:[%s1 + $0x3768] sm:$0xff]
  %v1926 = vld [vmem:[%s1 + $0x3770] sm:$0xff]
  %v1927 = vld [vmem:[%s1 + $0x3778] sm:$0xff]
  %v1928 = vld [vmem:[%s1 + $0x3780] sm:$0xff]
  %v1929 = vld [vmem:[%s1 + $0x3788] sm:$0xff]
  %v1930 = vld [vmem:[%s1 + $0x3790] sm:$0xff]
  %v1931 = vld [vmem:[%s1 + $0x3798] sm:$0xff]
  %v1932 = vld [vmem:[%s1 + $0x37a0] sm:$0xff]
  %v1933 = vld [vmem:[%s1 + $0x37a8] sm:$0xff]
  %v1934 = vld [vmem:[%s1 + $0x37b0] sm:$0xff]
  %v1935 = vld [vmem:[%s1 + $0x37b8] sm:$0xff]
  %v1936 = vld [vmem:[%s1 + $0x37c0] sm:$0xff]
  %v1937 = vld [vmem:[%s1 + $0x37c8] sm:$0xff]
  %v1938 = vld [vmem:[%s1 + $0x37d0] sm:$0xff]
  %v1939 = vld [vmem:[%s1 + $0x37d8] sm:$0xff]
  %v1940 = vld [vmem:[%s1 + $0x37e0] sm:$0xff]
  %v1941 = vld [vmem:[%s1 + $0x37e8] sm:$0xff]
  %v1942 = vld [vmem:[%s1 + $0x37f0] sm:$0xff]
  %v1943 = vld [vmem:[%s1 + $0x37f8] sm:$0xff]
  %v1944 = vld [vmem:[%s1 + $0x3800] sm:$0xff]
  %v1945 = vld [vmem:[%s1 + $0x3808] sm:$0xff]
  %v1946 = vld [vmem:[%s1 + $0x3810] sm:$0xff]
  %v1947 = vld [vmem:[%s1 + $0x3818] sm:$0xff]
  %v1948 = vld [vmem:[%s1 + $0x3820] sm:$0xff]
  %v1949 = vld [vmem:[%s1 + $0x3828] sm:$0xff]
  %v1950 = vld [vmem:[%s1 + $0x3830] sm:$0xff]
  %v1951 = vld [vmem:[%s1 + $0x3838] sm:$0xff]
  %v1952 = vld [vmem:[%s1 + $0x3840] sm:$0xff]
  %v1953 = vld [vmem:[%s1 + $0x3848] sm:$0xff]
  %v1954 = vld [vmem:[%s1 + $0x3850] sm:$0xff]
  %v1955 = vld [vmem:[%s1 + $0x3858] sm:$0xff]
  %v1956 = vld [vmem:[%s1 + $0x3860] sm:$0xff]
  %v1957 = vld [vmem:[%s1 + $0x3868] sm:$0xff]
  %v1958 = vld [vmem:[%s1 + $0x3870] sm:$0xff]
  %v1959 = vld [vmem:[%s1 + $0x3878] sm:$0xff]
  %v1960 = vld [vmem:[%s1 + $0x3880] sm:$0xff]
  %v1961 = vld [vmem:[%s1 + $0x3888] sm:$0xff]
  %v1962 = vld [vmem:[%s1 + $0x3890] sm:$0xff]
  %v1963 = vld [vmem:[%s1 + $0x3898] sm:$0xff]
  %v1964 = vld [vmem:[%s1 + $0x38a0] sm:$0xff]
  %v1965 = vld [vmem:[%s1 + $0x38a8] sm:$0xff]
  %v1966 = vld [vmem:[%s1 + $0x38b0] sm:$0xff]
  %v1967 = vld [vmem:[%s1 + $0x38b8] sm:$0xff]
  %v1968 = vld [vmem:[%s1 + $0x38c0] sm:$0xff]
  %v1969 = vld [vmem:[%s1 + $0x38c8] sm:$0xff]
  %v1970 = vld [vmem:[%s1 + $0x38d0] sm:$0xff]
  %v1971 = vld [vmem:[%s1 + $0x38d8] sm:$0xff]
  %v1972 = vld [vmem:[%s1 + $0x38e0] sm:$0xff]
  %v1973 = vld [vmem:[%s1 + $0x38e8] sm:$0xff]
  %v1974 = vld [vmem:[%s1 + $0x38f0] sm:$0xff]
  %v1975 = vld [vmem:[%s1 + $0x38f8] sm:$0xff]
  %v1976 = vld [vmem:[%s1 + $0x3900] sm:$0xff]
  %v1977 = vld [vmem:[%s1 + $0x3908] sm:$0xff]
  %v1978 = vld [vmem:[%s1 + $0x3910] sm:$0xff]
  %v1979 = vld [vmem:[%s1 + $0x3918] sm:$0xff]
  %v1980 = vld [vmem:[%s1 + $0x3920] sm:$0xff]
  %v1981 = vld [vmem:[%s1 + $0x3928] sm:$0xff]
  %v1982 = vld [vmem:[%s1 + $0x3930] sm:$0xff]
  %v1983 = vld [vmem:[%s1 + $0x3938] sm:$0xff]
  %v1984 = vld [vmem:[%s1 + $0x3940] sm:$0xff]
  %v1985 = vld [vmem:[%s1 + $0x3948] sm:$0xff]
  %v1986 = vld [vmem:[%s1 + $0x3950] sm:$0xff]
  %v1987 = vld [vmem:[%s1 + $0x3958] sm:$0xff]
  %v1988 = vld [vmem:[%s1 + $0x3960] sm:$0xff]
  %v1989 = vld [vmem:[%s1 + $0x3968] sm:$0xff]
  %v1990 = vld [vmem:[%s1 + $0x3970] sm:$0xff]
  %v1991 = vld [vmem:[%s1 + $0x3978] sm:$0xff]
  %v1992 = vld [vmem:[%s1 + $0x3980] sm:$0xff]
  %v1993 = vld [vmem:[%s1 + $0x3988] sm:$0xff]
  %v1994 = vld [vmem:[%s1 + $0x3990] sm:$0xff]
  %v1995 = vld [vmem:[%s1 + $0x3998] sm:$0xff]
  %v1996 = vld [vmem:[%s1 + $0x39a0] sm:$0xff]
  %v1997 = vld [vmem:[%s1 + $0x39a8] sm:$0xff]
  %v1998 = vld [vmem:[%s1 + $0x39b0] sm:$0xff]
  %v1999 = vld [vmem:[%s1 + $0x39b8] sm:$0xff]
  %v2000 = vld [vmem:[%s1 + $0x39c0] sm:$0xff]
  %v2001 = vld [vmem:[%s1 + $0x39c8] sm:$0xff]
  %v2002 = vld [vmem:[%s1 + $0x39d0] sm:$0xff]
  %v2003 = vld [vmem:[%s1 + $0x39d8] sm:$0xff]
  %v2004 = vld [vmem:[%s1 + $0x39e0] sm:$0xff]
  %v2005 = vld [vmem:[%s1 + $0x39e8] sm:$0xff]
  %v2006 = vld [vmem:[%s1 + $0x39f0] sm:$0xff]
  %v2007 = vld [vmem:[%s1 + $0x39f8] sm:$0xff]
  %v2008 = vld [vmem:[%s1 + $0x3a00] sm:$0xff]
  %v2009 = vld [vmem:[%s1 + $0x3a08] sm:$0xff]
  %v2010 = vld [vmem:[%s1 + $0x3a10] sm:$0xff]
  %v2011 = vld [vmem:[%s1 + $0x3a18] sm:$0xff]
  %v2012 = vld [vmem:[%s1 + $0x3a20] sm:$0xff]
  %v2013 = vld [vmem:[%s1 + $0x3a28] sm:$0xff]
  %v2014 = vld [vmem:[%s1 + $0x3a30] sm:$0xff]
  %v2015 = vld [vmem:[%s1 + $0x3a38] sm:$0xff]
  %v2016 = vld [vmem:[%s1 + $0x3a40] sm:$0xff]
  %v2017 = vld [vmem:[%s1 + $0x3a48] sm:$0xff]
  %v2018 = vld [vmem:[%s1 + $0x3a50] sm:$0xff]
  %v2019 = vld [vmem:[%s1 + $0x3a58] sm:$0xff]
  %v2020 = vld [vmem:[%s1 + $0x3a60] sm:$0xff]
  %v2021 = vld [vmem:[%s1 + $0x3a68] sm:$0xff]
  %v2022 = vld [vmem:[%s1 + $0x3a70] sm:$0xff]
  %v2023 = vld [vmem:[%s1 + $0x3a78] sm:$0xff]
  %v2024 = vld [vmem:[%s1 + $0x3a80] sm:$0x3f]
  %v2025 = vld [vmem:[%s1 + $0x3a88] sm:$0x3f]
  %v2026 = vld [vmem:[%s1 + $0x3a90] sm:$0x3f]
  %v2027 = vld [vmem:[%s1 + $0x3a98] sm:$0x3f]
  %vm2028 = vcmask 310272
  %v2030 = vsel %vm2028, %v61, 0
  %v2033 = vsel %vm2028, %v91, 0
  %v2036 = vsel %vm2028, %v121, 0
  %v2039 = vsel %vm2028, %v151, 0
  %vm2041 = vcmask 1045504
  %v2043 = vsel %vm2041, %v2024, 0
  %v2046 = vsel %vm2041, %v2025, 0
  %v2049 = vsel %vm2041, %v2026, 0
  %v2052 = vsel %vm2041, %v2027, 0
  %2054 = vmatprep.subr.mxu0 %v153
  %2055 = vmatpush1.msra.mxu0 %v152
  %2056 = vmatprep.subr.mxu0 %v157
  %2057 = vmatpush1.msra.mxu0 %v156
  %2058 = vmatprep.subr.mxu0 %v161
  %2059 = vmatpush1.msra.mxu0 %v160
  %2060 = vmatprep.subr.mxu0 %v165
  %2061 = vmatpush1.msra.mxu0 %v164
  %2062 = vmatprep.subr.mxu0 %v169
  %2063 = vmatpush1.msra.mxu0 %v168
  %2064 = vmatprep.subr.mxu0 %v173
  %2065 = vmatpush1.msra.mxu0 %v172
  %2066 = vmatprep.subr.mxu0 %v177
  %2067 = vmatpush1.msra.mxu0 %v176
  %2068 = vmatprep.subr.mxu0 %v181
  %2069 = vmatpush1.msra.mxu0 %v180
  %2070 = vmatprep.subr.mxu0 %v185
  %2071 = vmatpush1.msra.mxu0 %v184
  %2072 = vmatprep.subr.mxu0 %v189
  %2073 = vmatpush1.msra.mxu0 %v188
  %2074 = vmatprep.subr.mxu0 %v193
  %2075 = vmatpush1.msra.mxu0 %v192
  %2076 = vmatprep.subr.mxu0 %v197
  %2077 = vmatpush1.msra.mxu0 %v196
  %2078 = vmatprep.subr.mxu0 %v201
  %2079 = vmatpush1.msra.mxu0 %v200
  %2080 = vmatprep.subr.mxu0 %v205
  %2081 = vmatpush1.msra.mxu0 %v204
  %2082 = vmatprep.subr.mxu0 %v209
  %2083 = vmatpush1.msra.mxu0 %v208
  %2084 = vmatprep.subr.mxu0 %v213
  %2085 = vmatpush1.msra.mxu0 %v212
  %2086 = vmatprep.subr.mxu0 %v217
  %2087 = vmatpush1.msra.mxu0 %v216
  %2088 = vmatprep.subr.mxu0 %v221
  %2089 = vmatpush1.msra.mxu0 %v220
  %2090 = vmatprep.subr.mxu0 %v225
  %2091 = vmatpush1.msra.mxu0 %v224
  %2092 = vmatprep.subr.mxu0 %v229
  %2093 = vmatpush1.msra.mxu0 %v228
  %2094 = vmatprep.subr.mxu0 %v233
  %2095 = vmatpush1.msra.mxu0 %v232
  %2096 = vmatprep.subr.mxu0 %v237
  %2097 = vmatpush1.msra.mxu0 %v236
  %2098 = vmatprep.subr.mxu0 %v241
  %2099 = vmatpush1.msra.mxu0 %v240
  %2100 = vmatprep.subr.mxu0 %v245
  %2101 = vmatpush1.msra.mxu0 %v244
  %2102 = vmatprep.subr.mxu0 %v249
  %2103 = vmatpush1.msra.mxu0 %v248
  %2104 = vmatprep.subr.mxu0 %v253
  %2105 = vmatpush1.msra.mxu0 %v252
  %2106 = vmatprep.subr.mxu0 %v257
  %2107 = vmatpush1.msra.mxu0 %v256
  %2108 = vmatprep.subr.mxu0 %v261
  %2109 = vmatpush1.msra.mxu0 %v260
  %2110 = vmatprep.subr.mxu0 %v265
  %2111 = vmatpush1.msra.mxu0 %v264
  %2112 = vmatprep.subr.mxu0 %v269
  %2113 = vmatpush1.msra.mxu0 %v268
  %2114 = vmatprep.subr.mxu0 %v273
  %2115 = vmatpush1.msra.mxu0 %v272
  %2116 = vmatprep.subr.mxu0 %v277
  %2117 = vmatpush1.msra.mxu0 %v276
  %2118 = vmatprep.mubr.f32.mxu0 %v33
  %2119 = vmatmul.mubr.f32.gmra.mrb[0].mxu0 %v32
  %v2120 = vpop.f32.mrb[0].mxu0
  %v2121 = vadd.f32 0.0, %v2120
  %v2122 = vpop.f32.mrb[0].mxu0
  %v2123 = vadd.f32 0.0, %v2122
  %2124 = vmatprep.mubr.f32.mxu0 %v63
  %2125 = vmatmul.mubr.f32.gmra.mrb[0].mxu0 %v62
  %v2126 = vpop.f32.mrb[0].mxu0
  %v2127 = vadd.f32 0.0, %v2126
  %v2128 = vpop.f32.mrb[0].mxu0
  %v2129 = vadd.f32 0.0, %v2128
  %2130 = vmatprep.mubr.f32.mxu0 %v93
  %2131 = vmatmul.mubr.f32.gmra.mrb[0].mxu0 %v92
  %v2132 = vpop.f32.mrb[0].mxu0
  %v2133 = vadd.f32 0.0, %v2132
  %v2134 = vpop.f32.mrb[0].mxu0
  %v2135 = vadd.f32 0.0, %v2134
  %2136 = vmatprep.mubr.f32.mxu0 %v123
  %2137 = vmatmul.mubr.f32.gmra.mrb[0].mxu0 %v122
  %v2138 = vpop.f32.mrb[0].mxu0
  %v2139 = vadd.f32 0.0, %v2138
  %v2140 = vpop.f32.mrb[0].mxu0
  %v2141 = vadd.f32 0.0, %v2140
  %2142 = vdwg.mxu0
  %2143 = vmatprep.subr.mxu0 %v281
  %2144 = vmatpush1.msra.mxu0 %v280
  %2145 = vmatprep.subr.mxu0 %v285
  %2146 = vmatpush1.msra.mxu0 %v284
  %2147 = vmatprep.subr.mxu0 %v289
  %2148 = vmatpush1.msra.mxu0 %v288
  %2149 = vmatprep.subr.mxu0 %v293
  %2150 = vmatpush1.msra.mxu0 %v292
  %2151 = vmatprep.subr.mxu0 %v297
  %2152 = vmatpush1.msra.mxu0 %v296
  %2153 = vmatprep.subr.mxu0 %v301
  %2154 = vmatpush1.msra.mxu0 %v300
  %2155 = vmatprep.subr.mxu0 %v305
  %2156 = vmatpush1.msra.mxu0 %v304
  %2157 = vmatprep.subr.mxu0 %v309
  %2158 = vmatpush1.msra.mxu0 %v308
  %2159 = vmatprep.subr.mxu0 %v313
  %2160 = vmatpush1.msra.mxu0 %v312
  %2161 = vmatprep.subr.mxu0 %v317
  %2162 = vmatpush1.msra.mxu0 %v316
  %2163 = vmatprep.subr.mxu0 %v321
  %2164 = vmatpush1.msra.mxu0 %v320
  %2165 = vmatprep.subr.mxu0 %v325
  %2166 = vmatpush1.msra.mxu0 %v324
  %2167 = vmatprep.subr.mxu0 %v329
  %2168 = vmatpush1.msra.mxu0 %v328
  %2169 = vmatprep.subr.mxu0 %v333
  %2170 = vmatpush1.msra.mxu0 %v332
  %2171 = vmatprep.subr.mxu0 %v337
  %2172 = vmatpush1.msra.mxu0 %v336
  %2173 = vmatprep.subr.mxu0 %v341
  %2174 = vmatpush1.msra.mxu0 %v340
  %2175 = vmatprep.subr.mxu0 %v345
  %2176 = vmatpush1.msra.mxu0 %v344
  %2177 = vmatprep.subr.mxu0 %v349
  %2178 = vmatpush1.msra.mxu0 %v348
  %2179 = vmatprep.subr.mxu0 %v353
  %2180 = vmatpush1.msra.mxu0 %v352
  %2181 = vmatprep.subr.mxu0 %v357
  %2182 = vmatpush1.msra.mxu0 %v356
  %2183 = vmatprep.subr.mxu0 %v361
  %2184 = vmatpush1.msra.mxu0 %v360
  %2185 = vmatprep.subr.mxu0 %v365
  %2186 = vmatpush1.msra.mxu0 %v364
  %2187 = vmatprep.subr.mxu0 %v369
  %2188 = vmatpush1.msra.mxu0 %v368
  %2189 = vmatprep.subr.mxu0 %v373
  %2190 = vmatpush1.msra.mxu0 %v372
  %2191 = vmatprep.subr.mxu0 %v377
  %2192 = vmatpush1.msra.mxu0 %v376
  %2193 = vmatprep.subr.mxu0 %v381
  %2194 = vmatpush1.msra.mxu0 %v380
  %2195 = vmatprep.subr.mxu0 %v385
  %2196 = vmatpush1.msra.mxu0 %v384
  %2197 = vmatprep.subr.mxu0 %v389
  %2198 = vmatpush1.msra.mxu0 %v388
  %2199 = vmatprep.subr.mxu0 %v393
  %2200 = vmatpush1.msra.mxu0 %v392
  %2201 = vmatprep.subr.mxu0 %v397
  %2202 = vmatpush1.msra.mxu0 %v396
  %2203 = vmatprep.subr.mxu0 %v401
  %2204 = vmatpush1.msra.mxu0 %v400
  %2205 = vmatprep.subr.mxu0 %v405
  %2206 = vmatpush1.msra.mxu0 %v404
  %2207 = vmatprep.mubr.f32.mxu0 %v35
  %2208 = vmatmul.mubr.f32.gmra.mrb[0].mxu0 %v34
  %v2209 = vpop.f32.mrb[0].mxu0
  %v2210 = vadd.f32 %v2121, %v2209
  %v2211 = vpop.f32.mrb[0].mxu0
  %v2212 = vadd.f32 %v2123, %v2211
  %2213 = vmatprep.mubr.f32.mxu0 %v65
  %2214 = vmatmul.mubr.f32.gmra.mrb[0].mxu0 %v64
  %v2215 = vpop.f32.mrb[0].mxu0
  %v2216 = vadd.f32 %v2127, %v2215
  %v2217 = vpop.f32.mrb[0].mxu0
  %v2218 = vadd.f32 %v2129, %v2217
  %2219 = vmatprep.mubr.f32.mxu0 %v95
  %2220 = vmatmul.mubr.f32.gmra.mrb[0].mxu0 %v94
  %v2221 = vpop.f32.mrb[0].mxu0
  %v2222 = vadd.f32 %v2133, %v2221
  %v2223 = vpop.f32.mrb[0].mxu0
  %v2224 = vadd.f32 %v2135, %v2223
  %2225 = vmatprep.mubr.f32.mxu0 %v125
  %2226 = vmatmul.mubr.f32.gmra.mrb[0].mxu0 %v124
  %v2227 = vpop.f32.mrb[0].mxu0
  %v2228 = vadd.f32 %v2139, %v2227
  %v2229 = vpop.f32.mrb[0].mxu0
  %v2230 = vadd.f32 %v2141, %v2229
  %2231 = vdwg.mxu0
  %2232 = vmatprep.subr.mxu0 %v409
  %2233 = vmatpush1.msra.mxu0 %v408
  %2234 = vmatprep.subr.mxu0 %v413
  %2235 = vmatpush1.msra.mxu0 %v412
  %2236 = vmatprep.subr.mxu0 %v417
  %2237 = vmatpush1.msra.mxu0 %v416
  %2238 = vmatprep.subr.mxu0 %v421
  %2239 = vmatpush1.msra.mxu0 %v420
  %2240 = vmatprep.subr.mxu0 %v425
  %2241 = vmatpush1.msra.mxu0 %v424
  %2242 = vmatprep.subr.mxu0 %v429
  %2243 = vmatpush1.msra.mxu0 %v428
  %2244 = vmatprep.subr.mxu0 %v433
  %2245 = vmatpush1.msra.mxu0 %v432
  %2246 = vmatprep.subr.mxu0 %v437
  %2247 = vmatpush1.msra.mxu0 %v436
  %2248 = vmatprep.subr.mxu0 %v441
  %2249 = vmatpush1.msra.mxu0 %v440
  %2250 = vmatprep.subr.mxu0 %v445
  %2251 = vmatpush1.msra.mxu0 %v444
  %2252 = vmatprep.subr.mxu0 %v449
  %2253 = vmatpush1.msra.mxu0 %v448
  %2254 = vmatprep.subr.mxu0 %v453
  %2255 = vmatpush1.msra.mxu0 %v452
  %2256 = vmatprep.subr.mxu0 %v457
  %2257 = vmatpush1.msra.mxu0 %v456
  %2258 = vmatprep.subr.mxu0 %v461
  %2259 = vmatpush1.msra.mxu0 %v460
  %2260 = vmatprep.subr.mxu0 %v465
  %2261 = vmatpush1.msra.mxu0 %v464
  %2262 = vmatprep.subr.mxu0 %v469
  %2263 = vmatpush1.msra.mxu0 %v468
  %2264 = vmatprep.subr.mxu0 %v473
  %2265 = vmatpush1.msra.mxu0 %v472
  %2266 = vmatprep.subr.mxu0 %v477
  %2267 = vmatpush1.msra.mxu0 %v476
  %2268 = vmatprep.subr.mxu0 %v481
  %2269 = vmatpush1.msra.mxu0 %v480
  %2270 = vmatprep.subr.mxu0 %v485
  %2271 = vmatpush1.msra.mxu0 %v484
  %2272 = vmatprep.subr.mxu0 %v489
  %2273 = vmatpush1.msra.mxu0 %v488
  %2274 = vmatprep.subr.mxu0 %v493
  %2275 = vmatpush1.msra.mxu0 %v492
  %2276 = vmatprep.subr.mxu0 %v497
  %2277 = vmatpush1.msra.mxu0 %v496
  %2278 = vmatprep.subr.mxu0 %v501
  %2279 = vmatpush1.msra.mxu0 %v500
  %2280 = vmatprep.subr.mxu0 %v505
  %2281 = vmatpush1.msra.mxu0 %v504
  %2282 = vmatprep.subr.mxu0 %v509
  %2283 = vmatpush1.msra.mxu0 %v508
  %2284 = vmatprep.subr.mxu0 %v513
  %2285 = vmatpush1.msra.mxu0 %v512
  %2286 = vmatprep.subr.mxu0 %v517
  %2287 = vmatpush1.msra.mxu0 %v516
  %2288 = vmatprep.subr.mxu0 %v521
  %2289 = vmatpush1.msra.mxu0 %v520
  %2290 = vmatprep.subr.mxu0 %v525
  %2291 = vmatpush1.msra.mxu0 %v524
  %2292 = vmatprep.subr.mxu0 %v529
  %2293 = vmatpush1.msra.mxu0 %v528
  %2294 = vmatprep.subr.mxu0 %v533
  %2295 = vmatpush1.msra.mxu0 %v532
  %2296 = vmatprep.mubr.f32.mxu0 %v37
  %2297 = vmatmul.mubr.f32.gmra.mrb[0].mxu0 %v36
  %v2298 = vpop.f32.mrb[0].mxu0
  %v2299 = vadd.f32 %v2210, %v2298
  %v2300 = vpop.f32.mrb[0].mxu0
  %v2301 = vadd.f32 %v2212, %v2300
  %2302 = vmatprep.mubr.f32.mxu0 %v67
  %2303 = vmatmul.mubr.f32.gmra.mrb[0].mxu0 %v66
  %v2304 = vpop.f32.mrb[0].mxu0
  %v2305 = vadd.f32 %v2216, %v2304
  %v2306 = vpop.f32.mrb[0].mxu0
  %v2307 = vadd.f32 %v2218, %v2306
  %2308 = vmatprep.mubr.f32.mxu0 %v97
  %2309 = vmatmul.mubr.f32.gmra.mrb[0].mxu0 %v96
  %v2310 = vpop.f32.mrb[0].mxu0
  %v2311 = vadd.f32 %v2222, %v2310
  %v2312 = vpop.f32.mrb[0].mxu0
  %v2313 = vadd.f32 %v2224, %v2312
  %2314 = vmatprep.mubr.f32.mxu0 %v127
  %2315 = vmatmul.mubr.f32.gmra.mrb[0].mxu0 %v126
  %v2316 = vpop.f32.mrb[0].mxu0
  %v2317 = vadd.f32 %v2228, %v2316
  %v2318 = vpop.f32.mrb[0].mxu0
  %v2319 = vadd.f32 %v2230, %v2318
  %2320 = vdwg.mxu0
  %2321 = vmatprep.subr.mxu0 %v537
  %2322 = vmatpush1.msra.mxu0 %v536
  %2323 = vmatprep.subr.mxu0 %v541
  %2324 = vmatpush1.msra.mxu0 %v540
  %2325 = vmatprep.subr.mxu0 %v545
  %2326 = vmatpush1.msra.mxu0 %v544
  %2327 = vmatprep.subr.mxu0 %v549
  %2328 = vmatpush1.msra.mxu0 %v548
  %2329 = vmatprep.subr.mxu0 %v553
  %2330 = vmatpush1.msra.mxu0 %v552
  %2331 = vmatprep.subr.mxu0 %v557
  %2332 = vmatpush1.msra.mxu0 %v556
  %2333 = vmatprep.subr.mxu0 %v561
  %2334 = vmatpush1.msra.mxu0 %v560
  %2335 = vmatprep.subr.mxu0 %v565
  %2336 = vmatpush1.msra.mxu0 %v564
  %2337 = vmatprep.subr.mxu0 %v569
  %2338 = vmatpush1.msra.mxu0 %v568
  %2339 = vmatprep.subr.mxu0 %v573
  %2340 = vmatpush1.msra.mxu0 %v572
  %2341 = vmatprep.subr.mxu0 %v577
  %2342 = vmatpush1.msra.mxu0 %v576
  %2343 = vmatprep.subr.mxu0 %v581
  %2344 = vmatpush1.msra.mxu0 %v580
  %2345 = vmatprep.subr.mxu0 %v585
  %2346 = vmatpush1.msra.mxu0 %v584
  %2347 = vmatprep.subr.mxu0 %v589
  %2348 = vmatpush1.msra.mxu0 %v588
  %2349 = vmatprep.subr.mxu0 %v593
  %2350 = vmatpush1.msra.mxu0 %v592
  %2351 = vmatprep.subr.mxu0 %v597
  %2352 = vmatpush1.msra.mxu0 %v596
  %2353 = vmatprep.subr.mxu0 %v601
  %2354 = vmatpush1.msra.mxu0 %v600
  %2355 = vmatprep.subr.mxu0 %v605
  %2356 = vmatpush1.msra.mxu0 %v604
  %2357 = vmatprep.subr.mxu0 %v609
  %2358 = vmatpush1.msra.mxu0 %v608
  %2359 = vmatprep.subr.mxu0 %v613
  %2360 = vmatpush1.msra.mxu0 %v612
  %2361 = vmatprep.subr.mxu0 %v617
  %2362 = vmatpush1.msra.mxu0 %v616
  %2363 = vmatprep.subr.mxu0 %v621
  %2364 = vmatpush1.msra.mxu0 %v620
  %2365 = vmatprep.subr.mxu0 %v625
  %2366 = vmatpush1.msra.mxu0 %v624
  %2367 = vmatprep.subr.mxu0 %v629
  %2368 = vmatpush1.msra.mxu0 %v628
  %2369 = vmatprep.subr.mxu0 %v633
  %2370 = vmatpush1.msra.mxu0 %v632
  %2371 = vmatprep.subr.mxu0 %v637
  %2372 = vmatpush1.msra.mxu0 %v636
  %2373 = vmatprep.subr.mxu0 %v641
  %2374 = vmatpush1.msra.mxu0 %v640
  %2375 = vmatprep.subr.mxu0 %v645
  %2376 = vmatpush1.msra.mxu0 %v644
  %2377 = vmatprep.subr.mxu0 %v649
  %2378 = vmatpush1.msra.mxu0 %v648
  %2379 = vmatprep.subr.mxu0 %v653
  %2380 = vmatpush1.msra.mxu0 %v652
  %2381 = vmatprep.subr.mxu0 %v657
  %2382 = vmatpush1.msra.mxu0 %v656
  %2383 = vmatprep.subr.mxu0 %v661
  %2384 = vmatpush1.msra.mxu0 %v660
  %2385 = vmatprep.mubr.f32.mxu0 %v39
  %2386 = vmatmul.mubr.f32.gmra.mrb[0].mxu0 %v38
  %v2387 = vpop.f32.mrb[0].mxu0
  %v2388 = vadd.f32 %v2299, %v2387
  %v2389 = vpop.f32.mrb[0].mxu0
  %v2390 = vadd.f32 %v2301, %v2389
  %2391 = vmatprep.mubr.f32.mxu0 %v69
  %2392 = vmatmul.mubr.f32.gmra.mrb[0].mxu0 %v68
  %v2393 = vpop.f32.mrb[0].mxu0
  %v2394 = vadd.f32 %v2305, %v2393
  %v2395 = vpop.f32.mrb[0].mxu0
  %v2396 = vadd.f32 %v2307, %v2395
  %2397 = vmatprep.mubr.f32.mxu0 %v99
  %2398 = vmatmul.mubr.f32.gmra.mrb[0].mxu0 %v98
  %v2399 = vpop.f32.mrb[0].mxu0
  %v2400 = vadd.f32 %v2311, %v2399
  %v2401 = vpop.f32.mrb[0].mxu0
  %v2402 = vadd.f32 %v2313, %v2401
  %2403 = vmatprep.mubr.f32.mxu0 %v129
  %2404 = vmatmul.mubr.f32.gmra.mrb[0].mxu0 %v128
  %v2405 = vpop.f32.mrb[0].mxu0
  %v2406 = vadd.f32 %v2317, %v2405
  %v2407 = vpop.f32.mrb[0].mxu0
  %v2408 = vadd.f32 %v2319, %v2407
  %2409 = vdwg.mxu0
  %2410 = vmatprep.subr.mxu0 %v665
  %2411 = vmatpush1.msra.mxu0 %v664
  %2412 = vmatprep.subr.mxu0 %v669
  %2413 = vmatpush1.msra.mxu0 %v668
  %2414 = vmatprep.subr.mxu0 %v673
  %2415 = vmatpush1.msra.mxu0 %v672
  %2416 = vmatprep.subr.mxu0 %v677
  %2417 = vmatpush1.msra.mxu0 %v676
  %2418 = vmatprep.subr.mxu0 %v681
  %2419 = vmatpush1.msra.mxu0 %v680
  %2420 = vmatprep.subr.mxu0 %v685
  %2421 = vmatpush1.msra.mxu0 %v684
  %2422 = vmatprep.subr.mxu0 %v689
  %2423 = vmatpush1.msra.mxu0 %v688
  %2424 = vmatprep.subr.mxu0 %v693
  %2425 = vmatpush1.msra.mxu0 %v692
  %2426 = vmatprep.subr.mxu0 %v697
  %2427 = vmatpush1.msra.mxu0 %v696
  %2428 = vmatprep.subr.mxu0 %v701
  %2429 = vmatpush1.msra.mxu0 %v700
  %2430 = vmatprep.subr.mxu0 %v705
  %2431 = vmatpush1.msra.mxu0 %v704
  %2432 = vmatprep.subr.mxu0 %v709
  %2433 = vmatpush1.msra.mxu0 %v708
  %2434 = vmatprep.subr.mxu0 %v713
  %2435 = vmatpush1.msra.mxu0 %v712
  %2436 = vmatprep.subr.mxu0 %v717
  %2437 = vmatpush1.msra.mxu0 %v716
  %2438 = vmatprep.subr.mxu0 %v721
  %2439 = vmatpush1.msra.mxu0 %v720
  %2440 = vmatprep.subr.mxu0 %v725
  %2441 = vmatpush1.msra.mxu0 %v724
  %2442 = vmatprep.subr.mxu0 %v729
  %2443 = vmatpush1.msra.mxu0 %v728
  %2444 = vmatprep.subr.mxu0 %v733
  %2445 = vmatpush1.msra.mxu0 %v732
  %2446 = vmatprep.subr.mxu0 %v737
  %2447 = vmatpush1.msra.mxu0 %v736
  %2448 = vmatprep.subr.mxu0 %v741
  %2449 = vmatpush1.msra.mxu0 %v740
  %2450 = vmatprep.subr.mxu0 %v745
  %2451 = vmatpush1.msra.mxu0 %v744
  %2452 = vmatprep.subr.mxu0 %v749
  %2453 = vmatpush1.msra.mxu0 %v748
  %2454 = vmatprep.subr.mxu0 %v753
  %2455 = vmatpush1.msra.mxu0 %v752
  %2456 = vmatprep.subr.mxu0 %v757
  %2457 = vmatpush1.msra.mxu0 %v756
  %2458 = vmatprep.subr.mxu0 %v761
  %2459 = vmatpush1.msra.mxu0 %v760
  %2460 = vmatprep.subr.mxu0 %v765
  %2461 = vmatpush1.msra.mxu0 %v764
  %2462 = vmatprep.subr.mxu0 %v769
  %2463 = vmatpush1.msra.mxu0 %v768
  %2464 = vmatprep.subr.mxu0 %v773
  %2465 = vmatpush1.msra.mxu0 %v772
  %2466 = vmatprep.subr.mxu0 %v777
  %2467 = vmatpush1.msra.mxu0 %v776
  %2468 = vmatprep.subr.mxu0 %v781
  %2469 = vmatpush1.msra.mxu0 %v780
  %2470 = vmatprep.subr.mxu0 %v785
  %2471 = vmatpush1.msra.mxu0 %v784
  %2472 = vmatprep.subr.mxu0 %v789
  %2473 = vmatpush1.msra.mxu0 %v788
  %2474 = vmatprep.mubr.f32.mxu0 %v41
  %2475 = vmatmul.mubr.f32.gmra.mrb[0].mxu0 %v40
  %v2476 = vpop.f32.mrb[0].mxu0
  %v2477 = vadd.f32 %v2388, %v2476
  %v2478 = vpop.f32.mrb[0].mxu0
  %v2479 = vadd.f32 %v2390, %v2478
  %2480 = vmatprep.mubr.f32.mxu0 %v71
  %2481 = vmatmul.mubr.f32.gmra.mrb[0].mxu0 %v70
  %v2482 = vpop.f32.mrb[0].mxu0
  %v2483 = vadd.f32 %v2394, %v2482
  %v2484 = vpop.f32.mrb[0].mxu0
  %v2485 = vadd.f32 %v2396, %v2484
  %2486 = vmatprep.mubr.f32.mxu0 %v101
  %2487 = vmatmul.mubr.f32.gmra.mrb[0].mxu0 %v100
  %v2488 = vpop.f32.mrb[0].mxu0
  %v2489 = vadd.f32 %v2400, %v2488
  %v2490 = vpop.f32.mrb[0].mxu0
  %v2491 = vadd.f32 %v2402, %v2490
  %2492 = vmatprep.mubr.f32.mxu0 %v131
  %2493 = vmatmul.mubr.f32.gmra.mrb[0].mxu0 %v130
  %v2494 = vpop.f32.mrb[0].mxu0
  %v2495 = vadd.f32 %v2406, %v2494
  %v2496 = vpop.f32.mrb[0].mxu0
  %v2497 = vadd.f32 %v2408, %v2496
  %2498 = vdwg.mxu0
  %2499 = vmatprep.subr.mxu0 %v793
  %2500 = vmatpush1.msra.mxu0 %v792
  %2501 = vmatprep.subr.mxu0 %v797
  %2502 = vmatpush1.msra.mxu0 %v796
  %2503 = vmatprep.subr.mxu0 %v801
  %2504 = vmatpush1.msra.mxu0 %v800
  %2505 = vmatprep.subr.mxu0 %v805
  %2506 = vmatpush1.msra.mxu0 %v804
  %2507 = vmatprep.subr.mxu0 %v809
  %2508 = vmatpush1.msra.mxu0 %v808
  %2509 = vmatprep.subr.mxu0 %v813
  %2510 = vmatpush1.msra.mxu0 %v812
  %2511 = vmatprep.subr.mxu0 %v817
  %2512 = vmatpush1.msra.mxu0 %v816
  %2513 = vmatprep.subr.mxu0 %v821
  %2514 = vmatpush1.msra.mxu0 %v820
  %2515 = vmatprep.subr.mxu0 %v825
  %2516 = vmatpush1.msra.mxu0 %v824
  %2517 = vmatprep.subr.mxu0 %v829
  %2518 = vmatpush1.msra.mxu0 %v828
  %2519 = vmatprep.subr.mxu0 %v833
  %2520 = vmatpush1.msra.mxu0 %v832
  %2521 = vmatprep.subr.mxu0 %v837
  %2522 = vmatpush1.msra.mxu0 %v836
  %2523 = vmatprep.subr.mxu0 %v841
  %2524 = vmatpush1.msra.mxu0 %v840
  %2525 = vmatprep.subr.mxu0 %v845
  %2526 = vmatpush1.msra.mxu0 %v844
  %2527 = vmatprep.subr.mxu0 %v849
  %2528 = vmatpush1.msra.mxu0 %v848
  %2529 = vmatprep.subr.mxu0 %v853
  %2530 = vmatpush1.msra.mxu0 %v852
  %2531 = vmatprep.subr.mxu0 %v857
  %2532 = vmatpush1.msra.mxu0 %v856
  %2533 = vmatprep.subr.mxu0 %v861
  %2534 = vmatpush1.msra.mxu0 %v860
  %2535 = vmatprep.subr.mxu0 %v865
  %2536 = vmatpush1.msra.mxu0 %v864
  %2537 = vmatprep.subr.mxu0 %v869
  %2538 = vmatpush1.msra.mxu0 %v868
  %2539 = vmatprep.subr.mxu0 %v873
  %2540 = vmatpush1.msra.mxu0 %v872
  %2541 = vmatprep.subr.mxu0 %v877
  %2542 = vmatpush1.msra.mxu0 %v876
  %2543 = vmatprep.subr.mxu0 %v881
  %2544 = vmatpush1.msra.mxu0 %v880
  %2545 = vmatprep.subr.mxu0 %v885
  %2546 = vmatpush1.msra.mxu0 %v884
  %2547 = vmatprep.subr.mxu0 %v889
  %2548 = vmatpush1.msra.mxu0 %v888
  %2549 = vmatprep.subr.mxu0 %v893
  %2550 = vmatpush1.msra.mxu0 %v892
  %2551 = vmatprep.subr.mxu0 %v897
  %2552 = vmatpush1.msra.mxu0 %v896
  %2553 = vmatprep.subr.mxu0 %v901
  %2554 = vmatpush1.msra.mxu0 %v900
  %2555 = vmatprep.subr.mxu0 %v905
  %2556 = vmatpush1.msra.mxu0 %v904
  %2557 = vmatprep.subr.mxu0 %v909
  %2558 = vmatpush1.msra.mxu0 %v908
  %2559 = vmatprep.subr.mxu0 %v913
  %2560 = vmatpush1.msra.mxu0 %v912
  %2561 = vmatprep.subr.mxu0 %v917
  %2562 = vmatpush1.msra.mxu0 %v916
  %2563 = vmatprep.mubr.f32.mxu0 %v43
  %2564 = vmatmul.mubr.f32.gmra.mrb[0].mxu0 %v42
  %v2565 = vpop.f32.mrb[0].mxu0
  %v2566 = vadd.f32 %v2477, %v2565
  %v2567 = vpop.f32.mrb[0].mxu0
  %v2568 = vadd.f32 %v2479, %v2567
  %2569 = vmatprep.mubr.f32.mxu0 %v73
  %2570 = vmatmul.mubr.f32.gmra.mrb[0].mxu0 %v72
  %v2571 = vpop.f32.mrb[0].mxu0
  %v2572 = vadd.f32 %v2483, %v2571
  %v2573 = vpop.f32.mrb[0].mxu0
  %v2574 = vadd.f32 %v2485, %v2573
  %2575 = vmatprep.mubr.f32.mxu0 %v103
  %2576 = vmatmul.mubr.f32.gmra.mrb[0].mxu0 %v102
  %v2577 = vpop.f32.mrb[0].mxu0
  %v2578 = vadd.f32 %v2489, %v2577
  %v2579 = vpop.f32.mrb[0].mxu0
  %v2580 = vadd.f32 %v2491, %v2579
  %2581 = vmatprep.mubr.f32.mxu0 %v133
  %2582 = vmatmul.mubr.f32.gmra.mrb[0].mxu0 %v132
  %v2583 = vpop.f32.mrb[0].mxu0
  %v2584 = vadd.f32 %v2495, %v2583
  %v2585 = vpop.f32.mrb[0].mxu0
  %v2586 = vadd.f32 %v2497, %v2585
  %2587 = vdwg.mxu0
  %2588 = vmatprep.subr.mxu0 %v921
  %2589 = vmatpush1.msra.mxu0 %v920
  %2590 = vmatprep.subr.mxu0 %v925
  %2591 = vmatpush1.msra.mxu0 %v924
  %2592 = vmatprep.subr.mxu0 %v929
  %2593 = vmatpush1.msra.mxu0 %v928
  %2594 = vmatprep.subr.mxu0 %v933
  %2595 = vmatpush1.msra.mxu0 %v932
  %2596 = vmatprep.subr.mxu0 %v937
  %2597 = vmatpush1.msra.mxu0 %v936
  %2598 = vmatprep.subr.mxu0 %v941
  %2599 = vmatpush1.msra.mxu0 %v940
  %2600 = vmatprep.subr.mxu0 %v945
  %2601 = vmatpush1.msra.mxu0 %v944
  %2602 = vmatprep.subr.mxu0 %v949
  %2603 = vmatpush1.msra.mxu0 %v948
  %2604 = vmatprep.subr.mxu0 %v953
  %2605 = vmatpush1.msra.mxu0 %v952
  %2606 = vmatprep.subr.mxu0 %v957
  %2607 = vmatpush1.msra.mxu0 %v956
  %2608 = vmatprep.subr.mxu0 %v961
  %2609 = vmatpush1.msra.mxu0 %v960
  %2610 = vmatprep.subr.mxu0 %v965
  %2611 = vmatpush1.msra.mxu0 %v964
  %2612 = vmatprep.subr.mxu0 %v969
  %2613 = vmatpush1.msra.mxu0 %v968
  %2614 = vmatprep.subr.mxu0 %v973
  %2615 = vmatpush1.msra.mxu0 %v972
  %2616 = vmatprep.subr.mxu0 %v977
  %2617 = vmatpush1.msra.mxu0 %v976
  %2618 = vmatprep.subr.mxu0 %v981
  %2619 = vmatpush1.msra.mxu0 %v980
  %2620 = vmatprep.subr.mxu0 %v985
  %2621 = vmatpush1.msra.mxu0 %v984
  %2622 = vmatprep.subr.mxu0 %v989
  %2623 = vmatpush1.msra.mxu0 %v988
  %2624 = vmatprep.subr.mxu0 %v993
  %2625 = vmatpush1.msra.mxu0 %v992
  %2626 = vmatprep.subr.mxu0 %v997
  %2627 = vmatpush1.msra.mxu0 %v996
  %2628 = vmatprep.subr.mxu0 %v1001
  %2629 = vmatpush1.msra.mxu0 %v1000
  %2630 = vmatprep.subr.mxu0 %v1005
  %2631 = vmatpush1.msra.mxu0 %v1004
  %2632 = vmatprep.subr.mxu0 %v1009
  %2633 = vmatpush1.msra.mxu0 %v1008
  %2634 = vmatprep.subr.mxu0 %v1013
  %2635 = vmatpush1.msra.mxu0 %v1012
  %2636 = vmatprep.subr.mxu0 %v1017
  %2637 = vmatpush1.msra.mxu0 %v1016
  %2638 = vmatprep.subr.mxu0 %v1021
  %2639 = vmatpush1.msra.mxu0 %v1020
  %2640 = vmatprep.subr.mxu0 %v1025
  %2641 = vmatpush1.msra.mxu0 %v1024
  %2642 = vmatprep.subr.mxu0 %v1029
  %2643 = vmatpush1.msra.mxu0 %v1028
  %2644 = vmatprep.subr.mxu0 %v1033
  %2645 = vmatpush1.msra.mxu0 %v1032
  %2646 = vmatprep.subr.mxu0 %v1037
  %2647 = vmatpush1.msra.mxu0 %v1036
  %2648 = vmatprep.subr.mxu0 %v1041
  %2649 = vmatpush1.msra.mxu0 %v1040
  %2650 = vmatprep.subr.mxu0 %v1045
  %2651 = vmatpush1.msra.mxu0 %v1044
  %2652 = vmatprep.mubr.f32.mxu0 %v45
  %2653 = vmatmul.mubr.f32.gmra.mrb[0].mxu0 %v44
  %v2654 = vpop.f32.mrb[0].mxu0
  %v2655 = vadd.f32 %v2566, %v2654
  %v2656 = vpop.f32.mrb[0].mxu0
  %v2657 = vadd.f32 %v2568, %v2656
  %2658 = vmatprep.mubr.f32.mxu0 %v75
  %2659 = vmatmul.mubr.f32.gmra.mrb[0].mxu0 %v74
  %v2660 = vpop.f32.mrb[0].mxu0
  %v2661 = vadd.f32 %v2572, %v2660
  %v2662 = vpop.f32.mrb[0].mxu0
  %v2663 = vadd.f32 %v2574, %v2662
  %2664 = vmatprep.mubr.f32.mxu0 %v105
  %2665 = vmatmul.mubr.f32.gmra.mrb[0].mxu0 %v104
  %v2666 = vpop.f32.mrb[0].mxu0
  %v2667 = vadd.f32 %v2578, %v2666
  %v2668 = vpop.f32.mrb[0].mxu0
  %v2669 = vadd.f32 %v2580, %v2668
  %2670 = vmatprep.mubr.f32.mxu0 %v135
  %2671 = vmatmul.mubr.f32.gmra.mrb[0].mxu0 %v134
  %v2672 = vpop.f32.mrb[0].mxu0
  %v2673 = vadd.f32 %v2584, %v2672
  %v2674 = vpop.f32.mrb[0].mxu0
  %v2675 = vadd.f32 %v2586, %v2674
  %2676 = vdwg.mxu0
  %2677 = vmatprep.subr.mxu0 %v1049
  %2678 = vmatpush1.msra.mxu0 %v1048
  %2679 = vmatprep.subr.mxu0 %v1053
  %2680 = vmatpush1.msra.mxu0 %v1052
  %2681 = vmatprep.subr.mxu0 %v1057
  %2682 = vmatpush1.msra.mxu0 %v1056
  %2683 = vmatprep.subr.mxu0 %v1061
  %2684 = vmatpush1.msra.mxu0 %v1060
  %2685 = vmatprep.subr.mxu0 %v1065
  %2686 = vmatpush1.msra.mxu0 %v1064
  %2687 = vmatprep.subr.mxu0 %v1069
  %2688 = vmatpush1.msra.mxu0 %v1068
  %2689 = vmatprep.subr.mxu0 %v1073
  %2690 = vmatpush1.msra.mxu0 %v1072
  %2691 = vmatprep.subr.mxu0 %v1077
  %2692 = vmatpush1.msra.mxu0 %v1076
  %2693 = vmatprep.subr.mxu0 %v1081
  %2694 = vmatpush1.msra.mxu0 %v1080
  %2695 = vmatprep.subr.mxu0 %v1085
  %2696 = vmatpush1.msra.mxu0 %v1084
  %2697 = vmatprep.subr.mxu0 %v1089
  %2698 = vmatpush1.msra.mxu0 %v1088
  %2699 = vmatprep.subr.mxu0 %v1093
  %2700 = vmatpush1.msra.mxu0 %v1092
  %2701 = vmatprep.subr.mxu0 %v1097
  %2702 = vmatpush1.msra.mxu0 %v1096
  %2703 = vmatprep.subr.mxu0 %v1101
  %2704 = vmatpush1.msra.mxu0 %v1100
  %2705 = vmatprep.subr.mxu0 %v1105
  %2706 = vmatpush1.msra.mxu0 %v1104
  %2707 = vmatprep.subr.mxu0 %v1109
  %2708 = vmatpush1.msra.mxu0 %v1108
  %2709 = vmatprep.subr.mxu0 %v1113
  %2710 = vmatpush1.msra.mxu0 %v1112
  %2711 = vmatprep.subr.mxu0 %v1117
  %2712 = vmatpush1.msra.mxu0 %v1116
  %2713 = vmatprep.subr.mxu0 %v1121
  %2714 = vmatpush1.msra.mxu0 %v1120
  %2715 = vmatprep.subr.mxu0 %v1125
  %2716 = vmatpush1.msra.mxu0 %v1124
  %2717 = vmatprep.subr.mxu0 %v1129
  %2718 = vmatpush1.msra.mxu0 %v1128
  %2719 = vmatprep.subr.mxu0 %v1133
  %2720 = vmatpush1.msra.mxu0 %v1132
  %2721 = vmatprep.subr.mxu0 %v1137
  %2722 = vmatpush1.msra.mxu0 %v1136
  %2723 = vmatprep.subr.mxu0 %v1141
  %2724 = vmatpush1.msra.mxu0 %v1140
  %2725 = vmatprep.subr.mxu0 %v1145
  %2726 = vmatpush1.msra.mxu0 %v1144
  %2727 = vmatprep.subr.mxu0 %v1149
  %2728 = vmatpush1.msra.mxu0 %v1148
  %2729 = vmatprep.subr.mxu0 %v1153
  %2730 = vmatpush1.msra.mxu0 %v1152
  %2731 = vmatprep.subr.mxu0 %v1157
  %2732 = vmatpush1.msra.mxu0 %v1156
  %2733 = vmatprep.subr.mxu0 %v1161
  %2734 = vmatpush1.msra.mxu0 %v1160
  %2735 = vmatprep.subr.mxu0 %v1165
  %2736 = vmatpush1.msra.mxu0 %v1164
  %2737 = vmatprep.subr.mxu0 %v1169
  %2738 = vmatpush1.msra.mxu0 %v1168
  %2739 = vmatprep.subr.mxu0 %v1173
  %2740 = vmatpush1.msra.mxu0 %v1172
  %2741 = vmatprep.mubr.f32.mxu0 %v47
  %2742 = vmatmul.mubr.f32.gmra.mrb[0].mxu0 %v46
  %v2743 = vpop.f32.mrb[0].mxu0
  %v2744 = vadd.f32 %v2655, %v2743
  %v2745 = vpop.f32.mrb[0].mxu0
  %v2746 = vadd.f32 %v2657, %v2745
  %2747 = vmatprep.mubr.f32.mxu0 %v77
  %2748 = vmatmul.mubr.f32.gmra.mrb[0].mxu0 %v76
  %v2749 = vpop.f32.mrb[0].mxu0
  %v2750 = vadd.f32 %v2661, %v2749
  %v2751 = vpop.f32.mrb[0].mxu0
  %v2752 = vadd.f32 %v2663, %v2751
  %2753 = vmatprep.mubr.f32.mxu0 %v107
  %2754 = vmatmul.mubr.f32.gmra.mrb[0].mxu0 %v106
  %v2755 = vpop.f32.mrb[0].mxu0
  %v2756 = vadd.f32 %v2667, %v2755
  %v2757 = vpop.f32.mrb[0].mxu0
  %v2758 = vadd.f32 %v2669, %v2757
  %2759 = vmatprep.mubr.f32.mxu0 %v137
  %2760 = vmatmul.mubr.f32.gmra.mrb[0].mxu0 %v136
  %v2761 = vpop.f32.mrb[0].mxu0
  %v2762 = vadd.f32 %v2673, %v2761
  %v2763 = vpop.f32.mrb[0].mxu0
  %v2764 = vadd.f32 %v2675, %v2763
  %2765 = vdwg.mxu0
  %2766 = vmatprep.subr.mxu0 %v1177
  %2767 = vmatpush1.msra.mxu0 %v1176
  %2768 = vmatprep.subr.mxu0 %v1181
  %2769 = vmatpush1.msra.mxu0 %v1180
  %2770 = vmatprep.subr.mxu0 %v1185
  %2771 = vmatpush1.msra.mxu0 %v1184
  %2772 = vmatprep.subr.mxu0 %v1189
  %2773 = vmatpush1.msra.mxu0 %v1188
  %2774 = vmatprep.subr.mxu0 %v1193
  %2775 = vmatpush1.msra.mxu0 %v1192
  %2776 = vmatprep.subr.mxu0 %v1197
  %2777 = vmatpush1.msra.mxu0 %v1196
  %2778 = vmatprep.subr.mxu0 %v1201
  %2779 = vmatpush1.msra.mxu0 %v1200
  %2780 = vmatprep.subr.mxu0 %v1205
  %2781 = vmatpush1.msra.mxu0 %v1204
  %2782 = vmatprep.subr.mxu0 %v1209
  %2783 = vmatpush1.msra.mxu0 %v1208
  %2784 = vmatprep.subr.mxu0 %v1213
  %2785 = vmatpush1.msra.mxu0 %v1212
  %2786 = vmatprep.subr.mxu0 %v1217
  %2787 = vmatpush1.msra.mxu0 %v1216
  %2788 = vmatprep.subr.mxu0 %v1221
  %2789 = vmatpush1.msra.mxu0 %v1220
  %2790 = vmatprep.subr.mxu0 %v1225
  %2791 = vmatpush1.msra.mxu0 %v1224
  %2792 = vmatprep.subr.mxu0 %v1229
  %2793 = vmatpush1.msra.mxu0 %v1228
  %2794 = vmatprep.subr.mxu0 %v1233
  %2795 = vmatpush1.msra.mxu0 %v1232
  %2796 = vmatprep.subr.mxu0 %v1237
  %2797 = vmatpush1.msra.mxu0 %v1236
  %2798 = vmatprep.subr.mxu0 %v1241
  %2799 = vmatpush1.msra.mxu0 %v1240
  %2800 = vmatprep.subr.mxu0 %v1245
  %2801 = vmatpush1.msra.mxu0 %v1244
  %2802 = vmatprep.subr.mxu0 %v1249
  %2803 = vmatpush1.msra.mxu0 %v1248
  %2804 = vmatprep.subr.mxu0 %v1253
  %2805 = vmatpush1.msra.mxu0 %v1252
  %2806 = vmatprep.subr.mxu0 %v1257
  %2807 = vmatpush1.msra.mxu0 %v1256
  %2808 = vmatprep.subr.mxu0 %v1261
  %2809 = vmatpush1.msra.mxu0 %v1260
  %2810 = vmatprep.subr.mxu0 %v1265
  %2811 = vmatpush1.msra.mxu0 %v1264
  %2812 = vmatprep.subr.mxu0 %v1269
  %2813 = vmatpush1.msra.mxu0 %v1268
  %2814 = vmatprep.subr.mxu0 %v1273
  %2815 = vmatpush1.msra.mxu0 %v1272
  %2816 = vmatprep.subr.mxu0 %v1277
  %2817 = vmatpush1.msra.mxu0 %v1276
  %2818 = vmatprep.subr.mxu0 %v1281
  %2819 = vmatpush1.msra.mxu0 %v1280
  %2820 = vmatprep.subr.mxu0 %v1285
  %2821 = vmatpush1.msra.mxu0 %v1284
  %2822 = vmatprep.subr.mxu0 %v1289
  %2823 = vmatpush1.msra.mxu0 %v1288
  %2824 = vmatprep.subr.mxu0 %v1293
  %2825 = vmatpush1.msra.mxu0 %v1292
  %2826 = vmatprep.subr.mxu0 %v1297
  %2827 = vmatpush1.msra.mxu0 %v1296
  %2828 = vmatprep.subr.mxu0 %v1301
  %2829 = vmatpush1.msra.mxu0 %v1300
  %2830 = vmatprep.mubr.f32.mxu0 %v49
  %2831 = vmatmul.mubr.f32.gmra.mrb[0].mxu0 %v48
  %v2832 = vpop.f32.mrb[0].mxu0
  %v2833 = vadd.f32 %v2744, %v2832
  %v2834 = vpop.f32.mrb[0].mxu0
  %v2835 = vadd.f32 %v2746, %v2834
  %2836 = vmatprep.mubr.f32.mxu0 %v79
  %2837 = vmatmul.mubr.f32.gmra.mrb[0].mxu0 %v78
  %v2838 = vpop.f32.mrb[0].mxu0
  %v2839 = vadd.f32 %v2750, %v2838
  %v2840 = vpop.f32.mrb[0].mxu0
  %v2841 = vadd.f32 %v2752, %v2840
  %2842 = vmatprep.mubr.f32.mxu0 %v109
  %2843 = vmatmul.mubr.f32.gmra.mrb[0].mxu0 %v108
  %v2844 = vpop.f32.mrb[0].mxu0
  %v2845 = vadd.f32 %v2756, %v2844
  %v2846 = vpop.f32.mrb[0].mxu0
  %v2847 = vadd.f32 %v2758, %v2846
  %2848 = vmatprep.mubr.f32.mxu0 %v139
  %2849 = vmatmul.mubr.f32.gmra.mrb[0].mxu0 %v138
  %v2850 = vpop.f32.mrb[0].mxu0
  %v2851 = vadd.f32 %v2762, %v2850
  %v2852 = vpop.f32.mrb[0].mxu0
  %v2853 = vadd.f32 %v2764, %v2852
  %2854 = vdwg.mxu0
  %2855 = vmatprep.subr.mxu0 %v1305
  %2856 = vmatpush1.msra.mxu0 %v1304
  %2857 = vmatprep.subr.mxu0 %v1309
  %2858 = vmatpush1.msra.mxu0 %v1308
  %2859 = vmatprep.subr.mxu0 %v1313
  %2860 = vmatpush1.msra.mxu0 %v1312
  %2861 = vmatprep.subr.mxu0 %v1317
  %2862 = vmatpush1.msra.mxu0 %v1316
  %2863 = vmatprep.subr.mxu0 %v1321
  %2864 = vmatpush1.msra.mxu0 %v1320
  %2865 = vmatprep.subr.mxu0 %v1325
  %2866 = vmatpush1.msra.mxu0 %v1324
  %2867 = vmatprep.subr.mxu0 %v1329
  %2868 = vmatpush1.msra.mxu0 %v1328
  %2869 = vmatprep.subr.mxu0 %v1333
  %2870 = vmatpush1.msra.mxu0 %v1332
  %2871 = vmatprep.subr.mxu0 %v1337
  %2872 = vmatpush1.msra.mxu0 %v1336
  %2873 = vmatprep.subr.mxu0 %v1341
  %2874 = vmatpush1.msra.mxu0 %v1340
  %2875 = vmatprep.subr.mxu0 %v1345
  %2876 = vmatpush1.msra.mxu0 %v1344
  %2877 = vmatprep.subr.mxu0 %v1349
  %2878 = vmatpush1.msra.mxu0 %v1348
  %2879 = vmatprep.subr.mxu0 %v1353
  %2880 = vmatpush1.msra.mxu0 %v1352
  %2881 = vmatprep.subr.mxu0 %v1357
  %2882 = vmatpush1.msra.mxu0 %v1356
  %2883 = vmatprep.subr.mxu0 %v1361
  %2884 = vmatpush1.msra.mxu0 %v1360
  %2885 = vmatprep.subr.mxu0 %v1365
  %2886 = vmatpush1.msra.mxu0 %v1364
  %2887 = vmatprep.subr.mxu0 %v1369
  %2888 = vmatpush1.msra.mxu0 %v1368
  %2889 = vmatprep.subr.mxu0 %v1373
  %2890 = vmatpush1.msra.mxu0 %v1372
  %2891 = vmatprep.subr.mxu0 %v1377
  %2892 = vmatpush1.msra.mxu0 %v1376
  %2893 = vmatprep.subr.mxu0 %v1381
  %2894 = vmatpush1.msra.mxu0 %v1380
  %2895 = vmatprep.subr.mxu0 %v1385
  %2896 = vmatpush1.msra.mxu0 %v1384
  %2897 = vmatprep.subr.mxu0 %v1389
  %2898 = vmatpush1.msra.mxu0 %v1388
  %2899 = vmatprep.subr.mxu0 %v1393
  %2900 = vmatpush1.msra.mxu0 %v1392
  %2901 = vmatprep.subr.mxu0 %v1397
  %2902 = vmatpush1.msra.mxu0 %v1396
  %2903 = vmatprep.subr.mxu0 %v1401
  %2904 = vmatpush1.msra.mxu0 %v1400
  %2905 = vmatprep.subr.mxu0 %v1405
  %2906 = vmatpush1.msra.mxu0 %v1404
  %2907 = vmatprep.subr.mxu0 %v1409
  %2908 = vmatpush1.msra.mxu0 %v1408
  %2909 = vmatprep.subr.mxu0 %v1413
  %2910 = vmatpush1.msra.mxu0 %v1412
  %2911 = vmatprep.subr.mxu0 %v1417
  %2912 = vmatpush1.msra.mxu0 %v1416
  %2913 = vmatprep.subr.mxu0 %v1421
  %2914 = vmatpush1.msra.mxu0 %v1420
  %2915 = vmatprep.subr.mxu0 %v1425
  %2916 = vmatpush1.msra.mxu0 %v1424
  %2917 = vmatprep.subr.mxu0 %v1429
  %2918 = vmatpush1.msra.mxu0 %v1428
  %2919 = vmatprep.mubr.f32.mxu0 %v51
  %2920 = vmatmul.mubr.f32.gmra.mrb[0].mxu0 %v50
  %v2921 = vpop.f32.mrb[0].mxu0
  %v2922 = vadd.f32 %v2833, %v2921
  %v2923 = vpop.f32.mrb[0].mxu0
  %v2924 = vadd.f32 %v2835, %v2923
  %2925 = vmatprep.mubr.f32.mxu0 %v81
  %2926 = vmatmul.mubr.f32.gmra.mrb[0].mxu0 %v80
  %v2927 = vpop.f32.mrb[0].mxu0
  %v2928 = vadd.f32 %v2839, %v2927
  %v2929 = vpop.f32.mrb[0].mxu0
  %v2930 = vadd.f32 %v2841, %v2929
  %2931 = vmatprep.mubr.f32.mxu0 %v111
  %2932 = vmatmul.mubr.f32.gmra.mrb[0].mxu0 %v110
  %v2933 = vpop.f32.mrb[0].mxu0
  %v2934 = vadd.f32 %v2845, %v2933
  %v2935 = vpop.f32.mrb[0].mxu0
  %v2936 = vadd.f32 %v2847, %v2935
  %2937 = vmatprep.mubr.f32.mxu0 %v141
  %2938 = vmatmul.mubr.f32.gmra.mrb[0].mxu0 %v140
  %v2939 = vpop.f32.mrb[0].mxu0
  %v2940 = vadd.f32 %v2851, %v2939
  %v2941 = vpop.f32.mrb[0].mxu0
  %v2942 = vadd.f32 %v2853, %v2941
  %2943 = vdwg.mxu0
  %2944 = vmatprep.subr.mxu0 %v1433
  %2945 = vmatpush1.msra.mxu0 %v1432
  %2946 = vmatprep.subr.mxu0 %v1437
  %2947 = vmatpush1.msra.mxu0 %v1436
  %2948 = vmatprep.subr.mxu0 %v1441
  %2949 = vmatpush1.msra.mxu0 %v1440
  %2950 = vmatprep.subr.mxu0 %v1445
  %2951 = vmatpush1.msra.mxu0 %v1444
  %2952 = vmatprep.subr.mxu0 %v1449
  %2953 = vmatpush1.msra.mxu0 %v1448
  %2954 = vmatprep.subr.mxu0 %v1453
  %2955 = vmatpush1.msra.mxu0 %v1452
  %2956 = vmatprep.subr.mxu0 %v1457
  %2957 = vmatpush1.msra.mxu0 %v1456
  %2958 = vmatprep.subr.mxu0 %v1461
  %2959 = vmatpush1.msra.mxu0 %v1460
  %2960 = vmatprep.subr.mxu0 %v1465
  %2961 = vmatpush1.msra.mxu0 %v1464
  %2962 = vmatprep.subr.mxu0 %v1469
  %2963 = vmatpush1.msra.mxu0 %v1468
  %2964 = vmatprep.subr.mxu0 %v1473
  %2965 = vmatpush1.msra.mxu0 %v1472
  %2966 = vmatprep.subr.mxu0 %v1477
  %2967 = vmatpush1.msra.mxu0 %v1476
  %2968 = vmatprep.subr.mxu0 %v1481
  %2969 = vmatpush1.msra.mxu0 %v1480
  %2970 = vmatprep.subr.mxu0 %v1485
  %2971 = vmatpush1.msra.mxu0 %v1484
  %2972 = vmatprep.subr.mxu0 %v1489
  %2973 = vmatpush1.msra.mxu0 %v1488
  %2974 = vmatprep.subr.mxu0 %v1493
  %2975 = vmatpush1.msra.mxu0 %v1492
  %2976 = vmatprep.subr.mxu0 %v1497
  %2977 = vmatpush1.msra.mxu0 %v1496
  %2978 = vmatprep.subr.mxu0 %v1501
  %2979 = vmatpush1.msra.mxu0 %v1500
  %2980 = vmatprep.subr.mxu0 %v1505
  %2981 = vmatpush1.msra.mxu0 %v1504
  %2982 = vmatprep.subr.mxu0 %v1509
  %2983 = vmatpush1.msra.mxu0 %v1508
  %2984 = vmatprep.subr.mxu0 %v1513
  %2985 = vmatpush1.msra.mxu0 %v1512
  %2986 = vmatprep.subr.mxu0 %v1517
  %2987 = vmatpush1.msra.mxu0 %v1516
  %2988 = vmatprep.subr.mxu0 %v1521
  %2989 = vmatpush1.msra.mxu0 %v1520
  %2990 = vmatprep.subr.mxu0 %v1525
  %2991 = vmatpush1.msra.mxu0 %v1524
  %2992 = vmatprep.subr.mxu0 %v1529
  %2993 = vmatpush1.msra.mxu0 %v1528
  %2994 = vmatprep.subr.mxu0 %v1533
  %2995 = vmatpush1.msra.mxu0 %v1532
  %2996 = vmatprep.subr.mxu0 %v1537
  %2997 = vmatpush1.msra.mxu0 %v1536
  %2998 = vmatprep.subr.mxu0 %v1541
  %2999 = vmatpush1.msra.mxu0 %v1540
  %3000 = vmatprep.subr.mxu0 %v1545
  %3001 = vmatpush1.msra.mxu0 %v1544
  %3002 = vmatprep.subr.mxu0 %v1549
  %3003 = vmatpush1.msra.mxu0 %v1548
  %3004 = vmatprep.subr.mxu0 %v1553
  %3005 = vmatpush1.msra.mxu0 %v1552
  %3006 = vmatprep.subr.mxu0 %v1557
  %3007 = vmatpush1.msra.mxu0 %v1556
  %3008 = vmatprep.mubr.f32.mxu0 %v53
  %3009 = vmatmul.mubr.f32.gmra.mrb[0].mxu0 %v52
  %v3010 = vpop.f32.mrb[0].mxu0
  %v3011 = vadd.f32 %v2922, %v3010
  %v3012 = vpop.f32.mrb[0].mxu0
  %v3013 = vadd.f32 %v2924, %v3012
  %3014 = vmatprep.mubr.f32.mxu0 %v83
  %3015 = vmatmul.mubr.f32.gmra.mrb[0].mxu0 %v82
  %v3016 = vpop.f32.mrb[0].mxu0
  %v3017 = vadd.f32 %v2928, %v3016
  %v3018 = vpop.f32.mrb[0].mxu0
  %v3019 = vadd.f32 %v2930, %v3018
  %3020 = vmatprep.mubr.f32.mxu0 %v113
  %3021 = vmatmul.mubr.f32.gmra.mrb[0].mxu0 %v112
  %v3022 = vpop.f32.mrb[0].mxu0
  %v3023 = vadd.f32 %v2934, %v3022
  %v3024 = vpop.f32.mrb[0].mxu0
  %v3025 = vadd.f32 %v2936, %v3024
  %3026 = vmatprep.mubr.f32.mxu0 %v143
  %3027 = vmatmul.mubr.f32.gmra.mrb[0].mxu0 %v142
  %v3028 = vpop.f32.mrb[0].mxu0
  %v3029 = vadd.f32 %v2940, %v3028
  %v3030 = vpop.f32.mrb[0].mxu0
  %v3031 = vadd.f32 %v2942, %v3030
  %3032 = vdwg.mxu0
  %3033 = vmatprep.subr.mxu0 %v1561
  %3034 = vmatpush1.msra.mxu0 %v1560
  %3035 = vmatprep.subr.mxu0 %v1565
  %3036 = vmatpush1.msra.mxu0 %v1564
  %3037 = vmatprep.subr.mxu0 %v1569
  %3038 = vmatpush1.msra.mxu0 %v1568
  %3039 = vmatprep.subr.mxu0 %v1573
  %3040 = vmatpush1.msra.mxu0 %v1572
  %3041 = vmatprep.subr.mxu0 %v1577
  %3042 = vmatpush1.msra.mxu0 %v1576
  %3043 = vmatprep.subr.mxu0 %v1581
  %3044 = vmatpush1.msra.mxu0 %v1580
  %3045 = vmatprep.subr.mxu0 %v1585
  %3046 = vmatpush1.msra.mxu0 %v1584
  %3047 = vmatprep.subr.mxu0 %v1589
  %3048 = vmatpush1.msra.mxu0 %v1588
  %3049 = vmatprep.subr.mxu0 %v1593
  %3050 = vmatpush1.msra.mxu0 %v1592
  %3051 = vmatprep.subr.mxu0 %v1597
  %3052 = vmatpush1.msra.mxu0 %v1596
  %3053 = vmatprep.subr.mxu0 %v1601
  %3054 = vmatpush1.msra.mxu0 %v1600
  %3055 = vmatprep.subr.mxu0 %v1605
  %3056 = vmatpush1.msra.mxu0 %v1604
  %3057 = vmatprep.subr.mxu0 %v1609
  %3058 = vmatpush1.msra.mxu0 %v1608
  %3059 = vmatprep.subr.mxu0 %v1613
  %3060 = vmatpush1.msra.mxu0 %v1612
  %3061 = vmatprep.subr.mxu0 %v1617
  %3062 = vmatpush1.msra.mxu0 %v1616
  %3063 = vmatprep.subr.mxu0 %v1621
  %3064 = vmatpush1.msra.mxu0 %v1620
  %3065 = vmatprep.subr.mxu0 %v1625
  %3066 = vmatpush1.msra.mxu0 %v1624
  %3067 = vmatprep.subr.mxu0 %v1629
  %3068 = vmatpush1.msra.mxu0 %v1628
  %3069 = vmatprep.subr.mxu0 %v1633
  %3070 = vmatpush1.msra.mxu0 %v1632
  %3071 = vmatprep.subr.mxu0 %v1637
  %3072 = vmatpush1.msra.mxu0 %v1636
  %3073 = vmatprep.subr.mxu0 %v1641
  %3074 = vmatpush1.msra.mxu0 %v1640
  %3075 = vmatprep.subr.mxu0 %v1645
  %3076 = vmatpush1.msra.mxu0 %v1644
  %3077 = vmatprep.subr.mxu0 %v1649
  %3078 = vmatpush1.msra.mxu0 %v1648
  %3079 = vmatprep.subr.mxu0 %v1653
  %3080 = vmatpush1.msra.mxu0 %v1652
  %3081 = vmatprep.subr.mxu0 %v1657
  %3082 = vmatpush1.msra.mxu0 %v1656
  %3083 = vmatprep.subr.mxu0 %v1661
  %3084 = vmatpush1.msra.mxu0 %v1660
  %3085 = vmatprep.subr.mxu0 %v1665
  %3086 = vmatpush1.msra.mxu0 %v1664
  %3087 = vmatprep.subr.mxu0 %v1669
  %3088 = vmatpush1.msra.mxu0 %v1668
  %3089 = vmatprep.subr.mxu0 %v1673
  %3090 = vmatpush1.msra.mxu0 %v1672
  %3091 = vmatprep.subr.mxu0 %v1677
  %3092 = vmatpush1.msra.mxu0 %v1676
  %3093 = vmatprep.subr.mxu0 %v1681
  %3094 = vmatpush1.msra.mxu0 %v1680
  %3095 = vmatprep.subr.mxu0 %v1685
  %3096 = vmatpush1.msra.mxu0 %v1684
  %3097 = vmatprep.mubr.f32.mxu0 %v55
  %3098 = vmatmul.mubr.f32.gmra.mrb[0].mxu0 %v54
  %v3099 = vpop.f32.mrb[0].mxu0
  %v3100 = vadd.f32 %v3011, %v3099
  %v3101 = vpop.f32.mrb[0].mxu0
  %v3102 = vadd.f32 %v3013, %v3101
  %3103 = vmatprep.mubr.f32.mxu0 %v85
  %3104 = vmatmul.mubr.f32.gmra.mrb[0].mxu0 %v84
  %v3105 = vpop.f32.mrb[0].mxu0
  %v3106 = vadd.f32 %v3017, %v3105
  %v3107 = vpop.f32.mrb[0].mxu0
  %v3108 = vadd.f32 %v3019, %v3107
  %3109 = vmatprep.mubr.f32.mxu0 %v115
  %3110 = vmatmul.mubr.f32.gmra.mrb[0].mxu0 %v114
  %v3111 = vpop.f32.mrb[0].mxu0
  %v3112 = vadd.f32 %v3023, %v3111
  %v3113 = vpop.f32.mrb[0].mxu0
  %v3114 = vadd.f32 %v3025, %v3113
  %3115 = vmatprep.mubr.f32.mxu0 %v145
  %3116 = vmatmul.mubr.f32.gmra.mrb[0].mxu0 %v144
  %v3117 = vpop.f32.mrb[0].mxu0
  %v3118 = vadd.f32 %v3029, %v3117
  %v3119 = vpop.f32.mrb[0].mxu0
  %v3120 = vadd.f32 %v3031, %v3119
  %3121 = vdwg.mxu0
  %3122 = vmatprep.subr.mxu0 %v1689
  %3123 = vmatpush1.msra.mxu0 %v1688
  %3124 = vmatprep.subr.mxu0 %v1693
  %3125 = vmatpush1.msra.mxu0 %v1692
  %3126 = vmatprep.subr.mxu0 %v1697
  %3127 = vmatpush1.msra.mxu0 %v1696
  %3128 = vmatprep.subr.mxu0 %v1701
  %3129 = vmatpush1.msra.mxu0 %v1700
  %3130 = vmatprep.subr.mxu0 %v1705
  %3131 = vmatpush1.msra.mxu0 %v1704
  %3132 = vmatprep.subr.mxu0 %v1709
  %3133 = vmatpush1.msra.mxu0 %v1708
  %3134 = vmatprep.subr.mxu0 %v1713
  %3135 = vmatpush1.msra.mxu0 %v1712
  %3136 = vmatprep.subr.mxu0 %v1717
  %3137 = vmatpush1.msra.mxu0 %v1716
  %3138 = vmatprep.subr.mxu0 %v1721
  %3139 = vmatpush1.msra.mxu0 %v1720
  %3140 = vmatprep.subr.mxu0 %v1725
  %3141 = vmatpush1.msra.mxu0 %v1724
  %3142 = vmatprep.subr.mxu0 %v1729
  %3143 = vmatpush1.msra.mxu0 %v1728
  %3144 = vmatprep.subr.mxu0 %v1733
  %3145 = vmatpush1.msra.mxu0 %v1732
  %3146 = vmatprep.subr.mxu0 %v1737
  %3147 = vmatpush1.msra.mxu0 %v1736
  %3148 = vmatprep.subr.mxu0 %v1741
  %3149 = vmatpush1.msra.mxu0 %v1740
  %3150 = vmatprep.subr.mxu0 %v1745
  %3151 = vmatpush1.msra.mxu0 %v1744
  %3152 = vmatprep.subr.mxu0 %v1749
  %3153 = vmatpush1.msra.mxu0 %v1748
  %3154 = vmatprep.subr.mxu0 %v1753
  %3155 = vmatpush1.msra.mxu0 %v1752
  %3156 = vmatprep.subr.mxu0 %v1757
  %3157 = vmatpush1.msra.mxu0 %v1756
  %3158 = vmatprep.subr.mxu0 %v1761
  %3159 = vmatpush1.msra.mxu0 %v1760
  %3160 = vmatprep.subr.mxu0 %v1765
  %3161 = vmatpush1.msra.mxu0 %v1764
  %3162 = vmatprep.subr.mxu0 %v1769
  %3163 = vmatpush1.msra.mxu0 %v1768
  %3164 = vmatprep.subr.mxu0 %v1773
  %3165 = vmatpush1.msra.mxu0 %v1772
  %3166 = vmatprep.subr.mxu0 %v1777
  %3167 = vmatpush1.msra.mxu0 %v1776
  %3168 = vmatprep.subr.mxu0 %v1781
  %3169 = vmatpush1.msra.mxu0 %v1780
  %3170 = vmatprep.subr.mxu0 %v1785
  %3171 = vmatpush1.msra.mxu0 %v1784
  %3172 = vmatprep.subr.mxu0 %v1789
  %3173 = vmatpush1.msra.mxu0 %v1788
  %3174 = vmatprep.subr.mxu0 %v1793
  %3175 = vmatpush1.msra.mxu0 %v1792
  %3176 = vmatprep.subr.mxu0 %v1797
  %3177 = vmatpush1.msra.mxu0 %v1796
  %3178 = vmatprep.subr.mxu0 %v1801
  %3179 = vmatpush1.msra.mxu0 %v1800
  %3180 = vmatprep.subr.mxu0 %v1805
  %3181 = vmatpush1.msra.mxu0 %v1804
  %3182 = vmatprep.subr.mxu0 %v1809
  %3183 = vmatpush1.msra.mxu0 %v1808
  %3184 = vmatprep.subr.mxu0 %v1813
  %3185 = vmatpush1.msra.mxu0 %v1812
  %3186 = vmatprep.mubr.f32.mxu0 %v57
  %3187 = vmatmul.mubr.f32.gmra.mrb[0].mxu0 %v56
  %v3188 = vpop.f32.mrb[0].mxu0
  %v3189 = vadd.f32 %v3100, %v3188
  %v3190 = vpop.f32.mrb[0].mxu0
  %v3191 = vadd.f32 %v3102, %v3190
  %3192 = vmatprep.mubr.f32.mxu0 %v87
  %3193 = vmatmul.mubr.f32.gmra.mrb[0].mxu0 %v86
  %v3194 = vpop.f32.mrb[0].mxu0
  %v3195 = vadd.f32 %v3106, %v3194
  %v3196 = vpop.f32.mrb[0].mxu0
  %v3197 = vadd.f32 %v3108, %v3196
  %3198 = vmatprep.mubr.f32.mxu0 %v117
  %3199 = vmatmul.mubr.f32.gmra.mrb[0].mxu0 %v116
  %v3200 = vpop.f32.mrb[0].mxu0
  %v3201 = vadd.f32 %v3112, %v3200
  %v3202 = vpop.f32.mrb[0].mxu0
  %v3203 = vadd.f32 %v3114, %v3202
  %3204 = vmatprep.mubr.f32.mxu0 %v147
  %3205 = vmatmul.mubr.f32.gmra.mrb[0].mxu0 %v146
  %v3206 = vpop.f32.mrb[0].mxu0
  %v3207 = vadd.f32 %v3118, %v3206
  %v3208 = vpop.f32.mrb[0].mxu0
  %v3209 = vadd.f32 %v3120, %v3208
  %3210 = vdwg.mxu0
  %3211 = vmatprep.subr.mxu0 %v1817
  %3212 = vmatpush1.msra.mxu0 %v1816
  %3213 = vmatprep.subr.mxu0 %v1821
  %3214 = vmatpush1.msra.mxu0 %v1820
  %3215 = vmatprep.subr.mxu0 %v1825
  %3216 = vmatpush1.msra.mxu0 %v1824
  %3217 = vmatprep.subr.mxu0 %v1829
  %3218 = vmatpush1.msra.mxu0 %v1828
  %3219 = vmatprep.subr.mxu0 %v1833
  %3220 = vmatpush1.msra.mxu0 %v1832
  %3221 = vmatprep.subr.mxu0 %v1837
  %3222 = vmatpush1.msra.mxu0 %v1836
  %3223 = vmatprep.subr.mxu0 %v1841
  %3224 = vmatpush1.msra.mxu0 %v1840
  %3225 = vmatprep.subr.mxu0 %v1845
  %3226 = vmatpush1.msra.mxu0 %v1844
  %3227 = vmatprep.subr.mxu0 %v1849
  %3228 = vmatpush1.msra.mxu0 %v1848
  %3229 = vmatprep.subr.mxu0 %v1853
  %3230 = vmatpush1.msra.mxu0 %v1852
  %3231 = vmatprep.subr.mxu0 %v1857
  %3232 = vmatpush1.msra.mxu0 %v1856
  %3233 = vmatprep.subr.mxu0 %v1861
  %3234 = vmatpush1.msra.mxu0 %v1860
  %3235 = vmatprep.subr.mxu0 %v1865
  %3236 = vmatpush1.msra.mxu0 %v1864
  %3237 = vmatprep.subr.mxu0 %v1869
  %3238 = vmatpush1.msra.mxu0 %v1868
  %3239 = vmatprep.subr.mxu0 %v1873
  %3240 = vmatpush1.msra.mxu0 %v1872
  %3241 = vmatprep.subr.mxu0 %v1877
  %3242 = vmatpush1.msra.mxu0 %v1876
  %3243 = vmatprep.subr.mxu0 %v1881
  %3244 = vmatpush1.msra.mxu0 %v1880
  %3245 = vmatprep.subr.mxu0 %v1885
  %3246 = vmatpush1.msra.mxu0 %v1884
  %3247 = vmatprep.subr.mxu0 %v1889
  %3248 = vmatpush1.msra.mxu0 %v1888
  %3249 = vmatprep.subr.mxu0 %v1893
  %3250 = vmatpush1.msra.mxu0 %v1892
  %3251 = vmatprep.subr.mxu0 %v1897
  %3252 = vmatpush1.msra.mxu0 %v1896
  %3253 = vmatprep.subr.mxu0 %v1901
  %3254 = vmatpush1.msra.mxu0 %v1900
  %3255 = vmatprep.subr.mxu0 %v1905
  %3256 = vmatpush1.msra.mxu0 %v1904
  %3257 = vmatprep.subr.mxu0 %v1909
  %3258 = vmatpush1.msra.mxu0 %v1908
  %3259 = vmatprep.subr.mxu0 %v1913
  %3260 = vmatpush1.msra.mxu0 %v1912
  %3261 = vmatprep.subr.mxu0 %v1917
  %3262 = vmatpush1.msra.mxu0 %v1916
  %3263 = vmatprep.subr.mxu0 %v1921
  %3264 = vmatpush1.msra.mxu0 %v1920
  %3265 = vmatprep.subr.mxu0 %v1925
  %3266 = vmatpush1.msra.mxu0 %v1924
  %3267 = vmatprep.subr.mxu0 %v1929
  %3268 = vmatpush1.msra.mxu0 %v1928
  %3269 = vmatprep.subr.mxu0 %v1933
  %3270 = vmatpush1.msra.mxu0 %v1932
  %3271 = vmatprep.subr.mxu0 %v1937
  %3272 = vmatpush1.msra.mxu0 %v1936
  %3273 = vmatprep.subr.mxu0 %v1941
  %3274 = vmatpush1.msra.mxu0 %v1940
  %3275 = vmatprep.mubr.f32.mxu0 %v59
  %3276 = vmatmul.mubr.f32.gmra.mrb[0].mxu0 %v58
  %v3277 = vpop.f32.mrb[0].mxu0
  %v3278 = vadd.f32 %v3189, %v3277
  %v3279 = vpop.f32.mrb[0].mxu0
  %v3280 = vadd.f32 %v3191, %v3279
  %3281 = vmatprep.mubr.f32.mxu0 %v89
  %3282 = vmatmul.mubr.f32.gmra.mrb[0].mxu0 %v88
  %v3283 = vpop.f32.mrb[0].mxu0
  %v3284 = vadd.f32 %v3195, %v3283
  %v3285 = vpop.f32.mrb[0].mxu0
  %v3286 = vadd.f32 %v3197, %v3285
  %3287 = vmatprep.mubr.f32.mxu0 %v119
  %3288 = vmatmul.mubr.f32.gmra.mrb[0].mxu0 %v118
  %v3289 = vpop.f32.mrb[0].mxu0
  %v3290 = vadd.f32 %v3201, %v3289
  %v3291 = vpop.f32.mrb[0].mxu0
  %v3292 = vadd.f32 %v3203, %v3291
  %3293 = vmatprep.mubr.f32.mxu0 %v149
  %3294 = vmatmul.mubr.f32.gmra.mrb[0].mxu0 %v148
  %v3295 = vpop.f32.mrb[0].mxu0
  %v3296 = vadd.f32 %v3207, %v3295
  %v3297 = vpop.f32.mrb[0].mxu0
  %v3298 = vadd.f32 %v3209, %v3297
  %3299 = vdwg.mxu0
  %3300 = vmatprep.subr.mxu0 %v1945
  %3301 = vmatpush1.msra.mxu0 %v1944
  %3302 = vmatprep.subr.mxu0 %v1949
  %3303 = vmatpush1.msra.mxu0 %v1948
  %3304 = vmatprep.subr.mxu0 %v1953
  %3305 = vmatpush1.msra.mxu0 %v1952
  %3306 = vmatprep.subr.mxu0 %v1957
  %3307 = vmatpush1.msra.mxu0 %v1956
  %3308 = vmatprep.subr.mxu0 %v1961
  %3309 = vmatpush1.msra.mxu0 %v1960
  %3310 = vmatprep.subr.mxu0 %v1965
  %3311 = vmatpush1.msra.mxu0 %v1964
  %3312 = vmatprep.subr.mxu0 %v1969
  %3313 = vmatpush1.msra.mxu0 %v1968
  %3314 = vmatprep.subr.mxu0 %v1973
  %3315 = vmatpush1.msra.mxu0 %v1972
  %3316 = vmatprep.subr.mxu0 %v1977
  %3317 = vmatpush1.msra.mxu0 %v1976
  %3318 = vmatprep.subr.mxu0 %v1981
  %3319 = vmatpush1.msra.mxu0 %v1980
  %3320 = vmatprep.subr.mxu0 %v1985
  %3321 = vmatpush1.msra.mxu0 %v1984
  %3322 = vmatprep.subr.mxu0 %v1989
  %3323 = vmatpush1.msra.mxu0 %v1988
  %3324 = vmatprep.subr.mxu0 %v1993
  %3325 = vmatpush1.msra.mxu0 %v1992
  %3326 = vmatprep.subr.mxu0 %v1997
  %3327 = vmatpush1.msra.mxu0 %v1996
  %3328 = vmatprep.subr.mxu0 %v2001
  %3329 = vmatpush1.msra.mxu0 %v2000
  %3330 = vmatprep.subr.mxu0 %v2005
  %3331 = vmatpush1.msra.mxu0 %v2004
  %3332 = vmatprep.subr.mxu0 %v2009
  %3333 = vmatpush1.msra.mxu0 %v2008
  %3334 = vmatprep.subr.mxu0 %v2013
  %3335 = vmatpush1.msra.mxu0 %v2012
  %3336 = vmatprep.subr.mxu0 %v2017
  %3337 = vmatpush1.msra.mxu0 %v2016
  %3338 = vmatprep.subr.mxu0 %v2021
  %3339 = vmatpush1.msra.mxu0 %v2020
  %3340 = vmatprep.subr.mxu0 %v2046
  %3341 = vmatpush1.msra.mxu0 %v2043
  %3342 = vmatprep.subr.mxu0 0.0
  %3343 = vmatpush1.msra.mxu0 0.0
  %3344 = vmatprep.subr.mxu0 0.0
  %3345 = vmatpush1.msra.mxu0 0.0
  %3346 = vmatprep.subr.mxu0 0.0
  %3347 = vmatpush1.msra.mxu0 0.0
  %3348 = vmatprep.subr.mxu0 0.0
  %3349 = vmatpush1.msra.mxu0 0.0
  %3350 = vmatprep.subr.mxu0 0.0
  %3351 = vmatpush1.msra.mxu0 0.0
  %3352 = vmatprep.subr.mxu0 0.0
  %3353 = vmatpush1.msra.mxu0 0.0
  %3354 = vmatprep.subr.mxu0 0.0
  %3355 = vmatpush1.msra.mxu0 0.0
  %3356 = vmatprep.subr.mxu0 0.0
  %3357 = vmatpush1.msra.mxu0 0.0
  %3358 = vmatprep.subr.mxu0 0.0
  %3359 = vmatpush1.msra.mxu0 0.0
  %3360 = vmatprep.subr.mxu0 0.0
  %3361 = vmatpush1.msra.mxu0 0.0
  %3362 = vmatprep.subr.mxu0 0.0
  %3363 = vmatpush1.msra.mxu0 0.0
  %3364 = vmatprep.mubr.f32.mxu0 %v2030
  %3365 = vmatmul.mubr.f32.gmra.mrb[0].mxu0 %v60
  %v3366 = vpop.f32.mrb[0].mxu0
  %v3367 = vadd.f32 %v3278, %v3366
  %v3368 = vpop.f32.mrb[0].mxu0
  %v3369 = vadd.f32 %v3280, %v3368
  %3370 = vmatprep.mubr.f32.mxu0 %v2033
  %3371 = vmatmul.mubr.f32.gmra.mrb[0].mxu0 %v90
  %v3372 = vpop.f32.mrb[0].mxu0
  %v3373 = vadd.f32 %v3284, %v3372
  %v3374 = vpop.f32.mrb[0].mxu0
  %v3375 = vadd.f32 %v3286, %v3374
  %3376 = vmatprep.mubr.f32.mxu0 %v2036
  %3377 = vmatmul.mubr.f32.gmra.mrb[0].mxu0 %v120
  %v3378 = vpop.f32.mrb[0].mxu0
  %v3379 = vadd.f32 %v3290, %v3378
  %v3380 = vpop.f32.mrb[0].mxu0
  %v3381 = vadd.f32 %v3292, %v3380
  %3382 = vmatprep.mubr.f32.mxu0 %v2039
  %3383 = vmatmul.mubr.f32.gmra.mrb[0].mxu0 %v150
  %v3384 = vpop.f32.mrb[0].mxu0
  %v3385 = vadd.f32 %v3296, %v3384
  %v3386 = vpop.f32.mrb[0].mxu0
  %v3387 = vadd.f32 %v3298, %v3386
  %3388 = vdwg.mxu0
  %3389 = vmatprep.subr.mxu0 %v155
  %3390 = vmatpush1.msra.mxu0 %v154
  %3391 = vmatprep.subr.mxu0 %v159
  %3392 = vmatpush1.msra.mxu0 %v158
  %3393 = vmatprep.subr.mxu0 %v163
  %3394 = vmatpush1.msra.mxu0 %v162
  %3395 = vmatprep.subr.mxu0 %v167
  %3396 = vmatpush1.msra.mxu0 %v166
  %3397 = vmatprep.subr.mxu0 %v171
  %3398 = vmatpush1.msra.mxu0 %v170
  %3399 = vmatprep.subr.mxu0 %v175
  %3400 = vmatpush1.msra.mxu0 %v174
  %3401 = vmatprep.subr.mxu0 %v179
  %3402 = vmatpush1.msra.mxu0 %v178
  %3403 = vmatprep.subr.mxu0 %v183
  %3404 = vmatpush1.msra.mxu0 %v182
  %3405 = vmatprep.subr.mxu0 %v187
  %3406 = vmatpush1.msra.mxu0 %v186
  %3407 = vmatprep.subr.mxu0 %v191
  %3408 = vmatpush1.msra.mxu0 %v190
  %3409 = vmatprep.subr.mxu0 %v195
  %3410 = vmatpush1.msra.mxu0 %v194
  %3411 = vmatprep.subr.mxu0 %v199
  %3412 = vmatpush1.msra.mxu0 %v198
  %3413 = vmatprep.subr.mxu0 %v203
  %3414 = vmatpush1.msra.mxu0 %v202
  %3415 = vmatprep.subr.mxu0 %v207
  %3416 = vmatpush1.msra.mxu0 %v206
  %3417 = vmatprep.subr.mxu0 %v211
  %3418 = vmatpush1.msra.mxu0 %v210
  %3419 = vmatprep.subr.mxu0 %v215
  %3420 = vmatpush1.msra.mxu0 %v214
  %3421 = vmatprep.subr.mxu0 %v219
  %3422 = vmatpush1.msra.mxu0 %v218
  %3423 = vmatprep.subr.mxu0 %v223
  %3424 = vmatpush1.msra.mxu0 %v222
  %3425 = vmatprep.subr.mxu0 %v227
  %3426 = vmatpush1.msra.mxu0 %v226
  %3427 = vmatprep.subr.mxu0 %v231
  %3428 = vmatpush1.msra.mxu0 %v230
  %3429 = vmatprep.subr.mxu0 %v235
  %3430 = vmatpush1.msra.mxu0 %v234
  %3431 = vmatprep.subr.mxu0 %v239
  %3432 = vmatpush1.msra.mxu0 %v238
  %3433 = vmatprep.subr.mxu0 %v243
  %3434 = vmatpush1.msra.mxu0 %v242
  %3435 = vmatprep.subr.mxu0 %v247
  %3436 = vmatpush1.msra.mxu0 %v246
  %3437 = vmatprep.subr.mxu0 %v251
  %3438 = vmatpush1.msra.mxu0 %v250
  %3439 = vmatprep.subr.mxu0 %v255
  %3440 = vmatpush1.msra.mxu0 %v254
  %3441 = vmatprep.subr.mxu0 %v259
  %3442 = vmatpush1.msra.mxu0 %v258
  %3443 = vmatprep.subr.mxu0 %v263
  %3444 = vmatpush1.msra.mxu0 %v262
  %3445 = vmatprep.subr.mxu0 %v267
  %3446 = vmatpush1.msra.mxu0 %v266
  %3447 = vmatprep.subr.mxu0 %v271
  %3448 = vmatpush1.msra.mxu0 %v270
  %3449 = vmatprep.subr.mxu0 %v275
  %3450 = vmatpush1.msra.mxu0 %v274
  %3451 = vmatprep.subr.mxu0 %v279
  %3452 = vmatpush1.msra.mxu0 %v278
  %3453 = vmatprep.mubr.f32.mxu0 %v33
  %3454 = vmatmul.mubr.f32.gmra.mrb[0].mxu0 %v32
  %v3455 = vpop.f32.mrb[0].mxu0
  %v3456 = vadd.f32 0.0, %v3455
  %v3457 = vpop.f32.mrb[0].mxu0
  %v3458 = vadd.f32 0.0, %v3457
  %3459 = vmatprep.mubr.f32.mxu0 %v63
  %3460 = vmatmul.mubr.f32.gmra.mrb[0].mxu0 %v62
  %v3461 = vpop.f32.mrb[0].mxu0
  %v3462 = vadd.f32 0.0, %v3461
  %v3463 = vpop.f32.mrb[0].mxu0
  %v3464 = vadd.f32 0.0, %v3463
  %3465 = vmatprep.mubr.f32.mxu0 %v93
  %3466 = vmatmul.mubr.f32.gmra.mrb[0].mxu0 %v92
  %v3467 = vpop.f32.mrb[0].mxu0
  %v3468 = vadd.f32 0.0, %v3467
  %v3469 = vpop.f32.mrb[0].mxu0
  %v3470 = vadd.f32 0.0, %v3469
  %3471 = vmatprep.mubr.f32.mxu0 %v123
  %3472 = vmatmul.mubr.f32.gmra.mrb[0].mxu0 %v122
  %v3473 = vpop.f32.mrb[0].mxu0
  %v3474 = vadd.f32 0.0, %v3473
  %v3475 = vpop.f32.mrb[0].mxu0
  %v3476 = vadd.f32 0.0, %v3475
  %3477 = vdwg.mxu0
  %3478 = vmatprep.subr.mxu0 %v283
  %3479 = vmatpush1.msra.mxu0 %v282
  %3480 = vmatprep.subr.mxu0 %v287
  %3481 = vmatpush1.msra.mxu0 %v286
  %3482 = vmatprep.subr.mxu0 %v291
  %3483 = vmatpush1.msra.mxu0 %v290
  %3484 = vmatprep.subr.mxu0 %v295
  %3485 = vmatpush1.msra.mxu0 %v294
  %3486 = vmatprep.subr.mxu0 %v299
  %3487 = vmatpush1.msra.mxu0 %v298
  %3488 = vmatprep.subr.mxu0 %v303
  %3489 = vmatpush1.msra.mxu0 %v302
  %3490 = vmatprep.subr.mxu0 %v307
  %3491 = vmatpush1.msra.mxu0 %v306
  %3492 = vmatprep.subr.mxu0 %v311
  %3493 = vmatpush1.msra.mxu0 %v310
  %3494 = vmatprep.subr.mxu0 %v315
  %3495 = vmatpush1.msra.mxu0 %v314
  %3496 = vmatprep.subr.mxu0 %v319
  %3497 = vmatpush1.msra.mxu0 %v318
  %3498 = vmatprep.subr.mxu0 %v323
  %3499 = vmatpush1.msra.mxu0 %v322
  %3500 = vmatprep.subr.mxu0 %v327
  %3501 = vmatpush1.msra.mxu0 %v326
  %3502 = vmatprep.subr.mxu0 %v331
  %3503 = vmatpush1.msra.mxu0 %v330
  %3504 = vmatprep.subr.mxu0 %v335
  %3505 = vmatpush1.msra.mxu0 %v334
  %3506 = vmatprep.subr.mxu0 %v339
  %3507 = vmatpush1.msra.mxu0 %v338
  %3508 = vmatprep.subr.mxu0 %v343
  %3509 = vmatpush1.msra.mxu0 %v342
  %3510 = vmatprep.subr.mxu0 %v347
  %3511 = vmatpush1.msra.mxu0 %v346
  %3512 = vmatprep.subr.mxu0 %v351
  %3513 = vmatpush1.msra.mxu0 %v350
  %3514 = vmatprep.subr.mxu0 %v355
  %3515 = vmatpush1.msra.mxu0 %v354
  %3516 = vmatprep.subr.mxu0 %v359
  %3517 = vmatpush1.msra.mxu0 %v358
  %3518 = vmatprep.subr.mxu0 %v363
  %3519 = vmatpush1.msra.mxu0 %v362
  %3520 = vmatprep.subr.mxu0 %v367
  %3521 = vmatpush1.msra.mxu0 %v366
  %3522 = vmatprep.subr.mxu0 %v371
  %3523 = vmatpush1.msra.mxu0 %v370
  %3524 = vmatprep.subr.mxu0 %v375
  %3525 = vmatpush1.msra.mxu0 %v374
  %3526 = vmatprep.subr.mxu0 %v379
  %3527 = vmatpush1.msra.mxu0 %v378
  %3528 = vmatprep.subr.mxu0 %v383
  %3529 = vmatpush1.msra.mxu0 %v382
  %3530 = vmatprep.subr.mxu0 %v387
  %3531 = vmatpush1.msra.mxu0 %v386
  %3532 = vmatprep.subr.mxu0 %v391
  %3533 = vmatpush1.msra.mxu0 %v390
  %3534 = vmatprep.subr.mxu0 %v395
  %3535 = vmatpush1.msra.mxu0 %v394
  %3536 = vmatprep.subr.mxu0 %v399
  %3537 = vmatpush1.msra.mxu0 %v398
  %3538 = vmatprep.subr.mxu0 %v403
  %3539 = vmatpush1.msra.mxu0 %v402
  %3540 = vmatprep.subr.mxu0 %v407
  %3541 = vmatpush1.msra.mxu0 %v406
  %3542 = vmatprep.mubr.f32.mxu0 %v35
  %3543 = vmatmul.mubr.f32.gmra.mrb[0].mxu0 %v34
  %v3544 = vpop.f32.mrb[0].mxu0
  %v3545 = vadd.f32 %v3456, %v3544
  %v3546 = vpop.f32.mrb[0].mxu0
  %v3547 = vadd.f32 %v3458, %v3546
  %3548 = vmatprep.mubr.f32.mxu0 %v65
  %3549 = vmatmul.mubr.f32.gmra.mrb[0].mxu0 %v64
  %v3550 = vpop.f32.mrb[0].mxu0
  %v3551 = vadd.f32 %v3462, %v3550
  %v3552 = vpop.f32.mrb[0].mxu0
  %v3553 = vadd.f32 %v3464, %v3552
  %3554 = vmatprep.mubr.f32.mxu0 %v95
  %3555 = vmatmul.mubr.f32.gmra.mrb[0].mxu0 %v94
  %v3556 = vpop.f32.mrb[0].mxu0
  %v3557 = vadd.f32 %v3468, %v3556
  %v3558 = vpop.f32.mrb[0].mxu0
  %v3559 = vadd.f32 %v3470, %v3558
  %3560 = vmatprep.mubr.f32.mxu0 %v125
  %3561 = vmatmul.mubr.f32.gmra.mrb[0].mxu0 %v124
  %v3562 = vpop.f32.mrb[0].mxu0
  %v3563 = vadd.f32 %v3474, %v3562
  %v3564 = vpop.f32.mrb[0].mxu0
  %v3565 = vadd.f32 %v3476, %v3564
  %3566 = vdwg.mxu0
  %3567 = vmatprep.subr.mxu0 %v411
  %3568 = vmatpush1.msra.mxu0 %v410
  %3569 = vmatprep.subr.mxu0 %v415
  %3570 = vmatpush1.msra.mxu0 %v414
  %3571 = vmatprep.subr.mxu0 %v419
  %3572 = vmatpush1.msra.mxu0 %v418
  %3573 = vmatprep.subr.mxu0 %v423
  %3574 = vmatpush1.msra.mxu0 %v422
  %3575 = vmatprep.subr.mxu0 %v427
  %3576 = vmatpush1.msra.mxu0 %v426
  %3577 = vmatprep.subr.mxu0 %v431
  %3578 = vmatpush1.msra.mxu0 %v430
  %3579 = vmatprep.subr.mxu0 %v435
  %3580 = vmatpush1.msra.mxu0 %v434
  %3581 = vmatprep.subr.mxu0 %v439
  %3582 = vmatpush1.msra.mxu0 %v438
  %3583 = vmatprep.subr.mxu0 %v443
  %3584 = vmatpush1.msra.mxu0 %v442
  %3585 = vmatprep.subr.mxu0 %v447
  %3586 = vmatpush1.msra.mxu0 %v446
  %3587 = vmatprep.subr.mxu0 %v451
  %3588 = vmatpush1.msra.mxu0 %v450
  %3589 = vmatprep.subr.mxu0 %v455
  %3590 = vmatpush1.msra.mxu0 %v454
  %3591 = vmatprep.subr.mxu0 %v459
  %3592 = vmatpush1.msra.mxu0 %v458
  %3593 = vmatprep.subr.mxu0 %v463
  %3594 = vmatpush1.msra.mxu0 %v462
  %3595 = vmatprep.subr.mxu0 %v467
  %3596 = vmatpush1.msra.mxu0 %v466
  %3597 = vmatprep.subr.mxu0 %v471
  %3598 = vmatpush1.msra.mxu0 %v470
  %3599 = vmatprep.subr.mxu0 %v475
  %3600 = vmatpush1.msra.mxu0 %v474
  %3601 = vmatprep.subr.mxu0 %v479
  %3602 = vmatpush1.msra.mxu0 %v478
  %3603 = vmatprep.subr.mxu0 %v483
  %3604 = vmatpush1.msra.mxu0 %v482
  %3605 = vmatprep.subr.mxu0 %v487
  %3606 = vmatpush1.msra.mxu0 %v486
  %3607 = vmatprep.subr.mxu0 %v491
  %3608 = vmatpush1.msra.mxu0 %v490
  %3609 = vmatprep.subr.mxu0 %v495
  %3610 = vmatpush1.msra.mxu0 %v494
  %3611 = vmatprep.subr.mxu0 %v499
  %3612 = vmatpush1.msra.mxu0 %v498
  %3613 = vmatprep.subr.mxu0 %v503
  %3614 = vmatpush1.msra.mxu0 %v502
  %3615 = vmatprep.subr.mxu0 %v507
  %3616 = vmatpush1.msra.mxu0 %v506
  %3617 = vmatprep.subr.mxu0 %v511
  %3618 = vmatpush1.msra.mxu0 %v510
  %3619 = vmatprep.subr.mxu0 %v515
  %3620 = vmatpush1.msra.mxu0 %v514
  %3621 = vmatprep.subr.mxu0 %v519
  %3622 = vmatpush1.msra.mxu0 %v518
  %3623 = vmatprep.subr.mxu0 %v523
  %3624 = vmatpush1.msra.mxu0 %v522
  %3625 = vmatprep.subr.mxu0 %v527
  %3626 = vmatpush1.msra.mxu0 %v526
  %3627 = vmatprep.subr.mxu0 %v531
  %3628 = vmatpush1.msra.mxu0 %v530
  %3629 = vmatprep.subr.mxu0 %v535
  %3630 = vmatpush1.msra.mxu0 %v534
  %3631 = vmatprep.mubr.f32.mxu0 %v37
  %3632 = vmatmul.mubr.f32.gmra.mrb[0].mxu0 %v36
  %v3633 = vpop.f32.mrb[0].mxu0
  %v3634 = vadd.f32 %v3545, %v3633
  %v3635 = vpop.f32.mrb[0].mxu0
  %v3636 = vadd.f32 %v3547, %v3635
  %3637 = vmatprep.mubr.f32.mxu0 %v67
  %3638 = vmatmul.mubr.f32.gmra.mrb[0].mxu0 %v66
  %v3639 = vpop.f32.mrb[0].mxu0
  %v3640 = vadd.f32 %v3551, %v3639
  %v3641 = vpop.f32.mrb[0].mxu0
  %v3642 = vadd.f32 %v3553, %v3641
  %3643 = vmatprep.mubr.f32.mxu0 %v97
  %3644 = vmatmul.mubr.f32.gmra.mrb[0].mxu0 %v96
  %v3645 = vpop.f32.mrb[0].mxu0
  %v3646 = vadd.f32 %v3557, %v3645
  %v3647 = vpop.f32.mrb[0].mxu0
  %v3648 = vadd.f32 %v3559, %v3647
  %3649 = vmatprep.mubr.f32.mxu0 %v127
  %3650 = vmatmul.mubr.f32.gmra.mrb[0].mxu0 %v126
  %v3651 = vpop.f32.mrb[0].mxu0
  %v3652 = vadd.f32 %v3563, %v3651
  %v3653 = vpop.f32.mrb[0].mxu0
  %v3654 = vadd.f32 %v3565, %v3653
  %3655 = vdwg.mxu0
  %3656 = vmatprep.subr.mxu0 %v539
  %3657 = vmatpush1.msra.mxu0 %v538
  %3658 = vmatprep.subr.mxu0 %v543
  %3659 = vmatpush1.msra.mxu0 %v542
  %3660 = vmatprep.subr.mxu0 %v547
  %3661 = vmatpush1.msra.mxu0 %v546
  %3662 = vmatprep.subr.mxu0 %v551
  %3663 = vmatpush1.msra.mxu0 %v550
  %3664 = vmatprep.subr.mxu0 %v555
  %3665 = vmatpush1.msra.mxu0 %v554
  %3666 = vmatprep.subr.mxu0 %v559
  %3667 = vmatpush1.msra.mxu0 %v558
  %3668 = vmatprep.subr.mxu0 %v563
  %3669 = vmatpush1.msra.mxu0 %v562
  %3670 = vmatprep.subr.mxu0 %v567
  %3671 = vmatpush1.msra.mxu0 %v566
  %3672 = vmatprep.subr.mxu0 %v571
  %3673 = vmatpush1.msra.mxu0 %v570
  %3674 = vmatprep.subr.mxu0 %v575
  %3675 = vmatpush1.msra.mxu0 %v574
  %3676 = vmatprep.subr.mxu0 %v579
  %3677 = vmatpush1.msra.mxu0 %v578
  %3678 = vmatprep.subr.mxu0 %v583
  %3679 = vmatpush1.msra.mxu0 %v582
  %3680 = vmatprep.subr.mxu0 %v587
  %3681 = vmatpush1.msra.mxu0 %v586
  %3682 = vmatprep.subr.mxu0 %v591
  %3683 = vmatpush1.msra.mxu0 %v590
  %3684 = vmatprep.subr.mxu0 %v595
  %3685 = vmatpush1.msra.mxu0 %v594
  %3686 = vmatprep.subr.mxu0 %v599
  %3687 = vmatpush1.msra.mxu0 %v598
  %3688 = vmatprep.subr.mxu0 %v603
  %3689 = vmatpush1.msra.mxu0 %v602
  %3690 = vmatprep.subr.mxu0 %v607
  %3691 = vmatpush1.msra.mxu0 %v606
  %3692 = vmatprep.subr.mxu0 %v611
  %3693 = vmatpush1.msra.mxu0 %v610
  %3694 = vmatprep.subr.mxu0 %v615
  %3695 = vmatpush1.msra.mxu0 %v614
  %3696 = vmatprep.subr.mxu0 %v619
  %3697 = vmatpush1.msra.mxu0 %v618
  %3698 = vmatprep.subr.mxu0 %v623
  %3699 = vmatpush1.msra.mxu0 %v622
  %3700 = vmatprep.subr.mxu0 %v627
  %3701 = vmatpush1.msra.mxu0 %v626
  %3702 = vmatprep.subr.mxu0 %v631
  %3703 = vmatpush1.msra.mxu0 %v630
  %3704 = vmatprep.subr.mxu0 %v635
  %3705 = vmatpush1.msra.mxu0 %v634
  %3706 = vmatprep.subr.mxu0 %v639
  %3707 = vmatpush1.msra.mxu0 %v638
  %3708 = vmatprep.subr.mxu0 %v643
  %3709 = vmatpush1.msra.mxu0 %v642
  %3710 = vmatprep.subr.mxu0 %v647
  %3711 = vmatpush1.msra.mxu0 %v646
  %3712 = vmatprep.subr.mxu0 %v651
  %3713 = vmatpush1.msra.mxu0 %v650
  %3714 = vmatprep.subr.mxu0 %v655
  %3715 = vmatpush1.msra.mxu0 %v654
  %3716 = vmatprep.subr.mxu0 %v659
  %3717 = vmatpush1.msra.mxu0 %v658
  %3718 = vmatprep.subr.mxu0 %v663
  %3719 = vmatpush1.msra.mxu0 %v662
  %3720 = vmatprep.mubr.f32.mxu0 %v39
  %3721 = vmatmul.mubr.f32.gmra.mrb[0].mxu0 %v38
  %v3722 = vpop.f32.mrb[0].mxu0
  %v3723 = vadd.f32 %v3634, %v3722
  %v3724 = vpop.f32.mrb[0].mxu0
  %v3725 = vadd.f32 %v3636, %v3724
  %3726 = vmatprep.mubr.f32.mxu0 %v69
  %3727 = vmatmul.mubr.f32.gmra.mrb[0].mxu0 %v68
  %v3728 = vpop.f32.mrb[0].mxu0
  %v3729 = vadd.f32 %v3640, %v3728
  %v3730 = vpop.f32.mrb[0].mxu0
  %v3731 = vadd.f32 %v3642, %v3730
  %3732 = vmatprep.mubr.f32.mxu0 %v99
  %3733 = vmatmul.mubr.f32.gmra.mrb[0].mxu0 %v98
  %v3734 = vpop.f32.mrb[0].mxu0
  %v3735 = vadd.f32 %v3646, %v3734
  %v3736 = vpop.f32.mrb[0].mxu0
  %v3737 = vadd.f32 %v3648, %v3736
  %3738 = vmatprep.mubr.f32.mxu0 %v129
  %3739 = vmatmul.mubr.f32.gmra.mrb[0].mxu0 %v128
  %v3740 = vpop.f32.mrb[0].mxu0
  %v3741 = vadd.f32 %v3652, %v3740
  %v3742 = vpop.f32.mrb[0].mxu0
  %v3743 = vadd.f32 %v3654, %v3742
  %3744 = vdwg.mxu0
  %3745 = vmatprep.subr.mxu0 %v667
  %3746 = vmatpush1.msra.mxu0 %v666
  %3747 = vmatprep.subr.mxu0 %v671
  %3748 = vmatpush1.msra.mxu0 %v670
  %3749 = vmatprep.subr.mxu0 %v675
  %3750 = vmatpush1.msra.mxu0 %v674
  %3751 = vmatprep.subr.mxu0 %v679
  %3752 = vmatpush1.msra.mxu0 %v678
  %3753 = vmatprep.subr.mxu0 %v683
  %3754 = vmatpush1.msra.mxu0 %v682
  %3755 = vmatprep.subr.mxu0 %v687
  %3756 = vmatpush1.msra.mxu0 %v686
  %3757 = vmatprep.subr.mxu0 %v691
  %3758 = vmatpush1.msra.mxu0 %v690
  %3759 = vmatprep.subr.mxu0 %v695
  %3760 = vmatpush1.msra.mxu0 %v694
  %3761 = vmatprep.subr.mxu0 %v699
  %3762 = vmatpush1.msra.mxu0 %v698
  %3763 = vmatprep.subr.mxu0 %v703
  %3764 = vmatpush1.msra.mxu0 %v702
  %3765 = vmatprep.subr.mxu0 %v707
  %3766 = vmatpush1.msra.mxu0 %v706
  %3767 = vmatprep.subr.mxu0 %v711
  %3768 = vmatpush1.msra.mxu0 %v710
  %3769 = vmatprep.subr.mxu0 %v715
  %3770 = vmatpush1.msra.mxu0 %v714
  %3771 = vmatprep.subr.mxu0 %v719
  %3772 = vmatpush1.msra.mxu0 %v718
  %3773 = vmatprep.subr.mxu0 %v723
  %3774 = vmatpush1.msra.mxu0 %v722
  %3775 = vmatprep.subr.mxu0 %v727
  %3776 = vmatpush1.msra.mxu0 %v726
  %3777 = vmatprep.subr.mxu0 %v731
  %3778 = vmatpush1.msra.mxu0 %v730
  %3779 = vmatprep.subr.mxu0 %v735
  %3780 = vmatpush1.msra.mxu0 %v734
  %3781 = vmatprep.subr.mxu0 %v739
  %3782 = vmatpush1.msra.mxu0 %v738
  %3783 = vmatprep.subr.mxu0 %v743
  %3784 = vmatpush1.msra.mxu0 %v742
  %3785 = vmatprep.subr.mxu0 %v747
  %3786 = vmatpush1.msra.mxu0 %v746
  %3787 = vmatprep.subr.mxu0 %v751
  %3788 = vmatpush1.msra.mxu0 %v750
  %3789 = vmatprep.subr.mxu0 %v755
  %3790 = vmatpush1.msra.mxu0 %v754
  %3791 = vmatprep.subr.mxu0 %v759
  %3792 = vmatpush1.msra.mxu0 %v758
  %3793 = vmatprep.subr.mxu0 %v763
  %3794 = vmatpush1.msra.mxu0 %v762
  %3795 = vmatprep.subr.mxu0 %v767
  %3796 = vmatpush1.msra.mxu0 %v766
  %3797 = vmatprep.subr.mxu0 %v771
  %3798 = vmatpush1.msra.mxu0 %v770
  %3799 = vmatprep.subr.mxu0 %v775
  %3800 = vmatpush1.msra.mxu0 %v774
  %3801 = vmatprep.subr.mxu0 %v779
  %3802 = vmatpush1.msra.mxu0 %v778
  %3803 = vmatprep.subr.mxu0 %v783
  %3804 = vmatpush1.msra.mxu0 %v782
  %3805 = vmatprep.subr.mxu0 %v787
  %3806 = vmatpush1.msra.mxu0 %v786
  %3807 = vmatprep.subr.mxu0 %v791
  %3808 = vmatpush1.msra.mxu0 %v790
  %3809 = vmatprep.mubr.f32.mxu0 %v41
  %3810 = vmatmul.mubr.f32.gmra.mrb[0].mxu0 %v40
  %v3811 = vpop.f32.mrb[0].mxu0
  %v3812 = vadd.f32 %v3723, %v3811
  %v3813 = vpop.f32.mrb[0].mxu0
  %v3814 = vadd.f32 %v3725, %v3813
  %3815 = vmatprep.mubr.f32.mxu0 %v71
  %3816 = vmatmul.mubr.f32.gmra.mrb[0].mxu0 %v70
  %v3817 = vpop.f32.mrb[0].mxu0
  %v3818 = vadd.f32 %v3729, %v3817
  %v3819 = vpop.f32.mrb[0].mxu0
  %v3820 = vadd.f32 %v3731, %v3819
  %3821 = vmatprep.mubr.f32.mxu0 %v101
  %3822 = vmatmul.mubr.f32.gmra.mrb[0].mxu0 %v100
  %v3823 = vpop.f32.mrb[0].mxu0
  %v3824 = vadd.f32 %v3735, %v3823
  %v3825 = vpop.f32.mrb[0].mxu0
  %v3826 = vadd.f32 %v3737, %v3825
  %3827 = vmatprep.mubr.f32.mxu0 %v131
  %3828 = vmatmul.mubr.f32.gmra.mrb[0].mxu0 %v130
  %v3829 = vpop.f32.mrb[0].mxu0
  %v3830 = vadd.f32 %v3741, %v3829
  %v3831 = vpop.f32.mrb[0].mxu0
  %v3832 = vadd.f32 %v3743, %v3831
  %3833 = vdwg.mxu0
  %3834 = vmatprep.subr.mxu0 %v795
  %3835 = vmatpush1.msra.mxu0 %v794
  %3836 = vmatprep.subr.mxu0 %v799
  %3837 = vmatpush1.msra.mxu0 %v798
  %3838 = vmatprep.subr.mxu0 %v803
  %3839 = vmatpush1.msra.mxu0 %v802
  %3840 = vmatprep.subr.mxu0 %v807
  %3841 = vmatpush1.msra.mxu0 %v806
  %3842 = vmatprep.subr.mxu0 %v811
  %3843 = vmatpush1.msra.mxu0 %v810
  %3844 = vmatprep.subr.mxu0 %v815
  %3845 = vmatpush1.msra.mxu0 %v814
  %3846 = vmatprep.subr.mxu0 %v819
  %3847 = vmatpush1.msra.mxu0 %v818
  %3848 = vmatprep.subr.mxu0 %v823
  %3849 = vmatpush1.msra.mxu0 %v822
  %3850 = vmatprep.subr.mxu0 %v827
  %3851 = vmatpush1.msra.mxu0 %v826
  %3852 = vmatprep.subr.mxu0 %v831
  %3853 = vmatpush1.msra.mxu0 %v830
  %3854 = vmatprep.subr.mxu0 %v835
  %3855 = vmatpush1.msra.mxu0 %v834
  %3856 = vmatprep.subr.mxu0 %v839
  %3857 = vmatpush1.msra.mxu0 %v838
  %3858 = vmatprep.subr.mxu0 %v843
  %3859 = vmatpush1.msra.mxu0 %v842
  %3860 = vmatprep.subr.mxu0 %v847
  %3861 = vmatpush1.msra.mxu0 %v846
  %3862 = vmatprep.subr.mxu0 %v851
  %3863 = vmatpush1.msra.mxu0 %v850
  %3864 = vmatprep.subr.mxu0 %v855
  %3865 = vmatpush1.msra.mxu0 %v854
  %3866 = vmatprep.subr.mxu0 %v859
  %3867 = vmatpush1.msra.mxu0 %v858
  %3868 = vmatprep.subr.mxu0 %v863
  %3869 = vmatpush1.msra.mxu0 %v862
  %3870 = vmatprep.subr.mxu0 %v867
  %3871 = vmatpush1.msra.mxu0 %v866
  %3872 = vmatprep.subr.mxu0 %v871
  %3873 = vmatpush1.msra.mxu0 %v870
  %3874 = vmatprep.subr.mxu0 %v875
  %3875 = vmatpush1.msra.mxu0 %v874
  %3876 = vmatprep.subr.mxu0 %v879
  %3877 = vmatpush1.msra.mxu0 %v878
  %3878 = vmatprep.subr.mxu0 %v883
  %3879 = vmatpush1.msra.mxu0 %v882
  %3880 = vmatprep.subr.mxu0 %v887
  %3881 = vmatpush1.msra.mxu0 %v886
  %3882 = vmatprep.subr.mxu0 %v891
  %3883 = vmatpush1.msra.mxu0 %v890
  %3884 = vmatprep.subr.mxu0 %v895
  %3885 = vmatpush1.msra.mxu0 %v894
  %3886 = vmatprep.subr.mxu0 %v899
  %3887 = vmatpush1.msra.mxu0 %v898
  %3888 = vmatprep.subr.mxu0 %v903
  %3889 = vmatpush1.msra.mxu0 %v902
  %3890 = vmatprep.subr.mxu0 %v907
  %3891 = vmatpush1.msra.mxu0 %v906
  %3892 = vmatprep.subr.mxu0 %v911
  %3893 = vmatpush1.msra.mxu0 %v910
  %3894 = vmatprep.subr.mxu0 %v915
  %3895 = vmatpush1.msra.mxu0 %v914
  %3896 = vmatprep.subr.mxu0 %v919
  %3897 = vmatpush1.msra.mxu0 %v918
  %3898 = vmatprep.mubr.f32.mxu0 %v43
  %3899 = vmatmul.mubr.f32.gmra.mrb[0].mxu0 %v42
  %v3900 = vpop.f32.mrb[0].mxu0
  %v3901 = vadd.f32 %v3812, %v3900
  %v3902 = vpop.f32.mrb[0].mxu0
  %v3903 = vadd.f32 %v3814, %v3902
  %3904 = vmatprep.mubr.f32.mxu0 %v73
  %3905 = vmatmul.mubr.f32.gmra.mrb[0].mxu0 %v72
  %v3906 = vpop.f32.mrb[0].mxu0
  %v3907 = vadd.f32 %v3818, %v3906
  %v3908 = vpop.f32.mrb[0].mxu0
  %v3909 = vadd.f32 %v3820, %v3908
  %3910 = vmatprep.mubr.f32.mxu0 %v103
  %3911 = vmatmul.mubr.f32.gmra.mrb[0].mxu0 %v102
  %v3912 = vpop.f32.mrb[0].mxu0
  %v3913 = vadd.f32 %v3824, %v3912
  %v3914 = vpop.f32.mrb[0].mxu0
  %v3915 = vadd.f32 %v3826, %v3914
  %3916 = vmatprep.mubr.f32.mxu0 %v133
  %3917 = vmatmul.mubr.f32.gmra.mrb[0].mxu0 %v132
  %v3918 = vpop.f32.mrb[0].mxu0
  %v3919 = vadd.f32 %v3830, %v3918
  %v3920 = vpop.f32.mrb[0].mxu0
  %v3921 = vadd.f32 %v3832, %v3920
  %3922 = vdwg.mxu0
  %3923 = vmatprep.subr.mxu0 %v923
  %3924 = vmatpush1.msra.mxu0 %v922
  %3925 = vmatprep.subr.mxu0 %v927
  %3926 = vmatpush1.msra.mxu0 %v926
  %3927 = vmatprep.subr.mxu0 %v931
  %3928 = vmatpush1.msra.mxu0 %v930
  %3929 = vmatprep.subr.mxu0 %v935
  %3930 = vmatpush1.msra.mxu0 %v934
  %3931 = vmatprep.subr.mxu0 %v939
  %3932 = vmatpush1.msra.mxu0 %v938
  %3933 = vmatprep.subr.mxu0 %v943
  %3934 = vmatpush1.msra.mxu0 %v942
  %3935 = vmatprep.subr.mxu0 %v947
  %3936 = vmatpush1.msra.mxu0 %v946
  %3937 = vmatprep.subr.mxu0 %v951
  %3938 = vmatpush1.msra.mxu0 %v950
  %3939 = vmatprep.subr.mxu0 %v955
  %3940 = vmatpush1.msra.mxu0 %v954
  %3941 = vmatprep.subr.mxu0 %v959
  %3942 = vmatpush1.msra.mxu0 %v958
  %3943 = vmatprep.subr.mxu0 %v963
  %3944 = vmatpush1.msra.mxu0 %v962
  %3945 = vmatprep.subr.mxu0 %v967
  %3946 = vmatpush1.msra.mxu0 %v966
  %3947 = vmatprep.subr.mxu0 %v971
  %3948 = vmatpush1.msra.mxu0 %v970
  %3949 = vmatprep.subr.mxu0 %v975
  %3950 = vmatpush1.msra.mxu0 %v974
  %3951 = vmatprep.subr.mxu0 %v979
  %3952 = vmatpush1.msra.mxu0 %v978
  %3953 = vmatprep.subr.mxu0 %v983
  %3954 = vmatpush1.msra.mxu0 %v982
  %3955 = vmatprep.subr.mxu0 %v987
  %3956 = vmatpush1.msra.mxu0 %v986
  %3957 = vmatprep.subr.mxu0 %v991
  %3958 = vmatpush1.msra.mxu0 %v990
  %3959 = vmatprep.subr.mxu0 %v995
  %3960 = vmatpush1.msra.mxu0 %v994
  %3961 = vmatprep.subr.mxu0 %v999
  %3962 = vmatpush1.msra.mxu0 %v998
  %3963 = vmatprep.subr.mxu0 %v1003
  %3964 = vmatpush1.msra.mxu0 %v1002
  %3965 = vmatprep.subr.mxu0 %v1007
  %3966 = vmatpush1.msra.mxu0 %v1006
  %3967 = vmatprep.subr.mxu0 %v1011
  %3968 = vmatpush1.msra.mxu0 %v1010
  %3969 = vmatprep.subr.mxu0 %v1015
  %3970 = vmatpush1.msra.mxu0 %v1014
  %3971 = vmatprep.subr.mxu0 %v1019
  %3972 = vmatpush1.msra.mxu0 %v1018
  %3973 = vmatprep.subr.mxu0 %v1023
  %3974 = vmatpush1.msra.mxu0 %v1022
  %3975 = vmatprep.subr.mxu0 %v1027
  %3976 = vmatpush1.msra.mxu0 %v1026
  %3977 = vmatprep.subr.mxu0 %v1031
  %3978 = vmatpush1.msra.mxu0 %v1030
  %3979 = vmatprep.subr.mxu0 %v1035
  %3980 = vmatpush1.msra.mxu0 %v1034
  %3981 = vmatprep.subr.mxu0 %v1039
  %3982 = vmatpush1.msra.mxu0 %v1038
  %3983 = vmatprep.subr.mxu0 %v1043
  %3984 = vmatpush1.msra.mxu0 %v1042
  %3985 = vmatprep.subr.mxu0 %v1047
  %3986 = vmatpush1.msra.mxu0 %v1046
  %3987 = vmatprep.mubr.f32.mxu0 %v45
  %3988 = vmatmul.mubr.f32.gmra.mrb[0].mxu0 %v44
  %v3989 = vpop.f32.mrb[0].mxu0
  %v3990 = vadd.f32 %v3901, %v3989
  %v3991 = vpop.f32.mrb[0].mxu0
  %v3992 = vadd.f32 %v3903, %v3991
  %3993 = vmatprep.mubr.f32.mxu0 %v75
  %3994 = vmatmul.mubr.f32.gmra.mrb[0].mxu0 %v74
  %v3995 = vpop.f32.mrb[0].mxu0
  %v3996 = vadd.f32 %v3907, %v3995
  %v3997 = vpop.f32.mrb[0].mxu0
  %v3998 = vadd.f32 %v3909, %v3997
  %3999 = vmatprep.mubr.f32.mxu0 %v105
  %4000 = vmatmul.mubr.f32.gmra.mrb[0].mxu0 %v104
  %v4001 = vpop.f32.mrb[0].mxu0
  %v4002 = vadd.f32 %v3913, %v4001
  %v4003 = vpop.f32.mrb[0].mxu0
  %v4004 = vadd.f32 %v3915, %v4003
  %4005 = vmatprep.mubr.f32.mxu0 %v135
  %4006 = vmatmul.mubr.f32.gmra.mrb[0].mxu0 %v134
  %v4007 = vpop.f32.mrb[0].mxu0
  %v4008 = vadd.f32 %v3919, %v4007
  %v4009 = vpop.f32.mrb[0].mxu0
  %v4010 = vadd.f32 %v3921, %v4009
  %4011 = vdwg.mxu0
  %4012 = vmatprep.subr.mxu0 %v1051
  %4013 = vmatpush1.msra.mxu0 %v1050
  %4014 = vmatprep.subr.mxu0 %v1055
  %4015 = vmatpush1.msra.mxu0 %v1054
  %4016 = vmatprep.subr.mxu0 %v1059
  %4017 = vmatpush1.msra.mxu0 %v1058
  %4018 = vmatprep.subr.mxu0 %v1063
  %4019 = vmatpush1.msra.mxu0 %v1062
  %4020 = vmatprep.subr.mxu0 %v1067
  %4021 = vmatpush1.msra.mxu0 %v1066
  %4022 = vmatprep.subr.mxu0 %v1071
  %4023 = vmatpush1.msra.mxu0 %v1070
  %4024 = vmatprep.subr.mxu0 %v1075
  %4025 = vmatpush1.msra.mxu0 %v1074
  %4026 = vmatprep.subr.mxu0 %v1079
  %4027 = vmatpush1.msra.mxu0 %v1078
  %4028 = vmatprep.subr.mxu0 %v1083
  %4029 = vmatpush1.msra.mxu0 %v1082
  %4030 = vmatprep.subr.mxu0 %v1087
  %4031 = vmatpush1.msra.mxu0 %v1086
  %4032 = vmatprep.subr.mxu0 %v1091
  %4033 = vmatpush1.msra.mxu0 %v1090
  %4034 = vmatprep.subr.mxu0 %v1095
  %4035 = vmatpush1.msra.mxu0 %v1094
  %4036 = vmatprep.subr.mxu0 %v1099
  %4037 = vmatpush1.msra.mxu0 %v1098
  %4038 = vmatprep.subr.mxu0 %v1103
  %4039 = vmatpush1.msra.mxu0 %v1102
  %4040 = vmatprep.subr.mxu0 %v1107
  %4041 = vmatpush1.msra.mxu0 %v1106
  %4042 = vmatprep.subr.mxu0 %v1111
  %4043 = vmatpush1.msra.mxu0 %v1110
  %4044 = vmatprep.subr.mxu0 %v1115
  %4045 = vmatpush1.msra.mxu0 %v1114
  %4046 = vmatprep.subr.mxu0 %v1119
  %4047 = vmatpush1.msra.mxu0 %v1118
  %4048 = vmatprep.subr.mxu0 %v1123
  %4049 = vmatpush1.msra.mxu0 %v1122
  %4050 = vmatprep.subr.mxu0 %v1127
  %4051 = vmatpush1.msra.mxu0 %v1126
  %4052 = vmatprep.subr.mxu0 %v1131
  %4053 = vmatpush1.msra.mxu0 %v1130
  %4054 = vmatprep.subr.mxu0 %v1135
  %4055 = vmatpush1.msra.mxu0 %v1134
  %4056 = vmatprep.subr.mxu0 %v1139
  %4057 = vmatpush1.msra.mxu0 %v1138
  %4058 = vmatprep.subr.mxu0 %v1143
  %4059 = vmatpush1.msra.mxu0 %v1142
  %4060 = vmatprep.subr.mxu0 %v1147
  %4061 = vmatpush1.msra.mxu0 %v1146
  %4062 = vmatprep.subr.mxu0 %v1151
  %4063 = vmatpush1.msra.mxu0 %v1150
  %4064 = vmatprep.subr.mxu0 %v1155
  %4065 = vmatpush1.msra.mxu0 %v1154
  %4066 = vmatprep.subr.mxu0 %v1159
  %4067 = vmatpush1.msra.mxu0 %v1158
  %4068 = vmatprep.subr.mxu0 %v1163
  %4069 = vmatpush1.msra.mxu0 %v1162
  %4070 = vmatprep.subr.mxu0 %v1167
  %4071 = vmatpush1.msra.mxu0 %v1166
  %4072 = vmatprep.subr.mxu0 %v1171
  %4073 = vmatpush1.msra.mxu0 %v1170
  %4074 = vmatprep.subr.mxu0 %v1175
  %4075 = vmatpush1.msra.mxu0 %v1174
  %4076 = vmatprep.mubr.f32.mxu0 %v47
  %4077 = vmatmul.mubr.f32.gmra.mrb[0].mxu0 %v46
  %v4078 = vpop.f32.mrb[0].mxu0
  %v4079 = vadd.f32 %v3990, %v4078
  %v4080 = vpop.f32.mrb[0].mxu0
  %v4081 = vadd.f32 %v3992, %v4080
  %4082 = vmatprep.mubr.f32.mxu0 %v77
  %4083 = vmatmul.mubr.f32.gmra.mrb[0].mxu0 %v76
  %v4084 = vpop.f32.mrb[0].mxu0
  %v4085 = vadd.f32 %v3996, %v4084
  %v4086 = vpop.f32.mrb[0].mxu0
  %v4087 = vadd.f32 %v3998, %v4086
  %4088 = vmatprep.mubr.f32.mxu0 %v107
  %4089 = vmatmul.mubr.f32.gmra.mrb[0].mxu0 %v106
  %v4090 = vpop.f32.mrb[0].mxu0
  %v4091 = vadd.f32 %v4002, %v4090
  %v4092 = vpop.f32.mrb[0].mxu0
  %v4093 = vadd.f32 %v4004, %v4092
  %4094 = vmatprep.mubr.f32.mxu0 %v137
  %4095 = vmatmul.mubr.f32.gmra.mrb[0].mxu0 %v136
  %v4096 = vpop.f32.mrb[0].mxu0
  %v4097 = vadd.f32 %v4008, %v4096
  %v4098 = vpop.f32.mrb[0].mxu0
  %v4099 = vadd.f32 %v4010, %v4098
  %4100 = vdwg.mxu0
  %4101 = vmatprep.subr.mxu0 %v1179
  %4102 = vmatpush1.msra.mxu0 %v1178
  %4103 = vmatprep.subr.mxu0 %v1183
  %4104 = vmatpush1.msra.mxu0 %v1182
  %4105 = vmatprep.subr.mxu0 %v1187
  %4106 = vmatpush1.msra.mxu0 %v1186
  %4107 = vmatprep.subr.mxu0 %v1191
  %4108 = vmatpush1.msra.mxu0 %v1190
  %4109 = vmatprep.subr.mxu0 %v1195
  %4110 = vmatpush1.msra.mxu0 %v1194
  %4111 = vmatprep.subr.mxu0 %v1199
  %4112 = vmatpush1.msra.mxu0 %v1198
  %4113 = vmatprep.subr.mxu0 %v1203
  %4114 = vmatpush1.msra.mxu0 %v1202
  %4115 = vmatprep.subr.mxu0 %v1207
  %4116 = vmatpush1.msra.mxu0 %v1206
  %4117 = vmatprep.subr.mxu0 %v1211
  %4118 = vmatpush1.msra.mxu0 %v1210
  %4119 = vmatprep.subr.mxu0 %v1215
  %4120 = vmatpush1.msra.mxu0 %v1214
  %4121 = vmatprep.subr.mxu0 %v1219
  %4122 = vmatpush1.msra.mxu0 %v1218
  %4123 = vmatprep.subr.mxu0 %v1223
  %4124 = vmatpush1.msra.mxu0 %v1222
  %4125 = vmatprep.subr.mxu0 %v1227
  %4126 = vmatpush1.msra.mxu0 %v1226
  %4127 = vmatprep.subr.mxu0 %v1231
  %4128 = vmatpush1.msra.mxu0 %v1230
  %4129 = vmatprep.subr.mxu0 %v1235
  %4130 = vmatpush1.msra.mxu0 %v1234
  %4131 = vmatprep.subr.mxu0 %v1239
  %4132 = vmatpush1.msra.mxu0 %v1238
  %4133 = vmatprep.subr.mxu0 %v1243
  %4134 = vmatpush1.msra.mxu0 %v1242
  %4135 = vmatprep.subr.mxu0 %v1247
  %4136 = vmatpush1.msra.mxu0 %v1246
  %4137 = vmatprep.subr.mxu0 %v1251
  %4138 = vmatpush1.msra.mxu0 %v1250
  %4139 = vmatprep.subr.mxu0 %v1255
  %4140 = vmatpush1.msra.mxu0 %v1254
  %4141 = vmatprep.subr.mxu0 %v1259
  %4142 = vmatpush1.msra.mxu0 %v1258
  %4143 = vmatprep.subr.mxu0 %v1263
  %4144 = vmatpush1.msra.mxu0 %v1262
  %4145 = vmatprep.subr.mxu0 %v1267
  %4146 = vmatpush1.msra.mxu0 %v1266
  %4147 = vmatprep.subr.mxu0 %v1271
  %4148 = vmatpush1.msra.mxu0 %v1270
  %4149 = vmatprep.subr.mxu0 %v1275
  %4150 = vmatpush1.msra.mxu0 %v1274
  %4151 = vmatprep.subr.mxu0 %v1279
  %4152 = vmatpush1.msra.mxu0 %v1278
  %4153 = vmatprep.subr.mxu0 %v1283
  %4154 = vmatpush1.msra.mxu0 %v1282
  %4155 = vmatprep.subr.mxu0 %v1287
  %4156 = vmatpush1.msra.mxu0 %v1286
  %4157 = vmatprep.subr.mxu0 %v1291
  %4158 = vmatpush1.msra.mxu0 %v1290
  %4159 = vmatprep.subr.mxu0 %v1295
  %4160 = vmatpush1.msra.mxu0 %v1294
  %4161 = vmatprep.subr.mxu0 %v1299
  %4162 = vmatpush1.msra.mxu0 %v1298
  %4163 = vmatprep.subr.mxu0 %v1303
  %4164 = vmatpush1.msra.mxu0 %v1302
  %4165 = vmatprep.mubr.f32.mxu0 %v49
  %4166 = vmatmul.mubr.f32.gmra.mrb[0].mxu0 %v48
  %v4167 = vpop.f32.mrb[0].mxu0
  %v4168 = vadd.f32 %v4079, %v4167
  %v4169 = vpop.f32.mrb[0].mxu0
  %v4170 = vadd.f32 %v4081, %v4169
  %4171 = vmatprep.mubr.f32.mxu0 %v79
  %4172 = vmatmul.mubr.f32.gmra.mrb[0].mxu0 %v78
  %v4173 = vpop.f32.mrb[0].mxu0
  %v4174 = vadd.f32 %v4085, %v4173
  %v4175 = vpop.f32.mrb[0].mxu0
  %v4176 = vadd.f32 %v4087, %v4175
  %4177 = vmatprep.mubr.f32.mxu0 %v109
  %4178 = vmatmul.mubr.f32.gmra.mrb[0].mxu0 %v108
  %v4179 = vpop.f32.mrb[0].mxu0
  %v4180 = vadd.f32 %v4091, %v4179
  %v4181 = vpop.f32.mrb[0].mxu0
  %v4182 = vadd.f32 %v4093, %v4181
  %4183 = vmatprep.mubr.f32.mxu0 %v139
  %4184 = vmatmul.mubr.f32.gmra.mrb[0].mxu0 %v138
  %v4185 = vpop.f32.mrb[0].mxu0
  %v4186 = vadd.f32 %v4097, %v4185
  %v4187 = vpop.f32.mrb[0].mxu0
  %v4188 = vadd.f32 %v4099, %v4187
  %4189 = vdwg.mxu0
  %4190 = vmatprep.subr.mxu0 %v1307
  %4191 = vmatpush1.msra.mxu0 %v1306
  %4192 = vmatprep.subr.mxu0 %v1311
  %4193 = vmatpush1.msra.mxu0 %v1310
  %4194 = vmatprep.subr.mxu0 %v1315
  %4195 = vmatpush1.msra.mxu0 %v1314
  %4196 = vmatprep.subr.mxu0 %v1319
  %4197 = vmatpush1.msra.mxu0 %v1318
  %4198 = vmatprep.subr.mxu0 %v1323
  %4199 = vmatpush1.msra.mxu0 %v1322
  %4200 = vmatprep.subr.mxu0 %v1327
  %4201 = vmatpush1.msra.mxu0 %v1326
  %4202 = vmatprep.subr.mxu0 %v1331
  %4203 = vmatpush1.msra.mxu0 %v1330
  %4204 = vmatprep.subr.mxu0 %v1335
  %4205 = vmatpush1.msra.mxu0 %v1334
  %4206 = vmatprep.subr.mxu0 %v1339
  %4207 = vmatpush1.msra.mxu0 %v1338
  %4208 = vmatprep.subr.mxu0 %v1343
  %4209 = vmatpush1.msra.mxu0 %v1342
  %4210 = vmatprep.subr.mxu0 %v1347
  %4211 = vmatpush1.msra.mxu0 %v1346
  %4212 = vmatprep.subr.mxu0 %v1351
  %4213 = vmatpush1.msra.mxu0 %v1350
  %4214 = vmatprep.subr.mxu0 %v1355
  %4215 = vmatpush1.msra.mxu0 %v1354
  %4216 = vmatprep.subr.mxu0 %v1359
  %4217 = vmatpush1.msra.mxu0 %v1358
  %4218 = vmatprep.subr.mxu0 %v1363
  %4219 = vmatpush1.msra.mxu0 %v1362
  %4220 = vmatprep.subr.mxu0 %v1367
  %4221 = vmatpush1.msra.mxu0 %v1366
  %4222 = vmatprep.subr.mxu0 %v1371
  %4223 = vmatpush1.msra.mxu0 %v1370
  %4224 = vmatprep.subr.mxu0 %v1375
  %4225 = vmatpush1.msra.mxu0 %v1374
  %4226 = vmatprep.subr.mxu0 %v1379
  %4227 = vmatpush1.msra.mxu0 %v1378
  %4228 = vmatprep.subr.mxu0 %v1383
  %4229 = vmatpush1.msra.mxu0 %v1382
  %4230 = vmatprep.subr.mxu0 %v1387
  %4231 = vmatpush1.msra.mxu0 %v1386
  %4232 = vmatprep.subr.mxu0 %v1391
  %4233 = vmatpush1.msra.mxu0 %v1390
  %4234 = vmatprep.subr.mxu0 %v1395
  %4235 = vmatpush1.msra.mxu0 %v1394
  %4236 = vmatprep.subr.mxu0 %v1399
  %4237 = vmatpush1.msra.mxu0 %v1398
  %4238 = vmatprep.subr.mxu0 %v1403
  %4239 = vmatpush1.msra.mxu0 %v1402
  %4240 = vmatprep.subr.mxu0 %v1407
  %4241 = vmatpush1.msra.mxu0 %v1406
  %4242 = vmatprep.subr.mxu0 %v1411
  %4243 = vmatpush1.msra.mxu0 %v1410
  %4244 = vmatprep.subr.mxu0 %v1415
  %4245 = vmatpush1.msra.mxu0 %v1414
  %4246 = vmatprep.subr.mxu0 %v1419
  %4247 = vmatpush1.msra.mxu0 %v1418
  %4248 = vmatprep.subr.mxu0 %v1423
  %4249 = vmatpush1.msra.mxu0 %v1422
  %4250 = vmatprep.subr.mxu0 %v1427
  %4251 = vmatpush1.msra.mxu0 %v1426
  %4252 = vmatprep.subr.mxu0 %v1431
  %4253 = vmatpush1.msra.mxu0 %v1430
  %4254 = vmatprep.mubr.f32.mxu0 %v51
  %4255 = vmatmul.mubr.f32.gmra.mrb[0].mxu0 %v50
  %v4256 = vpop.f32.mrb[0].mxu0
  %v4257 = vadd.f32 %v4168, %v4256
  %v4258 = vpop.f32.mrb[0].mxu0
  %v4259 = vadd.f32 %v4170, %v4258
  %4260 = vmatprep.mubr.f32.mxu0 %v81
  %4261 = vmatmul.mubr.f32.gmra.mrb[0].mxu0 %v80
  %v4262 = vpop.f32.mrb[0].mxu0
  %v4263 = vadd.f32 %v4174, %v4262
  %v4264 = vpop.f32.mrb[0].mxu0
  %v4265 = vadd.f32 %v4176, %v4264
  %4266 = vmatprep.mubr.f32.mxu0 %v111
  %4267 = vmatmul.mubr.f32.gmra.mrb[0].mxu0 %v110
  %v4268 = vpop.f32.mrb[0].mxu0
  %v4269 = vadd.f32 %v4180, %v4268
  %v4270 = vpop.f32.mrb[0].mxu0
  %v4271 = vadd.f32 %v4182, %v4270
  %4272 = vmatprep.mubr.f32.mxu0 %v141
  %4273 = vmatmul.mubr.f32.gmra.mrb[0].mxu0 %v140
  %v4274 = vpop.f32.mrb[0].mxu0
  %v4275 = vadd.f32 %v4186, %v4274
  %v4276 = vpop.f32.mrb[0].mxu0
  %v4277 = vadd.f32 %v4188, %v4276
  %4278 = vdwg.mxu0
  %4279 = vmatprep.subr.mxu0 %v1435
  %4280 = vmatpush1.msra.mxu0 %v1434
  %4281 = vmatprep.subr.mxu0 %v1439
  %4282 = vmatpush1.msra.mxu0 %v1438
  %4283 = vmatprep.subr.mxu0 %v1443
  %4284 = vmatpush1.msra.mxu0 %v1442
  %4285 = vmatprep.subr.mxu0 %v1447
  %4286 = vmatpush1.msra.mxu0 %v1446
  %4287 = vmatprep.subr.mxu0 %v1451
  %4288 = vmatpush1.msra.mxu0 %v1450
  %4289 = vmatprep.subr.mxu0 %v1455
  %4290 = vmatpush1.msra.mxu0 %v1454
  %4291 = vmatprep.subr.mxu0 %v1459
  %4292 = vmatpush1.msra.mxu0 %v1458
  %4293 = vmatprep.subr.mxu0 %v1463
  %4294 = vmatpush1.msra.mxu0 %v1462
  %4295 = vmatprep.subr.mxu0 %v1467
  %4296 = vmatpush1.msra.mxu0 %v1466
  %4297 = vmatprep.subr.mxu0 %v1471
  %4298 = vmatpush1.msra.mxu0 %v1470
  %4299 = vmatprep.subr.mxu0 %v1475
  %4300 = vmatpush1.msra.mxu0 %v1474
  %4301 = vmatprep.subr.mxu0 %v1479
  %4302 = vmatpush1.msra.mxu0 %v1478
  %4303 = vmatprep.subr.mxu0 %v1483
  %4304 = vmatpush1.msra.mxu0 %v1482
  %4305 = vmatprep.subr.mxu0 %v1487
  %4306 = vmatpush1.msra.mxu0 %v1486
  %4307 = vmatprep.subr.mxu0 %v1491
  %4308 = vmatpush1.msra.mxu0 %v1490
  %4309 = vmatprep.subr.mxu0 %v1495
  %4310 = vmatpush1.msra.mxu0 %v1494
  %4311 = vmatprep.subr.mxu0 %v1499
  %4312 = vmatpush1.msra.mxu0 %v1498
  %4313 = vmatprep.subr.mxu0 %v1503
  %4314 = vmatpush1.msra.mxu0 %v1502
  %4315 = vmatprep.subr.mxu0 %v1507
  %4316 = vmatpush1.msra.mxu0 %v1506
  %4317 = vmatprep.subr.mxu0 %v1511
  %4318 = vmatpush1.msra.mxu0 %v1510
  %4319 = vmatprep.subr.mxu0 %v1515
  %4320 = vmatpush1.msra.mxu0 %v1514
  %4321 = vmatprep.subr.mxu0 %v1519
  %4322 = vmatpush1.msra.mxu0 %v1518
  %4323 = vmatprep.subr.mxu0 %v1523
  %4324 = vmatpush1.msra.mxu0 %v1522
  %4325 = vmatprep.subr.mxu0 %v1527
  %4326 = vmatpush1.msra.mxu0 %v1526
  %4327 = vmatprep.subr.mxu0 %v1531
  %4328 = vmatpush1.msra.mxu0 %v1530
  %4329 = vmatprep.subr.mxu0 %v1535
  %4330 = vmatpush1.msra.mxu0 %v1534
  %4331 = vmatprep.subr.mxu0 %v1539
  %4332 = vmatpush1.msra.mxu0 %v1538
  %4333 = vmatprep.subr.mxu0 %v1543
  %4334 = vmatpush1.msra.mxu0 %v1542
  %4335 = vmatprep.subr.mxu0 %v1547
  %4336 = vmatpush1.msra.mxu0 %v1546
  %4337 = vmatprep.subr.mxu0 %v1551
  %4338 = vmatpush1.msra.mxu0 %v1550
  %4339 = vmatprep.subr.mxu0 %v1555
  %4340 = vmatpush1.msra.mxu0 %v1554
  %4341 = vmatprep.subr.mxu0 %v1559
  %4342 = vmatpush1.msra.mxu0 %v1558
  %4343 = vmatprep.mubr.f32.mxu0 %v53
  %4344 = vmatmul.mubr.f32.gmra.mrb[0].mxu0 %v52
  %v4345 = vpop.f32.mrb[0].mxu0
  %v4346 = vadd.f32 %v4257, %v4345
  %v4347 = vpop.f32.mrb[0].mxu0
  %v4348 = vadd.f32 %v4259, %v4347
  %4349 = vmatprep.mubr.f32.mxu0 %v83
  %4350 = vmatmul.mubr.f32.gmra.mrb[0].mxu0 %v82
  %v4351 = vpop.f32.mrb[0].mxu0
  %v4352 = vadd.f32 %v4263, %v4351
  %v4353 = vpop.f32.mrb[0].mxu0
  %v4354 = vadd.f32 %v4265, %v4353
  %4355 = vmatprep.mubr.f32.mxu0 %v113
  %4356 = vmatmul.mubr.f32.gmra.mrb[0].mxu0 %v112
  %v4357 = vpop.f32.mrb[0].mxu0
  %v4358 = vadd.f32 %v4269, %v4357
  %v4359 = vpop.f32.mrb[0].mxu0
  %v4360 = vadd.f32 %v4271, %v4359
  %4361 = vmatprep.mubr.f32.mxu0 %v143
  %4362 = vmatmul.mubr.f32.gmra.mrb[0].mxu0 %v142
  %v4363 = vpop.f32.mrb[0].mxu0
  %v4364 = vadd.f32 %v4275, %v4363
  %v4365 = vpop.f32.mrb[0].mxu0
  %v4366 = vadd.f32 %v4277, %v4365
  %4367 = vdwg.mxu0
  %4368 = vmatprep.subr.mxu0 %v1563
  %4369 = vmatpush1.msra.mxu0 %v1562
  %4370 = vmatprep.subr.mxu0 %v1567
  %4371 = vmatpush1.msra.mxu0 %v1566
  %4372 = vmatprep.subr.mxu0 %v1571
  %4373 = vmatpush1.msra.mxu0 %v1570
  %4374 = vmatprep.subr.mxu0 %v1575
  %4375 = vmatpush1.msra.mxu0 %v1574
  %4376 = vmatprep.subr.mxu0 %v1579
  %4377 = vmatpush1.msra.mxu0 %v1578
  %4378 = vmatprep.subr.mxu0 %v1583
  %4379 = vmatpush1.msra.mxu0 %v1582
  %4380 = vmatprep.subr.mxu0 %v1587
  %4381 = vmatpush1.msra.mxu0 %v1586
  %4382 = vmatprep.subr.mxu0 %v1591
  %4383 = vmatpush1.msra.mxu0 %v1590
  %4384 = vmatprep.subr.mxu0 %v1595
  %4385 = vmatpush1.msra.mxu0 %v1594
  %4386 = vmatprep.subr.mxu0 %v1599
  %4387 = vmatpush1.msra.mxu0 %v1598
  %4388 = vmatprep.subr.mxu0 %v1603
  %4389 = vmatpush1.msra.mxu0 %v1602
  %4390 = vmatprep.subr.mxu0 %v1607
  %4391 = vmatpush1.msra.mxu0 %v1606
  %4392 = vmatprep.subr.mxu0 %v1611
  %4393 = vmatpush1.msra.mxu0 %v1610
  %4394 = vmatprep.subr.mxu0 %v1615
  %4395 = vmatpush1.msra.mxu0 %v1614
  %4396 = vmatprep.subr.mxu0 %v1619
  %4397 = vmatpush1.msra.mxu0 %v1618
  %4398 = vmatprep.subr.mxu0 %v1623
  %4399 = vmatpush1.msra.mxu0 %v1622
  %4400 = vmatprep.subr.mxu0 %v1627
  %4401 = vmatpush1.msra.mxu0 %v1626
  %4402 = vmatprep.subr.mxu0 %v1631
  %4403 = vmatpush1.msra.mxu0 %v1630
  %4404 = vmatprep.subr.mxu0 %v1635
  %4405 = vmatpush1.msra.mxu0 %v1634
  %4406 = vmatprep.subr.mxu0 %v1639
  %4407 = vmatpush1.msra.mxu0 %v1638
  %4408 = vmatprep.subr.mxu0 %v1643
  %4409 = vmatpush1.msra.mxu0 %v1642
  %4410 = vmatprep.subr.mxu0 %v1647
  %4411 = vmatpush1.msra.mxu0 %v1646
  %4412 = vmatprep.subr.mxu0 %v1651
  %4413 = vmatpush1.msra.mxu0 %v1650
  %4414 = vmatprep.subr.mxu0 %v1655
  %4415 = vmatpush1.msra.mxu0 %v1654
  %4416 = vmatprep.subr.mxu0 %v1659
  %4417 = vmatpush1.msra.mxu0 %v1658
  %4418 = vmatprep.subr.mxu0 %v1663
  %4419 = vmatpush1.msra.mxu0 %v1662
  %4420 = vmatprep.subr.mxu0 %v1667
  %4421 = vmatpush1.msra.mxu0 %v1666
  %4422 = vmatprep.subr.mxu0 %v1671
  %4423 = vmatpush1.msra.mxu0 %v1670
  %4424 = vmatprep.subr.mxu0 %v1675
  %4425 = vmatpush1.msra.mxu0 %v1674
  %4426 = vmatprep.subr.mxu0 %v1679
  %4427 = vmatpush1.msra.mxu0 %v1678
  %4428 = vmatprep.subr.mxu0 %v1683
  %4429 = vmatpush1.msra.mxu0 %v1682
  %4430 = vmatprep.subr.mxu0 %v1687
  %4431 = vmatpush1.msra.mxu0 %v1686
  %4432 = vmatprep.mubr.f32.mxu0 %v55
  %4433 = vmatmul.mubr.f32.gmra.mrb[0].mxu0 %v54
  %v4434 = vpop.f32.mrb[0].mxu0
  %v4435 = vadd.f32 %v4346, %v4434
  %v4436 = vpop.f32.mrb[0].mxu0
  %v4437 = vadd.f32 %v4348, %v4436
  %4438 = vmatprep.mubr.f32.mxu0 %v85
  %4439 = vmatmul.mubr.f32.gmra.mrb[0].mxu0 %v84
  %v4440 = vpop.f32.mrb[0].mxu0
  %v4441 = vadd.f32 %v4352, %v4440
  %v4442 = vpop.f32.mrb[0].mxu0
  %v4443 = vadd.f32 %v4354, %v4442
  %4444 = vmatprep.mubr.f32.mxu0 %v115
  %4445 = vmatmul.mubr.f32.gmra.mrb[0].mxu0 %v114
  %v4446 = vpop.f32.mrb[0].mxu0
  %v4447 = vadd.f32 %v4358, %v4446
  %v4448 = vpop.f32.mrb[0].mxu0
  %v4449 = vadd.f32 %v4360, %v4448
  %4450 = vmatprep.mubr.f32.mxu0 %v145
  %4451 = vmatmul.mubr.f32.gmra.mrb[0].mxu0 %v144
  %v4452 = vpop.f32.mrb[0].mxu0
  %v4453 = vadd.f32 %v4364, %v4452
  %v4454 = vpop.f32.mrb[0].mxu0
  %v4455 = vadd.f32 %v4366, %v4454
  %4456 = vdwg.mxu0
  %4457 = vmatprep.subr.mxu0 %v1691
  %4458 = vmatpush1.msra.mxu0 %v1690
  %4459 = vmatprep.subr.mxu0 %v1695
  %4460 = vmatpush1.msra.mxu0 %v1694
  %4461 = vmatprep.subr.mxu0 %v1699
  %4462 = vmatpush1.msra.mxu0 %v1698
  %4463 = vmatprep.subr.mxu0 %v1703
  %4464 = vmatpush1.msra.mxu0 %v1702
  %4465 = vmatprep.subr.mxu0 %v1707
  %4466 = vmatpush1.msra.mxu0 %v1706
  %4467 = vmatprep.subr.mxu0 %v1711
  %4468 = vmatpush1.msra.mxu0 %v1710
  %4469 = vmatprep.subr.mxu0 %v1715
  %4470 = vmatpush1.msra.mxu0 %v1714
  %4471 = vmatprep.subr.mxu0 %v1719
  %4472 = vmatpush1.msra.mxu0 %v1718
  %4473 = vmatprep.subr.mxu0 %v1723
  %4474 = vmatpush1.msra.mxu0 %v1722
  %4475 = vmatprep.subr.mxu0 %v1727
  %4476 = vmatpush1.msra.mxu0 %v1726
  %4477 = vmatprep.subr.mxu0 %v1731
  %4478 = vmatpush1.msra.mxu0 %v1730
  %4479 = vmatprep.subr.mxu0 %v1735
  %4480 = vmatpush1.msra.mxu0 %v1734
  %4481 = vmatprep.subr.mxu0 %v1739
  %4482 = vmatpush1.msra.mxu0 %v1738
  %4483 = vmatprep.subr.mxu0 %v1743
  %4484 = vmatpush1.msra.mxu0 %v1742
  %4485 = vmatprep.subr.mxu0 %v1747
  %4486 = vmatpush1.msra.mxu0 %v1746
  %4487 = vmatprep.subr.mxu0 %v1751
  %4488 = vmatpush1.msra.mxu0 %v1750
  %4489 = vmatprep.subr.mxu0 %v1755
  %4490 = vmatpush1.msra.mxu0 %v1754
  %4491 = vmatprep.subr.mxu0 %v1759
  %4492 = vmatpush1.msra.mxu0 %v1758
  %4493 = vmatprep.subr.mxu0 %v1763
  %4494 = vmatpush1.msra.mxu0 %v1762
  %4495 = vmatprep.subr.mxu0 %v1767
  %4496 = vmatpush1.msra.mxu0 %v1766
  %4497 = vmatprep.subr.mxu0 %v1771
  %4498 = vmatpush1.msra.mxu0 %v1770
  %4499 = vmatprep.subr.mxu0 %v1775
  %4500 = vmatpush1.msra.mxu0 %v1774
  %4501 = vmatprep.subr.mxu0 %v1779
  %4502 = vmatpush1.msra.mxu0 %v1778
  %4503 = vmatprep.subr.mxu0 %v1783
  %4504 = vmatpush1.msra.mxu0 %v1782
  %4505 = vmatprep.subr.mxu0 %v1787
  %4506 = vmatpush1.msra.mxu0 %v1786
  %4507 = vmatprep.subr.mxu0 %v1791
  %4508 = vmatpush1.msra.mxu0 %v1790
  %4509 = vmatprep.subr.mxu0 %v1795
  %4510 = vmatpush1.msra.mxu0 %v1794
  %4511 = vmatprep.subr.mxu0 %v1799
  %4512 = vmatpush1.msra.mxu0 %v1798
  %4513 = vmatprep.subr.mxu0 %v1803
  %4514 = vmatpush1.msra.mxu0 %v1802
  %4515 = vmatprep.subr.mxu0 %v1807
  %4516 = vmatpush1.msra.mxu0 %v1806
  %4517 = vmatprep.subr.mxu0 %v1811
  %4518 = vmatpush1.msra.mxu0 %v1810
  %4519 = vmatprep.subr.mxu0 %v1815
  %4520 = vmatpush1.msra.mxu0 %v1814
  %4521 = vmatprep.mubr.f32.mxu0 %v57
  %4522 = vmatmul.mubr.f32.gmra.mrb[0].mxu0 %v56
  %v4523 = vpop.f32.mrb[0].mxu0
  %v4524 = vadd.f32 %v4435, %v4523
  %v4525 = vpop.f32.mrb[0].mxu0
  %v4526 = vadd.f32 %v4437, %v4525
  %4527 = vmatprep.mubr.f32.mxu0 %v87
  %4528 = vmatmul.mubr.f32.gmra.mrb[0].mxu0 %v86
  %v4529 = vpop.f32.mrb[0].mxu0
  %v4530 = vadd.f32 %v4441, %v4529
  %v4531 = vpop.f32.mrb[0].mxu0
  %v4532 = vadd.f32 %v4443, %v4531
  %4533 = vmatprep.mubr.f32.mxu0 %v117
  %4534 = vmatmul.mubr.f32.gmra.mrb[0].mxu0 %v116
  %v4535 = vpop.f32.mrb[0].mxu0
  %v4536 = vadd.f32 %v4447, %v4535
  %v4537 = vpop.f32.mrb[0].mxu0
  %v4538 = vadd.f32 %v4449, %v4537
  %4539 = vmatprep.mubr.f32.mxu0 %v147
  %4540 = vmatmul.mubr.f32.gmra.mrb[0].mxu0 %v146
  %v4541 = vpop.f32.mrb[0].mxu0
  %v4542 = vadd.f32 %v4453, %v4541
  %v4543 = vpop.f32.mrb[0].mxu0
  %v4544 = vadd.f32 %v4455, %v4543
  %4545 = vdwg.mxu0
  %4546 = vmatprep.subr.mxu0 %v1819
  %4547 = vmatpush1.msra.mxu0 %v1818
  %4548 = vmatprep.subr.mxu0 %v1823
  %4549 = vmatpush1.msra.mxu0 %v1822
  %4550 = vmatprep.subr.mxu0 %v1827
  %4551 = vmatpush1.msra.mxu0 %v1826
  %4552 = vmatprep.subr.mxu0 %v1831
  %4553 = vmatpush1.msra.mxu0 %v1830
  %4554 = vmatprep.subr.mxu0 %v1835
  %4555 = vmatpush1.msra.mxu0 %v1834
  %4556 = vmatprep.subr.mxu0 %v1839
  %4557 = vmatpush1.msra.mxu0 %v1838
  %4558 = vmatprep.subr.mxu0 %v1843
  %4559 = vmatpush1.msra.mxu0 %v1842
  %4560 = vmatprep.subr.mxu0 %v1847
  %4561 = vmatpush1.msra.mxu0 %v1846
  %4562 = vmatprep.subr.mxu0 %v1851
  %4563 = vmatpush1.msra.mxu0 %v1850
  %4564 = vmatprep.subr.mxu0 %v1855
  %4565 = vmatpush1.msra.mxu0 %v1854
  %4566 = vmatprep.subr.mxu0 %v1859
  %4567 = vmatpush1.msra.mxu0 %v1858
  %4568 = vmatprep.subr.mxu0 %v1863
  %4569 = vmatpush1.msra.mxu0 %v1862
  %4570 = vmatprep.subr.mxu0 %v1867
  %4571 = vmatpush1.msra.mxu0 %v1866
  %4572 = vmatprep.subr.mxu0 %v1871
  %4573 = vmatpush1.msra.mxu0 %v1870
  %4574 = vmatprep.subr.mxu0 %v1875
  %4575 = vmatpush1.msra.mxu0 %v1874
  %4576 = vmatprep.subr.mxu0 %v1879
  %4577 = vmatpush1.msra.mxu0 %v1878
  %4578 = vmatprep.subr.mxu0 %v1883
  %4579 = vmatpush1.msra.mxu0 %v1882
  %4580 = vmatprep.subr.mxu0 %v1887
  %4581 = vmatpush1.msra.mxu0 %v1886
  %4582 = vmatprep.subr.mxu0 %v1891
  %4583 = vmatpush1.msra.mxu0 %v1890
  %4584 = vmatprep.subr.mxu0 %v1895
  %4585 = vmatpush1.msra.mxu0 %v1894
  %4586 = vmatprep.subr.mxu0 %v1899
  %4587 = vmatpush1.msra.mxu0 %v1898
  %4588 = vmatprep.subr.mxu0 %v1903
  %4589 = vmatpush1.msra.mxu0 %v1902
  %4590 = vmatprep.subr.mxu0 %v1907
  %4591 = vmatpush1.msra.mxu0 %v1906
  %4592 = vmatprep.subr.mxu0 %v1911
  %4593 = vmatpush1.msra.mxu0 %v1910
  %4594 = vmatprep.subr.mxu0 %v1915
  %4595 = vmatpush1.msra.mxu0 %v1914
  %4596 = vmatprep.subr.mxu0 %v1919
  %4597 = vmatpush1.msra.mxu0 %v1918
  %4598 = vmatprep.subr.mxu0 %v1923
  %4599 = vmatpush1.msra.mxu0 %v1922
  %4600 = vmatprep.subr.mxu0 %v1927
  %4601 = vmatpush1.msra.mxu0 %v1926
  %4602 = vmatprep.subr.mxu0 %v1931
  %4603 = vmatpush1.msra.mxu0 %v1930
  %4604 = vmatprep.subr.mxu0 %v1935
  %4605 = vmatpush1.msra.mxu0 %v1934
  %4606 = vmatprep.subr.mxu0 %v1939
  %4607 = vmatpush1.msra.mxu0 %v1938
  %4608 = vmatprep.subr.mxu0 %v1943
  %4609 = vmatpush1.msra.mxu0 %v1942
  %4610 = vmatprep.mubr.f32.mxu0 %v59
  %4611 = vmatmul.mubr.f32.gmra.mrb[0].mxu0 %v58
  %v4612 = vpop.f32.mrb[0].mxu0
  %v4613 = vadd.f32 %v4524, %v4612
  %v4614 = vpop.f32.mrb[0].mxu0
  %v4615 = vadd.f32 %v4526, %v4614
  %4616 = vmatprep.mubr.f32.mxu0 %v89
  %4617 = vmatmul.mubr.f32.gmra.mrb[0].mxu0 %v88
  %v4618 = vpop.f32.mrb[0].mxu0
  %v4619 = vadd.f32 %v4530, %v4618
  %v4620 = vpop.f32.mrb[0].mxu0
  %v4621 = vadd.f32 %v4532, %v4620
  %4622 = vmatprep.mubr.f32.mxu0 %v119
  %4623 = vmatmul.mubr.f32.gmra.mrb[0].mxu0 %v118
  %v4624 = vpop.f32.mrb[0].mxu0
  %v4625 = vadd.f32 %v4536, %v4624
  %v4626 = vpop.f32.mrb[0].mxu0
  %v4627 = vadd.f32 %v4538, %v4626
  %4628 = vmatprep.mubr.f32.mxu0 %v149
  %4629 = vmatmul.mubr.f32.gmra.mrb[0].mxu0 %v148
  %v4630 = vpop.f32.mrb[0].mxu0
  %v4631 = vadd.f32 %v4542, %v4630
  %v4632 = vpop.f32.mrb[0].mxu0
  %v4633 = vadd.f32 %v4544, %v4632
  %4634 = vdwg.mxu0
  %4635 = vmatprep.subr.mxu0 %v1947
  %4636 = vmatpush1.msra.mxu0 %v1946
  %4637 = vmatprep.subr.mxu0 %v1951
  %4638 = vmatpush1.msra.mxu0 %v1950
  %4639 = vmatprep.subr.mxu0 %v1955
  %4640 = vmatpush1.msra.mxu0 %v1954
  %4641 = vmatprep.subr.mxu0 %v1959
  %4642 = vmatpush1.msra.mxu0 %v1958
  %4643 = vmatprep.subr.mxu0 %v1963
  %4644 = vmatpush1.msra.mxu0 %v1962
  %4645 = vmatprep.subr.mxu0 %v1967
  %4646 = vmatpush1.msra.mxu0 %v1966
  %4647 = vmatprep.subr.mxu0 %v1971
  %4648 = vmatpush1.msra.mxu0 %v1970
  %4649 = vmatprep.subr.mxu0 %v1975
  %4650 = vmatpush1.msra.mxu0 %v1974
  %4651 = vmatprep.subr.mxu0 %v1979
  %4652 = vmatpush1.msra.mxu0 %v1978
  %4653 = vmatprep.subr.mxu0 %v1983
  %4654 = vmatpush1.msra.mxu0 %v1982
  %4655 = vmatprep.subr.mxu0 %v1987
  %4656 = vmatpush1.msra.mxu0 %v1986
  %4657 = vmatprep.subr.mxu0 %v1991
  %4658 = vmatpush1.msra.mxu0 %v1990
  %4659 = vmatprep.subr.mxu0 %v1995
  %4660 = vmatpush1.msra.mxu0 %v1994
  %4661 = vmatprep.subr.mxu0 %v1999
  %4662 = vmatpush1.msra.mxu0 %v1998
  %4663 = vmatprep.subr.mxu0 %v2003
  %4664 = vmatpush1.msra.mxu0 %v2002
  %4665 = vmatprep.subr.mxu0 %v2007
  %4666 = vmatpush1.msra.mxu0 %v2006
  %4667 = vmatprep.subr.mxu0 %v2011
  %4668 = vmatpush1.msra.mxu0 %v2010
  %4669 = vmatprep.subr.mxu0 %v2015
  %4670 = vmatpush1.msra.mxu0 %v2014
  %4671 = vmatprep.subr.mxu0 %v2019
  %4672 = vmatpush1.msra.mxu0 %v2018
  %4673 = vmatprep.subr.mxu0 %v2023
  %4674 = vmatpush1.msra.mxu0 %v2022
  %4675 = vmatprep.subr.mxu0 %v2052
  %4676 = vmatpush1.msra.mxu0 %v2049
  %4677 = vmatprep.subr.mxu0 0.0
  %4678 = vmatpush1.msra.mxu0 0.0
  %4679 = vmatprep.subr.mxu0 0.0
  %4680 = vmatpush1.msra.mxu0 0.0
  %4681 = vmatprep.subr.mxu0 0.0
  %4682 = vmatpush1.msra.mxu0 0.0
  %4683 = vmatprep.subr.mxu0 0.0
  %4684 = vmatpush1.msra.mxu0 0.0
  %4685 = vmatprep.subr.mxu0 0.0
  %4686 = vmatpush1.msra.mxu0 0.0
  %4687 = vmatprep.subr.mxu0 0.0
  %4688 = vmatpush1.msra.mxu0 0.0
  %4689 = vmatprep.subr.mxu0 0.0
  %4690 = vmatpush1.msra.mxu0 0.0
  %4691 = vmatprep.subr.mxu0 0.0
  %4692 = vmatpush1.msra.mxu0 0.0
  %4693 = vmatprep.subr.mxu0 0.0
  %4694 = vmatpush1.msra.mxu0 0.0
  %4695 = vmatprep.subr.mxu0 0.0
  %4696 = vmatpush1.msra.mxu0 0.0
  %4697 = vmatprep.subr.mxu0 0.0
  %4698 = vmatpush1.msra.mxu0 0.0
  %4699 = vmatprep.mubr.f32.mxu0 %v2030
  %4700 = vmatmul.mubr.f32.gmra.mrb[0].mxu0 %v60
  %v4701 = vpop.f32.mrb[0].mxu0
  %v4702 = vadd.f32 %v4613, %v4701
  %v4703 = vpop.f32.mrb[0].mxu0
  %v4704 = vadd.f32 %v4615, %v4703
  %4705 = vmatprep.mubr.f32.mxu0 %v2033
  %4706 = vmatmul.mubr.f32.gmra.mrb[0].mxu0 %v90
  %v4707 = vpop.f32.mrb[0].mxu0
  %v4708 = vadd.f32 %v4619, %v4707
  %v4709 = vpop.f32.mrb[0].mxu0
  %v4710 = vadd.f32 %v4621, %v4709
  %4711 = vmatprep.mubr.f32.mxu0 %v2036
  %4712 = vmatmul.mubr.f32.gmra.mrb[0].mxu0 %v120
  %v4713 = vpop.f32.mrb[0].mxu0
  %v4714 = vadd.f32 %v4625, %v4713
  %v4715 = vpop.f32.mrb[0].mxu0
  %v4716 = vadd.f32 %v4627, %v4715
  %4717 = vmatprep.mubr.f32.mxu0 %v2039
  %4718 = vmatmul.mubr.f32.gmra.mrb[0].mxu0 %v150
  %v4719 = vpop.f32.mrb[0].mxu0
  %v4720 = vadd.f32 %v4631, %v4719
  %v4721 = vpop.f32.mrb[0].mxu0
  %v4722 = vadd.f32 %v4633, %v4721
  %4723 = vdwg.mxu0
  %v4724 = vmax.f32 %v3367, %v3373
  %v4725 = vmax.f32 %v3369, %v3375
  %v4726 = vmax.f32 %v4702, %v4708
  %v4727 = vmax.f32 %v4704, %v4710
  %v4728 = vmax.f32 %v3379, %v3385
  %v4729 = vmax.f32 %v3381, %v3387
  %v4730 = vmax.f32 %v4714, %v4720
  %v4731 = vmax.f32 %v4716, %v4722
  %v4732 = vmax.f32 %v4724, %v4728
  %v4733 = vmax.f32 %v4725, %v4729
  %v4734 = vmax.f32 %v4726, %v4730
  %v4735 = vmax.f32 %v4727, %v4731
  %v4736 = vld [vmem:[%s2] sm:$0xf]
  %v4738 = vlaneseq
  %v4739 = vshrl.u32 %v4738, 7
  %v4740 = vsub.s32 0, %v4739
  %v4741 = vrot.slane %v4736, %v4740
  %v4742 = vlaneseq
  %v4743 = vshrl.u32 %v4742, 7
  %v4744 = vsub.s32 1, %v4743
  %v4745 = vrot.slane %v4736, %v4744
  %v4746 = vlaneseq
  %v4747 = vshrl.u32 %v4746, 7
  %v4748 = vsub.s32 2, %v4747
  %v4749 = vrot.slane %v4736, %v4748
  %v4750 = vlaneseq
  %v4751 = vshrl.u32 %v4750, 7
  %v4752 = vsub.s32 3, %v4751
  %v4753 = vrot.slane %v4736, %v4752
  %v4758 = vadd.f32 %v4732, %v4741
  %v4759 = vadd.f32 %v4733, %v4745
  %v4760 = vadd.f32 %v4734, %v4749
  %v4761 = vadd.f32 %v4735, %v4753
  %v4762 = vmax.f32 %v4758, 0.0
  %v4763 = vmax.f32 %v4759, 0.0
  %v4764 = vmax.f32 %v4760, 0.0
  %v4765 = vmax.f32 %v4761, 0.0
  %v4766 = vld [vmem:[%s3] sm:$0xff]
  %v4767 = vld [vmem:[%s3 + $0x8] sm:$0xff]
  %v4768 = vld [vmem:[%s3 + $0x10] sm:$0xff]
  %v4769 = vld [vmem:[%s3 + $0x18] sm:$0xff]
  %v4770 = vld [vmem:[%s3 + $0x20] sm:$0xff]
  %v4771 = vld [vmem:[%s3 + $0x28] sm:$0xff]
  %v4772 = vld [vmem:[%s3 + $0x30] sm:$0xff]
  %v4773 = vld [vmem:[%s3 + $0x38] sm:$0xff]
  %v4774 = vld [vmem:[%s3 + $0x40] sm:$0xff]
  %v4775 = vld [vmem:[%s3 + $0x48] sm:$0xff]
  %v4776 = vld [vmem:[%s3 + $0x50] sm:$0xff]
  %v4777 = vld [vmem:[%s3 + $0x58] sm:$0xff]
  %v4778 = vld [vmem:[%s3 + $0x60] sm:$0xff]
  %v4779 = vld [vmem:[%s3 + $0x68] sm:$0xff]
  %v4780 = vld [vmem:[%s3 + $0x70] sm:$0xff]
  %v4781 = vld [vmem:[%s3 + $0x78] sm:$0xff]
  %v4782 = vld [vmem:[%s3 + $0x80] sm:$0xff]
  %v4783 = vld [vmem:[%s3 + $0x88] sm:$0xff]
  %v4784 = vld [vmem:[%s3 + $0x90] sm:$0xff]
  %v4785 = vld [vmem:[%s3 + $0x98] sm:$0xff]
  %v4786 = vld [vmem:[%s3 + $0xa0] sm:$0xff]
  %v4787 = vld [vmem:[%s3 + $0xa8] sm:$0xff]
  %v4788 = vld [vmem:[%s3 + $0xb0] sm:$0xff]
  %v4789 = vld [vmem:[%s3 + $0xb8] sm:$0xff]
  %v4790 = vld [vmem:[%s3 + $0xc0] sm:$0xff]
  %v4791 = vld [vmem:[%s3 + $0xc8] sm:$0xff]
  %v4792 = vld [vmem:[%s3 + $0xd0] sm:$0xff]
  %v4793 = vld [vmem:[%s3 + $0xd8] sm:$0xff]
  %v4794 = vld [vmem:[%s3 + $0xe0] sm:$0xff]
  %v4795 = vld [vmem:[%s3 + $0xe8] sm:$0xff]
  %v4796 = vld [vmem:[%s3 + $0xf0] sm:$0xff]
  %v4797 = vld [vmem:[%s3 + $0xf8] sm:$0xff]
  %v4798 = vld [vmem:[%s3 + $0x100] sm:$0xff]
  %v4799 = vld [vmem:[%s3 + $0x108] sm:$0xff]
  %v4800 = vld [vmem:[%s3 + $0x110] sm:$0xff]
  %v4801 = vld [vmem:[%s3 + $0x118] sm:$0xff]
  %v4802 = vld [vmem:[%s3 + $0x120] sm:$0xff]
  %v4803 = vld [vmem:[%s3 + $0x128] sm:$0xff]
  %v4804 = vld [vmem:[%s3 + $0x130] sm:$0xff]
  %v4805 = vld [vmem:[%s3 + $0x138] sm:$0xff]
  %v4806 = vld [vmem:[%s3 + $0x140] sm:$0xff]
  %v4807 = vld [vmem:[%s3 + $0x148] sm:$0xff]
  %v4808 = vld [vmem:[%s3 + $0x150] sm:$0xff]
  %v4809 = vld [vmem:[%s3 + $0x158] sm:$0xff]
  %v4810 = vld [vmem:[%s3 + $0x160] sm:$0xff]
  %v4811 = vld [vmem:[%s3 + $0x168] sm:$0xff]
  %v4812 = vld [vmem:[%s3 + $0x170] sm:$0xff]
  %v4813 = vld [vmem:[%s3 + $0x178] sm:$0xff]
  %v4814 = vld [vmem:[%s3 + $0x180] sm:$0xff]
  %v4815 = vld [vmem:[%s3 + $0x188] sm:$0xff]
  %v4816 = vld [vmem:[%s4] sm:$0x1]
  %v4818 = vlaneseq
  %v4819 = vshrl.u32 %v4818, 7
  %v4820 = vsub.s32 0, %v4819
  %v4821 = vrot.slane %v4816, %v4820
  %vm4823 = vcmask 130048
  %v4825 = vsel %vm4823, %v4765, 0
  %4827 = vmatprep.subr.mxu0 0.0
  %4828 = vmatpush1.msra.mxu0 %v4766
  %4829 = vmatprep.subr.mxu0 0.0
  %4830 = vmatpush1.msra.mxu0 %v4767
  %4831 = vmatprep.subr.mxu0 0.0
  %4832 = vmatpush1.msra.mxu0 %v4768
  %4833 = vmatprep.subr.mxu0 0.0
  %4834 = vmatpush1.msra.mxu0 %v4769
  %4835 = vmatprep.subr.mxu0 0.0
  %4836 = vmatpush1.msra.mxu0 %v4770
  %4837 = vmatprep.subr.mxu0 0.0
  %4838 = vmatpush1.msra.mxu0 %v4771
  %4839 = vmatprep.subr.mxu0 0.0
  %4840 = vmatpush1.msra.mxu0 %v4772
  %4841 = vmatprep.subr.mxu0 0.0
  %4842 = vmatpush1.msra.mxu0 %v4773
  %4843 = vmatprep.subr.mxu0 0.0
  %4844 = vmatpush1.msra.mxu0 %v4774
  %4845 = vmatprep.subr.mxu0 0.0
  %4846 = vmatpush1.msra.mxu0 %v4775
  %4847 = vmatprep.subr.mxu0 0.0
  %4848 = vmatpush1.msra.mxu0 %v4776
  %4849 = vmatprep.subr.mxu0 0.0
  %4850 = vmatpush1.msra.mxu0 %v4777
  %4851 = vmatprep.subr.mxu0 0.0
  %4852 = vmatpush1.msra.mxu0 %v4778
  %4853 = vmatprep.subr.mxu0 0.0
  %4854 = vmatpush1.msra.mxu0 %v4779
  %4855 = vmatprep.subr.mxu0 0.0
  %4856 = vmatpush1.msra.mxu0 %v4780
  %4857 = vmatprep.subr.mxu0 0.0
  %4858 = vmatpush1.msra.mxu0 %v4781
  %4859 = vmatprep.subr.mxu0 0.0
  %4860 = vmatpush1.msra.mxu0 %v4782
  %4861 = vmatprep.subr.mxu0 0.0
  %4862 = vmatpush1.msra.mxu0 %v4783
  %4863 = vmatprep.subr.mxu0 0.0
  %4864 = vmatpush1.msra.mxu0 %v4784
  %4865 = vmatprep.subr.mxu0 0.0
  %4866 = vmatpush1.msra.mxu0 %v4785
  %4867 = vmatprep.subr.mxu0 0.0
  %4868 = vmatpush1.msra.mxu0 %v4786
  %4869 = vmatprep.subr.mxu0 0.0
  %4870 = vmatpush1.msra.mxu0 %v4787
  %4871 = vmatprep.subr.mxu0 0.0
  %4872 = vmatpush1.msra.mxu0 %v4788
  %4873 = vmatprep.subr.mxu0 0.0
  %4874 = vmatpush1.msra.mxu0 %v4789
  %4875 = vmatprep.subr.mxu0 0.0
  %4876 = vmatpush1.msra.mxu0 %v4790
  %4877 = vmatprep.subr.mxu0 0.0
  %4878 = vmatpush1.msra.mxu0 %v4791
  %4879 = vmatprep.subr.mxu0 0.0
  %4880 = vmatpush1.msra.mxu0 %v4792
  %4881 = vmatprep.subr.mxu0 0.0
  %4882 = vmatpush1.msra.mxu0 %v4793
  %4883 = vmatprep.subr.mxu0 0.0
  %4884 = vmatpush1.msra.mxu0 %v4794
  %4885 = vmatprep.subr.mxu0 0.0
  %4886 = vmatpush1.msra.mxu0 %v4795
  %4887 = vmatprep.subr.mxu0 0.0
  %4888 = vmatpush1.msra.mxu0 %v4796
  %4889 = vmatprep.subr.mxu0 0.0
  %4890 = vmatpush1.msra.mxu0 %v4797
  %4891 = vmatprep.mubr.f32.mxu0 %v4763
  %4892 = vmatmul.mubr.f32.gmra.mrb[0].mxu0 %v4762
  %v4893 = vpop.f32.mrb[0].mxu0
  %v4894 = vadd.f32 %v4821, %v4893
  %v4895 = vpop.f32.mrb[0].mxu0
  %4896 = vdwg.mxu0
  %4897 = vmatprep.subr.mxu0 0.0
  %4898 = vmatpush1.msra.mxu0 %v4798
  %4899 = vmatprep.subr.mxu0 0.0
  %4900 = vmatpush1.msra.mxu0 %v4799
  %4901 = vmatprep.subr.mxu0 0.0
  %4902 = vmatpush1.msra.mxu0 %v4800
  %4903 = vmatprep.subr.mxu0 0.0
  %4904 = vmatpush1.msra.mxu0 %v4801
  %4905 = vmatprep.subr.mxu0 0.0
  %4906 = vmatpush1.msra.mxu0 %v4802
  %4907 = vmatprep.subr.mxu0 0.0
  %4908 = vmatpush1.msra.mxu0 %v4803
  %4909 = vmatprep.subr.mxu0 0.0
  %4910 = vmatpush1.msra.mxu0 %v4804
  %4911 = vmatprep.subr.mxu0 0.0
  %4912 = vmatpush1.msra.mxu0 %v4805
  %4913 = vmatprep.subr.mxu0 0.0
  %4914 = vmatpush1.msra.mxu0 %v4806
  %4915 = vmatprep.subr.mxu0 0.0
  %4916 = vmatpush1.msra.mxu0 %v4807
  %4917 = vmatprep.subr.mxu0 0.0
  %4918 = vmatpush1.msra.mxu0 %v4808
  %4919 = vmatprep.subr.mxu0 0.0
  %4920 = vmatpush1.msra.mxu0 %v4809
  %4921 = vmatprep.subr.mxu0 0.0
  %4922 = vmatpush1.msra.mxu0 %v4810
  %4923 = vmatprep.subr.mxu0 0.0
  %4924 = vmatpush1.msra.mxu0 %v4811
  %4925 = vmatprep.subr.mxu0 0.0
  %4926 = vmatpush1.msra.mxu0 %v4812
  %4927 = vmatprep.subr.mxu0 0.0
  %4928 = vmatpush1.msra.mxu0 %v4813
  %4929 = vmatprep.subr.mxu0 0.0
  %4930 = vmatpush1.msra.mxu0 %v4814
  %4931 = vmatprep.subr.mxu0 0.0
  %4932 = vmatpush1.msra.mxu0 %v4815
  %4933 = vmatprep.subr.mxu0 0.0
  %4934 = vmatpush1.msra.mxu0 0.0
  %4935 = vmatprep.subr.mxu0 0.0
  %4936 = vmatpush1.msra.mxu0 0.0
  %4937 = vmatprep.subr.mxu0 0.0
  %4938 = vmatpush1.msra.mxu0 0.0
  %4939 = vmatprep.subr.mxu0 0.0
  %4940 = vmatpush1.msra.mxu0 0.0
  %4941 = vmatprep.subr.mxu0 0.0
  %4942 = vmatpush1.msra.mxu0 0.0
  %4943 = vmatprep.subr.mxu0 0.0
  %4944 = vmatpush1.msra.mxu0 0.0
  %4945 = vmatprep.subr.mxu0 0.0
  %4946 = vmatpush1.msra.mxu0 0.0
  %4947 = vmatprep.subr.mxu0 0.0
  %4948 = vmatpush1.msra.mxu0 0.0
  %4949 = vmatprep.subr.mxu0 0.0
  %4950 = vmatpush1.msra.mxu0 0.0
  %4951 = vmatprep.subr.mxu0 0.0
  %4952 = vmatpush1.msra.mxu0 0.0
  %4953 = vmatprep.subr.mxu0 0.0
  %4954 = vmatpush1.msra.mxu0 0.0
  %4955 = vmatprep.subr.mxu0 0.0
  %4956 = vmatpush1.msra.mxu0 0.0
  %4957 = vmatprep.subr.mxu0 0.0
  %4958 = vmatpush1.msra.mxu0 0.0
  %4959 = vmatprep.subr.mxu0 0.0
  %4960 = vmatpush1.msra.mxu0 0.0
  %4961 = vmatprep.mubr.f32.mxu0 %v4825
  %4962 = vmatmul.mubr.f32.gmra.mrb[0].mxu0 %v4764
  %v4963 = vpop.f32.mrb[0].mxu0
  %v4964 = vadd.f32 %v4894, %v4963
  %v4965 = vpop.f32.mrb[0].mxu0
  %4966 = vdwg.mxu0
  %v4967 = vmax.f32 %v4964, 0.0
  %v4968 = vld [vmem:[%s5] sm:$0xff]
  %v4969 = vld [vmem:[%s5 + $0x8] sm:$0xff]
  %v4970 = vld [vmem:[%s5 + $0x10] sm:$0xff]
  %v4971 = vld [vmem:[%s5 + $0x18] sm:$0xff]
  %v4972 = vld [vmem:[%s5 + $0x20] sm:$0xff]
  %v4973 = vld [vmem:[%s5 + $0x28] sm:$0xff]
  %v4974 = vld [vmem:[%s5 + $0x30] sm:$0xff]
  %v4975 = vld [vmem:[%s5 + $0x38] sm:$0xff]
  %v4976 = vld [vmem:[%s5 + $0x40] sm:$0xff]
  %v4977 = vld [vmem:[%s5 + $0x48] sm:$0xff]
  %v4978 = vld [vmem:[%s5 + $0x50] sm:$0xff]
  %v4979 = vld [vmem:[%s5 + $0x58] sm:$0xff]
  %v4980 = vld [vmem:[%s5 + $0x60] sm:$0xff]
  %v4981 = vld [vmem:[%s5 + $0x68] sm:$0xff]
  %v4982 = vld [vmem:[%s5 + $0x70] sm:$0xff]
  %v4983 = vld [vmem:[%s5 + $0x78] sm:$0xff]
  %v4984 = vld [vmem:[%s6] sm:$0x1]
  %v4986 = vlaneseq
  %v4987 = vshrl.u32 %v4986, 7
  %v4988 = vsub.s32 0, %v4987
  %v4989 = vrot.slane %v4984, %v4988
  %4991 = vmatprep.subr.mxu0 0.0
  %4992 = vmatpush1.msra.mxu0 %v4968
  %4993 = vmatprep.subr.mxu0 0.0
  %4994 = vmatpush1.msra.mxu0 %v4969
  %4995 = vmatprep.subr.mxu0 0.0
  %4996 = vmatpush1.msra.mxu0 %v4970
  %4997 = vmatprep.subr.mxu0 0.0
  %4998 = vmatpush1.msra.mxu0 %v4971
  %4999 = vmatprep.subr.mxu0 0.0
  %5000 = vmatpush1.msra.mxu0 %v4972
  %5001 = vmatprep.subr.mxu0 0.0
  %5002 = vmatpush1.msra.mxu0 %v4973
  %5003 = vmatprep.subr.mxu0 0.0
  %5004 = vmatpush1.msra.mxu0 %v4974
  %5005 = vmatprep.subr.mxu0 0.0
  %5006 = vmatpush1.msra.mxu0 %v4975
  %5007 = vmatprep.subr.mxu0 0.0
  %5008 = vmatpush1.msra.mxu0 %v4976
  %5009 = vmatprep.subr.mxu0 0.0
  %5010 = vmatpush1.msra.mxu0 %v4977
  %5011 = vmatprep.subr.mxu0 0.0
  %5012 = vmatpush1.msra.mxu0 %v4978
  %5013 = vmatprep.subr.mxu0 0.0
  %5014 = vmatpush1.msra.mxu0 %v4979
  %5015 = vmatprep.subr.mxu0 0.0
  %5016 = vmatpush1.msra.mxu0 %v4980
  %5017 = vmatprep.subr.mxu0 0.0
  %5018 = vmatpush1.msra.mxu0 %v4981
  %5019 = vmatprep.subr.mxu0 0.0
  %5020 = vmatpush1.msra.mxu0 %v4982
  %5021 = vmatprep.subr.mxu0 0.0
  %5022 = vmatpush1.msra.mxu0 %v4983
  %5023 = vmatprep.subr.mxu0 0.0
  %5024 = vmatpush1.msra.mxu0 0.0
  %5025 = vmatprep.subr.mxu0 0.0
  %5026 = vmatpush1.msra.mxu0 0.0
  %5027 = vmatprep.subr.mxu0 0.0
  %5028 = vmatpush1.msra.mxu0 0.0
  %5029 = vmatprep.subr.mxu0 0.0
  %5030 = vmatpush1.msra.mxu0 0.0
  %5031 = vmatprep.subr.mxu0 0.0
  %5032 = vmatpush1.msra.mxu0 0.0
  %5033 = vmatprep.subr.mxu0 0.0
  %5034 = vmatpush1.msra.mxu0 0.0
  %5035 = vmatprep.subr.mxu0 0.0
  %5036 = vmatpush1.msra.mxu0 0.0
  %5037 = vmatprep.subr.mxu0 0.0
  %5038 = vmatpush1.msra.mxu0 0.0
  %5039 = vmatprep.subr.mxu0 0.0
  %5040 = vmatpush1.msra.mxu0 0.0
  %5041 = vmatprep.subr.mxu0 0.0
  %5042 = vmatpush1.msra.mxu0 0.0
  %5043 = vmatprep.subr.mxu0 0.0
  %5044 = vmatpush1.msra.mxu0 0.0
  %5045 = vmatprep.subr.mxu0 0.0
  %5046 = vmatpush1.msra.mxu0 0.0
  %5047 = vmatprep.subr.mxu0 0.0
  %5048 = vmatpush1.msra.mxu0 0.0
  %5049 = vmatprep.subr.mxu0 0.0
  %5050 = vmatpush1.msra.mxu0 0.0
  %5051 = vmatprep.subr.mxu0 0.0
  %5052 = vmatpush1.msra.mxu0 0.0
  %5053 = vmatprep.subr.mxu0 0.0
  %5054 = vmatpush1.msra.mxu0 0.0
  %5055 = vmatprep.mubr.f32.mxu0 0.0
  %5056 = vmatmul.mubr.f32.gmra.mrb[0].mxu0 %v4967
  %v5057 = vpop.f32.mrb[0].mxu0
  %v5058 = vadd.f32 %v4989, %v5057
  %v5059 = vpop.f32.mrb[0].mxu0
  %5060 = vdwg.mxu0
  %v5061 = vmax.f32 %v5058, 0.0
  %v5062 = vld [vmem:[%s7] sm:$0xff]
  %v5063 = vld [vmem:[%s7 + $0x8] sm:$0xff]
  %v5064 = vld [vmem:[%s7 + $0x10] sm:$0xff]
  %v5065 = vld [vmem:[%s7 + $0x18] sm:$0xff]
  %v5066 = vld [vmem:[%s7 + $0x20] sm:$0xff]
  %v5067 = vld [vmem:[%s7 + $0x28] sm:$0xff]
  %v5068 = vld [vmem:[%s7 + $0x30] sm:$0xff]
  %v5069 = vld [vmem:[%s7 + $0x38] sm:$0xff]
  %v5070 = vld [vmem:[%s7 + $0x40] sm:$0xff]
  %v5071 = vld [vmem:[%s7 + $0x48] sm:$0xff]
  %v5072 = vld [vmem:[%s7 + $0x50] sm:$0xff]
  %v5073 = vld [vmem:[%s7 + $0x58] sm:$0xff]
  %v5074 = vld [vmem:[%s7 + $0x60] sm:$0xff]
  %v5075 = vld [vmem:[%s7 + $0x68] sm:$0xff]
  %v5076 = vld [vmem:[%s7 + $0x70] sm:$0xff]
  %v5077 = vld [vmem:[%s7 + $0x78] sm:$0xff]
  %v5078 = vld [vmem:[%s8] sm:$0x1]
  %v5080 = vlaneseq
  %v5081 = vshrl.u32 %v5080, 7
  %v5082 = vsub.s32 0, %v5081
  %v5083 = vrot.slane %v5078, %v5082
  %5085 = vmatprep.subr.mxu0 0.0
  %5086 = vmatpush1.msra.mxu0 %v5062
  %5087 = vmatprep.subr.mxu0 0.0
  %5088 = vmatpush1.msra.mxu0 %v5063
  %5089 = vmatprep.subr.mxu0 0.0
  %5090 = vmatpush1.msra.mxu0 %v5064
  %5091 = vmatprep.subr.mxu0 0.0
  %5092 = vmatpush1.msra.mxu0 %v5065
  %5093 = vmatprep.subr.mxu0 0.0
  %5094 = vmatpush1.msra.mxu0 %v5066
  %5095 = vmatprep.subr.mxu0 0.0
  %5096 = vmatpush1.msra.mxu0 %v5067
  %5097 = vmatprep.subr.mxu0 0.0
  %5098 = vmatpush1.msra.mxu0 %v5068
  %5099 = vmatprep.subr.mxu0 0.0
  %5100 = vmatpush1.msra.mxu0 %v5069
  %5101 = vmatprep.subr.mxu0 0.0
  %5102 = vmatpush1.msra.mxu0 %v5070
  %5103 = vmatprep.subr.mxu0 0.0
  %5104 = vmatpush1.msra.mxu0 %v5071
  %5105 = vmatprep.subr.mxu0 0.0
  %5106 = vmatpush1.msra.mxu0 %v5072
  %5107 = vmatprep.subr.mxu0 0.0
  %5108 = vmatpush1.msra.mxu0 %v5073
  %5109 = vmatprep.subr.mxu0 0.0
  %5110 = vmatpush1.msra.mxu0 %v5074
  %5111 = vmatprep.subr.mxu0 0.0
  %5112 = vmatpush1.msra.mxu0 %v5075
  %5113 = vmatprep.subr.mxu0 0.0
  %5114 = vmatpush1.msra.mxu0 %v5076
  %5115 = vmatprep.subr.mxu0 0.0
  %5116 = vmatpush1.msra.mxu0 %v5077
  %5117 = vmatprep.subr.mxu0 0.0
  %5118 = vmatpush1.msra.mxu0 0.0
  %5119 = vmatprep.subr.mxu0 0.0
  %5120 = vmatpush1.msra.mxu0 0.0
  %5121 = vmatprep.subr.mxu0 0.0
  %5122 = vmatpush1.msra.mxu0 0.0
  %5123 = vmatprep.subr.mxu0 0.0
  %5124 = vmatpush1.msra.mxu0 0.0
  %5125 = vmatprep.subr.mxu0 0.0
  %5126 = vmatpush1.msra.mxu0 0.0
  %5127 = vmatprep.subr.mxu0 0.0
  %5128 = vmatpush1.msra.mxu0 0.0
  %5129 = vmatprep.subr.mxu0 0.0
  %5130 = vmatpush1.msra.mxu0 0.0
  %5131 = vmatprep.subr.mxu0 0.0
  %5132 = vmatpush1.msra.mxu0 0.0
  %5133 = vmatprep.subr.mxu0 0.0
  %5134 = vmatpush1.msra.mxu0 0.0
  %5135 = vmatprep.subr.mxu0 0.0
  %5136 = vmatpush1.msra.mxu0 0.0
  %5137 = vmatprep.subr.mxu0 0.0
  %5138 = vmatpush1.msra.mxu0 0.0
  %5139 = vmatprep.subr.mxu0 0.0
  %5140 = vmatpush1.msra.mxu0 0.0
  %5141 = vmatprep.subr.mxu0 0.0
  %5142 = vmatpush1.msra.mxu0 0.0
  %5143 = vmatprep.subr.mxu0 0.0
  %5144 = vmatpush1.msra.mxu0 0.0
  %5145 = vmatprep.subr.mxu0 0.0
  %5146 = vmatpush1.msra.mxu0 0.0
  %5147 = vmatprep.subr.mxu0 0.0
  %5148 = vmatpush1.msra.mxu0 0.0
  %5149 = vmatprep.mubr.f32.mxu0 0.0
  %5150 = vmatmul.mubr.f32.gmra.mrb[0].mxu0 %v5061
  %v5151 = vpop.f32.mrb[0].mxu0
  %v5152 = vadd.f32 %v5083, %v5151
  %v5153 = vpop.f32.mrb[0].mxu0
  %5154 = vdwg.mxu0
  %vm5155 = vcmask 80896
  %5156 = vst.msk [vmem:[%s9] sm:$0xff] %vm5155, %v5152
  // Predicated region
  $region38: #{lenet_forward.3} parent=0 // pred_check
    _
  $region39: #{lenet_forward.3} parent=0 // pred_check_branch
    %5158 = sbr.rel (0) target = $region41
  $region40: #{lenet_forward.3} parent=0 // pred_region
    _
  $region41: #{lenet_forward.3} parent=0 // pred_fallthru
    _
  // Predicated region
  $region42: #{lenet_forward.3} parent=0 // pred_check
    _
  $region43: #{lenet_forward.3} parent=0 // pred_check_branch
    %5160 = sbr.rel (0) target = $region45
  $region44: #{lenet_forward.3} parent=0 // pred_region
    _
  $region45: #{lenet_forward.3} parent=0 // pred_fallthru
    _

</llo_original>
